<compile_context>
chip_gen: v7x
topology: tpu7x:2x2x1
jax: 0.10.0
libtpu: 0.0.40
codegen_flags: <defaults>
</compile_context>

<pallas_src>
import functools

import jax
import jax.numpy as jnp
from jax.experimental import pallas as pl
from jax.experimental.pallas import tpu as pltpu


HAND_SPECS = {"pose_6d": 6 * 16, "cam_t/wp": 3, "shape": 10}  # 96, 3, 10

# packed 128-lane state layout
_POSE, _SHAPE, _CAM = 96, 10, 3
_STATE = 128           # [0:96) pose | [96:106) shape | [106:109) cam | [109:112) cam_init | pad
_TK = 512              # K-tile used to stream the fused feat weight
_FUSED = 512 + 1024    # cam_init hidden (512) | refine hidden-1 (1024)


def _round_up(x, m):
    return (x + m - 1) // m * m


def _hmr_kernel(feat_ref, bigw_ref, bigb_ref,
                cw2_ref, cb2_ref, cw3_ref, cb3_ref,
                rw1s_ref, rw2_ref, rb2_ref, decw_ref, decb_ref,
                out_ref, acc_ref, *, n_iter):
    f32 = jnp.float32
    bf16 = jnp.bfloat16
    k = pl.program_id(1)
    nk = pl.num_programs(1)

    @pl.when(k == 0)
    def _():
        acc_ref[...] = jnp.zeros_like(acc_ref)

    # K-tiled accumulation of feat @ [cam_w1 | rw1_feat]  (computed once, hoisted
    # out of the refinement loop).
    acc_ref[...] += jnp.dot(feat_ref[...], bigw_ref[...], preferred_element_type=f32)

    @pl.when(k == nk - 1)
    def _():
        acc = acc_ref[...] + bigb_ref[...]              # (TB, 1536)
        h1 = jnp.maximum(acc[:, :512], 0.0)             # cam_init hidden-1 (post ReLU)
        feat_part = acc[:, 512:]                        # feat @ rw1_feat + rb1 (loop-invariant)

        # cam_init tail: Linear(512,512)+ReLU, then Linear(512,3) packed into the
        # 128-lane state layout (writes lanes 106:109 and a copy at 109:112).
        h2 = jnp.dot(h1.astype(bf16), cw2_ref[...], preferred_element_type=f32) + cb2_ref[...]
        h2 = jnp.maximum(h2, 0.0)
        cam_state = jnp.dot(h2.astype(bf16), cw3_ref[...], preferred_element_type=f32) + cb3_ref[...]

        # init state: identity 6d pose pattern ([1,0,0,0,1,0] x16), zero shape,
        # cam_init in the cam lanes (and preserved copy in lanes 109:112).
        lane = jax.lax.broadcasted_iota(jnp.int32, cam_state.shape, 1)
        m6 = lane % 6
        pose_init = jnp.where((lane < _POSE) & ((m6 == 0) | (m6 == 4)), 1.0, 0.0).astype(f32)
        state = cam_state + pose_init                   # (TB, 128)

        # HMRLayer: n_iter refinement steps (Dropout = identity in eval mode).
        for _ in range(n_iter):
            xc = feat_part + jnp.dot(state.astype(bf16), rw1s_ref[...],
                                     preferred_element_type=f32)
            xc = jnp.maximum(xc, 0.0)
            xc = jnp.dot(xc.astype(bf16), rw2_ref[...], preferred_element_type=f32) + rb2_ref[...]
            xc = jnp.maximum(xc, 0.0)
            # fused per-key decoders with residual update (pad / cam_init lanes are
            # zero in decw/decb, so they pass through unchanged).
            state = state + jnp.dot(xc.astype(bf16), decw_ref[...],
                                    preferred_element_type=f32) + decb_ref[...]

        out_ref[...] = state                            # single unmasked 128-wide store


def _rotation_6d_to_matrix(d6, eps=1e-12):
    # pytorch3d-style: F.normalize uses eps on the norm.
    a1, a2 = d6[..., :3], d6[..., 3:6]
    n1 = jnp.maximum(jnp.sqrt(jnp.sum(a1 * a1, axis=-1, keepdims=True)), eps)
    b1 = a1 / n1
    b2 = a2 - jnp.sum(b1 * a2, axis=-1, keepdims=True) * b1
    n2 = jnp.maximum(jnp.sqrt(jnp.sum(b2 * b2, axis=-1, keepdims=True)), eps)
    b2 = b2 / n2
    b3 = jnp.cross(b1, b2)
    return jnp.stack((b1, b2, b3), axis=-2)


def init_params(key, feat_dim):
    """Deterministic synthetic parameters matching HandHMR's layer shapes (f32)."""
    ks = jax.random.split(key, 11)

    def lin(k, fin, fout, scale=None):
        if scale is None:
            scale = 1.0 / (fin ** 0.5)
        w = jax.random.normal(k, (fin, fout), jnp.float32) * scale
        b = jnp.zeros((1, fout), jnp.float32)
        return w, b

    p = {}
    p["cam_w1"], p["cam_b1"] = lin(ks[0], feat_dim, 512)
    p["cam_w2"], p["cam_b2"] = lin(ks[1], 512, 512)
    p["cam_w3"], p["cam_b3"] = lin(ks[2], 512, 3)
    p["rw1_feat"], p["rb1"] = lin(ks[3], feat_dim, 1024)
    p["rw1_pose"], _ = lin(ks[4], HAND_SPECS["pose_6d"], 1024)
    p["rw1_shape"], _ = lin(ks[5], HAND_SPECS["shape"], 1024)
    p["rw1_cam"], _ = lin(ks[6], HAND_SPECS["cam_t/wp"], 1024)
    p["rw2"], p["rb2"] = lin(ks[7], 1024, 1024)
    p["dw_pose"], p["db_pose"] = lin(ks[8], 1024, HAND_SPECS["pose_6d"], scale=0.01 / 32.0)
    p["dw_cam"], p["db_cam"] = lin(ks[9], 1024, HAND_SPECS["cam_t/wp"], scale=0.01 / 32.0)
    p["dw_shape"], p["db_shape"] = lin(ks[10], 1024, HAND_SPECS["shape"], scale=0.01 / 32.0)
    return p


def pack_params(params, feat_dim):
    """Fuse / pad / cast parameters into the kernel layout (bf16 weights, f32 biases)."""
    f32, bf16 = jnp.float32, jnp.bfloat16
    f_pad = _round_up(feat_dim, _TK)

    # fused feat weight: [cam_init layer-1 | refine layer-1 feat part], K zero-padded.
    bigw = jnp.concatenate([params["cam_w1"], params["rw1_feat"]], axis=1)     # (F, 1536)
    bigw = jnp.pad(bigw, ((0, f_pad - feat_dim), (0, 0))).astype(bf16)
    bigb = jnp.concatenate([params["cam_b1"], params["rb1"]], axis=1).astype(f32)

    # cam_init layer-3 packed into the 128-lane state layout (cam at 106:109, copy at 109:112).
    cw3 = jnp.zeros((512, _STATE), f32)
    cw3 = cw3.at[:, 106:109].set(params["cam_w3"]).at[:, 109:112].set(params["cam_w3"])
    cb3 = jnp.zeros((1, _STATE), f32)
    cb3 = cb3.at[:, 106:109].set(params["cam_b3"]).at[:, 109:112].set(params["cam_b3"])

    # refine layer-1 state part: rows [pose | shape | cam | zeros].
    rw1s = jnp.concatenate(
        [params["rw1_pose"], params["rw1_shape"], params["rw1_cam"]], axis=0)  # (109, 1024)
    rw1s = jnp.pad(rw1s, ((0, _STATE - rw1s.shape[0]), (0, 0))).astype(bf16)

    # fused decoders: cols [pose | shape | cam | zeros].
    decw = jnp.concatenate(
        [params["dw_pose"], params["dw_shape"], params["dw_cam"]], axis=1)     # (1024, 109)
    decw = jnp.pad(decw, ((0, 0), (0, _STATE - decw.shape[1]))).astype(bf16)
    decb = jnp.concatenate(
        [params["db_pose"], params["db_shape"], params["db_cam"]], axis=1)
    decb = jnp.pad(decb, ((0, 0), (0, _STATE - decb.shape[1]))).astype(f32)

    return dict(
        bigw=bigw, bigb=bigb,
        cw2=params["cam_w2"].astype(bf16), cb2=params["cam_b2"].astype(f32),
        cw3=cw3.astype(bf16), cb3=cb3,
        rw1s=rw1s, rw2=params["rw2"].astype(bf16), rb2=params["rb2"].astype(f32),
        decw=decw, decb=decb,
    )


def hand_hmr_forward(feat, packed, n_iter=3):
    """feat: (B, C, H, W) float32 (NCHW, as in the PyTorch module)."""
    b = feat.shape[0]
    feat_flat = feat.reshape(b, -1).astype(jnp.float32)
    f = feat_flat.shape[1]
    f_pad = packed["bigw"].shape[0]
    nk = f_pad // _TK

    b_pad = _round_up(max(b, 8), 8)
    tb = min(b_pad, 128)
    b_pad = _round_up(b_pad, tb)
    nb = b_pad // tb

    feat_p = jnp.pad(feat_flat, ((0, b_pad - b), (0, f_pad - f))).astype(jnp.bfloat16)

    const = lambda i, k: (0, 0)
    in_specs = [
        pl.BlockSpec((tb, _TK), lambda i, k: (i, k)),        # feat tile (streams over K)
        pl.BlockSpec((_TK, _FUSED), lambda i, k: (k, 0)),    # fused feat weight tile
        pl.BlockSpec((1, _FUSED), const),                    # fused bias
        pl.BlockSpec((512, 512), const),                     # cam_init layer-2 W
        pl.BlockSpec((1, 512), const),                       # cam_init layer-2 b
        pl.BlockSpec((512, _STATE), const),                  # cam_init layer-3 W (packed)
        pl.BlockSpec((1, _STATE), const),                    # cam_init layer-3 b (packed)
        pl.BlockSpec((_STATE, 1024), const),                 # refine layer-1 state W (packed)
        pl.BlockSpec((1024, 1024), const),                   # refine layer-2 W
        pl.BlockSpec((1, 1024), const),                      # refine layer-2 b
        pl.BlockSpec((1024, _STATE), const),                 # fused decoders W (packed)
        pl.BlockSpec((1, _STATE), const),                    # fused decoders b (packed)
    ]
    out_spec = pl.BlockSpec((tb, _STATE), lambda i, k: (i, 0))

    # VMEM footprint estimate (double-buffer factor 2 on every BlockSpec input).
    bf2, f4 = 2, 4
    est = 2 * (tb * _TK * bf2 + _TK * _FUSED * bf2
               + 512 * 512 * bf2 + 512 * _STATE * bf2 + _STATE * 1024 * bf2
               + 1024 * 1024 * bf2 + 1024 * _STATE * bf2
               + (_FUSED + 512 + _STATE + 1024 + _STATE) * f4
               + tb * _STATE * f4)
    est += tb * _FUSED * f4  # accumulator scratch
    vmem_limit = int(min(48 * 1024 * 1024, max(32 * 1024 * 1024, est + 4 * 1024 * 1024)))

    kernel = functools.partial(_hmr_kernel, n_iter=n_iter)
    out = pl.pallas_call(
        kernel,
        out_shape=jax.ShapeDtypeStruct((b_pad, _STATE), jnp.float32),
        grid_spec=pltpu.PrefetchScalarGridSpec(
            num_scalar_prefetch=0,
            grid=(nb, nk),
            in_specs=in_specs,
            out_specs=out_spec,
            scratch_shapes=[pltpu.VMEM((tb, _FUSED), jnp.float32)],
        ),
        compiler_params=pltpu.CompilerParams(
            dimension_semantics=("parallel", "arbitrary"),
            vmem_limit_bytes=vmem_limit,
        ),
    )(feat_p, packed["bigw"], packed["bigb"], packed["cw2"], packed["cb2"],
      packed["cw3"], packed["cb3"], packed["rw1s"], packed["rw2"], packed["rb2"],
      packed["decw"], packed["decb"])

    out = out[:b]
    pose6d = out[:, :_POSE]
    shp = out[:, _POSE:_POSE + _SHAPE]
    cam = out[:, 106:109]
    cam_init = out[:, 109:112]

    # glue: rotation_6d_to_matrix on the final pose (tiny elementwise op)
    pred_rotmat = _rotation_6d_to_matrix(pose6d.reshape(-1, 6)).reshape(b, 16, 3, 3)

    # keys after pred_vdict.replace_keys('/', '.')
    return {
        "pose_6d": pose6d,
        "shape": shp,
        "cam_t.wp": cam,
        "pose": pred_rotmat,
        "cam_t.wp.init": cam_init,
    }


def _reference_forward(feat, params, n_iter=3):
    """Pure-JAX f32 reference of the PyTorch module (for a sanity check)."""
    b = feat.shape[0]
    x = feat.reshape(b, -1).astype(jnp.float32)
    h = jax.nn.relu(x @ params["cam_w1"] + params["cam_b1"])
    h = jax.nn.relu(h @ params["cam_w2"] + params["cam_b2"])
    cam = h @ params["cam_w3"] + params["cam_b3"]
    cam_init = cam
    pose = jnp.broadcast_to(
        jnp.tile(jnp.array([1.0, 0.0, 0.0, 0.0, 1.0, 0.0], jnp.float32), 16), (b, 96))
    shp = jnp.zeros((b, 10), jnp.float32)
    for _ in range(n_iter):
        xc = (x @ params["rw1_feat"] + pose @ params["rw1_pose"]
              + shp @ params["rw1_shape"] + cam @ params["rw1_cam"] + params["rb1"])
        xc = jax.nn.relu(xc)
        xc = jax.nn.relu(xc @ params["rw2"] + params["rb2"])
        pose = pose + xc @ params["dw_pose"] + params["db_pose"]
        cam = cam + xc @ params["dw_cam"] + params["db_cam"]
        shp = shp + xc @ params["dw_shape"] + params["db_shape"]
    return pose, shp, cam, cam_init


if __name__ == "__main__":
    key = jax.random.PRNGKey(0)
    kx, kp = jax.random.split(key)

    # small example input, NCHW; feat_dim = 4*16*16 = 1024 after flatten
    x = jax.random.normal(kx, (2, 4, 16, 16), jnp.float32)
    feat_dim = x.shape[1] * x.shape[2] * x.shape[3]
    params = init_params(kp, feat_dim)
    packed = pack_params(params, feat_dim)

    fwd = jax.jit(functools.partial(hand_hmr_forward, n_iter=3))
    out = fwd(x, packed)
    out = jax.block_until_ready(out)

    assert out["pose"].shape == (2, 16, 3, 3)
    assert out["pose_6d"].shape == (2, 96)
    assert out["shape"].shape == (2, 10)
    assert out["cam_t.wp"].shape == (2, 3)
    assert out["cam_t.wp.init"].shape == (2, 3)
    assert all(bool(jnp.all(jnp.isfinite(v))) for v in out.values())

    # numerical sanity check against the f32 reference (bf16 weights -> loose tol)
    ref_pose, ref_shp, ref_cam, ref_ci = _reference_forward(x, params, 3)
    for got, ref in ((out["pose_6d"], ref_pose), (out["shape"], ref_shp),
                     (out["cam_t.wp"], ref_cam), (out["cam_t.wp.init"], ref_ci)):
        assert float(jnp.max(jnp.abs(got - ref))) < 0.25

    print("KERNEL_OK")
</pallas_src>

<mosaic_0001>
module attributes {stable_mosaic.version = 11 : i64} {
  func.func @_hmr_kernel(%arg0: i32, %arg1: i32, %arg2: memref<8x512xbf16, #tpu.memory_space<vmem>>, %arg3: memref<512x1536xbf16, #tpu.memory_space<vmem>>, %arg4: memref<1x1536xf32, #tpu.memory_space<vmem>>, %arg5: memref<512x512xbf16, #tpu.memory_space<vmem>>, %arg6: memref<1x512xf32, #tpu.memory_space<vmem>>, %arg7: memref<512x128xbf16, #tpu.memory_space<vmem>>, %arg8: memref<1x128xf32, #tpu.memory_space<vmem>>, %arg9: memref<128x1024xbf16, #tpu.memory_space<vmem>>, %arg10: memref<1024x1024xbf16, #tpu.memory_space<vmem>>, %arg11: memref<1x1024xf32, #tpu.memory_space<vmem>>, %arg12: memref<1024x128xbf16, #tpu.memory_space<vmem>>, %arg13: memref<1x128xf32, #tpu.memory_space<vmem>>, %arg14: memref<8x128xf32, #tpu.memory_space<vmem>>, %arg15: memref<8x1536xf32, #tpu.memory_space<vmem>>) attributes {dimension_semantics = [#tpu.dimension_semantics<parallel>, #tpu.dimension_semantics<arbitrary>], iteration_bounds = array<i64: 1, 2>, scalar_prefetch = 0 : i64, scratch_operands = 1 : i64, tpu.core_type = #tpu.core_type<tc>, window_params = [{transform_indices = @transform_0, window_bounds = array<i64: 8, 512>}, {transform_indices = @transform_1, window_bounds = array<i64: 512, 1536>}, {pipeline_mode = #tpu.pipeline_mode<synchronous>, transform_indices = @transform_2, window_bounds = array<i64: 1, 1536>}, {pipeline_mode = #tpu.pipeline_mode<synchronous>, transform_indices = @transform_3, window_bounds = array<i64: 512, 512>}, {pipeline_mode = #tpu.pipeline_mode<synchronous>, transform_indices = @transform_4, window_bounds = array<i64: 1, 512>}, {pipeline_mode = #tpu.pipeline_mode<synchronous>, transform_indices = @transform_5, window_bounds = array<i64: 512, 128>}, {pipeline_mode = #tpu.pipeline_mode<synchronous>, transform_indices = @transform_6, window_bounds = array<i64: 1, 128>}, {pipeline_mode = #tpu.pipeline_mode<synchronous>, transform_indices = @transform_7, window_bounds = array<i64: 128, 1024>}, {pipeline_mode = #tpu.pipeline_mode<synchronous>, transform_indices = @transform_8, window_bounds = array<i64: 1024, 1024>}, {pipeline_mode = #tpu.pipeline_mode<synchronous>, transform_indices = @transform_9, window_bounds = array<i64: 1, 1024>}, {pipeline_mode = #tpu.pipeline_mode<synchronous>, transform_indices = @transform_10, window_bounds = array<i64: 1024, 128>}, {pipeline_mode = #tpu.pipeline_mode<synchronous>, transform_indices = @transform_11, window_bounds = array<i64: 1, 128>}, {transform_indices = @transform_12, window_bounds = array<i64: 8, 128>}]} {
    %c0_i32 = arith.constant 0 : i32
    %0 = arith.cmpi eq, %arg1, %c0_i32 : i32
    %1 = arith.extui %0 : i1 to i32
    %c0_i32_0 = arith.constant 0 : i32
    %2 = arith.cmpi ne, %1, %c0_i32_0 : i32
    scf.if %2 {
      %cst_9 = arith.constant 0.000000e+00 : f32
      %12 = vector.broadcast %cst_9 : f32 to vector<8x1536xf32>
      %c0_10 = arith.constant 0 : index
      %c0_11 = arith.constant 0 : index
      %13 = vector.load %arg15[%c0_10, %c0_11] : memref<8x1536xf32, #tpu.memory_space<vmem>>, vector<8x1536xf32>
      tpu.vector_store %arg15[%c0_10, %c0_11], %12 {strides = array<i32>} : memref<8x1536xf32, #tpu.memory_space<vmem>>, vector<8x1536xf32>,
    } else {
    }
    %c0 = arith.constant 0 : index
    %c0_1 = arith.constant 0 : index
    %3 = vector.load %arg15[%c0, %c0_1] : memref<8x1536xf32, #tpu.memory_space<vmem>>, vector<8x1536xf32>
    %c0_2 = arith.constant 0 : index
    %c0_3 = arith.constant 0 : index
    %4 = vector.load %arg2[%c0_2, %c0_3] : memref<8x512xbf16, #tpu.memory_space<vmem>>, vector<8x512xbf16>
    %c0_4 = arith.constant 0 : index
    %c0_5 = arith.constant 0 : index
    %5 = vector.load %arg3[%c0_4, %c0_5] : memref<512x1536xbf16, #tpu.memory_space<vmem>>, vector<512x1536xbf16>
    %cst = arith.constant dense<0.000000e+00> : vector<8x1536xf32>
    %6 = tpu.matmul %4, %5, %cst {dimension_numbers = #tpu.dot_dimension_numbers<[1], [0], [0], [1], [0, 0, 1, 1], [], []>} : vector<8x512xbf16>, vector<512x1536xbf16>, vector<8x1536xf32> -> vector<8x1536xf32>
    %7 = arith.addf %3, %6 : vector<8x1536xf32>
    %c0_6 = arith.constant 0 : index
    %c0_7 = arith.constant 0 : index
    %8 = vector.load %arg15[%c0_6, %c0_7] : memref<8x1536xf32, #tpu.memory_space<vmem>>, vector<8x1536xf32>
    tpu.vector_store %arg15[%c0_6, %c0_7], %7 {strides = array<i32>} : memref<8x1536xf32, #tpu.memory_space<vmem>>, vector<8x1536xf32>,
    %c1_i32 = arith.constant 1 : i32
    %9 = arith.cmpi eq, %arg1, %c1_i32 : i32
    %10 = arith.extui %9 : i1 to i32
    %c0_i32_8 = arith.constant 0 : i32
    %11 = arith.cmpi ne, %10, %c0_i32_8 : i32
    scf.if %11 {
      %c0_9 = arith.constant 0 : index
      %c0_10 = arith.constant 0 : index
      %12 = vector.load %arg15[%c0_9, %c0_10] : memref<8x1536xf32, #tpu.memory_space<vmem>>, vector<8x1536xf32>
      %c0_11 = arith.constant 0 : index
      %c0_12 = arith.constant 0 : index
      %13 = vector.load %arg4[%c0_11, %c0_12] : memref<1x1536xf32, #tpu.memory_space<vmem>>, vector<1x1536xf32>
      %14 = vector.broadcast %13 : vector<1x1536xf32> to vector<8x1536xf32>
      %15 = arith.addf %12, %14 : vector<8x1536xf32>
      %16 = vector.extract_strided_slice %15 {offsets = [0, 0], sizes = [8, 512], strides = [1, 1]} : vector<8x1536xf32> to vector<8x512xf32>
      %cst_13 = arith.constant 0.000000e+00 : f32
      %17 = vector.broadcast %cst_13 : f32 to vector<8x512xf32>
      %18 = arith.maximumf %16, %17 : vector<8x512xf32>
      %19 = vector.extract_strided_slice %15 {offsets = [0, 512], sizes = [8, 1024], strides = [1, 1]} : vector<8x1536xf32> to vector<8x1024xf32>
      %20 = arith.truncf %18 : vector<8x512xf32> to vector<8x512xbf16>
      %c0_14 = arith.constant 0 : index
      %c0_15 = arith.constant 0 : index
      %21 = vector.load %arg5[%c0_14, %c0_15] : memref<512x512xbf16, #tpu.memory_space<vmem>>, vector<512x512xbf16>
      %cst_16 = arith.constant dense<0.000000e+00> : vector<8x512xf32>
      %22 = tpu.matmul %20, %21, %cst_16 {dimension_numbers = #tpu.dot_dimension_numbers<[1], [0], [0], [1], [0, 0, 1, 1], [], []>} : vector<8x512xbf16>, vector<512x512xbf16>, vector<8x512xf32> -> vector<8x512xf32>
      %c0_17 = arith.constant 0 : index
      %c0_18 = arith.constant 0 : index
      %23 = vector.load %arg6[%c0_17, %c0_18] : memref<1x512xf32, #tpu.memory_space<vmem>>, vector<1x512xf32>
      %24 = vector.broadcast %23 : vector<1x512xf32> to vector<8x512xf32>
      %25 = arith.addf %22, %24 : vector<8x512xf32>
      %cst_19 = arith.constant 0.000000e+00 : f32
      %26 = vector.broadcast %cst_19 : f32 to vector<8x512xf32>
      %27 = arith.maximumf %25, %26 : vector<8x512xf32>
      %28 = arith.truncf %27 : vector<8x512xf32> to vector<8x512xbf16>
      %c0_20 = arith.constant 0 : index
      %c0_21 = arith.constant 0 : index
      %29 = vector.load %arg7[%c0_20, %c0_21] : memref<512x128xbf16, #tpu.memory_space<vmem>>, vector<512x128xbf16>
      %cst_22 = arith.constant dense<0.000000e+00> : vector<8x128xf32>
      %30 = tpu.matmul %28, %29, %cst_22 {dimension_numbers = #tpu.dot_dimension_numbers<[1], [0], [0], [1], [0, 0, 1, 1], [], []>} : vector<8x512xbf16>, vector<512x128xbf16>, vector<8x128xf32> -> vector<8x128xf32>
      %c0_23 = arith.constant 0 : index
      %c0_24 = arith.constant 0 : index
      %31 = vector.load %arg8[%c0_23, %c0_24] : memref<1x128xf32, #tpu.memory_space<vmem>>, vector<1x128xf32>
      %32 = vector.broadcast %31 : vector<1x128xf32> to vector<8x128xf32>
      %33 = arith.addf %30, %32 : vector<8x128xf32>
      %34 = tpu.iota {dimensions = array<i32: 1>} : vector<8x128xi32>
      %c6_i32 = arith.constant 6 : i32
      %c0_i32_25 = arith.constant 0 : i32
      %35 = arith.cmpi eq, %c6_i32, %c0_i32_25 : i32
      %c1_i32_26 = arith.constant 1 : i32
      %36 = arith.select %35, %c1_i32_26, %c6_i32 : i32
      %37 = vector.broadcast %36 : i32 to vector<8x128xi32>
      %38 = arith.remsi %34, %37 : vector<8x128xi32>
      %c0_i32_27 = arith.constant 0 : i32
      %39 = vector.broadcast %c0_i32_27 : i32 to vector<8x128xi32>
      %40 = arith.cmpi ne, %38, %39 : vector<8x128xi32>
      %c0_i32_28 = arith.constant 0 : i32
      %41 = vector.broadcast %c0_i32_28 : i32 to vector<8x128xi32>
      %42 = arith.cmpi slt, %38, %41 : vector<8x128xi32>
      %c0_i32_29 = arith.constant 0 : i32
      %43 = arith.cmpi slt, %36, %c0_i32_29 : i32
      %44 = vector.broadcast %43 : i1 to vector<8x128xi1>
      %45 = vector.broadcast %44 : vector<8x128xi1> to vector<8x128xi1>
      %46 = arith.xori %42, %45 : vector<8x128xi1>
      %47 = arith.andi %46, %40 : vector<8x128xi1>
      %48 = vector.broadcast %36 : i32 to vector<8x128xi32>
      %49 = arith.addi %38, %48 : vector<8x128xi32>
      %50 = arith.select %47, %49, %38 : vector<8x128xi1>, vector<8x128xi32>
      %c96_i32 = arith.constant 96 : i32
      %51 = vector.broadcast %c96_i32 : i32 to vector<8x128xi32>
      %52 = arith.cmpi slt, %34, %51 : vector<8x128xi32>
      %c0_i32_30 = arith.constant 0 : i32
      %53 = vector.broadcast %c0_i32_30 : i32 to vector<8x128xi32>
      %54 = arith.cmpi eq, %50, %53 : vector<8x128xi32>
      %c4_i32 = arith.constant 4 : i32
      %55 = vector.broadcast %c4_i32 : i32 to vector<8x128xi32>
      %56 = arith.cmpi eq, %50, %55 : vector<8x128xi32>
      %57 = arith.ori %54, %56 : vector<8x128xi1>
      %58 = arith.andi %52, %57 : vector<8x128xi1>
      %cst_31 = arith.constant 1.000000e+00 : f32
      %cst_32 = arith.constant 0.000000e+00 : f32
      %59 = vector.broadcast %cst_31 : f32 to vector<8x128xf32>
      %60 = vector.broadcast %cst_32 : f32 to vector<8x128xf32>
      %61 = arith.select %58, %59, %60 : vector<8x128xi1>, vector<8x128xf32>
      %62 = arith.addf %33, %61 : vector<8x128xf32>
      %63 = arith.truncf %62 : vector<8x128xf32> to vector<8x128xbf16>
      %c0_33 = arith.constant 0 : index
      %c0_34 = arith.constant 0 : index
      %64 = vector.load %arg9[%c0_33, %c0_34] : memref<128x1024xbf16, #tpu.memory_space<vmem>>, vector<128x1024xbf16>
      %cst_35 = arith.constant dense<0.000000e+00> : vector<8x1024xf32>
      %65 = tpu.matmul %63, %64, %cst_35 {dimension_numbers = #tpu.dot_dimension_numbers<[1], [0], [0], [1], [0, 0, 1, 1], [], []>} : vector<8x128xbf16>, vector<128x1024xbf16>, vector<8x1024xf32> -> vector<8x1024xf32>
      %66 = arith.addf %19, %65 : vector<8x1024xf32>
      %cst_36 = arith.constant 0.000000e+00 : f32
      %67 = vector.broadcast %cst_36 : f32 to vector<8x1024xf32>
      %68 = arith.maximumf %66, %67 : vector<8x1024xf32>
      %69 = arith.truncf %68 : vector<8x1024xf32> to vector<8x1024xbf16>
      %c0_37 = arith.constant 0 : index
      %c0_38 = arith.constant 0 : index
      %70 = vector.load %arg10[%c0_37, %c0_38] : memref<1024x1024xbf16, #tpu.memory_space<vmem>>, vector<1024x1024xbf16>
      %cst_39 = arith.constant dense<0.000000e+00> : vector<8x1024xf32>
      %71 = tpu.matmul %69, %70, %cst_39 {dimension_numbers = #tpu.dot_dimension_numbers<[1], [0], [0], [1], [0, 0, 1, 1], [], []>} : vector<8x1024xbf16>, vector<1024x1024xbf16>, vector<8x1024xf32> -> vector<8x1024xf32>
      %c0_40 = arith.constant 0 : index
      %c0_41 = arith.constant 0 : index
      %72 = vector.load %arg11[%c0_40, %c0_41] : memref<1x1024xf32, #tpu.memory_space<vmem>>, vector<1x1024xf32>
      %73 = vector.broadcast %72 : vector<1x1024xf32> to vector<8x1024xf32>
      %74 = arith.addf %71, %73 : vector<8x1024xf32>
      %cst_42 = arith.constant 0.000000e+00 : f32
      %75 = vector.broadcast %cst_42 : f32 to vector<8x1024xf32>
      %76 = arith.maximumf %74, %75 : vector<8x1024xf32>
      %77 = arith.truncf %76 : vector<8x1024xf32> to vector<8x1024xbf16>
      %c0_43 = arith.constant 0 : index
      %c0_44 = arith.constant 0 : index
      %78 = vector.load %arg12[%c0_43, %c0_44] : memref<1024x128xbf16, #tpu.memory_space<vmem>>, vector<1024x128xbf16>
      %cst_45 = arith.constant dense<0.000000e+00> : vector<8x128xf32>
      %79 = tpu.matmul %77, %78, %cst_45 {dimension_numbers = #tpu.dot_dimension_numbers<[1], [0], [0], [1], [0, 0, 1, 1], [], []>} : vector<8x1024xbf16>, vector<1024x128xbf16>, vector<8x128xf32> -> vector<8x128xf32>
      %80 = arith.addf %62, %79 : vector<8x128xf32>
      %c0_46 = arith.constant 0 : index
      %c0_47 = arith.constant 0 : index
      %81 = vector.load %arg13[%c0_46, %c0_47] : memref<1x128xf32, #tpu.memory_space<vmem>>, vector<1x128xf32>
      %82 = vector.broadcast %81 : vector<1x128xf32> to vector<8x128xf32>
      %83 = arith.addf %80, %82 : vector<8x128xf32>
      %84 = arith.truncf %83 : vector<8x128xf32> to vector<8x128xbf16>
      %c0_48 = arith.constant 0 : index
      %c0_49 = arith.constant 0 : index
      %85 = vector.load %arg9[%c0_48, %c0_49] : memref<128x1024xbf16, #tpu.memory_space<vmem>>, vector<128x1024xbf16>
      %cst_50 = arith.constant dense<0.000000e+00> : vector<8x1024xf32>
      %86 = tpu.matmul %84, %85, %cst_50 {dimension_numbers = #tpu.dot_dimension_numbers<[1], [0], [0], [1], [0, 0, 1, 1], [], []>} : vector<8x128xbf16>, vector<128x1024xbf16>, vector<8x1024xf32> -> vector<8x1024xf32>
      %87 = arith.addf %19, %86 : vector<8x1024xf32>
      %cst_51 = arith.constant 0.000000e+00 : f32
      %88 = vector.broadcast %cst_51 : f32 to vector<8x1024xf32>
      %89 = arith.maximumf %87, %88 : vector<8x1024xf32>
      %90 = arith.truncf %89 : vector<8x1024xf32> to vector<8x1024xbf16>
      %c0_52 = arith.constant 0 : index
      %c0_53 = arith.constant 0 : index
      %91 = vector.load %arg10[%c0_52, %c0_53] : memref<1024x1024xbf16, #tpu.memory_space<vmem>>, vector<1024x1024xbf16>
      %cst_54 = arith.constant dense<0.000000e+00> : vector<8x1024xf32>
      %92 = tpu.matmul %90, %91, %cst_54 {dimension_numbers = #tpu.dot_dimension_numbers<[1], [0], [0], [1], [0, 0, 1, 1], [], []>} : vector<8x1024xbf16>, vector<1024x1024xbf16>, vector<8x1024xf32> -> vector<8x1024xf32>
      %c0_55 = arith.constant 0 : index
      %c0_56 = arith.constant 0 : index
      %93 = vector.load %arg11[%c0_55, %c0_56] : memref<1x1024xf32, #tpu.memory_space<vmem>>, vector<1x1024xf32>
      %94 = vector.broadcast %93 : vector<1x1024xf32> to vector<8x1024xf32>
      %95 = arith.addf %92, %94 : vector<8x1024xf32>
      %cst_57 = arith.constant 0.000000e+00 : f32
      %96 = vector.broadcast %cst_57 : f32 to vector<8x1024xf32>
      %97 = arith.maximumf %95, %96 : vector<8x1024xf32>
      %98 = arith.truncf %97 : vector<8x1024xf32> to vector<8x1024xbf16>
      %c0_58 = arith.constant 0 : index
      %c0_59 = arith.constant 0 : index
      %99 = vector.load %arg12[%c0_58, %c0_59] : memref<1024x128xbf16, #tpu.memory_space<vmem>>, vector<1024x128xbf16>
      %cst_60 = arith.constant dense<0.000000e+00> : vector<8x128xf32>
      %100 = tpu.matmul %98, %99, %cst_60 {dimension_numbers = #tpu.dot_dimension_numbers<[1], [0], [0], [1], [0, 0, 1, 1], [], []>} : vector<8x1024xbf16>, vector<1024x128xbf16>, vector<8x128xf32> -> vector<8x128xf32>
      %101 = arith.addf %83, %100 : vector<8x128xf32>
      %c0_61 = arith.constant 0 : index
      %c0_62 = arith.constant 0 : index
      %102 = vector.load %arg13[%c0_61, %c0_62] : memref<1x128xf32, #tpu.memory_space<vmem>>, vector<1x128xf32>
      %103 = vector.broadcast %102 : vector<1x128xf32> to vector<8x128xf32>
      %104 = arith.addf %101, %103 : vector<8x128xf32>
      %105 = arith.truncf %104 : vector<8x128xf32> to vector<8x128xbf16>
      %c0_63 = arith.constant 0 : index
      %c0_64 = arith.constant 0 : index
      %106 = vector.load %arg9[%c0_63, %c0_64] : memref<128x1024xbf16, #tpu.memory_space<vmem>>, vector<128x1024xbf16>
      %cst_65 = arith.constant dense<0.000000e+00> : vector<8x1024xf32>
      %107 = tpu.matmul %105, %106, %cst_65 {dimension_numbers = #tpu.dot_dimension_numbers<[1], [0], [0], [1], [0, 0, 1, 1], [], []>} : vector<8x128xbf16>, vector<128x1024xbf16>, vector<8x1024xf32> -> vector<8x1024xf32>
      %108 = arith.addf %19, %107 : vector<8x1024xf32>
      %cst_66 = arith.constant 0.000000e+00 : f32
      %109 = vector.broadcast %cst_66 : f32 to vector<8x1024xf32>
      %110 = arith.maximumf %108, %109 : vector<8x1024xf32>
      %111 = arith.truncf %110 : vector<8x1024xf32> to vector<8x1024xbf16>
      %c0_67 = arith.constant 0 : index
      %c0_68 = arith.constant 0 : index
      %112 = vector.load %arg10[%c0_67, %c0_68] : memref<1024x1024xbf16, #tpu.memory_space<vmem>>, vector<1024x1024xbf16>
      %cst_69 = arith.constant dense<0.000000e+00> : vector<8x1024xf32>
      %113 = tpu.matmul %111, %112, %cst_69 {dimension_numbers = #tpu.dot_dimension_numbers<[1], [0], [0], [1], [0, 0, 1, 1], [], []>} : vector<8x1024xbf16>, vector<1024x1024xbf16>, vector<8x1024xf32> -> vector<8x1024xf32>
      %c0_70 = arith.constant 0 : index
      %c0_71 = arith.constant 0 : index
      %114 = vector.load %arg11[%c0_70, %c0_71] : memref<1x1024xf32, #tpu.memory_space<vmem>>, vector<1x1024xf32>
      %115 = vector.broadcast %114 : vector<1x1024xf32> to vector<8x1024xf32>
      %116 = arith.addf %113, %115 : vector<8x1024xf32>
      %cst_72 = arith.constant 0.000000e+00 : f32
      %117 = vector.broadcast %cst_72 : f32 to vector<8x1024xf32>
      %118 = arith.maximumf %116, %117 : vector<8x1024xf32>
      %119 = arith.truncf %118 : vector<8x1024xf32> to vector<8x1024xbf16>
      %c0_73 = arith.constant 0 : index
      %c0_74 = arith.constant 0 : index
      %120 = vector.load %arg12[%c0_73, %c0_74] : memref<1024x128xbf16, #tpu.memory_space<vmem>>, vector<1024x128xbf16>
      %cst_75 = arith.constant dense<0.000000e+00> : vector<8x128xf32>
      %121 = tpu.matmul %119, %120, %cst_75 {dimension_numbers = #tpu.dot_dimension_numbers<[1], [0], [0], [1], [0, 0, 1, 1], [], []>} : vector<8x1024xbf16>, vector<1024x128xbf16>, vector<8x128xf32> -> vector<8x128xf32>
      %122 = arith.addf %104, %121 : vector<8x128xf32>
      %c0_76 = arith.constant 0 : index
      %c0_77 = arith.constant 0 : index
      %123 = vector.load %arg13[%c0_76, %c0_77] : memref<1x128xf32, #tpu.memory_space<vmem>>, vector<1x128xf32>
      %124 = vector.broadcast %123 : vector<1x128xf32> to vector<8x128xf32>
      %125 = arith.addf %122, %124 : vector<8x128xf32>
      %c0_78 = arith.constant 0 : index
      %c0_79 = arith.constant 0 : index
      %126 = vector.load %arg14[%c0_78, %c0_79] : memref<8x128xf32, #tpu.memory_space<vmem>>, vector<8x128xf32>
      tpu.vector_store %arg14[%c0_78, %c0_79], %125 {strides = array<i32>} : memref<8x128xf32, #tpu.memory_space<vmem>>, vector<8x128xf32>,
    } else {
    }
    return
  }
  func.func @transform_0(%arg0: i32, %arg1: i32) -> (i32, i32) {
    %c0_i32 = arith.constant 0 : i32
    return %arg0, %arg1 : i32, i32
  }
  func.func @transform_1(%arg0: i32, %arg1: i32) -> (i32, i32) {
    %c0_i32 = arith.constant 0 : i32
    %c0_i32_0 = arith.constant 0 : i32
    return %arg1, %c0_i32 : i32, i32
  }
  func.func @transform_2(%arg0: i32, %arg1: i32) -> (i32, i32) {
    %c0_i32 = arith.constant 0 : i32
    %c0_i32_0 = arith.constant 0 : i32
    %c0_i32_1 = arith.constant 0 : i32
    return %c0_i32, %c0_i32_0 : i32, i32
  }
  func.func @transform_3(%arg0: i32, %arg1: i32) -> (i32, i32) {
    %c0_i32 = arith.constant 0 : i32
    %c0_i32_0 = arith.constant 0 : i32
    %c0_i32_1 = arith.constant 0 : i32
    return %c0_i32, %c0_i32_0 : i32, i32
  }
  func.func @transform_4(%arg0: i32, %arg1: i32) -> (i32, i32) {
    %c0_i32 = arith.constant 0 : i32
    %c0_i32_0 = arith.constant 0 : i32
    %c0_i32_1 = arith.constant 0 : i32
    return %c0_i32, %c0_i32_0 : i32, i32
  }
  func.func @transform_5(%arg0: i32, %arg1: i32) -> (i32, i32) {
    %c0_i32 = arith.constant 0 : i32
    %c0_i32_0 = arith.constant 0 : i32
    %c0_i32_1 = arith.constant 0 : i32
    return %c0_i32, %c0_i32_0 : i32, i32
  }
  func.func @transform_6(%arg0: i32, %arg1: i32) -> (i32, i32) {
    %c0_i32 = arith.constant 0 : i32
    %c0_i32_0 = arith.constant 0 : i32
    %c0_i32_1 = arith.constant 0 : i32
    return %c0_i32, %c0_i32_0 : i32, i32
  }
  func.func @transform_7(%arg0: i32, %arg1: i32) -> (i32, i32) {
    %c0_i32 = arith.constant 0 : i32
    %c0_i32_0 = arith.constant 0 : i32
    %c0_i32_1 = arith.constant 0 : i32
    return %c0_i32, %c0_i32_0 : i32, i32
  }
  func.func @transform_8(%arg0: i32, %arg1: i32) -> (i32, i32) {
    %c0_i32 = arith.constant 0 : i32
    %c0_i32_0 = arith.constant 0 : i32
    %c0_i32_1 = arith.constant 0 : i32
    return %c0_i32, %c0_i32_0 : i32, i32
  }
  func.func @transform_9(%arg0: i32, %arg1: i32) -> (i32, i32) {
    %c0_i32 = arith.constant 0 : i32
    %c0_i32_0 = arith.constant 0 : i32
    %c0_i32_1 = arith.constant 0 : i32
    return %c0_i32, %c0_i32_0 : i32, i32
  }
  func.func @transform_10(%arg0: i32, %arg1: i32) -> (i32, i32) {
    %c0_i32 = arith.constant 0 : i32
    %c0_i32_0 = arith.constant 0 : i32
    %c0_i32_1 = arith.constant 0 : i32
    return %c0_i32, %c0_i32_0 : i32, i32
  }
  func.func @transform_11(%arg0: i32, %arg1: i32) -> (i32, i32) {
    %c0_i32 = arith.constant 0 : i32
    %c0_i32_0 = arith.constant 0 : i32
    %c0_i32_1 = arith.constant 0 : i32
    return %c0_i32, %c0_i32_0 : i32, i32
  }
  func.func @transform_12(%arg0: i32, %arg1: i32) -> (i32, i32) {
    %c0_i32 = arith.constant 0 : i32
    %c0_i32_0 = arith.constant 0 : i32
    return %arg0, %c0_i32 : i32, i32
  }
}

</mosaic_0001>

<llo_original>
// kernel: hand_hmr_forward.1
$region0: #{hand_hmr_forward.1}
  #allocation0 [shape = 'u32[]', space=smem, size = 0x4, offset = 0x4, fixed_abs, tag = 'smem constant byte address 0x4 - core index']
  #allocation1 [shape = 'u32[144,128]{1,0:T(1,128)}', space=vmem, size = 0x12000, scoped, tag = 'internal scratch']
  #allocation2 [shape = 'f32[8,1536]{1,0:T(8,128)}', space=vmem, size = 0xc000, scoped, tag = 'scratch operand']
  %s0 = inlined_call_operand.vmem [shape: bf16[8,1024], index: 0, kind: input, shape index: {}]
  %s1 = inlined_call_operand.hbm [shape: bf16[1024,1536], index: 1, kind: input, shape index: {}]
  %s2 = inlined_call_operand.hbm [shape: f32[1,1536], index: 2, kind: input, shape index: {}]
  %s3 = inlined_call_operand.hbm [shape: bf16[512,512], index: 3, kind: input, shape index: {}]
  %s4 = inlined_call_operand.hbm [shape: f32[1,512], index: 4, kind: input, shape index: {}]
  %s5 = inlined_call_operand.hbm [shape: bf16[512,128], index: 5, kind: input, shape index: {}]
  %s6 = inlined_call_operand.hbm [shape: f32[1,128], index: 6, kind: input, shape index: {}]
  %s7 = inlined_call_operand.hbm [shape: bf16[128,1024], index: 7, kind: input, shape index: {}]
  %s8 = inlined_call_operand.hbm [shape: bf16[1024,1024], index: 8, kind: input, shape index: {}]
  %s9 = inlined_call_operand.hbm [shape: f32[1,1024], index: 9, kind: input, shape index: {}]
  %s10 = inlined_call_operand.hbm [shape: bf16[1024,128], index: 10, kind: input, shape index: {}]
  %s11 = inlined_call_operand.hbm [shape: f32[1,128], index: 11, kind: input, shape index: {}]
  %s12 = inlined_call_operand.vmem [shape: f32[8,128], index: 12, kind: output, shape index: {}]
  %s13 = sld [smem:[#allocation0]]
  $region133: #{hand_hmr_forward.1} parent=0
    _
  %s15 = ssub.s32 1, %s13
  %s16 = scalar_select 0, %s15, %s13
  $region1: #{hand_hmr_forward.1} parent=0
    #allocation3 [shape = 'u8[3145728]{0}', space=vmem, size = 0x300000, scoped, tag = 'input window, operand 1']
    #allocation4 [shape = 's32[2]{0}', space=sflag, size = 0x8, scoped, tag = 'scoped memory for hand_hmr_forward.1']
    #allocation5 [shape = 'u8[6144]{0}', space=vmem, size = 0x1800, scoped, tag = 'input window, operand 2, single buffered']
    #allocation6 [shape = 's32[1]{0}', space=sflag, size = 0x4, scoped, tag = 'scoped memory for hand_hmr_forward.1']
    #allocation7 [shape = 'u8[524288]{0}', space=vmem, size = 0x80000, scoped, tag = 'input window, operand 3, single buffered']
    #allocation8 [shape = 'u8[2048]{0}', space=vmem, size = 0x800, scoped, tag = 'input window, operand 4, single buffered']
    #allocation9 [shape = 's32[1]{0}', space=sflag, size = 0x4, scoped, tag = 'scoped memory for hand_hmr_forward.1']
    #allocation10 [shape = 'u8[131072]{0}', space=vmem, size = 0x20000, scoped, tag = 'input window, operand 5, single buffered']
    #allocation11 [shape = 'u8[512]{0}', space=vmem, size = 0x400, scoped, tag = 'input window, operand 6, single buffered']
    #allocation12 [shape = 's32[1]{0}', space=sflag, size = 0x4, scoped, tag = 'scoped memory for hand_hmr_forward.1']
    #allocation13 [shape = 'u8[262144]{0}', space=vmem, size = 0x40000, scoped, tag = 'input window, operand 7, single buffered']
    #allocation14 [shape = 'u8[2097152]{0}', space=vmem, size = 0x200000, scoped, tag = 'input window, operand 8, single buffered']
    #allocation15 [shape = 's32[1]{0}', space=sflag, size = 0x4, scoped, tag = 'scoped memory for hand_hmr_forward.1']
    #allocation16 [shape = 'u8[4096]{0}', space=vmem, size = 0x1000, scoped, tag = 'input window, operand 9, single buffered']
    #allocation17 [shape = 'u8[262144]{0}', space=vmem, size = 0x40000, scoped, tag = 'input window, operand 10, single buffered']
    #allocation18 [shape = 's32[1]{0}', space=sflag, size = 0x4, scoped, tag = 'scoped memory for hand_hmr_forward.1']
    #allocation19 [shape = 'u8[512]{0}', space=vmem, size = 0x400, scoped, tag = 'input window, operand 11, single buffered']
    %17 = vsyncpa [#allocation4], 0
    %s18 = scalar_lea.sflag [#allocation4], 1
    %19 = vsyncpa %s18, 0
    %20 = vsyncpa [#allocation6], 0
    %21 = vsyncpa [#allocation9], 0
    %22 = vsyncpa [#allocation12], 0
    %23 = vsyncpa [#allocation15], 0
    %24 = vsyncpa [#allocation18], 0
    loop: start=0, step=1, limit=4
    $region2: #{hand_hmr_forward.1} parent=1 // loop_pre_header
      _
    $region3: #{hand_hmr_forward.1} parent=1 // loop_header
      %s26 = sphi 0, %s30
      %p27 = scmp.ge.s32.totalorder %s26, 4
      %s33 = sphi 0, %s45
      %s34 = sphi 0, %s41
      %s35 = sphi 0, %s33
      %s36 = sphi 0, %s34
      %s37 = sphi 0, %s35
      %s38 = sphi 0, %s36
      %s50 = sphi 0, %s52
      %s53 = sphi 0, %s50
      %s54 = sphi 0, %s53
      %s70 = sphi 0, %s54
      %s76 = sphi 0, %s78
      %s79 = sphi 0, %s76
      %s80 = sphi 0, %s79
      %s96 = sphi 0, %s80
      %s100 = sphi 0, %s100
      %s102 = sphi 0, %s100
      %s103 = sphi 0, %s102
      %s117 = sphi 0, %s103
      %s121 = sphi 0, %s121
      %s123 = sphi 0, %s121
      %s124 = sphi 0, %s123
      %s138 = sphi 0, %s124
      %s142 = sphi 0, %s142
      %s144 = sphi 0, %s142
      %s145 = sphi 0, %s144
      %s159 = sphi 0, %s145
      %s163 = sphi 0, %s163
      %s165 = sphi 0, %s163
      %s166 = sphi 0, %s165
      %s180 = sphi 0, %s166
      %s184 = sphi 0, %s184
      %s186 = sphi 0, %s184
      %s187 = sphi 0, %s186
      %s201 = sphi 0, %s187
      %s205 = sphi 0, %s205
      %s207 = sphi 0, %s205
      %s208 = sphi 0, %s207
      %s222 = sphi 0, %s208
      %s226 = sphi 0, %s226
      %s228 = sphi 0, %s226
      %s229 = sphi 0, %s228
      %s243 = sphi 0, %s229
      %s247 = sphi 0, %s247
      %s249 = sphi 0, %s247
      %s250 = sphi 0, %s249
      %s264 = sphi 0, %s250
      %s268 = sphi 0, %s268
      %s270 = sphi 0, %s268
      %s271 = sphi 0, %s270
      %s285 = sphi 0, %s271
      %s289 = sphi 0, %s289
      %s291 = sphi 0, %s289
      %s292 = sphi 0, %s291
      %s306 = sphi 0, %s292
      %s312 = sphi 0, %s314
      %s315 = sphi 0, %s312
      %s316 = sphi 0, %s315
      %s332 = sphi 0, %s316
    $region4: #{hand_hmr_forward.1} parent=1 // loop_header_branch
      %29 = sbr.rel (%p27) target = $region8
    $region5: #{hand_hmr_forward.1} parent=1 // loop_body
      %s31 = ssub.s32 %s26, 1
      %s32 = ssub.s32 %s26, 2
      %s39 = sadd.s32 1, %s34
      %p40 = scmp.ge.s32.totalorder %s39, 2
      %s41 = scalar_select %p40, 0, %s39
      %s42 = sadd.s32 1, %s33
      %s43 = scalar_select %p40, %s42, %s33
      %p44 = scmp.ge.s32.totalorder %s43, 1
      %s45 = scalar_select %p44, 0, %s43
      %s46 = ssub.s32 %s33, %s45
      %s47 = ssub.s32 %s34, %s41
      %s48 = sor.u32 %s46, %s47
      %p49 = scmp.eq.s32.totalorder %s48, 0
      %s51 = sadd.s32 %s50, 1
      %s52 = scalar_select %p49, %s50, %s51
      %p55 = pneg %p49
      %p56 = scmp.eq.s32.totalorder %s26, 1
      %p57 = por %p55, %p56
      %p58 = scmp.ne.s32.totalorder %s50, %s53
      %p59 = scmp.eq.s32.totalorder %s26, 0
      %p60 = por %p58, %p59
      %p61 = scmp.ne.s32.totalorder %s50, %s53
      %p62 = scmp.eq.s32.totalorder %s31, 1
      %p63 = por %p61, %p62
      %p64 = scmp.ne.s32.totalorder %s53, %s54
      %p65 = scmp.eq.s32.totalorder %s31, 0
      %p66 = por %p64, %p65
      %p67 = scmp.ne.s32.totalorder %s53, %s54
      %p68 = scmp.eq.s32.totalorder %s32, 1
      %p69 = por %p67, %p68
      %p71 = scmp.ne.s32.totalorder %s54, %s70
      %p72 = scmp.eq.s32.totalorder %s32, 0
      %p73 = por %p71, %p72
      %s74 = ssub.s32 %s34, %s41
      %p75 = scmp.eq.s32.totalorder %s74, 0
      %s77 = sadd.s32 %s76, 1
      %s78 = scalar_select %p75, %s76, %s77
      %p81 = pneg %p75
      %p82 = scmp.eq.s32.totalorder %s26, 1
      %p83 = por %p81, %p82
      %p84 = scmp.ne.s32.totalorder %s76, %s79
      %p85 = scmp.eq.s32.totalorder %s26, 0
      %p86 = por %p84, %p85
      %p87 = scmp.ne.s32.totalorder %s76, %s79
      %p88 = scmp.eq.s32.totalorder %s31, 1
      %p89 = por %p87, %p88
      %p90 = scmp.ne.s32.totalorder %s79, %s80
      %p91 = scmp.eq.s32.totalorder %s31, 0
      %p92 = por %p90, %p91
      %p93 = scmp.ne.s32.totalorder %s79, %s80
      %p94 = scmp.eq.s32.totalorder %s32, 1
      %p95 = por %p93, %p94
      %p97 = scmp.ne.s32.totalorder %s80, %s96
      %p98 = scmp.eq.s32.totalorder %s32, 0
      %p99 = por %p97, %p98
      %s101 = sadd.s32 %s100, 1
      %p104 = scmp.eq.s32.totalorder %s26, 1
      %p105 = scmp.ne.s32.totalorder %s100, %s102
      %p106 = scmp.eq.s32.totalorder %s26, 0
      %p107 = por %p105, %p106
      %p108 = scmp.ne.s32.totalorder %s100, %s102
      %p109 = scmp.eq.s32.totalorder %s31, 1
      %p110 = por %p108, %p109
      %p111 = scmp.ne.s32.totalorder %s102, %s103
      %p112 = scmp.eq.s32.totalorder %s31, 0
      %p113 = por %p111, %p112
      %p114 = scmp.ne.s32.totalorder %s102, %s103
      %p115 = scmp.eq.s32.totalorder %s32, 1
      %p116 = por %p114, %p115
      %p118 = scmp.ne.s32.totalorder %s103, %s117
      %p119 = scmp.eq.s32.totalorder %s32, 0
      %p120 = por %p118, %p119
      %s122 = sadd.s32 %s121, 1
      %p125 = scmp.eq.s32.totalorder %s26, 1
      %p126 = scmp.ne.s32.totalorder %s121, %s123
      %p127 = scmp.eq.s32.totalorder %s26, 0
      %p128 = por %p126, %p127
      %p129 = scmp.ne.s32.totalorder %s121, %s123
      %p130 = scmp.eq.s32.totalorder %s31, 1
      %p131 = por %p129, %p130
      %p132 = scmp.ne.s32.totalorder %s123, %s124
      %p133 = scmp.eq.s32.totalorder %s31, 0
      %p134 = por %p132, %p133
      %p135 = scmp.ne.s32.totalorder %s123, %s124
      %p136 = scmp.eq.s32.totalorder %s32, 1
      %p137 = por %p135, %p136
      %p139 = scmp.ne.s32.totalorder %s124, %s138
      %p140 = scmp.eq.s32.totalorder %s32, 0
      %p141 = por %p139, %p140
      %s143 = sadd.s32 %s142, 1
      %p146 = scmp.eq.s32.totalorder %s26, 1
      %p147 = scmp.ne.s32.totalorder %s142, %s144
      %p148 = scmp.eq.s32.totalorder %s26, 0
      %p149 = por %p147, %p148
      %p150 = scmp.ne.s32.totalorder %s142, %s144
      %p151 = scmp.eq.s32.totalorder %s31, 1
      %p152 = por %p150, %p151
      %p153 = scmp.ne.s32.totalorder %s144, %s145
      %p154 = scmp.eq.s32.totalorder %s31, 0
      %p155 = por %p153, %p154
      %p156 = scmp.ne.s32.totalorder %s144, %s145
      %p157 = scmp.eq.s32.totalorder %s32, 1
      %p158 = por %p156, %p157
      %p160 = scmp.ne.s32.totalorder %s145, %s159
      %p161 = scmp.eq.s32.totalorder %s32, 0
      %p162 = por %p160, %p161
      %s164 = sadd.s32 %s163, 1
      %p167 = scmp.eq.s32.totalorder %s26, 1
      %p168 = scmp.ne.s32.totalorder %s163, %s165
      %p169 = scmp.eq.s32.totalorder %s26, 0
      %p170 = por %p168, %p169
      %p171 = scmp.ne.s32.totalorder %s163, %s165
      %p172 = scmp.eq.s32.totalorder %s31, 1
      %p173 = por %p171, %p172
      %p174 = scmp.ne.s32.totalorder %s165, %s166
      %p175 = scmp.eq.s32.totalorder %s31, 0
      %p176 = por %p174, %p175
      %p177 = scmp.ne.s32.totalorder %s165, %s166
      %p178 = scmp.eq.s32.totalorder %s32, 1
      %p179 = por %p177, %p178
      %p181 = scmp.ne.s32.totalorder %s166, %s180
      %p182 = scmp.eq.s32.totalorder %s32, 0
      %p183 = por %p181, %p182
      %s185 = sadd.s32 %s184, 1
      %p188 = scmp.eq.s32.totalorder %s26, 1
      %p189 = scmp.ne.s32.totalorder %s184, %s186
      %p190 = scmp.eq.s32.totalorder %s26, 0
      %p191 = por %p189, %p190
      %p192 = scmp.ne.s32.totalorder %s184, %s186
      %p193 = scmp.eq.s32.totalorder %s31, 1
      %p194 = por %p192, %p193
      %p195 = scmp.ne.s32.totalorder %s186, %s187
      %p196 = scmp.eq.s32.totalorder %s31, 0
      %p197 = por %p195, %p196
      %p198 = scmp.ne.s32.totalorder %s186, %s187
      %p199 = scmp.eq.s32.totalorder %s32, 1
      %p200 = por %p198, %p199
      %p202 = scmp.ne.s32.totalorder %s187, %s201
      %p203 = scmp.eq.s32.totalorder %s32, 0
      %p204 = por %p202, %p203
      %s206 = sadd.s32 %s205, 1
      %p209 = scmp.eq.s32.totalorder %s26, 1
      %p210 = scmp.ne.s32.totalorder %s205, %s207
      %p211 = scmp.eq.s32.totalorder %s26, 0
      %p212 = por %p210, %p211
      %p213 = scmp.ne.s32.totalorder %s205, %s207
      %p214 = scmp.eq.s32.totalorder %s31, 1
      %p215 = por %p213, %p214
      %p216 = scmp.ne.s32.totalorder %s207, %s208
      %p217 = scmp.eq.s32.totalorder %s31, 0
      %p218 = por %p216, %p217
      %p219 = scmp.ne.s32.totalorder %s207, %s208
      %p220 = scmp.eq.s32.totalorder %s32, 1
      %p221 = por %p219, %p220
      %p223 = scmp.ne.s32.totalorder %s208, %s222
      %p224 = scmp.eq.s32.totalorder %s32, 0
      %p225 = por %p223, %p224
      %s227 = sadd.s32 %s226, 1
      %p230 = scmp.eq.s32.totalorder %s26, 1
      %p231 = scmp.ne.s32.totalorder %s226, %s228
      %p232 = scmp.eq.s32.totalorder %s26, 0
      %p233 = por %p231, %p232
      %p234 = scmp.ne.s32.totalorder %s226, %s228
      %p235 = scmp.eq.s32.totalorder %s31, 1
      %p236 = por %p234, %p235
      %p237 = scmp.ne.s32.totalorder %s228, %s229
      %p238 = scmp.eq.s32.totalorder %s31, 0
      %p239 = por %p237, %p238
      %p240 = scmp.ne.s32.totalorder %s228, %s229
      %p241 = scmp.eq.s32.totalorder %s32, 1
      %p242 = por %p240, %p241
      %p244 = scmp.ne.s32.totalorder %s229, %s243
      %p245 = scmp.eq.s32.totalorder %s32, 0
      %p246 = por %p244, %p245
      %s248 = sadd.s32 %s247, 1
      %p251 = scmp.eq.s32.totalorder %s26, 1
      %p252 = scmp.ne.s32.totalorder %s247, %s249
      %p253 = scmp.eq.s32.totalorder %s26, 0
      %p254 = por %p252, %p253
      %p255 = scmp.ne.s32.totalorder %s247, %s249
      %p256 = scmp.eq.s32.totalorder %s31, 1
      %p257 = por %p255, %p256
      %p258 = scmp.ne.s32.totalorder %s249, %s250
      %p259 = scmp.eq.s32.totalorder %s31, 0
      %p260 = por %p258, %p259
      %p261 = scmp.ne.s32.totalorder %s249, %s250
      %p262 = scmp.eq.s32.totalorder %s32, 1
      %p263 = por %p261, %p262
      %p265 = scmp.ne.s32.totalorder %s250, %s264
      %p266 = scmp.eq.s32.totalorder %s32, 0
      %p267 = por %p265, %p266
      %s269 = sadd.s32 %s268, 1
      %p272 = scmp.eq.s32.totalorder %s26, 1
      %p273 = scmp.ne.s32.totalorder %s268, %s270
      %p274 = scmp.eq.s32.totalorder %s26, 0
      %p275 = por %p273, %p274
      %p276 = scmp.ne.s32.totalorder %s268, %s270
      %p277 = scmp.eq.s32.totalorder %s31, 1
      %p278 = por %p276, %p277
      %p279 = scmp.ne.s32.totalorder %s270, %s271
      %p280 = scmp.eq.s32.totalorder %s31, 0
      %p281 = por %p279, %p280
      %p282 = scmp.ne.s32.totalorder %s270, %s271
      %p283 = scmp.eq.s32.totalorder %s32, 1
      %p284 = por %p282, %p283
      %p286 = scmp.ne.s32.totalorder %s271, %s285
      %p287 = scmp.eq.s32.totalorder %s32, 0
      %p288 = por %p286, %p287
      %s290 = sadd.s32 %s289, 1
      %p293 = scmp.eq.s32.totalorder %s26, 1
      %p294 = scmp.ne.s32.totalorder %s289, %s291
      %p295 = scmp.eq.s32.totalorder %s26, 0
      %p296 = por %p294, %p295
      %p297 = scmp.ne.s32.totalorder %s289, %s291
      %p298 = scmp.eq.s32.totalorder %s31, 1
      %p299 = por %p297, %p298
      %p300 = scmp.ne.s32.totalorder %s291, %s292
      %p301 = scmp.eq.s32.totalorder %s31, 0
      %p302 = por %p300, %p301
      %p303 = scmp.ne.s32.totalorder %s291, %s292
      %p304 = scmp.eq.s32.totalorder %s32, 1
      %p305 = por %p303, %p304
      %p307 = scmp.ne.s32.totalorder %s292, %s306
      %p308 = scmp.eq.s32.totalorder %s32, 0
      %p309 = por %p307, %p308
      %s310 = ssub.s32 %s33, %s45
      %p311 = scmp.eq.s32.totalorder %s310, 0
      %s313 = sadd.s32 %s312, 1
      %s314 = scalar_select %p311, %s312, %s313
      %p317 = pneg %p311
      %p318 = scmp.eq.s32.totalorder %s26, 1
      %p319 = por %p317, %p318
      %p320 = scmp.ne.s32.totalorder %s312, %s315
      %p321 = scmp.eq.s32.totalorder %s26, 0
      %p322 = por %p320, %p321
      %p323 = scmp.ne.s32.totalorder %s312, %s315
      %p324 = scmp.eq.s32.totalorder %s31, 1
      %p325 = por %p323, %p324
      %p326 = scmp.ne.s32.totalorder %s315, %s316
      %p327 = scmp.eq.s32.totalorder %s31, 0
      %p328 = por %p326, %p327
      %p329 = scmp.ne.s32.totalorder %s315, %s316
      %p330 = scmp.eq.s32.totalorder %s32, 1
      %p331 = por %p329, %p330
      %p333 = scmp.ne.s32.totalorder %s316, %s332
      %p334 = scmp.eq.s32.totalorder %s32, 0
      %p335 = por %p333, %p334
      %p336 = scmp.le.s32.totalorder 1, %s26
      %p337 = scmp.lt.s32.totalorder %s26, 3
      %p338 = pnand %p336, %p337
      %p339 = pneg %p338
      // Predicated region
      $region9: #{hand_hmr_forward.1} parent=5 // pred_check
        _
      $region10: #{hand_hmr_forward.1} parent=5 // pred_check_branch
        %341 = sbr.rel (%p338) target = $region12
      $region11: #{hand_hmr_forward.1} parent=5 // pred_region
        %s342 = ssub.s32 %s26, 1
        // Predicated region
        $region13: #{hand_hmr_forward.1} parent=11 // pred_check
          %p343 = pneg %p113
        $region14: #{hand_hmr_forward.1} parent=11 // pred_check_branch
          %345 = sbr.rel (%p343) target = $region16
        $region15: #{hand_hmr_forward.1} parent=11 // pred_region
          %s347 = ssub.s32 192, 192
          %348 = vsyncadd [#allocation6], %s347
          %s350 = sshll.u32 [#allocation5], 4
          %s351 = int_to_ptr.vmem [resolvable:$true] %s350
          %353 = dma.hbm_to_vmem [thread:$0]  %s2, 192, %s351, [#allocation6]
        $region16: #{hand_hmr_forward.1} parent=11 // pred_fallthru
          _
        // Predicated region
        $region17: #{hand_hmr_forward.1} parent=11 // pred_check
          %p354 = pneg %p134
        $region18: #{hand_hmr_forward.1} parent=11 // pred_check_branch
          %356 = sbr.rel (%p354) target = $region20
        $region19: #{hand_hmr_forward.1} parent=11 // pred_region
          %s358 = ssub.s32 16384, 16384
          %359 = vsyncadd [#allocation6], %s358
          %s360 = sshll.u32 [#allocation7], 4
          %s361 = int_to_ptr.vmem [resolvable:$true] %s360
          %366 = dma.hbm_to_vmem [thread:$0]  %s3, 16384, %s361, [#allocation6], 256, 256, 16
        $region20: #{hand_hmr_forward.1} parent=11 // pred_fallthru
          _
        // Predicated region
        $region21: #{hand_hmr_forward.1} parent=11 // pred_check
          %p367 = pneg %p155
        $region22: #{hand_hmr_forward.1} parent=11 // pred_check_branch
          %369 = sbr.rel (%p367) target = $region24
        $region23: #{hand_hmr_forward.1} parent=11 // pred_region
          %s371 = ssub.s32 64, 64
          %372 = vsyncadd [#allocation9], %s371
          %s374 = sshll.u32 [#allocation8], 4
          %s375 = int_to_ptr.vmem [resolvable:$true] %s374
          %377 = dma.hbm_to_vmem [thread:$0]  %s4, 64, %s375, [#allocation9]
        $region24: #{hand_hmr_forward.1} parent=11 // pred_fallthru
          _
        // Predicated region
        $region25: #{hand_hmr_forward.1} parent=11 // pred_check
          %p378 = pneg %p176
        $region26: #{hand_hmr_forward.1} parent=11 // pred_check_branch
          %380 = sbr.rel (%p378) target = $region28
        $region27: #{hand_hmr_forward.1} parent=11 // pred_region
          %s382 = ssub.s32 4096, 4096
          %383 = vsyncadd [#allocation9], %s382
          %s384 = sshll.u32 [#allocation10], 4
          %s385 = int_to_ptr.vmem [resolvable:$true] %s384
          %390 = dma.hbm_to_vmem [thread:$0]  %s5, 4096, %s385, [#allocation9], 64, 64, 4
        $region28: #{hand_hmr_forward.1} parent=11 // pred_fallthru
          _
        // Predicated region
        $region29: #{hand_hmr_forward.1} parent=11 // pred_check
          %p391 = pneg %p197
        $region30: #{hand_hmr_forward.1} parent=11 // pred_check_branch
          %393 = sbr.rel (%p391) target = $region32
        $region31: #{hand_hmr_forward.1} parent=11 // pred_region
          %s395 = ssub.s32 16, 16
          %396 = vsyncadd [#allocation12], %s395
          %s398 = sshll.u32 [#allocation11], 4
          %s399 = int_to_ptr.vmem [resolvable:$true] %s398
          %401 = dma.hbm_to_vmem [thread:$0]  %s6, 16, %s399, [#allocation12]
        $region32: #{hand_hmr_forward.1} parent=11 // pred_fallthru
          _
        // Predicated region
        $region33: #{hand_hmr_forward.1} parent=11 // pred_check
          %p402 = pneg %p218
        $region34: #{hand_hmr_forward.1} parent=11 // pred_check_branch
          %404 = sbr.rel (%p402) target = $region36
        $region35: #{hand_hmr_forward.1} parent=11 // pred_region
          %s406 = ssub.s32 8192, 8192
          %407 = vsyncadd [#allocation12], %s406
          %s408 = sshll.u32 [#allocation13], 4
          %s409 = int_to_ptr.vmem [resolvable:$true] %s408
          %414 = dma.hbm_to_vmem [thread:$0]  %s7, 8192, %s409, [#allocation12], 512, 512, 32
        $region36: #{hand_hmr_forward.1} parent=11 // pred_fallthru
          _
        // Predicated region
        $region37: #{hand_hmr_forward.1} parent=11 // pred_check
          %p415 = pneg %p239
        $region38: #{hand_hmr_forward.1} parent=11 // pred_check_branch
          %417 = sbr.rel (%p415) target = $region40
        $region39: #{hand_hmr_forward.1} parent=11 // pred_region
          %s419 = ssub.s32 65536, 65536
          %420 = vsyncadd [#allocation15], %s419
          %s421 = sshll.u32 [#allocation14], 4
          %s422 = int_to_ptr.vmem [resolvable:$true] %s421
          %427 = dma.hbm_to_vmem [thread:$0]  %s8, 65536, %s422, [#allocation15], 512, 512, 32
        $region40: #{hand_hmr_forward.1} parent=11 // pred_fallthru
          _
        // Predicated region
        $region41: #{hand_hmr_forward.1} parent=11 // pred_check
          %p428 = pneg %p260
        $region42: #{hand_hmr_forward.1} parent=11 // pred_check_branch
          %430 = sbr.rel (%p428) target = $region44
        $region43: #{hand_hmr_forward.1} parent=11 // pred_region
          %s432 = ssub.s32 128, 128
          %433 = vsyncadd [#allocation15], %s432
          %s435 = sshll.u32 [#allocation16], 4
          %s436 = int_to_ptr.vmem [resolvable:$true] %s435
          %438 = dma.hbm_to_vmem [thread:$0]  %s9, 128, %s436, [#allocation15]
        $region44: #{hand_hmr_forward.1} parent=11 // pred_fallthru
          _
        // Predicated region
        $region45: #{hand_hmr_forward.1} parent=11 // pred_check
          %p439 = pneg %p281
        $region46: #{hand_hmr_forward.1} parent=11 // pred_check_branch
          %441 = sbr.rel (%p439) target = $region48
        $region47: #{hand_hmr_forward.1} parent=11 // pred_region
          %s443 = ssub.s32 8192, 8192
          %444 = vsyncadd [#allocation18], %s443
          %s445 = sshll.u32 [#allocation17], 4
          %s446 = int_to_ptr.vmem [resolvable:$true] %s445
          %451 = dma.hbm_to_vmem [thread:$0]  %s10, 8192, %s446, [#allocation18], 64, 64, 4
        $region48: #{hand_hmr_forward.1} parent=11 // pred_fallthru
          _
        // Predicated region
        $region49: #{hand_hmr_forward.1} parent=11 // pred_check
          %p452 = pneg %p302
        $region50: #{hand_hmr_forward.1} parent=11 // pred_check_branch
          %454 = sbr.rel (%p452) target = $region52
        $region51: #{hand_hmr_forward.1} parent=11 // pred_region
          %s456 = ssub.s32 16, 16
          %457 = vsyncadd [#allocation18], %s456
          %s459 = sshll.u32 [#allocation19], 4
          %s460 = int_to_ptr.vmem [resolvable:$true] %s459
          %462 = dma.hbm_to_vmem [thread:$0]  %s11, 16, %s460, [#allocation18]
        $region52: #{hand_hmr_forward.1} parent=11 // pred_fallthru
          _
      $region12: #{hand_hmr_forward.1} parent=5 // pred_fallthru
        _
      %p463 = scmp.lt.s32.totalorder %s26, 2
      // Predicated region
      $region53: #{hand_hmr_forward.1} parent=5 // pred_check
        %p464 = pneg %p463
      $region54: #{hand_hmr_forward.1} parent=5 // pred_check_branch
        %466 = sbr.rel (%p464) target = $region56
      $region55: #{hand_hmr_forward.1} parent=5 // pred_region
        // Predicated region
        $region57: #{hand_hmr_forward.1} parent=55 // pred_check
          %p467 = pneg %p60
        $region58: #{hand_hmr_forward.1} parent=55 // pred_check_branch
          %469 = sbr.rel (%p467) target = $region60
        $region59: #{hand_hmr_forward.1} parent=55 // pred_region
          %s470 = smul.u32 4, %s34
          %p471 = scmp.lt.s32.totalorder %s33, 0
          %s472 = scalar_select %p471, %s33, 0
          %p473 = scmp.lt.s32.totalorder %s470, 7
          %s474 = scalar_select %p473, %s470, 7
          %s475 = smul.addr %s472, 8
          %s476 = sadd.s32 %s474, %s475
          %s477 = smul.addr %s476, 4
          %s478 = scalar_lea.vmem %s0, %s477
          %s479 = smul.u32 4, %s34
        $region60: #{hand_hmr_forward.1} parent=55 // pred_fallthru
          _
        // Predicated region
        $region61: #{hand_hmr_forward.1} parent=55 // pred_check
          %p480 = pneg %p86
        $region62: #{hand_hmr_forward.1} parent=55 // pred_check_branch
          %482 = sbr.rel (%p480) target = $region64
        $region63: #{hand_hmr_forward.1} parent=55 // pred_region
          %s483 = sand.u32 %s76, 1
          %s484 = scalar_lea.sflag [#allocation4], %s483
          %s485 = sand.u32 %s76, 1
          %s486 = smul.addr %s485, 3072
          %s487 = scalar_lea.vmem [#allocation3], %s486
          %s488 = smul.u32 64, %s34
          %s490 = ssub.s32 49152, 49152
          %491 = vsyncadd %s484, %s490
          %s492 = smul.addr %s488, 12
          %s493 = smul.addr %s492, 64
          %s494 = scalar_lea.hbm %s1, %s493
          %s495 = sshll.u32 %s487, 4
          %s496 = int_to_ptr.vmem [resolvable:$true] %s495
          %501 = dma.hbm_to_vmem [thread:$0]  %s494, 49152, %s496, %s484, 768, 768, 48
        $region64: #{hand_hmr_forward.1} parent=55 // pred_fallthru
          _
      $region56: #{hand_hmr_forward.1} parent=5 // pred_fallthru
        _
      %p502 = scmp.le.s32.totalorder 1, %s26
      %p503 = scmp.lt.s32.totalorder %s26, 3
      %p504 = pnand %p502, %p503
      %p505 = pneg %p504
      // Predicated region
      $region65: #{hand_hmr_forward.1} parent=5 // pred_check
        _
      $region66: #{hand_hmr_forward.1} parent=5 // pred_check_branch
        %507 = sbr.rel (%p504) target = $region68
      $region67: #{hand_hmr_forward.1} parent=5 // pred_region
        %s508 = ssub.s32 %s26, 1
        %s509 = sand.u32 %s79, 1
        %s510 = scalar_lea.sflag [#allocation4], %s509
        %s511 = sand.u32 %s79, 1
        %s512 = smul.addr %s511, 3072
        %s513 = scalar_lea.vmem [#allocation3], %s512
        // Predicated region
        $region69: #{hand_hmr_forward.1} parent=67 // pred_check
          %p514 = pneg %p92
        $region70: #{hand_hmr_forward.1} parent=67 // pred_check_branch
          %516 = sbr.rel (%p514) target = $region72
        $region71: #{hand_hmr_forward.1} parent=67 // pred_region
          %517 = dma.done %s510, 49152
        $region72: #{hand_hmr_forward.1} parent=67 // pred_fallthru
          _
        // Predicated region
        $region73: #{hand_hmr_forward.1} parent=67 // pred_check
          %p518 = pneg %p113
        $region74: #{hand_hmr_forward.1} parent=67 // pred_check_branch
          %520 = sbr.rel (%p518) target = $region76
        $region75: #{hand_hmr_forward.1} parent=67 // pred_region
          %521 = dma.done [#allocation6], 192
        $region76: #{hand_hmr_forward.1} parent=67 // pred_fallthru
          _
        // Predicated region
        $region77: #{hand_hmr_forward.1} parent=67 // pred_check
          %p522 = pneg %p134
        $region78: #{hand_hmr_forward.1} parent=67 // pred_check_branch
          %524 = sbr.rel (%p522) target = $region80
        $region79: #{hand_hmr_forward.1} parent=67 // pred_region
          %525 = dma.done [#allocation6], 16384
        $region80: #{hand_hmr_forward.1} parent=67 // pred_fallthru
          _
        // Predicated region
        $region81: #{hand_hmr_forward.1} parent=67 // pred_check
          %p526 = pneg %p155
        $region82: #{hand_hmr_forward.1} parent=67 // pred_check_branch
          %528 = sbr.rel (%p526) target = $region84
        $region83: #{hand_hmr_forward.1} parent=67 // pred_region
          %529 = dma.done [#allocation9], 64
        $region84: #{hand_hmr_forward.1} parent=67 // pred_fallthru
          _
        // Predicated region
        $region85: #{hand_hmr_forward.1} parent=67 // pred_check
          %p530 = pneg %p176
        $region86: #{hand_hmr_forward.1} parent=67 // pred_check_branch
          %532 = sbr.rel (%p530) target = $region88
        $region87: #{hand_hmr_forward.1} parent=67 // pred_region
          %533 = dma.done [#allocation9], 4096
        $region88: #{hand_hmr_forward.1} parent=67 // pred_fallthru
          _
        // Predicated region
        $region89: #{hand_hmr_forward.1} parent=67 // pred_check
          %p534 = pneg %p197
        $region90: #{hand_hmr_forward.1} parent=67 // pred_check_branch
          %536 = sbr.rel (%p534) target = $region92
        $region91: #{hand_hmr_forward.1} parent=67 // pred_region
          %537 = dma.done [#allocation12], 16
        $region92: #{hand_hmr_forward.1} parent=67 // pred_fallthru
          _
        // Predicated region
        $region93: #{hand_hmr_forward.1} parent=67 // pred_check
          %p538 = pneg %p218
        $region94: #{hand_hmr_forward.1} parent=67 // pred_check_branch
          %540 = sbr.rel (%p538) target = $region96
        $region95: #{hand_hmr_forward.1} parent=67 // pred_region
          %541 = dma.done [#allocation12], 8192
        $region96: #{hand_hmr_forward.1} parent=67 // pred_fallthru
          _
        // Predicated region
        $region97: #{hand_hmr_forward.1} parent=67 // pred_check
          %p542 = pneg %p239
        $region98: #{hand_hmr_forward.1} parent=67 // pred_check_branch
          %544 = sbr.rel (%p542) target = $region100
        $region99: #{hand_hmr_forward.1} parent=67 // pred_region
          %545 = dma.done [#allocation15], 65536
        $region100: #{hand_hmr_forward.1} parent=67 // pred_fallthru
          _
        // Predicated region
        $region101: #{hand_hmr_forward.1} parent=67 // pred_check
          %p546 = pneg %p260
        $region102: #{hand_hmr_forward.1} parent=67 // pred_check_branch
          %548 = sbr.rel (%p546) target = $region104
        $region103: #{hand_hmr_forward.1} parent=67 // pred_region
          %549 = dma.done [#allocation15], 128
        $region104: #{hand_hmr_forward.1} parent=67 // pred_fallthru
          _
        // Predicated region
        $region105: #{hand_hmr_forward.1} parent=67 // pred_check
          %p550 = pneg %p281
        $region106: #{hand_hmr_forward.1} parent=67 // pred_check_branch
          %552 = sbr.rel (%p550) target = $region108
        $region107: #{hand_hmr_forward.1} parent=67 // pred_region
          %553 = dma.done [#allocation18], 8192
        $region108: #{hand_hmr_forward.1} parent=67 // pred_fallthru
          _
        // Predicated region
        $region109: #{hand_hmr_forward.1} parent=67 // pred_check
          %p554 = pneg %p302
        $region110: #{hand_hmr_forward.1} parent=67 // pred_check_branch
          %556 = sbr.rel (%p554) target = $region112
        $region111: #{hand_hmr_forward.1} parent=67 // pred_region
          %557 = dma.done [#allocation18], 16
        $region112: #{hand_hmr_forward.1} parent=67 // pred_fallthru
          _
        %s558 = smul.u32 4, %s36
        %p559 = scmp.lt.s32.totalorder %s35, 0
        %s560 = scalar_select %p559, %s35, 0
        %p561 = scmp.lt.s32.totalorder %s558, 7
        %s562 = scalar_select %p561, %s558, 7
        %s563 = smul.addr %s560, 8
        %s564 = sadd.s32 %s562, %s563
        %s565 = smul.addr %s564, 4
        %s566 = scalar_lea.vmem %s0, %s565
        %p567 = pneg %p66
        %p568 = pneg %p63
        %s569 = sand.u32 %s79, 1
        %s570 = scalar_lea.sflag [#allocation4], %s569
        %s571 = sand.u32 %s79, 1
        %s572 = smul.addr %s571, 3072
        %s573 = scalar_lea.vmem [#allocation3], %s572
        %p574 = pneg %p92
        %p575 = pneg %p89
        %p576 = pneg %p113
        %p577 = pneg %p110
        %p578 = pneg %p134
        %p579 = pneg %p131
        %p580 = pneg %p155
        %p581 = pneg %p152
        %p582 = pneg %p176
        %p583 = pneg %p173
        %p584 = pneg %p197
        %p585 = pneg %p194
        %p586 = pneg %p218
        %p587 = pneg %p215
        %p588 = pneg %p239
        %p589 = pneg %p236
        %p590 = pneg %p260
        %p591 = pneg %p257
        %p592 = pneg %p281
        %p593 = pneg %p278
        %p594 = pneg %p302
        %p595 = pneg %p299
        %p596 = pneg %p328
        %p597 = pneg %p325
        %p598 = scmp.lt.s32.totalorder %s35, 0
        %s599 = scalar_select %p598, %s35, 0
        %s600 = smul.addr %s599, 8
        %s601 = scalar_lea.vmem %s12, %s600
        %s602 = smul.u32 4, %s36
        %p603 = scmp.lt.s32.totalorder %s35, 0
        %s604 = scalar_select %p603, %s35, 0
        %p605 = scmp.lt.s32.totalorder %s602, 7
        %s606 = scalar_select %p605, %s602, 7
        %s607 = smul.addr %s604, 8
        %s608 = sadd.s32 %s606, %s607
        %s609 = smul.addr %s608, 4
        %s610 = scalar_lea.vmem %s0, %s609
        %s611 = smul.u32 4, %s36
        %s612 = smul.u32 64, %s36
        %p613 = scmp.lt.s32.totalorder %s35, 0
        %s614 = scalar_select %p613, %s35, 0
        %s615 = smul.addr %s614, 8
        %s616 = scalar_lea.vmem %s12, %s615
        %p618 = scmp.eq.s32.totalorder %s36, 0
        // Predicated region
        $region113: #{hand_hmr_forward.1} parent=67 // pred_check
          %p619 = pneg %p618
        $region114: #{hand_hmr_forward.1} parent=67 // pred_check_branch
          %621 = sbr.rel (%p619) target = $region116
        $region115: #{hand_hmr_forward.1} parent=67 // pred_region
          %622 = vst [vmem:[#allocation2] sm:$0xff] 0.0
          %623 = vst [vmem:[#allocation2 + $0x8] sm:$0xff] 0.0
          %624 = vst [vmem:[#allocation2 + $0x10] sm:$0xff] 0.0
          %625 = vst [vmem:[#allocation2 + $0x18] sm:$0xff] 0.0
          %626 = vst [vmem:[#allocation2 + $0x20] sm:$0xff] 0.0
          %627 = vst [vmem:[#allocation2 + $0x28] sm:$0xff] 0.0
          %628 = vst [vmem:[#allocation2 + $0x30] sm:$0xff] 0.0
          %629 = vst [vmem:[#allocation2 + $0x38] sm:$0xff] 0.0
          %630 = vst [vmem:[#allocation2 + $0x40] sm:$0xff] 0.0
          %631 = vst [vmem:[#allocation2 + $0x48] sm:$0xff] 0.0
          %632 = vst [vmem:[#allocation2 + $0x50] sm:$0xff] 0.0
          %633 = vst [vmem:[#allocation2 + $0x58] sm:$0xff] 0.0
        $region116: #{hand_hmr_forward.1} parent=67 // pred_fallthru
          _
        %v634 = vld [vmem:[#allocation2] sm:$0xff]
        %v635 = vld [vmem:[#allocation2 + $0x8] sm:$0xff]
        %v636 = vld [vmem:[#allocation2 + $0x10] sm:$0xff]
        %v637 = vld [vmem:[#allocation2 + $0x18] sm:$0xff]
        %v638 = vld [vmem:[#allocation2 + $0x20] sm:$0xff]
        %v639 = vld [vmem:[#allocation2 + $0x28] sm:$0xff]
        %v640 = vld [vmem:[#allocation2 + $0x30] sm:$0xff]
        %v641 = vld [vmem:[#allocation2 + $0x38] sm:$0xff]
        %v642 = vld [vmem:[#allocation2 + $0x40] sm:$0xff]
        %v643 = vld [vmem:[#allocation2 + $0x48] sm:$0xff]
        %v644 = vld [vmem:[#allocation2 + $0x50] sm:$0xff]
        %v645 = vld [vmem:[#allocation2 + $0x58] sm:$0xff]
        %v646 = vld [vmem:[%s610] sm:$0xff]
        %v647 = vld [vmem:[%s610 + $0x8] sm:$0xff]
        %v648 = vld [vmem:[%s513] sm:$0xff]
        %v649 = vld [vmem:[%s513 + $0x8] sm:$0xff]
        %v650 = vld [vmem:[%s513 + $0x10] sm:$0xff]
        %v651 = vld [vmem:[%s513 + $0x18] sm:$0xff]
        %v652 = vld [vmem:[%s513 + $0x20] sm:$0xff]
        %v653 = vld [vmem:[%s513 + $0x28] sm:$0xff]
        %v654 = vld [vmem:[%s513 + $0x30] sm:$0xff]
        %v655 = vld [vmem:[%s513 + $0x38] sm:$0xff]
        %v656 = vld [vmem:[%s513 + $0x40] sm:$0xff]
        %v657 = vld [vmem:[%s513 + $0x48] sm:$0xff]
        %v658 = vld [vmem:[%s513 + $0x50] sm:$0xff]
        %v659 = vld [vmem:[%s513 + $0x58] sm:$0xff]
        %v660 = vld [vmem:[%s513 + $0x60] sm:$0xff]
        %v661 = vld [vmem:[%s513 + $0x68] sm:$0xff]
        %v662 = vld [vmem:[%s513 + $0x70] sm:$0xff]
        %v663 = vld [vmem:[%s513 + $0x78] sm:$0xff]
        %v664 = vld [vmem:[%s513 + $0x80] sm:$0xff]
        %v665 = vld [vmem:[%s513 + $0x88] sm:$0xff]
        %v666 = vld [vmem:[%s513 + $0x90] sm:$0xff]
        %v667 = vld [vmem:[%s513 + $0x98] sm:$0xff]
        %v668 = vld [vmem:[%s513 + $0xa0] sm:$0xff]
        %v669 = vld [vmem:[%s513 + $0xa8] sm:$0xff]
        %v670 = vld [vmem:[%s513 + $0xb0] sm:$0xff]
        %v671 = vld [vmem:[%s513 + $0xb8] sm:$0xff]
        %v672 = vld [vmem:[%s513 + $0xc0] sm:$0xff]
        %v673 = vld [vmem:[%s513 + $0xc8] sm:$0xff]
        %v674 = vld [vmem:[%s513 + $0xd0] sm:$0xff]
        %v675 = vld [vmem:[%s513 + $0xd8] sm:$0xff]
        %v676 = vld [vmem:[%s513 + $0xe0] sm:$0xff]
        %v677 = vld [vmem:[%s513 + $0xe8] sm:$0xff]
        %v678 = vld [vmem:[%s513 + $0xf0] sm:$0xff]
        %v679 = vld [vmem:[%s513 + $0xf8] sm:$0xff]
        %v680 = vld [vmem:[%s513 + $0x100] sm:$0xff]
        %v681 = vld [vmem:[%s513 + $0x108] sm:$0xff]
        %v682 = vld [vmem:[%s513 + $0x110] sm:$0xff]
        %v683 = vld [vmem:[%s513 + $0x118] sm:$0xff]
        %v684 = vld [vmem:[%s513 + $0x120] sm:$0xff]
        %v685 = vld [vmem:[%s513 + $0x128] sm:$0xff]
        %v686 = vld [vmem:[%s513 + $0x130] sm:$0xff]
        %v687 = vld [vmem:[%s513 + $0x138] sm:$0xff]
        %v688 = vld [vmem:[%s513 + $0x140] sm:$0xff]
        %v689 = vld [vmem:[%s513 + $0x148] sm:$0xff]
        %v690 = vld [vmem:[%s513 + $0x150] sm:$0xff]
        %v691 = vld [vmem:[%s513 + $0x158] sm:$0xff]
        %v692 = vld [vmem:[%s513 + $0x160] sm:$0xff]
        %v693 = vld [vmem:[%s513 + $0x168] sm:$0xff]
        %v694 = vld [vmem:[%s513 + $0x170] sm:$0xff]
        %v695 = vld [vmem:[%s513 + $0x178] sm:$0xff]
        %v696 = vld [vmem:[%s513 + $0x180] sm:$0xff]
        %v697 = vld [vmem:[%s513 + $0x188] sm:$0xff]
        %v698 = vld [vmem:[%s513 + $0x190] sm:$0xff]
        %v699 = vld [vmem:[%s513 + $0x198] sm:$0xff]
        %v700 = vld [vmem:[%s513 + $0x1a0] sm:$0xff]
        %v701 = vld [vmem:[%s513 + $0x1a8] sm:$0xff]
        %v702 = vld [vmem:[%s513 + $0x1b0] sm:$0xff]
        %v703 = vld [vmem:[%s513 + $0x1b8] sm:$0xff]
        %v704 = vld [vmem:[%s513 + $0x1c0] sm:$0xff]
        %v705 = vld [vmem:[%s513 + $0x1c8] sm:$0xff]
        %v706 = vld [vmem:[%s513 + $0x1d0] sm:$0xff]
        %v707 = vld [vmem:[%s513 + $0x1d8] sm:$0xff]
        %v708 = vld [vmem:[%s513 + $0x1e0] sm:$0xff]
        %v709 = vld [vmem:[%s513 + $0x1e8] sm:$0xff]
        %v710 = vld [vmem:[%s513 + $0x1f0] sm:$0xff]
        %v711 = vld [vmem:[%s513 + $0x1f8] sm:$0xff]
        %v712 = vld [vmem:[%s513 + $0x200] sm:$0xff]
        %v713 = vld [vmem:[%s513 + $0x208] sm:$0xff]
        %v714 = vld [vmem:[%s513 + $0x210] sm:$0xff]
        %v715 = vld [vmem:[%s513 + $0x218] sm:$0xff]
        %v716 = vld [vmem:[%s513 + $0x220] sm:$0xff]
        %v717 = vld [vmem:[%s513 + $0x228] sm:$0xff]
        %v718 = vld [vmem:[%s513 + $0x230] sm:$0xff]
        %v719 = vld [vmem:[%s513 + $0x238] sm:$0xff]
        %v720 = vld [vmem:[%s513 + $0x240] sm:$0xff]
        %v721 = vld [vmem:[%s513 + $0x248] sm:$0xff]
        %v722 = vld [vmem:[%s513 + $0x250] sm:$0xff]
        %v723 = vld [vmem:[%s513 + $0x258] sm:$0xff]
        %v724 = vld [vmem:[%s513 + $0x260] sm:$0xff]
        %v725 = vld [vmem:[%s513 + $0x268] sm:$0xff]
        %v726 = vld [vmem:[%s513 + $0x270] sm:$0xff]
        %v727 = vld [vmem:[%s513 + $0x278] sm:$0xff]
        %v728 = vld [vmem:[%s513 + $0x280] sm:$0xff]
        %v729 = vld [vmem:[%s513 + $0x288] sm:$0xff]
        %v730 = vld [vmem:[%s513 + $0x290] sm:$0xff]
        %v731 = vld [vmem:[%s513 + $0x298] sm:$0xff]
        %v732 = vld [vmem:[%s513 + $0x2a0] sm:$0xff]
        %v733 = vld [vmem:[%s513 + $0x2a8] sm:$0xff]
        %v734 = vld [vmem:[%s513 + $0x2b0] sm:$0xff]
        %v735 = vld [vmem:[%s513 + $0x2b8] sm:$0xff]
        %v736 = vld [vmem:[%s513 + $0x2c0] sm:$0xff]
        %v737 = vld [vmem:[%s513 + $0x2c8] sm:$0xff]
        %v738 = vld [vmem:[%s513 + $0x2d0] sm:$0xff]
        %v739 = vld [vmem:[%s513 + $0x2d8] sm:$0xff]
        %v740 = vld [vmem:[%s513 + $0x2e0] sm:$0xff]
        %v741 = vld [vmem:[%s513 + $0x2e8] sm:$0xff]
        %v742 = vld [vmem:[%s513 + $0x2f0] sm:$0xff]
        %v743 = vld [vmem:[%s513 + $0x2f8] sm:$0xff]
        %v744 = vld [vmem:[%s513 + $0x300] sm:$0xff]
        %v745 = vld [vmem:[%s513 + $0x308] sm:$0xff]
        %v746 = vld [vmem:[%s513 + $0x310] sm:$0xff]
        %v747 = vld [vmem:[%s513 + $0x318] sm:$0xff]
        %v748 = vld [vmem:[%s513 + $0x320] sm:$0xff]
        %v749 = vld [vmem:[%s513 + $0x328] sm:$0xff]
        %v750 = vld [vmem:[%s513 + $0x330] sm:$0xff]
        %v751 = vld [vmem:[%s513 + $0x338] sm:$0xff]
        %v752 = vld [vmem:[%s513 + $0x340] sm:$0xff]
        %v753 = vld [vmem:[%s513 + $0x348] sm:$0xff]
        %v754 = vld [vmem:[%s513 + $0x350] sm:$0xff]
        %v755 = vld [vmem:[%s513 + $0x358] sm:$0xff]
        %v756 = vld [vmem:[%s513 + $0x360] sm:$0xff]
        %v757 = vld [vmem:[%s513 + $0x368] sm:$0xff]
        %v758 = vld [vmem:[%s513 + $0x370] sm:$0xff]
        %v759 = vld [vmem:[%s513 + $0x378] sm:$0xff]
        %v760 = vld [vmem:[%s513 + $0x380] sm:$0xff]
        %v761 = vld [vmem:[%s513 + $0x388] sm:$0xff]
        %v762 = vld [vmem:[%s513 + $0x390] sm:$0xff]
        %v763 = vld [vmem:[%s513 + $0x398] sm:$0xff]
        %v764 = vld [vmem:[%s513 + $0x3a0] sm:$0xff]
        %v765 = vld [vmem:[%s513 + $0x3a8] sm:$0xff]
        %v766 = vld [vmem:[%s513 + $0x3b0] sm:$0xff]
        %v767 = vld [vmem:[%s513 + $0x3b8] sm:$0xff]
        %v768 = vld [vmem:[%s513 + $0x3c0] sm:$0xff]
        %v769 = vld [vmem:[%s513 + $0x3c8] sm:$0xff]
        %v770 = vld [vmem:[%s513 + $0x3d0] sm:$0xff]
        %v771 = vld [vmem:[%s513 + $0x3d8] sm:$0xff]
        %v772 = vld [vmem:[%s513 + $0x3e0] sm:$0xff]
        %v773 = vld [vmem:[%s513 + $0x3e8] sm:$0xff]
        %v774 = vld [vmem:[%s513 + $0x3f0] sm:$0xff]
        %v775 = vld [vmem:[%s513 + $0x3f8] sm:$0xff]
        %v776 = vld [vmem:[%s513 + $0x400] sm:$0xff]
        %v777 = vld [vmem:[%s513 + $0x408] sm:$0xff]
        %v778 = vld [vmem:[%s513 + $0x410] sm:$0xff]
        %v779 = vld [vmem:[%s513 + $0x418] sm:$0xff]
        %v780 = vld [vmem:[%s513 + $0x420] sm:$0xff]
        %v781 = vld [vmem:[%s513 + $0x428] sm:$0xff]
        %v782 = vld [vmem:[%s513 + $0x430] sm:$0xff]
        %v783 = vld [vmem:[%s513 + $0x438] sm:$0xff]
        %v784 = vld [vmem:[%s513 + $0x440] sm:$0xff]
        %v785 = vld [vmem:[%s513 + $0x448] sm:$0xff]
        %v786 = vld [vmem:[%s513 + $0x450] sm:$0xff]
        %v787 = vld [vmem:[%s513 + $0x458] sm:$0xff]
        %v788 = vld [vmem:[%s513 + $0x460] sm:$0xff]
        %v789 = vld [vmem:[%s513 + $0x468] sm:$0xff]
        %v790 = vld [vmem:[%s513 + $0x470] sm:$0xff]
        %v791 = vld [vmem:[%s513 + $0x478] sm:$0xff]
        %v792 = vld [vmem:[%s513 + $0x480] sm:$0xff]
        %v793 = vld [vmem:[%s513 + $0x488] sm:$0xff]
        %v794 = vld [vmem:[%s513 + $0x490] sm:$0xff]
        %v795 = vld [vmem:[%s513 + $0x498] sm:$0xff]
        %v796 = vld [vmem:[%s513 + $0x4a0] sm:$0xff]
        %v797 = vld [vmem:[%s513 + $0x4a8] sm:$0xff]
        %v798 = vld [vmem:[%s513 + $0x4b0] sm:$0xff]
        %v799 = vld [vmem:[%s513 + $0x4b8] sm:$0xff]
        %v800 = vld [vmem:[%s513 + $0x4c0] sm:$0xff]
        %v801 = vld [vmem:[%s513 + $0x4c8] sm:$0xff]
        %v802 = vld [vmem:[%s513 + $0x4d0] sm:$0xff]
        %v803 = vld [vmem:[%s513 + $0x4d8] sm:$0xff]
        %v804 = vld [vmem:[%s513 + $0x4e0] sm:$0xff]
        %v805 = vld [vmem:[%s513 + $0x4e8] sm:$0xff]
        %v806 = vld [vmem:[%s513 + $0x4f0] sm:$0xff]
        %v807 = vld [vmem:[%s513 + $0x4f8] sm:$0xff]
        %v808 = vld [vmem:[%s513 + $0x500] sm:$0xff]
        %v809 = vld [vmem:[%s513 + $0x508] sm:$0xff]
        %v810 = vld [vmem:[%s513 + $0x510] sm:$0xff]
        %v811 = vld [vmem:[%s513 + $0x518] sm:$0xff]
        %v812 = vld [vmem:[%s513 + $0x520] sm:$0xff]
        %v813 = vld [vmem:[%s513 + $0x528] sm:$0xff]
        %v814 = vld [vmem:[%s513 + $0x530] sm:$0xff]
        %v815 = vld [vmem:[%s513 + $0x538] sm:$0xff]
        %v816 = vld [vmem:[%s513 + $0x540] sm:$0xff]
        %v817 = vld [vmem:[%s513 + $0x548] sm:$0xff]
        %v818 = vld [vmem:[%s513 + $0x550] sm:$0xff]
        %v819 = vld [vmem:[%s513 + $0x558] sm:$0xff]
        %v820 = vld [vmem:[%s513 + $0x560] sm:$0xff]
        %v821 = vld [vmem:[%s513 + $0x568] sm:$0xff]
        %v822 = vld [vmem:[%s513 + $0x570] sm:$0xff]
        %v823 = vld [vmem:[%s513 + $0x578] sm:$0xff]
        %v824 = vld [vmem:[%s513 + $0x580] sm:$0xff]
        %v825 = vld [vmem:[%s513 + $0x588] sm:$0xff]
        %v826 = vld [vmem:[%s513 + $0x590] sm:$0xff]
        %v827 = vld [vmem:[%s513 + $0x598] sm:$0xff]
        %v828 = vld [vmem:[%s513 + $0x5a0] sm:$0xff]
        %v829 = vld [vmem:[%s513 + $0x5a8] sm:$0xff]
        %v830 = vld [vmem:[%s513 + $0x5b0] sm:$0xff]
        %v831 = vld [vmem:[%s513 + $0x5b8] sm:$0xff]
        %v832 = vld [vmem:[%s513 + $0x5c0] sm:$0xff]
        %v833 = vld [vmem:[%s513 + $0x5c8] sm:$0xff]
        %v834 = vld [vmem:[%s513 + $0x5d0] sm:$0xff]
        %v835 = vld [vmem:[%s513 + $0x5d8] sm:$0xff]
        %v836 = vld [vmem:[%s513 + $0x5e0] sm:$0xff]
        %v837 = vld [vmem:[%s513 + $0x5e8] sm:$0xff]
        %v838 = vld [vmem:[%s513 + $0x5f0] sm:$0xff]
        %v839 = vld [vmem:[%s513 + $0x5f8] sm:$0xff]
        %v840 = vld [vmem:[%s513 + $0x600] sm:$0xff]
        %v841 = vld [vmem:[%s513 + $0x608] sm:$0xff]
        %v842 = vld [vmem:[%s513 + $0x610] sm:$0xff]
        %v843 = vld [vmem:[%s513 + $0x618] sm:$0xff]
        %v844 = vld [vmem:[%s513 + $0x620] sm:$0xff]
        %v845 = vld [vmem:[%s513 + $0x628] sm:$0xff]
        %v846 = vld [vmem:[%s513 + $0x630] sm:$0xff]
        %v847 = vld [vmem:[%s513 + $0x638] sm:$0xff]
        %v848 = vld [vmem:[%s513 + $0x640] sm:$0xff]
        %v849 = vld [vmem:[%s513 + $0x648] sm:$0xff]
        %v850 = vld [vmem:[%s513 + $0x650] sm:$0xff]
        %v851 = vld [vmem:[%s513 + $0x658] sm:$0xff]
        %v852 = vld [vmem:[%s513 + $0x660] sm:$0xff]
        %v853 = vld [vmem:[%s513 + $0x668] sm:$0xff]
        %v854 = vld [vmem:[%s513 + $0x670] sm:$0xff]
        %v855 = vld [vmem:[%s513 + $0x678] sm:$0xff]
        %v856 = vld [vmem:[%s513 + $0x680] sm:$0xff]
        %v857 = vld [vmem:[%s513 + $0x688] sm:$0xff]
        %v858 = vld [vmem:[%s513 + $0x690] sm:$0xff]
        %v859 = vld [vmem:[%s513 + $0x698] sm:$0xff]
        %v860 = vld [vmem:[%s513 + $0x6a0] sm:$0xff]
        %v861 = vld [vmem:[%s513 + $0x6a8] sm:$0xff]
        %v862 = vld [vmem:[%s513 + $0x6b0] sm:$0xff]
        %v863 = vld [vmem:[%s513 + $0x6b8] sm:$0xff]
        %v864 = vld [vmem:[%s513 + $0x6c0] sm:$0xff]
        %v865 = vld [vmem:[%s513 + $0x6c8] sm:$0xff]
        %v866 = vld [vmem:[%s513 + $0x6d0] sm:$0xff]
        %v867 = vld [vmem:[%s513 + $0x6d8] sm:$0xff]
        %v868 = vld [vmem:[%s513 + $0x6e0] sm:$0xff]
        %v869 = vld [vmem:[%s513 + $0x6e8] sm:$0xff]
        %v870 = vld [vmem:[%s513 + $0x6f0] sm:$0xff]
        %v871 = vld [vmem:[%s513 + $0x6f8] sm:$0xff]
        %v872 = vld [vmem:[%s513 + $0x700] sm:$0xff]
        %v873 = vld [vmem:[%s513 + $0x708] sm:$0xff]
        %v874 = vld [vmem:[%s513 + $0x710] sm:$0xff]
        %v875 = vld [vmem:[%s513 + $0x718] sm:$0xff]
        %v876 = vld [vmem:[%s513 + $0x720] sm:$0xff]
        %v877 = vld [vmem:[%s513 + $0x728] sm:$0xff]
        %v878 = vld [vmem:[%s513 + $0x730] sm:$0xff]
        %v879 = vld [vmem:[%s513 + $0x738] sm:$0xff]
        %v880 = vld [vmem:[%s513 + $0x740] sm:$0xff]
        %v881 = vld [vmem:[%s513 + $0x748] sm:$0xff]
        %v882 = vld [vmem:[%s513 + $0x750] sm:$0xff]
        %v883 = vld [vmem:[%s513 + $0x758] sm:$0xff]
        %v884 = vld [vmem:[%s513 + $0x760] sm:$0xff]
        %v885 = vld [vmem:[%s513 + $0x768] sm:$0xff]
        %v886 = vld [vmem:[%s513 + $0x770] sm:$0xff]
        %v887 = vld [vmem:[%s513 + $0x778] sm:$0xff]
        %v888 = vld [vmem:[%s513 + $0x780] sm:$0xff]
        %v889 = vld [vmem:[%s513 + $0x788] sm:$0xff]
        %v890 = vld [vmem:[%s513 + $0x790] sm:$0xff]
        %v891 = vld [vmem:[%s513 + $0x798] sm:$0xff]
        %v892 = vld [vmem:[%s513 + $0x7a0] sm:$0xff]
        %v893 = vld [vmem:[%s513 + $0x7a8] sm:$0xff]
        %v894 = vld [vmem:[%s513 + $0x7b0] sm:$0xff]
        %v895 = vld [vmem:[%s513 + $0x7b8] sm:$0xff]
        %v896 = vld [vmem:[%s513 + $0x7c0] sm:$0xff]
        %v897 = vld [vmem:[%s513 + $0x7c8] sm:$0xff]
        %v898 = vld [vmem:[%s513 + $0x7d0] sm:$0xff]
        %v899 = vld [vmem:[%s513 + $0x7d8] sm:$0xff]
        %v900 = vld [vmem:[%s513 + $0x7e0] sm:$0xff]
        %v901 = vld [vmem:[%s513 + $0x7e8] sm:$0xff]
        %v902 = vld [vmem:[%s513 + $0x7f0] sm:$0xff]
        %v903 = vld [vmem:[%s513 + $0x7f8] sm:$0xff]
        %v904 = vld [vmem:[%s513 + $0x800] sm:$0xff]
        %v905 = vld [vmem:[%s513 + $0x808] sm:$0xff]
        %v906 = vld [vmem:[%s513 + $0x810] sm:$0xff]
        %v907 = vld [vmem:[%s513 + $0x818] sm:$0xff]
        %v908 = vld [vmem:[%s513 + $0x820] sm:$0xff]
        %v909 = vld [vmem:[%s513 + $0x828] sm:$0xff]
        %v910 = vld [vmem:[%s513 + $0x830] sm:$0xff]
        %v911 = vld [vmem:[%s513 + $0x838] sm:$0xff]
        %v912 = vld [vmem:[%s513 + $0x840] sm:$0xff]
        %v913 = vld [vmem:[%s513 + $0x848] sm:$0xff]
        %v914 = vld [vmem:[%s513 + $0x850] sm:$0xff]
        %v915 = vld [vmem:[%s513 + $0x858] sm:$0xff]
        %v916 = vld [vmem:[%s513 + $0x860] sm:$0xff]
        %v917 = vld [vmem:[%s513 + $0x868] sm:$0xff]
        %v918 = vld [vmem:[%s513 + $0x870] sm:$0xff]
        %v919 = vld [vmem:[%s513 + $0x878] sm:$0xff]
        %v920 = vld [vmem:[%s513 + $0x880] sm:$0xff]
        %v921 = vld [vmem:[%s513 + $0x888] sm:$0xff]
        %v922 = vld [vmem:[%s513 + $0x890] sm:$0xff]
        %v923 = vld [vmem:[%s513 + $0x898] sm:$0xff]
        %v924 = vld [vmem:[%s513 + $0x8a0] sm:$0xff]
        %v925 = vld [vmem:[%s513 + $0x8a8] sm:$0xff]
        %v926 = vld [vmem:[%s513 + $0x8b0] sm:$0xff]
        %v927 = vld [vmem:[%s513 + $0x8b8] sm:$0xff]
        %v928 = vld [vmem:[%s513 + $0x8c0] sm:$0xff]
        %v929 = vld [vmem:[%s513 + $0x8c8] sm:$0xff]
        %v930 = vld [vmem:[%s513 + $0x8d0] sm:$0xff]
        %v931 = vld [vmem:[%s513 + $0x8d8] sm:$0xff]
        %v932 = vld [vmem:[%s513 + $0x8e0] sm:$0xff]
        %v933 = vld [vmem:[%s513 + $0x8e8] sm:$0xff]
        %v934 = vld [vmem:[%s513 + $0x8f0] sm:$0xff]
        %v935 = vld [vmem:[%s513 + $0x8f8] sm:$0xff]
        %v936 = vld [vmem:[%s513 + $0x900] sm:$0xff]
        %v937 = vld [vmem:[%s513 + $0x908] sm:$0xff]
        %v938 = vld [vmem:[%s513 + $0x910] sm:$0xff]
        %v939 = vld [vmem:[%s513 + $0x918] sm:$0xff]
        %v940 = vld [vmem:[%s513 + $0x920] sm:$0xff]
        %v941 = vld [vmem:[%s513 + $0x928] sm:$0xff]
        %v942 = vld [vmem:[%s513 + $0x930] sm:$0xff]
        %v943 = vld [vmem:[%s513 + $0x938] sm:$0xff]
        %v944 = vld [vmem:[%s513 + $0x940] sm:$0xff]
        %v945 = vld [vmem:[%s513 + $0x948] sm:$0xff]
        %v946 = vld [vmem:[%s513 + $0x950] sm:$0xff]
        %v947 = vld [vmem:[%s513 + $0x958] sm:$0xff]
        %v948 = vld [vmem:[%s513 + $0x960] sm:$0xff]
        %v949 = vld [vmem:[%s513 + $0x968] sm:$0xff]
        %v950 = vld [vmem:[%s513 + $0x970] sm:$0xff]
        %v951 = vld [vmem:[%s513 + $0x978] sm:$0xff]
        %v952 = vld [vmem:[%s513 + $0x980] sm:$0xff]
        %v953 = vld [vmem:[%s513 + $0x988] sm:$0xff]
        %v954 = vld [vmem:[%s513 + $0x990] sm:$0xff]
        %v955 = vld [vmem:[%s513 + $0x998] sm:$0xff]
        %v956 = vld [vmem:[%s513 + $0x9a0] sm:$0xff]
        %v957 = vld [vmem:[%s513 + $0x9a8] sm:$0xff]
        %v958 = vld [vmem:[%s513 + $0x9b0] sm:$0xff]
        %v959 = vld [vmem:[%s513 + $0x9b8] sm:$0xff]
        %v960 = vld [vmem:[%s513 + $0x9c0] sm:$0xff]
        %v961 = vld [vmem:[%s513 + $0x9c8] sm:$0xff]
        %v962 = vld [vmem:[%s513 + $0x9d0] sm:$0xff]
        %v963 = vld [vmem:[%s513 + $0x9d8] sm:$0xff]
        %v964 = vld [vmem:[%s513 + $0x9e0] sm:$0xff]
        %v965 = vld [vmem:[%s513 + $0x9e8] sm:$0xff]
        %v966 = vld [vmem:[%s513 + $0x9f0] sm:$0xff]
        %v967 = vld [vmem:[%s513 + $0x9f8] sm:$0xff]
        %v968 = vld [vmem:[%s513 + $0xa00] sm:$0xff]
        %v969 = vld [vmem:[%s513 + $0xa08] sm:$0xff]
        %v970 = vld [vmem:[%s513 + $0xa10] sm:$0xff]
        %v971 = vld [vmem:[%s513 + $0xa18] sm:$0xff]
        %v972 = vld [vmem:[%s513 + $0xa20] sm:$0xff]
        %v973 = vld [vmem:[%s513 + $0xa28] sm:$0xff]
        %v974 = vld [vmem:[%s513 + $0xa30] sm:$0xff]
        %v975 = vld [vmem:[%s513 + $0xa38] sm:$0xff]
        %v976 = vld [vmem:[%s513 + $0xa40] sm:$0xff]
        %v977 = vld [vmem:[%s513 + $0xa48] sm:$0xff]
        %v978 = vld [vmem:[%s513 + $0xa50] sm:$0xff]
        %v979 = vld [vmem:[%s513 + $0xa58] sm:$0xff]
        %v980 = vld [vmem:[%s513 + $0xa60] sm:$0xff]
        %v981 = vld [vmem:[%s513 + $0xa68] sm:$0xff]
        %v982 = vld [vmem:[%s513 + $0xa70] sm:$0xff]
        %v983 = vld [vmem:[%s513 + $0xa78] sm:$0xff]
        %v984 = vld [vmem:[%s513 + $0xa80] sm:$0xff]
        %v985 = vld [vmem:[%s513 + $0xa88] sm:$0xff]
        %v986 = vld [vmem:[%s513 + $0xa90] sm:$0xff]
        %v987 = vld [vmem:[%s513 + $0xa98] sm:$0xff]
        %v988 = vld [vmem:[%s513 + $0xaa0] sm:$0xff]
        %v989 = vld [vmem:[%s513 + $0xaa8] sm:$0xff]
        %v990 = vld [vmem:[%s513 + $0xab0] sm:$0xff]
        %v991 = vld [vmem:[%s513 + $0xab8] sm:$0xff]
        %v992 = vld [vmem:[%s513 + $0xac0] sm:$0xff]
        %v993 = vld [vmem:[%s513 + $0xac8] sm:$0xff]
        %v994 = vld [vmem:[%s513 + $0xad0] sm:$0xff]
        %v995 = vld [vmem:[%s513 + $0xad8] sm:$0xff]
        %v996 = vld [vmem:[%s513 + $0xae0] sm:$0xff]
        %v997 = vld [vmem:[%s513 + $0xae8] sm:$0xff]
        %v998 = vld [vmem:[%s513 + $0xaf0] sm:$0xff]
        %v999 = vld [vmem:[%s513 + $0xaf8] sm:$0xff]
        %v1000 = vld [vmem:[%s513 + $0xb00] sm:$0xff]
        %v1001 = vld [vmem:[%s513 + $0xb08] sm:$0xff]
        %v1002 = vld [vmem:[%s513 + $0xb10] sm:$0xff]
        %v1003 = vld [vmem:[%s513 + $0xb18] sm:$0xff]
        %v1004 = vld [vmem:[%s513 + $0xb20] sm:$0xff]
        %v1005 = vld [vmem:[%s513 + $0xb28] sm:$0xff]
        %v1006 = vld [vmem:[%s513 + $0xb30] sm:$0xff]
        %v1007 = vld [vmem:[%s513 + $0xb38] sm:$0xff]
        %v1008 = vld [vmem:[%s513 + $0xb40] sm:$0xff]
        %v1009 = vld [vmem:[%s513 + $0xb48] sm:$0xff]
        %v1010 = vld [vmem:[%s513 + $0xb50] sm:$0xff]
        %v1011 = vld [vmem:[%s513 + $0xb58] sm:$0xff]
        %v1012 = vld [vmem:[%s513 + $0xb60] sm:$0xff]
        %v1013 = vld [vmem:[%s513 + $0xb68] sm:$0xff]
        %v1014 = vld [vmem:[%s513 + $0xb70] sm:$0xff]
        %v1015 = vld [vmem:[%s513 + $0xb78] sm:$0xff]
        %v1016 = vld [vmem:[%s513 + $0xb80] sm:$0xff]
        %v1017 = vld [vmem:[%s513 + $0xb88] sm:$0xff]
        %v1018 = vld [vmem:[%s513 + $0xb90] sm:$0xff]
        %v1019 = vld [vmem:[%s513 + $0xb98] sm:$0xff]
        %v1020 = vld [vmem:[%s513 + $0xba0] sm:$0xff]
        %v1021 = vld [vmem:[%s513 + $0xba8] sm:$0xff]
        %v1022 = vld [vmem:[%s513 + $0xbb0] sm:$0xff]
        %v1023 = vld [vmem:[%s513 + $0xbb8] sm:$0xff]
        %v1024 = vld [vmem:[%s513 + $0xbc0] sm:$0xff]
        %v1025 = vld [vmem:[%s513 + $0xbc8] sm:$0xff]
        %v1026 = vld [vmem:[%s513 + $0xbd0] sm:$0xff]
        %v1027 = vld [vmem:[%s513 + $0xbd8] sm:$0xff]
        %v1028 = vld [vmem:[%s513 + $0xbe0] sm:$0xff]
        %v1029 = vld [vmem:[%s513 + $0xbe8] sm:$0xff]
        %v1030 = vld [vmem:[%s513 + $0xbf0] sm:$0xff]
        %v1031 = vld [vmem:[%s513 + $0xbf8] sm:$0xff]
        %v1034 = vunpack.c.l.b16 %v646
        %v1035 = vunpack.c.h.b16 %v646
        %v1036 = vunpack.c.l.b16 %v647
        %v1037 = vunpack.c.h.b16 %v647
        %v1038 = vpack.c.b16 %v1034, %v1034
        %v1039 = vpack.c.b16 %v1035, %v1035
        %v1040 = vpack.c.b16 %v1036, %v1036
        %v1041 = vpack.c.b16 %v1037, %v1037
        %v1430 = vunpack.c.l.b16 %v648
        %v1431 = vunpack.c.h.b16 %v648
        %v1432 = vunpack.c.l.b16 %v649
        %v1433 = vunpack.c.h.b16 %v649
        %v1434 = vunpack.c.l.b16 %v650
        %v1435 = vunpack.c.h.b16 %v650
        %v1436 = vunpack.c.l.b16 %v651
        %v1437 = vunpack.c.h.b16 %v651
        %v1438 = vunpack.c.l.b16 %v652
        %v1439 = vunpack.c.h.b16 %v652
        %v1440 = vunpack.c.l.b16 %v653
        %v1441 = vunpack.c.h.b16 %v653
        %v1442 = vunpack.c.l.b16 %v654
        %v1443 = vunpack.c.h.b16 %v654
        %v1444 = vunpack.c.l.b16 %v655
        %v1445 = vunpack.c.h.b16 %v655
        %v1446 = vunpack.c.l.b16 %v656
        %v1447 = vunpack.c.h.b16 %v656
        %v1448 = vunpack.c.l.b16 %v657
        %v1449 = vunpack.c.h.b16 %v657
        %v1450 = vunpack.c.l.b16 %v658
        %v1451 = vunpack.c.h.b16 %v658
        %v1452 = vunpack.c.l.b16 %v659
        %v1453 = vunpack.c.h.b16 %v659
        %v1454 = vunpack.c.l.b16 %v660
        %v1455 = vunpack.c.h.b16 %v660
        %v1456 = vunpack.c.l.b16 %v661
        %v1457 = vunpack.c.h.b16 %v661
        %v1458 = vunpack.c.l.b16 %v662
        %v1459 = vunpack.c.h.b16 %v662
        %v1460 = vunpack.c.l.b16 %v663
        %v1461 = vunpack.c.h.b16 %v663
        %v1462 = vunpack.c.l.b16 %v664
        %v1463 = vunpack.c.h.b16 %v664
        %v1464 = vunpack.c.l.b16 %v665
        %v1465 = vunpack.c.h.b16 %v665
        %v1466 = vunpack.c.l.b16 %v666
        %v1467 = vunpack.c.h.b16 %v666
        %v1468 = vunpack.c.l.b16 %v667
        %v1469 = vunpack.c.h.b16 %v667
        %v1470 = vunpack.c.l.b16 %v668
        %v1471 = vunpack.c.h.b16 %v668
        %v1472 = vunpack.c.l.b16 %v669
        %v1473 = vunpack.c.h.b16 %v669
        %v1474 = vunpack.c.l.b16 %v670
        %v1475 = vunpack.c.h.b16 %v670
        %v1476 = vunpack.c.l.b16 %v671
        %v1477 = vunpack.c.h.b16 %v671
        %v1478 = vunpack.c.l.b16 %v672
        %v1479 = vunpack.c.h.b16 %v672
        %v1480 = vunpack.c.l.b16 %v673
        %v1481 = vunpack.c.h.b16 %v673
        %v1482 = vunpack.c.l.b16 %v674
        %v1483 = vunpack.c.h.b16 %v674
        %v1484 = vunpack.c.l.b16 %v675
        %v1485 = vunpack.c.h.b16 %v675
        %v1486 = vunpack.c.l.b16 %v676
        %v1487 = vunpack.c.h.b16 %v676
        %v1488 = vunpack.c.l.b16 %v677
        %v1489 = vunpack.c.h.b16 %v677
        %v1490 = vunpack.c.l.b16 %v678
        %v1491 = vunpack.c.h.b16 %v678
        %v1492 = vunpack.c.l.b16 %v679
        %v1493 = vunpack.c.h.b16 %v679
        %v1494 = vunpack.c.l.b16 %v680
        %v1495 = vunpack.c.h.b16 %v680
        %v1496 = vunpack.c.l.b16 %v681
        %v1497 = vunpack.c.h.b16 %v681
        %v1498 = vunpack.c.l.b16 %v682
        %v1499 = vunpack.c.h.b16 %v682
        %v1500 = vunpack.c.l.b16 %v683
        %v1501 = vunpack.c.h.b16 %v683
        %v1502 = vunpack.c.l.b16 %v684
        %v1503 = vunpack.c.h.b16 %v684
        %v1504 = vunpack.c.l.b16 %v685
        %v1505 = vunpack.c.h.b16 %v685
        %v1506 = vunpack.c.l.b16 %v686
        %v1507 = vunpack.c.h.b16 %v686
        %v1508 = vunpack.c.l.b16 %v687
        %v1509 = vunpack.c.h.b16 %v687
        %v1510 = vunpack.c.l.b16 %v688
        %v1511 = vunpack.c.h.b16 %v688
        %v1512 = vunpack.c.l.b16 %v689
        %v1513 = vunpack.c.h.b16 %v689
        %v1514 = vunpack.c.l.b16 %v690
        %v1515 = vunpack.c.h.b16 %v690
        %v1516 = vunpack.c.l.b16 %v691
        %v1517 = vunpack.c.h.b16 %v691
        %v1518 = vunpack.c.l.b16 %v692
        %v1519 = vunpack.c.h.b16 %v692
        %v1520 = vunpack.c.l.b16 %v693
        %v1521 = vunpack.c.h.b16 %v693
        %v1522 = vunpack.c.l.b16 %v694
        %v1523 = vunpack.c.h.b16 %v694
        %v1524 = vunpack.c.l.b16 %v695
        %v1525 = vunpack.c.h.b16 %v695
        %v1526 = vunpack.c.l.b16 %v696
        %v1527 = vunpack.c.h.b16 %v696
        %v1528 = vunpack.c.l.b16 %v697
        %v1529 = vunpack.c.h.b16 %v697
        %v1530 = vunpack.c.l.b16 %v698
        %v1531 = vunpack.c.h.b16 %v698
        %v1532 = vunpack.c.l.b16 %v699
        %v1533 = vunpack.c.h.b16 %v699
        %v1534 = vunpack.c.l.b16 %v700
        %v1535 = vunpack.c.h.b16 %v700
        %v1536 = vunpack.c.l.b16 %v701
        %v1537 = vunpack.c.h.b16 %v701
        %v1538 = vunpack.c.l.b16 %v702
        %v1539 = vunpack.c.h.b16 %v702
        %v1540 = vunpack.c.l.b16 %v703
        %v1541 = vunpack.c.h.b16 %v703
        %v1542 = vunpack.c.l.b16 %v704
        %v1543 = vunpack.c.h.b16 %v704
        %v1544 = vunpack.c.l.b16 %v705
        %v1545 = vunpack.c.h.b16 %v705
        %v1546 = vunpack.c.l.b16 %v706
        %v1547 = vunpack.c.h.b16 %v706
        %v1548 = vunpack.c.l.b16 %v707
        %v1549 = vunpack.c.h.b16 %v707
        %v1550 = vunpack.c.l.b16 %v708
        %v1551 = vunpack.c.h.b16 %v708
        %v1552 = vunpack.c.l.b16 %v709
        %v1553 = vunpack.c.h.b16 %v709
        %v1554 = vunpack.c.l.b16 %v710
        %v1555 = vunpack.c.h.b16 %v710
        %v1556 = vunpack.c.l.b16 %v711
        %v1557 = vunpack.c.h.b16 %v711
        %v1558 = vunpack.c.l.b16 %v712
        %v1559 = vunpack.c.h.b16 %v712
        %v1560 = vunpack.c.l.b16 %v713
        %v1561 = vunpack.c.h.b16 %v713
        %v1562 = vunpack.c.l.b16 %v714
        %v1563 = vunpack.c.h.b16 %v714
        %v1564 = vunpack.c.l.b16 %v715
        %v1565 = vunpack.c.h.b16 %v715
        %v1566 = vunpack.c.l.b16 %v716
        %v1567 = vunpack.c.h.b16 %v716
        %v1568 = vunpack.c.l.b16 %v717
        %v1569 = vunpack.c.h.b16 %v717
        %v1570 = vunpack.c.l.b16 %v718
        %v1571 = vunpack.c.h.b16 %v718
        %v1572 = vunpack.c.l.b16 %v719
        %v1573 = vunpack.c.h.b16 %v719
        %v1574 = vunpack.c.l.b16 %v720
        %v1575 = vunpack.c.h.b16 %v720
        %v1576 = vunpack.c.l.b16 %v721
        %v1577 = vunpack.c.h.b16 %v721
        %v1578 = vunpack.c.l.b16 %v722
        %v1579 = vunpack.c.h.b16 %v722
        %v1580 = vunpack.c.l.b16 %v723
        %v1581 = vunpack.c.h.b16 %v723
        %v1582 = vunpack.c.l.b16 %v724
        %v1583 = vunpack.c.h.b16 %v724
        %v1584 = vunpack.c.l.b16 %v725
        %v1585 = vunpack.c.h.b16 %v725
        %v1586 = vunpack.c.l.b16 %v726
        %v1587 = vunpack.c.h.b16 %v726
        %v1588 = vunpack.c.l.b16 %v727
        %v1589 = vunpack.c.h.b16 %v727
        %v1590 = vunpack.c.l.b16 %v728
        %v1591 = vunpack.c.h.b16 %v728
        %v1592 = vunpack.c.l.b16 %v729
        %v1593 = vunpack.c.h.b16 %v729
        %v1594 = vunpack.c.l.b16 %v730
        %v1595 = vunpack.c.h.b16 %v730
        %v1596 = vunpack.c.l.b16 %v731
        %v1597 = vunpack.c.h.b16 %v731
        %v1598 = vunpack.c.l.b16 %v732
        %v1599 = vunpack.c.h.b16 %v732
        %v1600 = vunpack.c.l.b16 %v733
        %v1601 = vunpack.c.h.b16 %v733
        %v1602 = vunpack.c.l.b16 %v734
        %v1603 = vunpack.c.h.b16 %v734
        %v1604 = vunpack.c.l.b16 %v735
        %v1605 = vunpack.c.h.b16 %v735
        %v1606 = vunpack.c.l.b16 %v736
        %v1607 = vunpack.c.h.b16 %v736
        %v1608 = vunpack.c.l.b16 %v737
        %v1609 = vunpack.c.h.b16 %v737
        %v1610 = vunpack.c.l.b16 %v738
        %v1611 = vunpack.c.h.b16 %v738
        %v1612 = vunpack.c.l.b16 %v739
        %v1613 = vunpack.c.h.b16 %v739
        %v1614 = vunpack.c.l.b16 %v740
        %v1615 = vunpack.c.h.b16 %v740
        %v1616 = vunpack.c.l.b16 %v741
        %v1617 = vunpack.c.h.b16 %v741
        %v1618 = vunpack.c.l.b16 %v742
        %v1619 = vunpack.c.h.b16 %v742
        %v1620 = vunpack.c.l.b16 %v743
        %v1621 = vunpack.c.h.b16 %v743
        %v1622 = vunpack.c.l.b16 %v744
        %v1623 = vunpack.c.h.b16 %v744
        %v1624 = vunpack.c.l.b16 %v745
        %v1625 = vunpack.c.h.b16 %v745
        %v1626 = vunpack.c.l.b16 %v746
        %v1627 = vunpack.c.h.b16 %v746
        %v1628 = vunpack.c.l.b16 %v747
        %v1629 = vunpack.c.h.b16 %v747
        %v1630 = vunpack.c.l.b16 %v748
        %v1631 = vunpack.c.h.b16 %v748
        %v1632 = vunpack.c.l.b16 %v749
        %v1633 = vunpack.c.h.b16 %v749
        %v1634 = vunpack.c.l.b16 %v750
        %v1635 = vunpack.c.h.b16 %v750
        %v1636 = vunpack.c.l.b16 %v751
        %v1637 = vunpack.c.h.b16 %v751
        %v1638 = vunpack.c.l.b16 %v752
        %v1639 = vunpack.c.h.b16 %v752
        %v1640 = vunpack.c.l.b16 %v753
        %v1641 = vunpack.c.h.b16 %v753
        %v1642 = vunpack.c.l.b16 %v754
        %v1643 = vunpack.c.h.b16 %v754
        %v1644 = vunpack.c.l.b16 %v755
        %v1645 = vunpack.c.h.b16 %v755
        %v1646 = vunpack.c.l.b16 %v756
        %v1647 = vunpack.c.h.b16 %v756
        %v1648 = vunpack.c.l.b16 %v757
        %v1649 = vunpack.c.h.b16 %v757
        %v1650 = vunpack.c.l.b16 %v758
        %v1651 = vunpack.c.h.b16 %v758
        %v1652 = vunpack.c.l.b16 %v759
        %v1653 = vunpack.c.h.b16 %v759
        %v1654 = vunpack.c.l.b16 %v760
        %v1655 = vunpack.c.h.b16 %v760
        %v1656 = vunpack.c.l.b16 %v761
        %v1657 = vunpack.c.h.b16 %v761
        %v1658 = vunpack.c.l.b16 %v762
        %v1659 = vunpack.c.h.b16 %v762
        %v1660 = vunpack.c.l.b16 %v763
        %v1661 = vunpack.c.h.b16 %v763
        %v1662 = vunpack.c.l.b16 %v764
        %v1663 = vunpack.c.h.b16 %v764
        %v1664 = vunpack.c.l.b16 %v765
        %v1665 = vunpack.c.h.b16 %v765
        %v1666 = vunpack.c.l.b16 %v766
        %v1667 = vunpack.c.h.b16 %v766
        %v1668 = vunpack.c.l.b16 %v767
        %v1669 = vunpack.c.h.b16 %v767
        %v1670 = vunpack.c.l.b16 %v768
        %v1671 = vunpack.c.h.b16 %v768
        %v1672 = vunpack.c.l.b16 %v769
        %v1673 = vunpack.c.h.b16 %v769
        %v1674 = vunpack.c.l.b16 %v770
        %v1675 = vunpack.c.h.b16 %v770
        %v1676 = vunpack.c.l.b16 %v771
        %v1677 = vunpack.c.h.b16 %v771
        %v1678 = vunpack.c.l.b16 %v772
        %v1679 = vunpack.c.h.b16 %v772
        %v1680 = vunpack.c.l.b16 %v773
        %v1681 = vunpack.c.h.b16 %v773
        %v1682 = vunpack.c.l.b16 %v774
        %v1683 = vunpack.c.h.b16 %v774
        %v1684 = vunpack.c.l.b16 %v775
        %v1685 = vunpack.c.h.b16 %v775
        %v1686 = vunpack.c.l.b16 %v776
        %v1687 = vunpack.c.h.b16 %v776
        %v1688 = vunpack.c.l.b16 %v777
        %v1689 = vunpack.c.h.b16 %v777
        %v1690 = vunpack.c.l.b16 %v778
        %v1691 = vunpack.c.h.b16 %v778
        %v1692 = vunpack.c.l.b16 %v779
        %v1693 = vunpack.c.h.b16 %v779
        %v1694 = vunpack.c.l.b16 %v780
        %v1695 = vunpack.c.h.b16 %v780
        %v1696 = vunpack.c.l.b16 %v781
        %v1697 = vunpack.c.h.b16 %v781
        %v1698 = vunpack.c.l.b16 %v782
        %v1699 = vunpack.c.h.b16 %v782
        %v1700 = vunpack.c.l.b16 %v783
        %v1701 = vunpack.c.h.b16 %v783
        %v1702 = vunpack.c.l.b16 %v784
        %v1703 = vunpack.c.h.b16 %v784
        %v1704 = vunpack.c.l.b16 %v785
        %v1705 = vunpack.c.h.b16 %v785
        %v1706 = vunpack.c.l.b16 %v786
        %v1707 = vunpack.c.h.b16 %v786
        %v1708 = vunpack.c.l.b16 %v787
        %v1709 = vunpack.c.h.b16 %v787
        %v1710 = vunpack.c.l.b16 %v788
        %v1711 = vunpack.c.h.b16 %v788
        %v1712 = vunpack.c.l.b16 %v789
        %v1713 = vunpack.c.h.b16 %v789
        %v1714 = vunpack.c.l.b16 %v790
        %v1715 = vunpack.c.h.b16 %v790
        %v1716 = vunpack.c.l.b16 %v791
        %v1717 = vunpack.c.h.b16 %v791
        %v1718 = vunpack.c.l.b16 %v792
        %v1719 = vunpack.c.h.b16 %v792
        %v1720 = vunpack.c.l.b16 %v793
        %v1721 = vunpack.c.h.b16 %v793
        %v1722 = vunpack.c.l.b16 %v794
        %v1723 = vunpack.c.h.b16 %v794
        %v1724 = vunpack.c.l.b16 %v795
        %v1725 = vunpack.c.h.b16 %v795
        %v1726 = vunpack.c.l.b16 %v796
        %v1727 = vunpack.c.h.b16 %v796
        %v1728 = vunpack.c.l.b16 %v797
        %v1729 = vunpack.c.h.b16 %v797
        %v1730 = vunpack.c.l.b16 %v798
        %v1731 = vunpack.c.h.b16 %v798
        %v1732 = vunpack.c.l.b16 %v799
        %v1733 = vunpack.c.h.b16 %v799
        %v1734 = vunpack.c.l.b16 %v800
        %v1735 = vunpack.c.h.b16 %v800
        %v1736 = vunpack.c.l.b16 %v801
        %v1737 = vunpack.c.h.b16 %v801
        %v1738 = vunpack.c.l.b16 %v802
        %v1739 = vunpack.c.h.b16 %v802
        %v1740 = vunpack.c.l.b16 %v803
        %v1741 = vunpack.c.h.b16 %v803
        %v1742 = vunpack.c.l.b16 %v804
        %v1743 = vunpack.c.h.b16 %v804
        %v1744 = vunpack.c.l.b16 %v805
        %v1745 = vunpack.c.h.b16 %v805
        %v1746 = vunpack.c.l.b16 %v806
        %v1747 = vunpack.c.h.b16 %v806
        %v1748 = vunpack.c.l.b16 %v807
        %v1749 = vunpack.c.h.b16 %v807
        %v1750 = vunpack.c.l.b16 %v808
        %v1751 = vunpack.c.h.b16 %v808
        %v1752 = vunpack.c.l.b16 %v809
        %v1753 = vunpack.c.h.b16 %v809
        %v1754 = vunpack.c.l.b16 %v810
        %v1755 = vunpack.c.h.b16 %v810
        %v1756 = vunpack.c.l.b16 %v811
        %v1757 = vunpack.c.h.b16 %v811
        %v1758 = vunpack.c.l.b16 %v812
        %v1759 = vunpack.c.h.b16 %v812
        %v1760 = vunpack.c.l.b16 %v813
        %v1761 = vunpack.c.h.b16 %v813
        %v1762 = vunpack.c.l.b16 %v814
        %v1763 = vunpack.c.h.b16 %v814
        %v1764 = vunpack.c.l.b16 %v815
        %v1765 = vunpack.c.h.b16 %v815
        %v1766 = vunpack.c.l.b16 %v816
        %v1767 = vunpack.c.h.b16 %v816
        %v1768 = vunpack.c.l.b16 %v817
        %v1769 = vunpack.c.h.b16 %v817
        %v1770 = vunpack.c.l.b16 %v818
        %v1771 = vunpack.c.h.b16 %v818
        %v1772 = vunpack.c.l.b16 %v819
        %v1773 = vunpack.c.h.b16 %v819
        %v1774 = vunpack.c.l.b16 %v820
        %v1775 = vunpack.c.h.b16 %v820
        %v1776 = vunpack.c.l.b16 %v821
        %v1777 = vunpack.c.h.b16 %v821
        %v1778 = vunpack.c.l.b16 %v822
        %v1779 = vunpack.c.h.b16 %v822
        %v1780 = vunpack.c.l.b16 %v823
        %v1781 = vunpack.c.h.b16 %v823
        %v1782 = vunpack.c.l.b16 %v824
        %v1783 = vunpack.c.h.b16 %v824
        %v1784 = vunpack.c.l.b16 %v825
        %v1785 = vunpack.c.h.b16 %v825
        %v1786 = vunpack.c.l.b16 %v826
        %v1787 = vunpack.c.h.b16 %v826
        %v1788 = vunpack.c.l.b16 %v827
        %v1789 = vunpack.c.h.b16 %v827
        %v1790 = vunpack.c.l.b16 %v828
        %v1791 = vunpack.c.h.b16 %v828
        %v1792 = vunpack.c.l.b16 %v829
        %v1793 = vunpack.c.h.b16 %v829
        %v1794 = vunpack.c.l.b16 %v830
        %v1795 = vunpack.c.h.b16 %v830
        %v1796 = vunpack.c.l.b16 %v831
        %v1797 = vunpack.c.h.b16 %v831
        %v1798 = vunpack.c.l.b16 %v832
        %v1799 = vunpack.c.h.b16 %v832
        %v1800 = vunpack.c.l.b16 %v833
        %v1801 = vunpack.c.h.b16 %v833
        %v1802 = vunpack.c.l.b16 %v834
        %v1803 = vunpack.c.h.b16 %v834
        %v1804 = vunpack.c.l.b16 %v835
        %v1805 = vunpack.c.h.b16 %v835
        %v1806 = vunpack.c.l.b16 %v836
        %v1807 = vunpack.c.h.b16 %v836
        %v1808 = vunpack.c.l.b16 %v837
        %v1809 = vunpack.c.h.b16 %v837
        %v1810 = vunpack.c.l.b16 %v838
        %v1811 = vunpack.c.h.b16 %v838
        %v1812 = vunpack.c.l.b16 %v839
        %v1813 = vunpack.c.h.b16 %v839
        %v1814 = vunpack.c.l.b16 %v840
        %v1815 = vunpack.c.h.b16 %v840
        %v1816 = vunpack.c.l.b16 %v841
        %v1817 = vunpack.c.h.b16 %v841
        %v1818 = vunpack.c.l.b16 %v842
        %v1819 = vunpack.c.h.b16 %v842
        %v1820 = vunpack.c.l.b16 %v843
        %v1821 = vunpack.c.h.b16 %v843
        %v1822 = vunpack.c.l.b16 %v844
        %v1823 = vunpack.c.h.b16 %v844
        %v1824 = vunpack.c.l.b16 %v845
        %v1825 = vunpack.c.h.b16 %v845
        %v1826 = vunpack.c.l.b16 %v846
        %v1827 = vunpack.c.h.b16 %v846
        %v1828 = vunpack.c.l.b16 %v847
        %v1829 = vunpack.c.h.b16 %v847
        %v1830 = vunpack.c.l.b16 %v848
        %v1831 = vunpack.c.h.b16 %v848
        %v1832 = vunpack.c.l.b16 %v849
        %v1833 = vunpack.c.h.b16 %v849
        %v1834 = vunpack.c.l.b16 %v850
        %v1835 = vunpack.c.h.b16 %v850
        %v1836 = vunpack.c.l.b16 %v851
        %v1837 = vunpack.c.h.b16 %v851
        %v1838 = vunpack.c.l.b16 %v852
        %v1839 = vunpack.c.h.b16 %v852
        %v1840 = vunpack.c.l.b16 %v853
        %v1841 = vunpack.c.h.b16 %v853
        %v1842 = vunpack.c.l.b16 %v854
        %v1843 = vunpack.c.h.b16 %v854
        %v1844 = vunpack.c.l.b16 %v855
        %v1845 = vunpack.c.h.b16 %v855
        %v1846 = vunpack.c.l.b16 %v856
        %v1847 = vunpack.c.h.b16 %v856
        %v1848 = vunpack.c.l.b16 %v857
        %v1849 = vunpack.c.h.b16 %v857
        %v1850 = vunpack.c.l.b16 %v858
        %v1851 = vunpack.c.h.b16 %v858
        %v1852 = vunpack.c.l.b16 %v859
        %v1853 = vunpack.c.h.b16 %v859
        %v1854 = vunpack.c.l.b16 %v860
        %v1855 = vunpack.c.h.b16 %v860
        %v1856 = vunpack.c.l.b16 %v861
        %v1857 = vunpack.c.h.b16 %v861
        %v1858 = vunpack.c.l.b16 %v862
        %v1859 = vunpack.c.h.b16 %v862
        %v1860 = vunpack.c.l.b16 %v863
        %v1861 = vunpack.c.h.b16 %v863
        %v1862 = vunpack.c.l.b16 %v864
        %v1863 = vunpack.c.h.b16 %v864
        %v1864 = vunpack.c.l.b16 %v865
        %v1865 = vunpack.c.h.b16 %v865
        %v1866 = vunpack.c.l.b16 %v866
        %v1867 = vunpack.c.h.b16 %v866
        %v1868 = vunpack.c.l.b16 %v867
        %v1869 = vunpack.c.h.b16 %v867
        %v1870 = vunpack.c.l.b16 %v868
        %v1871 = vunpack.c.h.b16 %v868
        %v1872 = vunpack.c.l.b16 %v869
        %v1873 = vunpack.c.h.b16 %v869
        %v1874 = vunpack.c.l.b16 %v870
        %v1875 = vunpack.c.h.b16 %v870
        %v1876 = vunpack.c.l.b16 %v871
        %v1877 = vunpack.c.h.b16 %v871
        %v1878 = vunpack.c.l.b16 %v872
        %v1879 = vunpack.c.h.b16 %v872
        %v1880 = vunpack.c.l.b16 %v873
        %v1881 = vunpack.c.h.b16 %v873
        %v1882 = vunpack.c.l.b16 %v874
        %v1883 = vunpack.c.h.b16 %v874
        %v1884 = vunpack.c.l.b16 %v875
        %v1885 = vunpack.c.h.b16 %v875
        %v1886 = vunpack.c.l.b16 %v876
        %v1887 = vunpack.c.h.b16 %v876
        %v1888 = vunpack.c.l.b16 %v877
        %v1889 = vunpack.c.h.b16 %v877
        %v1890 = vunpack.c.l.b16 %v878
        %v1891 = vunpack.c.h.b16 %v878
        %v1892 = vunpack.c.l.b16 %v879
        %v1893 = vunpack.c.h.b16 %v879
        %v1894 = vunpack.c.l.b16 %v880
        %v1895 = vunpack.c.h.b16 %v880
        %v1896 = vunpack.c.l.b16 %v881
        %v1897 = vunpack.c.h.b16 %v881
        %v1898 = vunpack.c.l.b16 %v882
        %v1899 = vunpack.c.h.b16 %v882
        %v1900 = vunpack.c.l.b16 %v883
        %v1901 = vunpack.c.h.b16 %v883
        %v1902 = vunpack.c.l.b16 %v884
        %v1903 = vunpack.c.h.b16 %v884
        %v1904 = vunpack.c.l.b16 %v885
        %v1905 = vunpack.c.h.b16 %v885
        %v1906 = vunpack.c.l.b16 %v886
        %v1907 = vunpack.c.h.b16 %v886
        %v1908 = vunpack.c.l.b16 %v887
        %v1909 = vunpack.c.h.b16 %v887
        %v1910 = vunpack.c.l.b16 %v888
        %v1911 = vunpack.c.h.b16 %v888
        %v1912 = vunpack.c.l.b16 %v889
        %v1913 = vunpack.c.h.b16 %v889
        %v1914 = vunpack.c.l.b16 %v890
        %v1915 = vunpack.c.h.b16 %v890
        %v1916 = vunpack.c.l.b16 %v891
        %v1917 = vunpack.c.h.b16 %v891
        %v1918 = vunpack.c.l.b16 %v892
        %v1919 = vunpack.c.h.b16 %v892
        %v1920 = vunpack.c.l.b16 %v893
        %v1921 = vunpack.c.h.b16 %v893
        %v1922 = vunpack.c.l.b16 %v894
        %v1923 = vunpack.c.h.b16 %v894
        %v1924 = vunpack.c.l.b16 %v895
        %v1925 = vunpack.c.h.b16 %v895
        %v1926 = vunpack.c.l.b16 %v896
        %v1927 = vunpack.c.h.b16 %v896
        %v1928 = vunpack.c.l.b16 %v897
        %v1929 = vunpack.c.h.b16 %v897
        %v1930 = vunpack.c.l.b16 %v898
        %v1931 = vunpack.c.h.b16 %v898
        %v1932 = vunpack.c.l.b16 %v899
        %v1933 = vunpack.c.h.b16 %v899
        %v1934 = vunpack.c.l.b16 %v900
        %v1935 = vunpack.c.h.b16 %v900
        %v1936 = vunpack.c.l.b16 %v901
        %v1937 = vunpack.c.h.b16 %v901
        %v1938 = vunpack.c.l.b16 %v902
        %v1939 = vunpack.c.h.b16 %v902
        %v1940 = vunpack.c.l.b16 %v903
        %v1941 = vunpack.c.h.b16 %v903
        %v1942 = vunpack.c.l.b16 %v904
        %v1943 = vunpack.c.h.b16 %v904
        %v1944 = vunpack.c.l.b16 %v905
        %v1945 = vunpack.c.h.b16 %v905
        %v1946 = vunpack.c.l.b16 %v906
        %v1947 = vunpack.c.h.b16 %v906
        %v1948 = vunpack.c.l.b16 %v907
        %v1949 = vunpack.c.h.b16 %v907
        %v1950 = vunpack.c.l.b16 %v908
        %v1951 = vunpack.c.h.b16 %v908
        %v1952 = vunpack.c.l.b16 %v909
        %v1953 = vunpack.c.h.b16 %v909
        %v1954 = vunpack.c.l.b16 %v910
        %v1955 = vunpack.c.h.b16 %v910
        %v1956 = vunpack.c.l.b16 %v911
        %v1957 = vunpack.c.h.b16 %v911
        %v1958 = vunpack.c.l.b16 %v912
        %v1959 = vunpack.c.h.b16 %v912
        %v1960 = vunpack.c.l.b16 %v913
        %v1961 = vunpack.c.h.b16 %v913
        %v1962 = vunpack.c.l.b16 %v914
        %v1963 = vunpack.c.h.b16 %v914
        %v1964 = vunpack.c.l.b16 %v915
        %v1965 = vunpack.c.h.b16 %v915
        %v1966 = vunpack.c.l.b16 %v916
        %v1967 = vunpack.c.h.b16 %v916
        %v1968 = vunpack.c.l.b16 %v917
        %v1969 = vunpack.c.h.b16 %v917
        %v1970 = vunpack.c.l.b16 %v918
        %v1971 = vunpack.c.h.b16 %v918
        %v1972 = vunpack.c.l.b16 %v919
        %v1973 = vunpack.c.h.b16 %v919
        %v1974 = vunpack.c.l.b16 %v920
        %v1975 = vunpack.c.h.b16 %v920
        %v1976 = vunpack.c.l.b16 %v921
        %v1977 = vunpack.c.h.b16 %v921
        %v1978 = vunpack.c.l.b16 %v922
        %v1979 = vunpack.c.h.b16 %v922
        %v1980 = vunpack.c.l.b16 %v923
        %v1981 = vunpack.c.h.b16 %v923
        %v1982 = vunpack.c.l.b16 %v924
        %v1983 = vunpack.c.h.b16 %v924
        %v1984 = vunpack.c.l.b16 %v925
        %v1985 = vunpack.c.h.b16 %v925
        %v1986 = vunpack.c.l.b16 %v926
        %v1987 = vunpack.c.h.b16 %v926
        %v1988 = vunpack.c.l.b16 %v927
        %v1989 = vunpack.c.h.b16 %v927
        %v1990 = vunpack.c.l.b16 %v928
        %v1991 = vunpack.c.h.b16 %v928
        %v1992 = vunpack.c.l.b16 %v929
        %v1993 = vunpack.c.h.b16 %v929
        %v1994 = vunpack.c.l.b16 %v930
        %v1995 = vunpack.c.h.b16 %v930
        %v1996 = vunpack.c.l.b16 %v931
        %v1997 = vunpack.c.h.b16 %v931
        %v1998 = vunpack.c.l.b16 %v932
        %v1999 = vunpack.c.h.b16 %v932
        %v2000 = vunpack.c.l.b16 %v933
        %v2001 = vunpack.c.h.b16 %v933
        %v2002 = vunpack.c.l.b16 %v934
        %v2003 = vunpack.c.h.b16 %v934
        %v2004 = vunpack.c.l.b16 %v935
        %v2005 = vunpack.c.h.b16 %v935
        %v2006 = vunpack.c.l.b16 %v936
        %v2007 = vunpack.c.h.b16 %v936
        %v2008 = vunpack.c.l.b16 %v937
        %v2009 = vunpack.c.h.b16 %v937
        %v2010 = vunpack.c.l.b16 %v938
        %v2011 = vunpack.c.h.b16 %v938
        %v2012 = vunpack.c.l.b16 %v939
        %v2013 = vunpack.c.h.b16 %v939
        %v2014 = vunpack.c.l.b16 %v940
        %v2015 = vunpack.c.h.b16 %v940
        %v2016 = vunpack.c.l.b16 %v941
        %v2017 = vunpack.c.h.b16 %v941
        %v2018 = vunpack.c.l.b16 %v942
        %v2019 = vunpack.c.h.b16 %v942
        %v2020 = vunpack.c.l.b16 %v943
        %v2021 = vunpack.c.h.b16 %v943
        %v2022 = vunpack.c.l.b16 %v944
        %v2023 = vunpack.c.h.b16 %v944
        %v2024 = vunpack.c.l.b16 %v945
        %v2025 = vunpack.c.h.b16 %v945
        %v2026 = vunpack.c.l.b16 %v946
        %v2027 = vunpack.c.h.b16 %v946
        %v2028 = vunpack.c.l.b16 %v947
        %v2029 = vunpack.c.h.b16 %v947
        %v2030 = vunpack.c.l.b16 %v948
        %v2031 = vunpack.c.h.b16 %v948
        %v2032 = vunpack.c.l.b16 %v949
        %v2033 = vunpack.c.h.b16 %v949
        %v2034 = vunpack.c.l.b16 %v950
        %v2035 = vunpack.c.h.b16 %v950
        %v2036 = vunpack.c.l.b16 %v951
        %v2037 = vunpack.c.h.b16 %v951
        %v2038 = vunpack.c.l.b16 %v952
        %v2039 = vunpack.c.h.b16 %v952
        %v2040 = vunpack.c.l.b16 %v953
        %v2041 = vunpack.c.h.b16 %v953
        %v2042 = vunpack.c.l.b16 %v954
        %v2043 = vunpack.c.h.b16 %v954
        %v2044 = vunpack.c.l.b16 %v955
        %v2045 = vunpack.c.h.b16 %v955
        %v2046 = vunpack.c.l.b16 %v956
        %v2047 = vunpack.c.h.b16 %v956
        %v2048 = vunpack.c.l.b16 %v957
        %v2049 = vunpack.c.h.b16 %v957
        %v2050 = vunpack.c.l.b16 %v958
        %v2051 = vunpack.c.h.b16 %v958
        %v2052 = vunpack.c.l.b16 %v959
        %v2053 = vunpack.c.h.b16 %v959
        %v2054 = vunpack.c.l.b16 %v960
        %v2055 = vunpack.c.h.b16 %v960
        %v2056 = vunpack.c.l.b16 %v961
        %v2057 = vunpack.c.h.b16 %v961
        %v2058 = vunpack.c.l.b16 %v962
        %v2059 = vunpack.c.h.b16 %v962
        %v2060 = vunpack.c.l.b16 %v963
        %v2061 = vunpack.c.h.b16 %v963
        %v2062 = vunpack.c.l.b16 %v964
        %v2063 = vunpack.c.h.b16 %v964
        %v2064 = vunpack.c.l.b16 %v965
        %v2065 = vunpack.c.h.b16 %v965
        %v2066 = vunpack.c.l.b16 %v966
        %v2067 = vunpack.c.h.b16 %v966
        %v2068 = vunpack.c.l.b16 %v967
        %v2069 = vunpack.c.h.b16 %v967
        %v2070 = vunpack.c.l.b16 %v968
        %v2071 = vunpack.c.h.b16 %v968
        %v2072 = vunpack.c.l.b16 %v969
        %v2073 = vunpack.c.h.b16 %v969
        %v2074 = vunpack.c.l.b16 %v970
        %v2075 = vunpack.c.h.b16 %v970
        %v2076 = vunpack.c.l.b16 %v971
        %v2077 = vunpack.c.h.b16 %v971
        %v2078 = vunpack.c.l.b16 %v972
        %v2079 = vunpack.c.h.b16 %v972
        %v2080 = vunpack.c.l.b16 %v973
        %v2081 = vunpack.c.h.b16 %v973
        %v2082 = vunpack.c.l.b16 %v974
        %v2083 = vunpack.c.h.b16 %v974
        %v2084 = vunpack.c.l.b16 %v975
        %v2085 = vunpack.c.h.b16 %v975
        %v2086 = vunpack.c.l.b16 %v976
        %v2087 = vunpack.c.h.b16 %v976
        %v2088 = vunpack.c.l.b16 %v977
        %v2089 = vunpack.c.h.b16 %v977
        %v2090 = vunpack.c.l.b16 %v978
        %v2091 = vunpack.c.h.b16 %v978
        %v2092 = vunpack.c.l.b16 %v979
        %v2093 = vunpack.c.h.b16 %v979
        %v2094 = vunpack.c.l.b16 %v980
        %v2095 = vunpack.c.h.b16 %v980
        %v2096 = vunpack.c.l.b16 %v981
        %v2097 = vunpack.c.h.b16 %v981
        %v2098 = vunpack.c.l.b16 %v982
        %v2099 = vunpack.c.h.b16 %v982
        %v2100 = vunpack.c.l.b16 %v983
        %v2101 = vunpack.c.h.b16 %v983
        %v2102 = vunpack.c.l.b16 %v984
        %v2103 = vunpack.c.h.b16 %v984
        %v2104 = vunpack.c.l.b16 %v985
        %v2105 = vunpack.c.h.b16 %v985
        %v2106 = vunpack.c.l.b16 %v986
        %v2107 = vunpack.c.h.b16 %v986
        %v2108 = vunpack.c.l.b16 %v987
        %v2109 = vunpack.c.h.b16 %v987
        %v2110 = vunpack.c.l.b16 %v988
        %v2111 = vunpack.c.h.b16 %v988
        %v2112 = vunpack.c.l.b16 %v989
        %v2113 = vunpack.c.h.b16 %v989
        %v2114 = vunpack.c.l.b16 %v990
        %v2115 = vunpack.c.h.b16 %v990
        %v2116 = vunpack.c.l.b16 %v991
        %v2117 = vunpack.c.h.b16 %v991
        %v2118 = vunpack.c.l.b16 %v992
        %v2119 = vunpack.c.h.b16 %v992
        %v2120 = vunpack.c.l.b16 %v993
        %v2121 = vunpack.c.h.b16 %v993
        %v2122 = vunpack.c.l.b16 %v994
        %v2123 = vunpack.c.h.b16 %v994
        %v2124 = vunpack.c.l.b16 %v995
        %v2125 = vunpack.c.h.b16 %v995
        %v2126 = vunpack.c.l.b16 %v996
        %v2127 = vunpack.c.h.b16 %v996
        %v2128 = vunpack.c.l.b16 %v997
        %v2129 = vunpack.c.h.b16 %v997
        %v2130 = vunpack.c.l.b16 %v998
        %v2131 = vunpack.c.h.b16 %v998
        %v2132 = vunpack.c.l.b16 %v999
        %v2133 = vunpack.c.h.b16 %v999
        %v2134 = vunpack.c.l.b16 %v1000
        %v2135 = vunpack.c.h.b16 %v1000
        %v2136 = vunpack.c.l.b16 %v1001
        %v2137 = vunpack.c.h.b16 %v1001
        %v2138 = vunpack.c.l.b16 %v1002
        %v2139 = vunpack.c.h.b16 %v1002
        %v2140 = vunpack.c.l.b16 %v1003
        %v2141 = vunpack.c.h.b16 %v1003
        %v2142 = vunpack.c.l.b16 %v1004
        %v2143 = vunpack.c.h.b16 %v1004
        %v2144 = vunpack.c.l.b16 %v1005
        %v2145 = vunpack.c.h.b16 %v1005
        %v2146 = vunpack.c.l.b16 %v1006
        %v2147 = vunpack.c.h.b16 %v1006
        %v2148 = vunpack.c.l.b16 %v1007
        %v2149 = vunpack.c.h.b16 %v1007
        %v2150 = vunpack.c.l.b16 %v1008
        %v2151 = vunpack.c.h.b16 %v1008
        %v2152 = vunpack.c.l.b16 %v1009
        %v2153 = vunpack.c.h.b16 %v1009
        %v2154 = vunpack.c.l.b16 %v1010
        %v2155 = vunpack.c.h.b16 %v1010
        %v2156 = vunpack.c.l.b16 %v1011
        %v2157 = vunpack.c.h.b16 %v1011
        %v2158 = vunpack.c.l.b16 %v1012
        %v2159 = vunpack.c.h.b16 %v1012
        %v2160 = vunpack.c.l.b16 %v1013
        %v2161 = vunpack.c.h.b16 %v1013
        %v2162 = vunpack.c.l.b16 %v1014
        %v2163 = vunpack.c.h.b16 %v1014
        %v2164 = vunpack.c.l.b16 %v1015
        %v2165 = vunpack.c.h.b16 %v1015
        %v2166 = vunpack.c.l.b16 %v1016
        %v2167 = vunpack.c.h.b16 %v1016
        %v2168 = vunpack.c.l.b16 %v1017
        %v2169 = vunpack.c.h.b16 %v1017
        %v2170 = vunpack.c.l.b16 %v1018
        %v2171 = vunpack.c.h.b16 %v1018
        %v2172 = vunpack.c.l.b16 %v1019
        %v2173 = vunpack.c.h.b16 %v1019
        %v2174 = vunpack.c.l.b16 %v1020
        %v2175 = vunpack.c.h.b16 %v1020
        %v2176 = vunpack.c.l.b16 %v1021
        %v2177 = vunpack.c.h.b16 %v1021
        %v2178 = vunpack.c.l.b16 %v1022
        %v2179 = vunpack.c.h.b16 %v1022
        %v2180 = vunpack.c.l.b16 %v1023
        %v2181 = vunpack.c.h.b16 %v1023
        %v2182 = vunpack.c.l.b16 %v1024
        %v2183 = vunpack.c.h.b16 %v1024
        %v2184 = vunpack.c.l.b16 %v1025
        %v2185 = vunpack.c.h.b16 %v1025
        %v2186 = vunpack.c.l.b16 %v1026
        %v2187 = vunpack.c.h.b16 %v1026
        %v2188 = vunpack.c.l.b16 %v1027
        %v2189 = vunpack.c.h.b16 %v1027
        %v2190 = vunpack.c.l.b16 %v1028
        %v2191 = vunpack.c.h.b16 %v1028
        %v2192 = vunpack.c.l.b16 %v1029
        %v2193 = vunpack.c.h.b16 %v1029
        %v2194 = vunpack.c.l.b16 %v1030
        %v2195 = vunpack.c.h.b16 %v1030
        %v2196 = vunpack.c.l.b16 %v1031
        %v2197 = vunpack.c.h.b16 %v1031
        %v2198 = vpack.c.b16 %v1442, %v1430
        %v2199 = vpack.c.b16 %v1443, %v1431
        %v2200 = vpack.c.b16 %v1444, %v1432
        %v2201 = vpack.c.b16 %v1445, %v1433
        %v2202 = vpack.c.b16 %v1446, %v1434
        %v2203 = vpack.c.b16 %v1447, %v1435
        %v2204 = vpack.c.b16 %v1448, %v1436
        %v2205 = vpack.c.b16 %v1449, %v1437
        %v2206 = vpack.c.b16 %v1450, %v1438
        %v2207 = vpack.c.b16 %v1451, %v1439
        %v2208 = vpack.c.b16 %v1452, %v1440
        %v2209 = vpack.c.b16 %v1453, %v1441
        %v2210 = vpack.c.b16 %v1466, %v1454
        %v2211 = vpack.c.b16 %v1467, %v1455
        %v2212 = vpack.c.b16 %v1468, %v1456
        %v2213 = vpack.c.b16 %v1469, %v1457
        %v2214 = vpack.c.b16 %v1470, %v1458
        %v2215 = vpack.c.b16 %v1471, %v1459
        %v2216 = vpack.c.b16 %v1472, %v1460
        %v2217 = vpack.c.b16 %v1473, %v1461
        %v2218 = vpack.c.b16 %v1474, %v1462
        %v2219 = vpack.c.b16 %v1475, %v1463
        %v2220 = vpack.c.b16 %v1476, %v1464
        %v2221 = vpack.c.b16 %v1477, %v1465
        %v2222 = vpack.c.b16 %v1490, %v1478
        %v2223 = vpack.c.b16 %v1491, %v1479
        %v2224 = vpack.c.b16 %v1492, %v1480
        %v2225 = vpack.c.b16 %v1493, %v1481
        %v2226 = vpack.c.b16 %v1494, %v1482
        %v2227 = vpack.c.b16 %v1495, %v1483
        %v2228 = vpack.c.b16 %v1496, %v1484
        %v2229 = vpack.c.b16 %v1497, %v1485
        %v2230 = vpack.c.b16 %v1498, %v1486
        %v2231 = vpack.c.b16 %v1499, %v1487
        %v2232 = vpack.c.b16 %v1500, %v1488
        %v2233 = vpack.c.b16 %v1501, %v1489
        %v2234 = vpack.c.b16 %v1514, %v1502
        %v2235 = vpack.c.b16 %v1515, %v1503
        %v2236 = vpack.c.b16 %v1516, %v1504
        %v2237 = vpack.c.b16 %v1517, %v1505
        %v2238 = vpack.c.b16 %v1518, %v1506
        %v2239 = vpack.c.b16 %v1519, %v1507
        %v2240 = vpack.c.b16 %v1520, %v1508
        %v2241 = vpack.c.b16 %v1521, %v1509
        %v2242 = vpack.c.b16 %v1522, %v1510
        %v2243 = vpack.c.b16 %v1523, %v1511
        %v2244 = vpack.c.b16 %v1524, %v1512
        %v2245 = vpack.c.b16 %v1525, %v1513
        %v2246 = vpack.c.b16 %v1538, %v1526
        %v2247 = vpack.c.b16 %v1539, %v1527
        %v2248 = vpack.c.b16 %v1540, %v1528
        %v2249 = vpack.c.b16 %v1541, %v1529
        %v2250 = vpack.c.b16 %v1542, %v1530
        %v2251 = vpack.c.b16 %v1543, %v1531
        %v2252 = vpack.c.b16 %v1544, %v1532
        %v2253 = vpack.c.b16 %v1545, %v1533
        %v2254 = vpack.c.b16 %v1546, %v1534
        %v2255 = vpack.c.b16 %v1547, %v1535
        %v2256 = vpack.c.b16 %v1548, %v1536
        %v2257 = vpack.c.b16 %v1549, %v1537
        %v2258 = vpack.c.b16 %v1562, %v1550
        %v2259 = vpack.c.b16 %v1563, %v1551
        %v2260 = vpack.c.b16 %v1564, %v1552
        %v2261 = vpack.c.b16 %v1565, %v1553
        %v2262 = vpack.c.b16 %v1566, %v1554
        %v2263 = vpack.c.b16 %v1567, %v1555
        %v2264 = vpack.c.b16 %v1568, %v1556
        %v2265 = vpack.c.b16 %v1569, %v1557
        %v2266 = vpack.c.b16 %v1570, %v1558
        %v2267 = vpack.c.b16 %v1571, %v1559
        %v2268 = vpack.c.b16 %v1572, %v1560
        %v2269 = vpack.c.b16 %v1573, %v1561
        %v2270 = vpack.c.b16 %v1586, %v1574
        %v2271 = vpack.c.b16 %v1587, %v1575
        %v2272 = vpack.c.b16 %v1588, %v1576
        %v2273 = vpack.c.b16 %v1589, %v1577
        %v2274 = vpack.c.b16 %v1590, %v1578
        %v2275 = vpack.c.b16 %v1591, %v1579
        %v2276 = vpack.c.b16 %v1592, %v1580
        %v2277 = vpack.c.b16 %v1593, %v1581
        %v2278 = vpack.c.b16 %v1594, %v1582
        %v2279 = vpack.c.b16 %v1595, %v1583
        %v2280 = vpack.c.b16 %v1596, %v1584
        %v2281 = vpack.c.b16 %v1597, %v1585
        %v2282 = vpack.c.b16 %v1610, %v1598
        %v2283 = vpack.c.b16 %v1611, %v1599
        %v2284 = vpack.c.b16 %v1612, %v1600
        %v2285 = vpack.c.b16 %v1613, %v1601
        %v2286 = vpack.c.b16 %v1614, %v1602
        %v2287 = vpack.c.b16 %v1615, %v1603
        %v2288 = vpack.c.b16 %v1616, %v1604
        %v2289 = vpack.c.b16 %v1617, %v1605
        %v2290 = vpack.c.b16 %v1618, %v1606
        %v2291 = vpack.c.b16 %v1619, %v1607
        %v2292 = vpack.c.b16 %v1620, %v1608
        %v2293 = vpack.c.b16 %v1621, %v1609
        %v2294 = vpack.c.b16 %v1634, %v1622
        %v2295 = vpack.c.b16 %v1635, %v1623
        %v2296 = vpack.c.b16 %v1636, %v1624
        %v2297 = vpack.c.b16 %v1637, %v1625
        %v2298 = vpack.c.b16 %v1638, %v1626
        %v2299 = vpack.c.b16 %v1639, %v1627
        %v2300 = vpack.c.b16 %v1640, %v1628
        %v2301 = vpack.c.b16 %v1641, %v1629
        %v2302 = vpack.c.b16 %v1642, %v1630
        %v2303 = vpack.c.b16 %v1643, %v1631
        %v2304 = vpack.c.b16 %v1644, %v1632
        %v2305 = vpack.c.b16 %v1645, %v1633
        %v2306 = vpack.c.b16 %v1658, %v1646
        %v2307 = vpack.c.b16 %v1659, %v1647
        %v2308 = vpack.c.b16 %v1660, %v1648
        %v2309 = vpack.c.b16 %v1661, %v1649
        %v2310 = vpack.c.b16 %v1662, %v1650
        %v2311 = vpack.c.b16 %v1663, %v1651
        %v2312 = vpack.c.b16 %v1664, %v1652
        %v2313 = vpack.c.b16 %v1665, %v1653
        %v2314 = vpack.c.b16 %v1666, %v1654
        %v2315 = vpack.c.b16 %v1667, %v1655
        %v2316 = vpack.c.b16 %v1668, %v1656
        %v2317 = vpack.c.b16 %v1669, %v1657
        %v2318 = vpack.c.b16 %v1682, %v1670
        %v2319 = vpack.c.b16 %v1683, %v1671
        %v2320 = vpack.c.b16 %v1684, %v1672
        %v2321 = vpack.c.b16 %v1685, %v1673
        %v2322 = vpack.c.b16 %v1686, %v1674
        %v2323 = vpack.c.b16 %v1687, %v1675
        %v2324 = vpack.c.b16 %v1688, %v1676
        %v2325 = vpack.c.b16 %v1689, %v1677
        %v2326 = vpack.c.b16 %v1690, %v1678
        %v2327 = vpack.c.b16 %v1691, %v1679
        %v2328 = vpack.c.b16 %v1692, %v1680
        %v2329 = vpack.c.b16 %v1693, %v1681
        %v2330 = vpack.c.b16 %v1706, %v1694
        %v2331 = vpack.c.b16 %v1707, %v1695
        %v2332 = vpack.c.b16 %v1708, %v1696
        %v2333 = vpack.c.b16 %v1709, %v1697
        %v2334 = vpack.c.b16 %v1710, %v1698
        %v2335 = vpack.c.b16 %v1711, %v1699
        %v2336 = vpack.c.b16 %v1712, %v1700
        %v2337 = vpack.c.b16 %v1713, %v1701
        %v2338 = vpack.c.b16 %v1714, %v1702
        %v2339 = vpack.c.b16 %v1715, %v1703
        %v2340 = vpack.c.b16 %v1716, %v1704
        %v2341 = vpack.c.b16 %v1717, %v1705
        %v2342 = vpack.c.b16 %v1730, %v1718
        %v2343 = vpack.c.b16 %v1731, %v1719
        %v2344 = vpack.c.b16 %v1732, %v1720
        %v2345 = vpack.c.b16 %v1733, %v1721
        %v2346 = vpack.c.b16 %v1734, %v1722
        %v2347 = vpack.c.b16 %v1735, %v1723
        %v2348 = vpack.c.b16 %v1736, %v1724
        %v2349 = vpack.c.b16 %v1737, %v1725
        %v2350 = vpack.c.b16 %v1738, %v1726
        %v2351 = vpack.c.b16 %v1739, %v1727
        %v2352 = vpack.c.b16 %v1740, %v1728
        %v2353 = vpack.c.b16 %v1741, %v1729
        %v2354 = vpack.c.b16 %v1754, %v1742
        %v2355 = vpack.c.b16 %v1755, %v1743
        %v2356 = vpack.c.b16 %v1756, %v1744
        %v2357 = vpack.c.b16 %v1757, %v1745
        %v2358 = vpack.c.b16 %v1758, %v1746
        %v2359 = vpack.c.b16 %v1759, %v1747
        %v2360 = vpack.c.b16 %v1760, %v1748
        %v2361 = vpack.c.b16 %v1761, %v1749
        %v2362 = vpack.c.b16 %v1762, %v1750
        %v2363 = vpack.c.b16 %v1763, %v1751
        %v2364 = vpack.c.b16 %v1764, %v1752
        %v2365 = vpack.c.b16 %v1765, %v1753
        %v2366 = vpack.c.b16 %v1778, %v1766
        %v2367 = vpack.c.b16 %v1779, %v1767
        %v2368 = vpack.c.b16 %v1780, %v1768
        %v2369 = vpack.c.b16 %v1781, %v1769
        %v2370 = vpack.c.b16 %v1782, %v1770
        %v2371 = vpack.c.b16 %v1783, %v1771
        %v2372 = vpack.c.b16 %v1784, %v1772
        %v2373 = vpack.c.b16 %v1785, %v1773
        %v2374 = vpack.c.b16 %v1786, %v1774
        %v2375 = vpack.c.b16 %v1787, %v1775
        %v2376 = vpack.c.b16 %v1788, %v1776
        %v2377 = vpack.c.b16 %v1789, %v1777
        %v2378 = vpack.c.b16 %v1802, %v1790
        %v2379 = vpack.c.b16 %v1803, %v1791
        %v2380 = vpack.c.b16 %v1804, %v1792
        %v2381 = vpack.c.b16 %v1805, %v1793
        %v2382 = vpack.c.b16 %v1806, %v1794
        %v2383 = vpack.c.b16 %v1807, %v1795
        %v2384 = vpack.c.b16 %v1808, %v1796
        %v2385 = vpack.c.b16 %v1809, %v1797
        %v2386 = vpack.c.b16 %v1810, %v1798
        %v2387 = vpack.c.b16 %v1811, %v1799
        %v2388 = vpack.c.b16 %v1812, %v1800
        %v2389 = vpack.c.b16 %v1813, %v1801
        %v2390 = vpack.c.b16 %v1826, %v1814
        %v2391 = vpack.c.b16 %v1827, %v1815
        %v2392 = vpack.c.b16 %v1828, %v1816
        %v2393 = vpack.c.b16 %v1829, %v1817
        %v2394 = vpack.c.b16 %v1830, %v1818
        %v2395 = vpack.c.b16 %v1831, %v1819
        %v2396 = vpack.c.b16 %v1832, %v1820
        %v2397 = vpack.c.b16 %v1833, %v1821
        %v2398 = vpack.c.b16 %v1834, %v1822
        %v2399 = vpack.c.b16 %v1835, %v1823
        %v2400 = vpack.c.b16 %v1836, %v1824
        %v2401 = vpack.c.b16 %v1837, %v1825
        %v2402 = vpack.c.b16 %v1850, %v1838
        %v2403 = vpack.c.b16 %v1851, %v1839
        %v2404 = vpack.c.b16 %v1852, %v1840
        %v2405 = vpack.c.b16 %v1853, %v1841
        %v2406 = vpack.c.b16 %v1854, %v1842
        %v2407 = vpack.c.b16 %v1855, %v1843
        %v2408 = vpack.c.b16 %v1856, %v1844
        %v2409 = vpack.c.b16 %v1857, %v1845
        %v2410 = vpack.c.b16 %v1858, %v1846
        %v2411 = vpack.c.b16 %v1859, %v1847
        %v2412 = vpack.c.b16 %v1860, %v1848
        %v2413 = vpack.c.b16 %v1861, %v1849
        %v2414 = vpack.c.b16 %v1874, %v1862
        %v2415 = vpack.c.b16 %v1875, %v1863
        %v2416 = vpack.c.b16 %v1876, %v1864
        %v2417 = vpack.c.b16 %v1877, %v1865
        %v2418 = vpack.c.b16 %v1878, %v1866
        %v2419 = vpack.c.b16 %v1879, %v1867
        %v2420 = vpack.c.b16 %v1880, %v1868
        %v2421 = vpack.c.b16 %v1881, %v1869
        %v2422 = vpack.c.b16 %v1882, %v1870
        %v2423 = vpack.c.b16 %v1883, %v1871
        %v2424 = vpack.c.b16 %v1884, %v1872
        %v2425 = vpack.c.b16 %v1885, %v1873
        %v2426 = vpack.c.b16 %v1898, %v1886
        %v2427 = vpack.c.b16 %v1899, %v1887
        %v2428 = vpack.c.b16 %v1900, %v1888
        %v2429 = vpack.c.b16 %v1901, %v1889
        %v2430 = vpack.c.b16 %v1902, %v1890
        %v2431 = vpack.c.b16 %v1903, %v1891
        %v2432 = vpack.c.b16 %v1904, %v1892
        %v2433 = vpack.c.b16 %v1905, %v1893
        %v2434 = vpack.c.b16 %v1906, %v1894
        %v2435 = vpack.c.b16 %v1907, %v1895
        %v2436 = vpack.c.b16 %v1908, %v1896
        %v2437 = vpack.c.b16 %v1909, %v1897
        %v2438 = vpack.c.b16 %v1922, %v1910
        %v2439 = vpack.c.b16 %v1923, %v1911
        %v2440 = vpack.c.b16 %v1924, %v1912
        %v2441 = vpack.c.b16 %v1925, %v1913
        %v2442 = vpack.c.b16 %v1926, %v1914
        %v2443 = vpack.c.b16 %v1927, %v1915
        %v2444 = vpack.c.b16 %v1928, %v1916
        %v2445 = vpack.c.b16 %v1929, %v1917
        %v2446 = vpack.c.b16 %v1930, %v1918
        %v2447 = vpack.c.b16 %v1931, %v1919
        %v2448 = vpack.c.b16 %v1932, %v1920
        %v2449 = vpack.c.b16 %v1933, %v1921
        %v2450 = vpack.c.b16 %v1946, %v1934
        %v2451 = vpack.c.b16 %v1947, %v1935
        %v2452 = vpack.c.b16 %v1948, %v1936
        %v2453 = vpack.c.b16 %v1949, %v1937
        %v2454 = vpack.c.b16 %v1950, %v1938
        %v2455 = vpack.c.b16 %v1951, %v1939
        %v2456 = vpack.c.b16 %v1952, %v1940
        %v2457 = vpack.c.b16 %v1953, %v1941
        %v2458 = vpack.c.b16 %v1954, %v1942
        %v2459 = vpack.c.b16 %v1955, %v1943
        %v2460 = vpack.c.b16 %v1956, %v1944
        %v2461 = vpack.c.b16 %v1957, %v1945
        %v2462 = vpack.c.b16 %v1970, %v1958
        %v2463 = vpack.c.b16 %v1971, %v1959
        %v2464 = vpack.c.b16 %v1972, %v1960
        %v2465 = vpack.c.b16 %v1973, %v1961
        %v2466 = vpack.c.b16 %v1974, %v1962
        %v2467 = vpack.c.b16 %v1975, %v1963
        %v2468 = vpack.c.b16 %v1976, %v1964
        %v2469 = vpack.c.b16 %v1977, %v1965
        %v2470 = vpack.c.b16 %v1978, %v1966
        %v2471 = vpack.c.b16 %v1979, %v1967
        %v2472 = vpack.c.b16 %v1980, %v1968
        %v2473 = vpack.c.b16 %v1981, %v1969
        %v2474 = vpack.c.b16 %v1994, %v1982
        %v2475 = vpack.c.b16 %v1995, %v1983
        %v2476 = vpack.c.b16 %v1996, %v1984
        %v2477 = vpack.c.b16 %v1997, %v1985
        %v2478 = vpack.c.b16 %v1998, %v1986
        %v2479 = vpack.c.b16 %v1999, %v1987
        %v2480 = vpack.c.b16 %v2000, %v1988
        %v2481 = vpack.c.b16 %v2001, %v1989
        %v2482 = vpack.c.b16 %v2002, %v1990
        %v2483 = vpack.c.b16 %v2003, %v1991
        %v2484 = vpack.c.b16 %v2004, %v1992
        %v2485 = vpack.c.b16 %v2005, %v1993
        %v2486 = vpack.c.b16 %v2018, %v2006
        %v2487 = vpack.c.b16 %v2019, %v2007
        %v2488 = vpack.c.b16 %v2020, %v2008
        %v2489 = vpack.c.b16 %v2021, %v2009
        %v2490 = vpack.c.b16 %v2022, %v2010
        %v2491 = vpack.c.b16 %v2023, %v2011
        %v2492 = vpack.c.b16 %v2024, %v2012
        %v2493 = vpack.c.b16 %v2025, %v2013
        %v2494 = vpack.c.b16 %v2026, %v2014
        %v2495 = vpack.c.b16 %v2027, %v2015
        %v2496 = vpack.c.b16 %v2028, %v2016
        %v2497 = vpack.c.b16 %v2029, %v2017
        %v2498 = vpack.c.b16 %v2042, %v2030
        %v2499 = vpack.c.b16 %v2043, %v2031
        %v2500 = vpack.c.b16 %v2044, %v2032
        %v2501 = vpack.c.b16 %v2045, %v2033
        %v2502 = vpack.c.b16 %v2046, %v2034
        %v2503 = vpack.c.b16 %v2047, %v2035
        %v2504 = vpack.c.b16 %v2048, %v2036
        %v2505 = vpack.c.b16 %v2049, %v2037
        %v2506 = vpack.c.b16 %v2050, %v2038
        %v2507 = vpack.c.b16 %v2051, %v2039
        %v2508 = vpack.c.b16 %v2052, %v2040
        %v2509 = vpack.c.b16 %v2053, %v2041
        %v2510 = vpack.c.b16 %v2066, %v2054
        %v2511 = vpack.c.b16 %v2067, %v2055
        %v2512 = vpack.c.b16 %v2068, %v2056
        %v2513 = vpack.c.b16 %v2069, %v2057
        %v2514 = vpack.c.b16 %v2070, %v2058
        %v2515 = vpack.c.b16 %v2071, %v2059
        %v2516 = vpack.c.b16 %v2072, %v2060
        %v2517 = vpack.c.b16 %v2073, %v2061
        %v2518 = vpack.c.b16 %v2074, %v2062
        %v2519 = vpack.c.b16 %v2075, %v2063
        %v2520 = vpack.c.b16 %v2076, %v2064
        %v2521 = vpack.c.b16 %v2077, %v2065
        %v2522 = vpack.c.b16 %v2090, %v2078
        %v2523 = vpack.c.b16 %v2091, %v2079
        %v2524 = vpack.c.b16 %v2092, %v2080
        %v2525 = vpack.c.b16 %v2093, %v2081
        %v2526 = vpack.c.b16 %v2094, %v2082
        %v2527 = vpack.c.b16 %v2095, %v2083
        %v2528 = vpack.c.b16 %v2096, %v2084
        %v2529 = vpack.c.b16 %v2097, %v2085
        %v2530 = vpack.c.b16 %v2098, %v2086
        %v2531 = vpack.c.b16 %v2099, %v2087
        %v2532 = vpack.c.b16 %v2100, %v2088
        %v2533 = vpack.c.b16 %v2101, %v2089
        %v2534 = vpack.c.b16 %v2114, %v2102
        %v2535 = vpack.c.b16 %v2115, %v2103
        %v2536 = vpack.c.b16 %v2116, %v2104
        %v2537 = vpack.c.b16 %v2117, %v2105
        %v2538 = vpack.c.b16 %v2118, %v2106
        %v2539 = vpack.c.b16 %v2119, %v2107
        %v2540 = vpack.c.b16 %v2120, %v2108
        %v2541 = vpack.c.b16 %v2121, %v2109
        %v2542 = vpack.c.b16 %v2122, %v2110
        %v2543 = vpack.c.b16 %v2123, %v2111
        %v2544 = vpack.c.b16 %v2124, %v2112
        %v2545 = vpack.c.b16 %v2125, %v2113
        %v2546 = vpack.c.b16 %v2138, %v2126
        %v2547 = vpack.c.b16 %v2139, %v2127
        %v2548 = vpack.c.b16 %v2140, %v2128
        %v2549 = vpack.c.b16 %v2141, %v2129
        %v2550 = vpack.c.b16 %v2142, %v2130
        %v2551 = vpack.c.b16 %v2143, %v2131
        %v2552 = vpack.c.b16 %v2144, %v2132
        %v2553 = vpack.c.b16 %v2145, %v2133
        %v2554 = vpack.c.b16 %v2146, %v2134
        %v2555 = vpack.c.b16 %v2147, %v2135
        %v2556 = vpack.c.b16 %v2148, %v2136
        %v2557 = vpack.c.b16 %v2149, %v2137
        %v2558 = vpack.c.b16 %v2162, %v2150
        %v2559 = vpack.c.b16 %v2163, %v2151
        %v2560 = vpack.c.b16 %v2164, %v2152
        %v2561 = vpack.c.b16 %v2165, %v2153
        %v2562 = vpack.c.b16 %v2166, %v2154
        %v2563 = vpack.c.b16 %v2167, %v2155
        %v2564 = vpack.c.b16 %v2168, %v2156
        %v2565 = vpack.c.b16 %v2169, %v2157
        %v2566 = vpack.c.b16 %v2170, %v2158
        %v2567 = vpack.c.b16 %v2171, %v2159
        %v2568 = vpack.c.b16 %v2172, %v2160
        %v2569 = vpack.c.b16 %v2173, %v2161
        %v2570 = vpack.c.b16 %v2186, %v2174
        %v2571 = vpack.c.b16 %v2187, %v2175
        %v2572 = vpack.c.b16 %v2188, %v2176
        %v2573 = vpack.c.b16 %v2189, %v2177
        %v2574 = vpack.c.b16 %v2190, %v2178
        %v2575 = vpack.c.b16 %v2191, %v2179
        %v2576 = vpack.c.b16 %v2192, %v2180
        %v2577 = vpack.c.b16 %v2193, %v2181
        %v2578 = vpack.c.b16 %v2194, %v2182
        %v2579 = vpack.c.b16 %v2195, %v2183
        %v2580 = vpack.c.b16 %v2196, %v2184
        %v2581 = vpack.c.b16 %v2197, %v2185
        %2966 = vmatprep.subr.bf16.mxu0 %v2199
        %2967 = vmatpush1.bf16.msra.mxu0 %v2198
        %2968 = vmatprep.subr.bf16.mxu0 %v2211
        %2969 = vmatpush1.bf16.msra.mxu0 %v2210
        %2970 = vmatprep.subr.bf16.mxu0 %v2223
        %2971 = vmatpush1.bf16.msra.mxu0 %v2222
        %2972 = vmatprep.subr.bf16.mxu0 %v2235
        %2973 = vmatpush1.bf16.msra.mxu0 %v2234
        %2974 = vmatprep.subr.bf16.mxu0 %v2247
        %2975 = vmatpush1.bf16.msra.mxu0 %v2246
        %2976 = vmatprep.subr.bf16.mxu0 %v2259
        %2977 = vmatpush1.bf16.msra.mxu0 %v2258
        %2978 = vmatprep.subr.bf16.mxu0 %v2271
        %2979 = vmatpush1.bf16.msra.mxu0 %v2270
        %2980 = vmatprep.subr.bf16.mxu0 %v2283
        %2981 = vmatpush1.bf16.msra.mxu0 %v2282
        %2982 = vmatprep.subr.bf16.mxu0 %v2295
        %2983 = vmatpush1.bf16.msra.mxu0 %v2294
        %2984 = vmatprep.subr.bf16.mxu0 %v2307
        %2985 = vmatpush1.bf16.msra.mxu0 %v2306
        %2986 = vmatprep.subr.bf16.mxu0 %v2319
        %2987 = vmatpush1.bf16.msra.mxu0 %v2318
        %2988 = vmatprep.subr.bf16.mxu0 %v2331
        %2989 = vmatpush1.bf16.msra.mxu0 %v2330
        %2990 = vmatprep.subr.bf16.mxu0 %v2343
        %2991 = vmatpush1.bf16.msra.mxu0 %v2342
        %2992 = vmatprep.subr.bf16.mxu0 %v2355
        %2993 = vmatpush1.bf16.msra.mxu0 %v2354
        %2994 = vmatprep.subr.bf16.mxu0 %v2367
        %2995 = vmatpush1.bf16.msra.mxu0 %v2366
        %2996 = vmatprep.subr.bf16.mxu0 %v2379
        %2997 = vmatpush1.bf16.msra.mxu0 %v2378
        %2998 = vmatprep.mubr.bf16.mxu0 %v1039
        %2999 = vmatmul.mubr.bf16.gmra.mrb[0].mxu0 %v1038
        %v3000 = vpop.f32.mrb[0].mxu0
        %v3001 = vadd.f32 0.0, %v3000
        %v3002 = vpop.f32.mrb[0].mxu0
        %v3003 = vadd.f32 0.0, %v3002
        %v3004 = vpop.f32.mrb[0].mxu0
        %v3005 = vpop.f32.mrb[0].mxu0
        %3006 = vdwg.mxu0
        %3007 = vmatprep.subr.bf16.mxu0 %v2391
        %3008 = vmatpush1.bf16.msra.mxu0 %v2390
        %3009 = vmatprep.subr.bf16.mxu0 %v2403
        %3010 = vmatpush1.bf16.msra.mxu0 %v2402
        %3011 = vmatprep.subr.bf16.mxu0 %v2415
        %3012 = vmatpush1.bf16.msra.mxu0 %v2414
        %3013 = vmatprep.subr.bf16.mxu0 %v2427
        %3014 = vmatpush1.bf16.msra.mxu0 %v2426
        %3015 = vmatprep.subr.bf16.mxu0 %v2439
        %3016 = vmatpush1.bf16.msra.mxu0 %v2438
        %3017 = vmatprep.subr.bf16.mxu0 %v2451
        %3018 = vmatpush1.bf16.msra.mxu0 %v2450
        %3019 = vmatprep.subr.bf16.mxu0 %v2463
        %3020 = vmatpush1.bf16.msra.mxu0 %v2462
        %3021 = vmatprep.subr.bf16.mxu0 %v2475
        %3022 = vmatpush1.bf16.msra.mxu0 %v2474
        %3023 = vmatprep.subr.bf16.mxu0 %v2487
        %3024 = vmatpush1.bf16.msra.mxu0 %v2486
        %3025 = vmatprep.subr.bf16.mxu0 %v2499
        %3026 = vmatpush1.bf16.msra.mxu0 %v2498
        %3027 = vmatprep.subr.bf16.mxu0 %v2511
        %3028 = vmatpush1.bf16.msra.mxu0 %v2510
        %3029 = vmatprep.subr.bf16.mxu0 %v2523
        %3030 = vmatpush1.bf16.msra.mxu0 %v2522
        %3031 = vmatprep.subr.bf16.mxu0 %v2535
        %3032 = vmatpush1.bf16.msra.mxu0 %v2534
        %3033 = vmatprep.subr.bf16.mxu0 %v2547
        %3034 = vmatpush1.bf16.msra.mxu0 %v2546
        %3035 = vmatprep.subr.bf16.mxu0 %v2559
        %3036 = vmatpush1.bf16.msra.mxu0 %v2558
        %3037 = vmatprep.subr.bf16.mxu0 %v2571
        %3038 = vmatpush1.bf16.msra.mxu0 %v2570
        %3039 = vmatprep.mubr.bf16.mxu0 %v1041
        %3040 = vmatmul.mubr.bf16.gmra.mrb[0].mxu0 %v1040
        %v3041 = vpop.f32.mrb[0].mxu0
        %v3042 = vadd.f32 %v3001, %v3041
        %v3043 = vpop.f32.mrb[0].mxu0
        %v3044 = vadd.f32 %v3003, %v3043
        %v3045 = vpop.f32.mrb[0].mxu0
        %v3046 = vpop.f32.mrb[0].mxu0
        %3047 = vdwg.mxu0
        %3048 = vmatprep.subr.bf16.mxu0 %v2201
        %3049 = vmatpush1.bf16.msra.mxu0 %v2200
        %3050 = vmatprep.subr.bf16.mxu0 %v2213
        %3051 = vmatpush1.bf16.msra.mxu0 %v2212
        %3052 = vmatprep.subr.bf16.mxu0 %v2225
        %3053 = vmatpush1.bf16.msra.mxu0 %v2224
        %3054 = vmatprep.subr.bf16.mxu0 %v2237
        %3055 = vmatpush1.bf16.msra.mxu0 %v2236
        %3056 = vmatprep.subr.bf16.mxu0 %v2249
        %3057 = vmatpush1.bf16.msra.mxu0 %v2248
        %3058 = vmatprep.subr.bf16.mxu0 %v2261
        %3059 = vmatpush1.bf16.msra.mxu0 %v2260
        %3060 = vmatprep.subr.bf16.mxu0 %v2273
        %3061 = vmatpush1.bf16.msra.mxu0 %v2272
        %3062 = vmatprep.subr.bf16.mxu0 %v2285
        %3063 = vmatpush1.bf16.msra.mxu0 %v2284
        %3064 = vmatprep.subr.bf16.mxu0 %v2297
        %3065 = vmatpush1.bf16.msra.mxu0 %v2296
        %3066 = vmatprep.subr.bf16.mxu0 %v2309
        %3067 = vmatpush1.bf16.msra.mxu0 %v2308
        %3068 = vmatprep.subr.bf16.mxu0 %v2321
        %3069 = vmatpush1.bf16.msra.mxu0 %v2320
        %3070 = vmatprep.subr.bf16.mxu0 %v2333
        %3071 = vmatpush1.bf16.msra.mxu0 %v2332
        %3072 = vmatprep.subr.bf16.mxu0 %v2345
        %3073 = vmatpush1.bf16.msra.mxu0 %v2344
        %3074 = vmatprep.subr.bf16.mxu0 %v2357
        %3075 = vmatpush1.bf16.msra.mxu0 %v2356
        %3076 = vmatprep.subr.bf16.mxu0 %v2369
        %3077 = vmatpush1.bf16.msra.mxu0 %v2368
        %3078 = vmatprep.subr.bf16.mxu0 %v2381
        %3079 = vmatpush1.bf16.msra.mxu0 %v2380
        %3080 = vmatprep.mubr.bf16.mxu0 %v1039
        %3081 = vmatmul.mubr.bf16.gmra.mrb[0].mxu0 %v1038
        %v3082 = vpop.f32.mrb[0].mxu0
        %v3083 = vadd.f32 0.0, %v3082
        %v3084 = vpop.f32.mrb[0].mxu0
        %v3085 = vadd.f32 0.0, %v3084
        %v3086 = vpop.f32.mrb[0].mxu0
        %v3087 = vpop.f32.mrb[0].mxu0
        %3088 = vdwg.mxu0
        %3089 = vmatprep.subr.bf16.mxu0 %v2393
        %3090 = vmatpush1.bf16.msra.mxu0 %v2392
        %3091 = vmatprep.subr.bf16.mxu0 %v2405
        %3092 = vmatpush1.bf16.msra.mxu0 %v2404
        %3093 = vmatprep.subr.bf16.mxu0 %v2417
        %3094 = vmatpush1.bf16.msra.mxu0 %v2416
        %3095 = vmatprep.subr.bf16.mxu0 %v2429
        %3096 = vmatpush1.bf16.msra.mxu0 %v2428
        %3097 = vmatprep.subr.bf16.mxu0 %v2441
        %3098 = vmatpush1.bf16.msra.mxu0 %v2440
        %3099 = vmatprep.subr.bf16.mxu0 %v2453
        %3100 = vmatpush1.bf16.msra.mxu0 %v2452
        %3101 = vmatprep.subr.bf16.mxu0 %v2465
        %3102 = vmatpush1.bf16.msra.mxu0 %v2464
        %3103 = vmatprep.subr.bf16.mxu0 %v2477
        %3104 = vmatpush1.bf16.msra.mxu0 %v2476
        %3105 = vmatprep.subr.bf16.mxu0 %v2489
        %3106 = vmatpush1.bf16.msra.mxu0 %v2488
        %3107 = vmatprep.subr.bf16.mxu0 %v2501
        %3108 = vmatpush1.bf16.msra.mxu0 %v2500
        %3109 = vmatprep.subr.bf16.mxu0 %v2513
        %3110 = vmatpush1.bf16.msra.mxu0 %v2512
        %3111 = vmatprep.subr.bf16.mxu0 %v2525
        %3112 = vmatpush1.bf16.msra.mxu0 %v2524
        %3113 = vmatprep.subr.bf16.mxu0 %v2537
        %3114 = vmatpush1.bf16.msra.mxu0 %v2536
        %3115 = vmatprep.subr.bf16.mxu0 %v2549
        %3116 = vmatpush1.bf16.msra.mxu0 %v2548
        %3117 = vmatprep.subr.bf16.mxu0 %v2561
        %3118 = vmatpush1.bf16.msra.mxu0 %v2560
        %3119 = vmatprep.subr.bf16.mxu0 %v2573
        %3120 = vmatpush1.bf16.msra.mxu0 %v2572
        %3121 = vmatprep.mubr.bf16.mxu0 %v1041
        %3122 = vmatmul.mubr.bf16.gmra.mrb[0].mxu0 %v1040
        %v3123 = vpop.f32.mrb[0].mxu0
        %v3124 = vadd.f32 %v3083, %v3123
        %v3125 = vpop.f32.mrb[0].mxu0
        %v3126 = vadd.f32 %v3085, %v3125
        %v3127 = vpop.f32.mrb[0].mxu0
        %v3128 = vpop.f32.mrb[0].mxu0
        %3129 = vdwg.mxu0
        %3130 = vmatprep.subr.bf16.mxu0 %v2203
        %3131 = vmatpush1.bf16.msra.mxu0 %v2202
        %3132 = vmatprep.subr.bf16.mxu0 %v2215
        %3133 = vmatpush1.bf16.msra.mxu0 %v2214
        %3134 = vmatprep.subr.bf16.mxu0 %v2227
        %3135 = vmatpush1.bf16.msra.mxu0 %v2226
        %3136 = vmatprep.subr.bf16.mxu0 %v2239
        %3137 = vmatpush1.bf16.msra.mxu0 %v2238
        %3138 = vmatprep.subr.bf16.mxu0 %v2251
        %3139 = vmatpush1.bf16.msra.mxu0 %v2250
        %3140 = vmatprep.subr.bf16.mxu0 %v2263
        %3141 = vmatpush1.bf16.msra.mxu0 %v2262
        %3142 = vmatprep.subr.bf16.mxu0 %v2275
        %3143 = vmatpush1.bf16.msra.mxu0 %v2274
        %3144 = vmatprep.subr.bf16.mxu0 %v2287
        %3145 = vmatpush1.bf16.msra.mxu0 %v2286
        %3146 = vmatprep.subr.bf16.mxu0 %v2299
        %3147 = vmatpush1.bf16.msra.mxu0 %v2298
        %3148 = vmatprep.subr.bf16.mxu0 %v2311
        %3149 = vmatpush1.bf16.msra.mxu0 %v2310
        %3150 = vmatprep.subr.bf16.mxu0 %v2323
        %3151 = vmatpush1.bf16.msra.mxu0 %v2322
        %3152 = vmatprep.subr.bf16.mxu0 %v2335
        %3153 = vmatpush1.bf16.msra.mxu0 %v2334
        %3154 = vmatprep.subr.bf16.mxu0 %v2347
        %3155 = vmatpush1.bf16.msra.mxu0 %v2346
        %3156 = vmatprep.subr.bf16.mxu0 %v2359
        %3157 = vmatpush1.bf16.msra.mxu0 %v2358
        %3158 = vmatprep.subr.bf16.mxu0 %v2371
        %3159 = vmatpush1.bf16.msra.mxu0 %v2370
        %3160 = vmatprep.subr.bf16.mxu0 %v2383
        %3161 = vmatpush1.bf16.msra.mxu0 %v2382
        %3162 = vmatprep.mubr.bf16.mxu0 %v1039
        %3163 = vmatmul.mubr.bf16.gmra.mrb[0].mxu0 %v1038
        %v3164 = vpop.f32.mrb[0].mxu0
        %v3165 = vadd.f32 0.0, %v3164
        %v3166 = vpop.f32.mrb[0].mxu0
        %v3167 = vadd.f32 0.0, %v3166
        %v3168 = vpop.f32.mrb[0].mxu0
        %v3169 = vpop.f32.mrb[0].mxu0
        %3170 = vdwg.mxu0
        %3171 = vmatprep.subr.bf16.mxu0 %v2395
        %3172 = vmatpush1.bf16.msra.mxu0 %v2394
        %3173 = vmatprep.subr.bf16.mxu0 %v2407
        %3174 = vmatpush1.bf16.msra.mxu0 %v2406
        %3175 = vmatprep.subr.bf16.mxu0 %v2419
        %3176 = vmatpush1.bf16.msra.mxu0 %v2418
        %3177 = vmatprep.subr.bf16.mxu0 %v2431
        %3178 = vmatpush1.bf16.msra.mxu0 %v2430
        %3179 = vmatprep.subr.bf16.mxu0 %v2443
        %3180 = vmatpush1.bf16.msra.mxu0 %v2442
        %3181 = vmatprep.subr.bf16.mxu0 %v2455
        %3182 = vmatpush1.bf16.msra.mxu0 %v2454
        %3183 = vmatprep.subr.bf16.mxu0 %v2467
        %3184 = vmatpush1.bf16.msra.mxu0 %v2466
        %3185 = vmatprep.subr.bf16.mxu0 %v2479
        %3186 = vmatpush1.bf16.msra.mxu0 %v2478
        %3187 = vmatprep.subr.bf16.mxu0 %v2491
        %3188 = vmatpush1.bf16.msra.mxu0 %v2490
        %3189 = vmatprep.subr.bf16.mxu0 %v2503
        %3190 = vmatpush1.bf16.msra.mxu0 %v2502
        %3191 = vmatprep.subr.bf16.mxu0 %v2515
        %3192 = vmatpush1.bf16.msra.mxu0 %v2514
        %3193 = vmatprep.subr.bf16.mxu0 %v2527
        %3194 = vmatpush1.bf16.msra.mxu0 %v2526
        %3195 = vmatprep.subr.bf16.mxu0 %v2539
        %3196 = vmatpush1.bf16.msra.mxu0 %v2538
        %3197 = vmatprep.subr.bf16.mxu0 %v2551
        %3198 = vmatpush1.bf16.msra.mxu0 %v2550
        %3199 = vmatprep.subr.bf16.mxu0 %v2563
        %3200 = vmatpush1.bf16.msra.mxu0 %v2562
        %3201 = vmatprep.subr.bf16.mxu0 %v2575
        %3202 = vmatpush1.bf16.msra.mxu0 %v2574
        %3203 = vmatprep.mubr.bf16.mxu0 %v1041
        %3204 = vmatmul.mubr.bf16.gmra.mrb[0].mxu0 %v1040
        %v3205 = vpop.f32.mrb[0].mxu0
        %v3206 = vadd.f32 %v3165, %v3205
        %v3207 = vpop.f32.mrb[0].mxu0
        %v3208 = vadd.f32 %v3167, %v3207
        %v3209 = vpop.f32.mrb[0].mxu0
        %v3210 = vpop.f32.mrb[0].mxu0
        %3211 = vdwg.mxu0
        %3212 = vmatprep.subr.bf16.mxu0 %v2205
        %3213 = vmatpush1.bf16.msra.mxu0 %v2204
        %3214 = vmatprep.subr.bf16.mxu0 %v2217
        %3215 = vmatpush1.bf16.msra.mxu0 %v2216
        %3216 = vmatprep.subr.bf16.mxu0 %v2229
        %3217 = vmatpush1.bf16.msra.mxu0 %v2228
        %3218 = vmatprep.subr.bf16.mxu0 %v2241
        %3219 = vmatpush1.bf16.msra.mxu0 %v2240
        %3220 = vmatprep.subr.bf16.mxu0 %v2253
        %3221 = vmatpush1.bf16.msra.mxu0 %v2252
        %3222 = vmatprep.subr.bf16.mxu0 %v2265
        %3223 = vmatpush1.bf16.msra.mxu0 %v2264
        %3224 = vmatprep.subr.bf16.mxu0 %v2277
        %3225 = vmatpush1.bf16.msra.mxu0 %v2276
        %3226 = vmatprep.subr.bf16.mxu0 %v2289
        %3227 = vmatpush1.bf16.msra.mxu0 %v2288
        %3228 = vmatprep.subr.bf16.mxu0 %v2301
        %3229 = vmatpush1.bf16.msra.mxu0 %v2300
        %3230 = vmatprep.subr.bf16.mxu0 %v2313
        %3231 = vmatpush1.bf16.msra.mxu0 %v2312
        %3232 = vmatprep.subr.bf16.mxu0 %v2325
        %3233 = vmatpush1.bf16.msra.mxu0 %v2324
        %3234 = vmatprep.subr.bf16.mxu0 %v2337
        %3235 = vmatpush1.bf16.msra.mxu0 %v2336
        %3236 = vmatprep.subr.bf16.mxu0 %v2349
        %3237 = vmatpush1.bf16.msra.mxu0 %v2348
        %3238 = vmatprep.subr.bf16.mxu0 %v2361
        %3239 = vmatpush1.bf16.msra.mxu0 %v2360
        %3240 = vmatprep.subr.bf16.mxu0 %v2373
        %3241 = vmatpush1.bf16.msra.mxu0 %v2372
        %3242 = vmatprep.subr.bf16.mxu0 %v2385
        %3243 = vmatpush1.bf16.msra.mxu0 %v2384
        %3244 = vmatprep.mubr.bf16.mxu0 %v1039
        %3245 = vmatmul.mubr.bf16.gmra.mrb[0].mxu0 %v1038
        %v3246 = vpop.f32.mrb[0].mxu0
        %v3247 = vadd.f32 0.0, %v3246
        %v3248 = vpop.f32.mrb[0].mxu0
        %v3249 = vadd.f32 0.0, %v3248
        %v3250 = vpop.f32.mrb[0].mxu0
        %v3251 = vpop.f32.mrb[0].mxu0
        %3252 = vdwg.mxu0
        %3253 = vmatprep.subr.bf16.mxu0 %v2397
        %3254 = vmatpush1.bf16.msra.mxu0 %v2396
        %3255 = vmatprep.subr.bf16.mxu0 %v2409
        %3256 = vmatpush1.bf16.msra.mxu0 %v2408
        %3257 = vmatprep.subr.bf16.mxu0 %v2421
        %3258 = vmatpush1.bf16.msra.mxu0 %v2420
        %3259 = vmatprep.subr.bf16.mxu0 %v2433
        %3260 = vmatpush1.bf16.msra.mxu0 %v2432
        %3261 = vmatprep.subr.bf16.mxu0 %v2445
        %3262 = vmatpush1.bf16.msra.mxu0 %v2444
        %3263 = vmatprep.subr.bf16.mxu0 %v2457
        %3264 = vmatpush1.bf16.msra.mxu0 %v2456
        %3265 = vmatprep.subr.bf16.mxu0 %v2469
        %3266 = vmatpush1.bf16.msra.mxu0 %v2468
        %3267 = vmatprep.subr.bf16.mxu0 %v2481
        %3268 = vmatpush1.bf16.msra.mxu0 %v2480
        %3269 = vmatprep.subr.bf16.mxu0 %v2493
        %3270 = vmatpush1.bf16.msra.mxu0 %v2492
        %3271 = vmatprep.subr.bf16.mxu0 %v2505
        %3272 = vmatpush1.bf16.msra.mxu0 %v2504
        %3273 = vmatprep.subr.bf16.mxu0 %v2517
        %3274 = vmatpush1.bf16.msra.mxu0 %v2516
        %3275 = vmatprep.subr.bf16.mxu0 %v2529
        %3276 = vmatpush1.bf16.msra.mxu0 %v2528
        %3277 = vmatprep.subr.bf16.mxu0 %v2541
        %3278 = vmatpush1.bf16.msra.mxu0 %v2540
        %3279 = vmatprep.subr.bf16.mxu0 %v2553
        %3280 = vmatpush1.bf16.msra.mxu0 %v2552
        %3281 = vmatprep.subr.bf16.mxu0 %v2565
        %3282 = vmatpush1.bf16.msra.mxu0 %v2564
        %3283 = vmatprep.subr.bf16.mxu0 %v2577
        %3284 = vmatpush1.bf16.msra.mxu0 %v2576
        %3285 = vmatprep.mubr.bf16.mxu0 %v1041
        %3286 = vmatmul.mubr.bf16.gmra.mrb[0].mxu0 %v1040
        %v3287 = vpop.f32.mrb[0].mxu0
        %v3288 = vadd.f32 %v3247, %v3287
        %v3289 = vpop.f32.mrb[0].mxu0
        %v3290 = vadd.f32 %v3249, %v3289
        %v3291 = vpop.f32.mrb[0].mxu0
        %v3292 = vpop.f32.mrb[0].mxu0
        %3293 = vdwg.mxu0
        %3294 = vmatprep.subr.bf16.mxu0 %v2207
        %3295 = vmatpush1.bf16.msra.mxu0 %v2206
        %3296 = vmatprep.subr.bf16.mxu0 %v2219
        %3297 = vmatpush1.bf16.msra.mxu0 %v2218
        %3298 = vmatprep.subr.bf16.mxu0 %v2231
        %3299 = vmatpush1.bf16.msra.mxu0 %v2230
        %3300 = vmatprep.subr.bf16.mxu0 %v2243
        %3301 = vmatpush1.bf16.msra.mxu0 %v2242
        %3302 = vmatprep.subr.bf16.mxu0 %v2255
        %3303 = vmatpush1.bf16.msra.mxu0 %v2254
        %3304 = vmatprep.subr.bf16.mxu0 %v2267
        %3305 = vmatpush1.bf16.msra.mxu0 %v2266
        %3306 = vmatprep.subr.bf16.mxu0 %v2279
        %3307 = vmatpush1.bf16.msra.mxu0 %v2278
        %3308 = vmatprep.subr.bf16.mxu0 %v2291
        %3309 = vmatpush1.bf16.msra.mxu0 %v2290
        %3310 = vmatprep.subr.bf16.mxu0 %v2303
        %3311 = vmatpush1.bf16.msra.mxu0 %v2302
        %3312 = vmatprep.subr.bf16.mxu0 %v2315
        %3313 = vmatpush1.bf16.msra.mxu0 %v2314
        %3314 = vmatprep.subr.bf16.mxu0 %v2327
        %3315 = vmatpush1.bf16.msra.mxu0 %v2326
        %3316 = vmatprep.subr.bf16.mxu0 %v2339
        %3317 = vmatpush1.bf16.msra.mxu0 %v2338
        %3318 = vmatprep.subr.bf16.mxu0 %v2351
        %3319 = vmatpush1.bf16.msra.mxu0 %v2350
        %3320 = vmatprep.subr.bf16.mxu0 %v2363
        %3321 = vmatpush1.bf16.msra.mxu0 %v2362
        %3322 = vmatprep.subr.bf16.mxu0 %v2375
        %3323 = vmatpush1.bf16.msra.mxu0 %v2374
        %3324 = vmatprep.subr.bf16.mxu0 %v2387
        %3325 = vmatpush1.bf16.msra.mxu0 %v2386
        %3326 = vmatprep.mubr.bf16.mxu0 %v1039
        %3327 = vmatmul.mubr.bf16.gmra.mrb[0].mxu0 %v1038
        %v3328 = vpop.f32.mrb[0].mxu0
        %v3329 = vadd.f32 0.0, %v3328
        %v3330 = vpop.f32.mrb[0].mxu0
        %v3331 = vadd.f32 0.0, %v3330
        %v3332 = vpop.f32.mrb[0].mxu0
        %v3333 = vpop.f32.mrb[0].mxu0
        %3334 = vdwg.mxu0
        %3335 = vmatprep.subr.bf16.mxu0 %v2399
        %3336 = vmatpush1.bf16.msra.mxu0 %v2398
        %3337 = vmatprep.subr.bf16.mxu0 %v2411
        %3338 = vmatpush1.bf16.msra.mxu0 %v2410
        %3339 = vmatprep.subr.bf16.mxu0 %v2423
        %3340 = vmatpush1.bf16.msra.mxu0 %v2422
        %3341 = vmatprep.subr.bf16.mxu0 %v2435
        %3342 = vmatpush1.bf16.msra.mxu0 %v2434
        %3343 = vmatprep.subr.bf16.mxu0 %v2447
        %3344 = vmatpush1.bf16.msra.mxu0 %v2446
        %3345 = vmatprep.subr.bf16.mxu0 %v2459
        %3346 = vmatpush1.bf16.msra.mxu0 %v2458
        %3347 = vmatprep.subr.bf16.mxu0 %v2471
        %3348 = vmatpush1.bf16.msra.mxu0 %v2470
        %3349 = vmatprep.subr.bf16.mxu0 %v2483
        %3350 = vmatpush1.bf16.msra.mxu0 %v2482
        %3351 = vmatprep.subr.bf16.mxu0 %v2495
        %3352 = vmatpush1.bf16.msra.mxu0 %v2494
        %3353 = vmatprep.subr.bf16.mxu0 %v2507
        %3354 = vmatpush1.bf16.msra.mxu0 %v2506
        %3355 = vmatprep.subr.bf16.mxu0 %v2519
        %3356 = vmatpush1.bf16.msra.mxu0 %v2518
        %3357 = vmatprep.subr.bf16.mxu0 %v2531
        %3358 = vmatpush1.bf16.msra.mxu0 %v2530
        %3359 = vmatprep.subr.bf16.mxu0 %v2543
        %3360 = vmatpush1.bf16.msra.mxu0 %v2542
        %3361 = vmatprep.subr.bf16.mxu0 %v2555
        %3362 = vmatpush1.bf16.msra.mxu0 %v2554
        %3363 = vmatprep.subr.bf16.mxu0 %v2567
        %3364 = vmatpush1.bf16.msra.mxu0 %v2566
        %3365 = vmatprep.subr.bf16.mxu0 %v2579
        %3366 = vmatpush1.bf16.msra.mxu0 %v2578
        %3367 = vmatprep.mubr.bf16.mxu0 %v1041
        %3368 = vmatmul.mubr.bf16.gmra.mrb[0].mxu0 %v1040
        %v3369 = vpop.f32.mrb[0].mxu0
        %v3370 = vadd.f32 %v3329, %v3369
        %v3371 = vpop.f32.mrb[0].mxu0
        %v3372 = vadd.f32 %v3331, %v3371
        %v3373 = vpop.f32.mrb[0].mxu0
        %v3374 = vpop.f32.mrb[0].mxu0
        %3375 = vdwg.mxu0
        %3376 = vmatprep.subr.bf16.mxu0 %v2209
        %3377 = vmatpush1.bf16.msra.mxu0 %v2208
        %3378 = vmatprep.subr.bf16.mxu0 %v2221
        %3379 = vmatpush1.bf16.msra.mxu0 %v2220
        %3380 = vmatprep.subr.bf16.mxu0 %v2233
        %3381 = vmatpush1.bf16.msra.mxu0 %v2232
        %3382 = vmatprep.subr.bf16.mxu0 %v2245
        %3383 = vmatpush1.bf16.msra.mxu0 %v2244
        %3384 = vmatprep.subr.bf16.mxu0 %v2257
        %3385 = vmatpush1.bf16.msra.mxu0 %v2256
        %3386 = vmatprep.subr.bf16.mxu0 %v2269
        %3387 = vmatpush1.bf16.msra.mxu0 %v2268
        %3388 = vmatprep.subr.bf16.mxu0 %v2281
        %3389 = vmatpush1.bf16.msra.mxu0 %v2280
        %3390 = vmatprep.subr.bf16.mxu0 %v2293
        %3391 = vmatpush1.bf16.msra.mxu0 %v2292
        %3392 = vmatprep.subr.bf16.mxu0 %v2305
        %3393 = vmatpush1.bf16.msra.mxu0 %v2304
        %3394 = vmatprep.subr.bf16.mxu0 %v2317
        %3395 = vmatpush1.bf16.msra.mxu0 %v2316
        %3396 = vmatprep.subr.bf16.mxu0 %v2329
        %3397 = vmatpush1.bf16.msra.mxu0 %v2328
        %3398 = vmatprep.subr.bf16.mxu0 %v2341
        %3399 = vmatpush1.bf16.msra.mxu0 %v2340
        %3400 = vmatprep.subr.bf16.mxu0 %v2353
        %3401 = vmatpush1.bf16.msra.mxu0 %v2352
        %3402 = vmatprep.subr.bf16.mxu0 %v2365
        %3403 = vmatpush1.bf16.msra.mxu0 %v2364
        %3404 = vmatprep.subr.bf16.mxu0 %v2377
        %3405 = vmatpush1.bf16.msra.mxu0 %v2376
        %3406 = vmatprep.subr.bf16.mxu0 %v2389
        %3407 = vmatpush1.bf16.msra.mxu0 %v2388
        %3408 = vmatprep.mubr.bf16.mxu0 %v1039
        %3409 = vmatmul.mubr.bf16.gmra.mrb[0].mxu0 %v1038
        %v3410 = vpop.f32.mrb[0].mxu0
        %v3411 = vadd.f32 0.0, %v3410
        %v3412 = vpop.f32.mrb[0].mxu0
        %v3413 = vadd.f32 0.0, %v3412
        %v3414 = vpop.f32.mrb[0].mxu0
        %v3415 = vpop.f32.mrb[0].mxu0
        %3416 = vdwg.mxu0
        %3417 = vmatprep.subr.bf16.mxu0 %v2401
        %3418 = vmatpush1.bf16.msra.mxu0 %v2400
        %3419 = vmatprep.subr.bf16.mxu0 %v2413
        %3420 = vmatpush1.bf16.msra.mxu0 %v2412
        %3421 = vmatprep.subr.bf16.mxu0 %v2425
        %3422 = vmatpush1.bf16.msra.mxu0 %v2424
        %3423 = vmatprep.subr.bf16.mxu0 %v2437
        %3424 = vmatpush1.bf16.msra.mxu0 %v2436
        %3425 = vmatprep.subr.bf16.mxu0 %v2449
        %3426 = vmatpush1.bf16.msra.mxu0 %v2448
        %3427 = vmatprep.subr.bf16.mxu0 %v2461
        %3428 = vmatpush1.bf16.msra.mxu0 %v2460
        %3429 = vmatprep.subr.bf16.mxu0 %v2473
        %3430 = vmatpush1.bf16.msra.mxu0 %v2472
        %3431 = vmatprep.subr.bf16.mxu0 %v2485
        %3432 = vmatpush1.bf16.msra.mxu0 %v2484
        %3433 = vmatprep.subr.bf16.mxu0 %v2497
        %3434 = vmatpush1.bf16.msra.mxu0 %v2496
        %3435 = vmatprep.subr.bf16.mxu0 %v2509
        %3436 = vmatpush1.bf16.msra.mxu0 %v2508
        %3437 = vmatprep.subr.bf16.mxu0 %v2521
        %3438 = vmatpush1.bf16.msra.mxu0 %v2520
        %3439 = vmatprep.subr.bf16.mxu0 %v2533
        %3440 = vmatpush1.bf16.msra.mxu0 %v2532
        %3441 = vmatprep.subr.bf16.mxu0 %v2545
        %3442 = vmatpush1.bf16.msra.mxu0 %v2544
        %3443 = vmatprep.subr.bf16.mxu0 %v2557
        %3444 = vmatpush1.bf16.msra.mxu0 %v2556
        %3445 = vmatprep.subr.bf16.mxu0 %v2569
        %3446 = vmatpush1.bf16.msra.mxu0 %v2568
        %3447 = vmatprep.subr.bf16.mxu0 %v2581
        %3448 = vmatpush1.bf16.msra.mxu0 %v2580
        %3449 = vmatprep.mubr.bf16.mxu0 %v1041
        %3450 = vmatmul.mubr.bf16.gmra.mrb[0].mxu0 %v1040
        %v3451 = vpop.f32.mrb[0].mxu0
        %v3452 = vadd.f32 %v3411, %v3451
        %v3453 = vpop.f32.mrb[0].mxu0
        %v3454 = vadd.f32 %v3413, %v3453
        %v3455 = vpop.f32.mrb[0].mxu0
        %v3456 = vpop.f32.mrb[0].mxu0
        %3457 = vdwg.mxu0
        %v3458 = vadd.f32 %v634, %v3042
        %v3459 = vadd.f32 %v635, %v3044
        %v3460 = vadd.f32 %v636, %v3124
        %v3461 = vadd.f32 %v637, %v3126
        %v3462 = vadd.f32 %v638, %v3206
        %v3463 = vadd.f32 %v639, %v3208
        %v3464 = vadd.f32 %v640, %v3288
        %v3465 = vadd.f32 %v641, %v3290
        %v3466 = vadd.f32 %v642, %v3370
        %v3467 = vadd.f32 %v643, %v3372
        %v3468 = vadd.f32 %v644, %v3452
        %v3469 = vadd.f32 %v645, %v3454
        %3470 = vst [vmem:[#allocation2] sm:$0xff] %v3458
        %3471 = vst [vmem:[#allocation2 + $0x8] sm:$0xff] %v3459
        %3472 = vst [vmem:[#allocation2 + $0x10] sm:$0xff] %v3460
        %3473 = vst [vmem:[#allocation2 + $0x18] sm:$0xff] %v3461
        %3474 = vst [vmem:[#allocation2 + $0x20] sm:$0xff] %v3462
        %3475 = vst [vmem:[#allocation2 + $0x28] sm:$0xff] %v3463
        %3476 = vst [vmem:[#allocation2 + $0x30] sm:$0xff] %v3464
        %3477 = vst [vmem:[#allocation2 + $0x38] sm:$0xff] %v3465
        %3478 = vst [vmem:[#allocation2 + $0x40] sm:$0xff] %v3466
        %3479 = vst [vmem:[#allocation2 + $0x48] sm:$0xff] %v3467
        %3480 = vst [vmem:[#allocation2 + $0x50] sm:$0xff] %v3468
        %3481 = vst [vmem:[#allocation2 + $0x58] sm:$0xff] %v3469
        %p3482 = scmp.eq.s32.totalorder %s36, 1
        // Predicated region
        $region117: #{hand_hmr_forward.1} parent=67 // pred_check
          %p3483 = pneg %p3482
        $region118: #{hand_hmr_forward.1} parent=67 // pred_check_branch
          %3485 = sbr.rel (%p3483) target = $region120
        $region119: #{hand_hmr_forward.1} parent=67 // pred_region
          %v3486 = vld [vmem:[#allocation2] sm:$0xff]
          %v3487 = vld [vmem:[#allocation2 + $0x8] sm:$0xff]
          %v3488 = vld [vmem:[#allocation2 + $0x10] sm:$0xff]
          %v3489 = vld [vmem:[#allocation2 + $0x18] sm:$0xff]
          %v3490 = vld [vmem:[#allocation2 + $0x20] sm:$0xff]
          %v3491 = vld [vmem:[#allocation2 + $0x28] sm:$0xff]
          %v3492 = vld [vmem:[#allocation2 + $0x30] sm:$0xff]
          %v3493 = vld [vmem:[#allocation2 + $0x38] sm:$0xff]
          %v3494 = vld [vmem:[#allocation2 + $0x40] sm:$0xff]
          %v3495 = vld [vmem:[#allocation2 + $0x48] sm:$0xff]
          %v3496 = vld [vmem:[#allocation2 + $0x50] sm:$0xff]
          %v3497 = vld [vmem:[#allocation2 + $0x58] sm:$0xff]
          %v3498 = vld [vmem:[#allocation5] sm:$0xff]
          %v3499 = vld [vmem:[#allocation5 + $0x8] sm:$0xf]
          %v3502 = vlaneseq
          %v3503 = vshrl.u32 %v3502, 7
          %v3504 = vsub.s32 0, %v3503
          %v3505 = vrot.slane %v3498, %v3504
          %v3506 = vlaneseq
          %v3507 = vshrl.u32 %v3506, 7
          %v3508 = vsub.s32 1, %v3507
          %v3509 = vrot.slane %v3498, %v3508
          %v3510 = vlaneseq
          %v3511 = vshrl.u32 %v3510, 7
          %v3512 = vsub.s32 2, %v3511
          %v3513 = vrot.slane %v3498, %v3512
          %v3514 = vlaneseq
          %v3515 = vshrl.u32 %v3514, 7
          %v3516 = vsub.s32 3, %v3515
          %v3517 = vrot.slane %v3498, %v3516
          %v3518 = vlaneseq
          %v3519 = vshrl.u32 %v3518, 7
          %v3520 = vsub.s32 4, %v3519
          %v3521 = vrot.slane %v3498, %v3520
          %v3522 = vlaneseq
          %v3523 = vshrl.u32 %v3522, 7
          %v3524 = vsub.s32 5, %v3523
          %v3525 = vrot.slane %v3498, %v3524
          %v3526 = vlaneseq
          %v3527 = vshrl.u32 %v3526, 7
          %v3528 = vsub.s32 6, %v3527
          %v3529 = vrot.slane %v3498, %v3528
          %v3530 = vlaneseq
          %v3531 = vshrl.u32 %v3530, 7
          %v3532 = vsub.s32 7, %v3531
          %v3533 = vrot.slane %v3498, %v3532
          %v3534 = vlaneseq
          %v3535 = vshrl.u32 %v3534, 7
          %v3536 = vsub.s32 0, %v3535
          %v3537 = vrot.slane %v3499, %v3536
          %v3538 = vlaneseq
          %v3539 = vshrl.u32 %v3538, 7
          %v3540 = vsub.s32 1, %v3539
          %v3541 = vrot.slane %v3499, %v3540
          %v3542 = vlaneseq
          %v3543 = vshrl.u32 %v3542, 7
          %v3544 = vsub.s32 2, %v3543
          %v3545 = vrot.slane %v3499, %v3544
          %v3546 = vlaneseq
          %v3547 = vshrl.u32 %v3546, 7
          %v3548 = vsub.s32 3, %v3547
          %v3549 = vrot.slane %v3499, %v3548
          %v3562 = vadd.f32 %v3486, %v3505
          %v3563 = vadd.f32 %v3487, %v3509
          %v3564 = vadd.f32 %v3488, %v3513
          %v3565 = vadd.f32 %v3489, %v3517
          %v3566 = vadd.f32 %v3490, %v3521
          %v3567 = vadd.f32 %v3491, %v3525
          %v3568 = vadd.f32 %v3492, %v3529
          %v3569 = vadd.f32 %v3493, %v3533
          %v3570 = vadd.f32 %v3494, %v3537
          %v3571 = vadd.f32 %v3495, %v3541
          %v3572 = vadd.f32 %v3496, %v3545
          %v3573 = vadd.f32 %v3497, %v3549
          %v3574 = vmax.f32 %v3562, 0.0
          %v3575 = vmax.f32 %v3563, 0.0
          %v3576 = vmax.f32 %v3564, 0.0
          %v3577 = vmax.f32 %v3565, 0.0
          %v3578 = vpack.c.bf16 %v3574, %v3574
          %v3579 = vpack.c.bf16 %v3575, %v3575
          %v3580 = vpack.c.bf16 %v3576, %v3576
          %v3581 = vpack.c.bf16 %v3577, %v3577
          %v3582 = vld [vmem:[#allocation7] sm:$0xff]
          %v3583 = vld [vmem:[#allocation7 + $0x8] sm:$0xff]
          %v3584 = vld [vmem:[#allocation7 + $0x10] sm:$0xff]
          %v3585 = vld [vmem:[#allocation7 + $0x18] sm:$0xff]
          %v3586 = vld [vmem:[#allocation7 + $0x20] sm:$0xff]
          %v3587 = vld [vmem:[#allocation7 + $0x28] sm:$0xff]
          %v3588 = vld [vmem:[#allocation7 + $0x30] sm:$0xff]
          %v3589 = vld [vmem:[#allocation7 + $0x38] sm:$0xff]
          %v3590 = vld [vmem:[#allocation7 + $0x40] sm:$0xff]
          %v3591 = vld [vmem:[#allocation7 + $0x48] sm:$0xff]
          %v3592 = vld [vmem:[#allocation7 + $0x50] sm:$0xff]
          %v3593 = vld [vmem:[#allocation7 + $0x58] sm:$0xff]
          %v3594 = vld [vmem:[#allocation7 + $0x60] sm:$0xff]
          %v3595 = vld [vmem:[#allocation7 + $0x68] sm:$0xff]
          %v3596 = vld [vmem:[#allocation7 + $0x70] sm:$0xff]
          %v3597 = vld [vmem:[#allocation7 + $0x78] sm:$0xff]
          %v3598 = vld [vmem:[#allocation7 + $0x80] sm:$0xff]
          %v3599 = vld [vmem:[#allocation7 + $0x88] sm:$0xff]
          %v3600 = vld [vmem:[#allocation7 + $0x90] sm:$0xff]
          %v3601 = vld [vmem:[#allocation7 + $0x98] sm:$0xff]
          %v3602 = vld [vmem:[#allocation7 + $0xa0] sm:$0xff]
          %v3603 = vld [vmem:[#allocation7 + $0xa8] sm:$0xff]
          %v3604 = vld [vmem:[#allocation7 + $0xb0] sm:$0xff]
          %v3605 = vld [vmem:[#allocation7 + $0xb8] sm:$0xff]
          %v3606 = vld [vmem:[#allocation7 + $0xc0] sm:$0xff]
          %v3607 = vld [vmem:[#allocation7 + $0xc8] sm:$0xff]
          %v3608 = vld [vmem:[#allocation7 + $0xd0] sm:$0xff]
          %v3609 = vld [vmem:[#allocation7 + $0xd8] sm:$0xff]
          %v3610 = vld [vmem:[#allocation7 + $0xe0] sm:$0xff]
          %v3611 = vld [vmem:[#allocation7 + $0xe8] sm:$0xff]
          %v3612 = vld [vmem:[#allocation7 + $0xf0] sm:$0xff]
          %v3613 = vld [vmem:[#allocation7 + $0xf8] sm:$0xff]
          %v3614 = vld [vmem:[#allocation7 + $0x100] sm:$0xff]
          %v3615 = vld [vmem:[#allocation7 + $0x108] sm:$0xff]
          %v3616 = vld [vmem:[#allocation7 + $0x110] sm:$0xff]
          %v3617 = vld [vmem:[#allocation7 + $0x118] sm:$0xff]
          %v3618 = vld [vmem:[#allocation7 + $0x120] sm:$0xff]
          %v3619 = vld [vmem:[#allocation7 + $0x128] sm:$0xff]
          %v3620 = vld [vmem:[#allocation7 + $0x130] sm:$0xff]
          %v3621 = vld [vmem:[#allocation7 + $0x138] sm:$0xff]
          %v3622 = vld [vmem:[#allocation7 + $0x140] sm:$0xff]
          %v3623 = vld [vmem:[#allocation7 + $0x148] sm:$0xff]
          %v3624 = vld [vmem:[#allocation7 + $0x150] sm:$0xff]
          %v3625 = vld [vmem:[#allocation7 + $0x158] sm:$0xff]
          %v3626 = vld [vmem:[#allocation7 + $0x160] sm:$0xff]
          %v3627 = vld [vmem:[#allocation7 + $0x168] sm:$0xff]
          %v3628 = vld [vmem:[#allocation7 + $0x170] sm:$0xff]
          %v3629 = vld [vmem:[#allocation7 + $0x178] sm:$0xff]
          %v3630 = vld [vmem:[#allocation7 + $0x180] sm:$0xff]
          %v3631 = vld [vmem:[#allocation7 + $0x188] sm:$0xff]
          %v3632 = vld [vmem:[#allocation7 + $0x190] sm:$0xff]
          %v3633 = vld [vmem:[#allocation7 + $0x198] sm:$0xff]
          %v3634 = vld [vmem:[#allocation7 + $0x1a0] sm:$0xff]
          %v3635 = vld [vmem:[#allocation7 + $0x1a8] sm:$0xff]
          %v3636 = vld [vmem:[#allocation7 + $0x1b0] sm:$0xff]
          %v3637 = vld [vmem:[#allocation7 + $0x1b8] sm:$0xff]
          %v3638 = vld [vmem:[#allocation7 + $0x1c0] sm:$0xff]
          %v3639 = vld [vmem:[#allocation7 + $0x1c8] sm:$0xff]
          %v3640 = vld [vmem:[#allocation7 + $0x1d0] sm:$0xff]
          %v3641 = vld [vmem:[#allocation7 + $0x1d8] sm:$0xff]
          %v3642 = vld [vmem:[#allocation7 + $0x1e0] sm:$0xff]
          %v3643 = vld [vmem:[#allocation7 + $0x1e8] sm:$0xff]
          %v3644 = vld [vmem:[#allocation7 + $0x1f0] sm:$0xff]
          %v3645 = vld [vmem:[#allocation7 + $0x1f8] sm:$0xff]
          %v3646 = vld [vmem:[#allocation7 + $0x200] sm:$0xff]
          %v3647 = vld [vmem:[#allocation7 + $0x208] sm:$0xff]
          %v3648 = vld [vmem:[#allocation7 + $0x210] sm:$0xff]
          %v3649 = vld [vmem:[#allocation7 + $0x218] sm:$0xff]
          %v3650 = vld [vmem:[#allocation7 + $0x220] sm:$0xff]
          %v3651 = vld [vmem:[#allocation7 + $0x228] sm:$0xff]
          %v3652 = vld [vmem:[#allocation7 + $0x230] sm:$0xff]
          %v3653 = vld [vmem:[#allocation7 + $0x238] sm:$0xff]
          %v3654 = vld [vmem:[#allocation7 + $0x240] sm:$0xff]
          %v3655 = vld [vmem:[#allocation7 + $0x248] sm:$0xff]
          %v3656 = vld [vmem:[#allocation7 + $0x250] sm:$0xff]
          %v3657 = vld [vmem:[#allocation7 + $0x258] sm:$0xff]
          %v3658 = vld [vmem:[#allocation7 + $0x260] sm:$0xff]
          %v3659 = vld [vmem:[#allocation7 + $0x268] sm:$0xff]
          %v3660 = vld [vmem:[#allocation7 + $0x270] sm:$0xff]
          %v3661 = vld [vmem:[#allocation7 + $0x278] sm:$0xff]
          %v3662 = vld [vmem:[#allocation7 + $0x280] sm:$0xff]
          %v3663 = vld [vmem:[#allocation7 + $0x288] sm:$0xff]
          %v3664 = vld [vmem:[#allocation7 + $0x290] sm:$0xff]
          %v3665 = vld [vmem:[#allocation7 + $0x298] sm:$0xff]
          %v3666 = vld [vmem:[#allocation7 + $0x2a0] sm:$0xff]
          %v3667 = vld [vmem:[#allocation7 + $0x2a8] sm:$0xff]
          %v3668 = vld [vmem:[#allocation7 + $0x2b0] sm:$0xff]
          %v3669 = vld [vmem:[#allocation7 + $0x2b8] sm:$0xff]
          %v3670 = vld [vmem:[#allocation7 + $0x2c0] sm:$0xff]
          %v3671 = vld [vmem:[#allocation7 + $0x2c8] sm:$0xff]
          %v3672 = vld [vmem:[#allocation7 + $0x2d0] sm:$0xff]
          %v3673 = vld [vmem:[#allocation7 + $0x2d8] sm:$0xff]
          %v3674 = vld [vmem:[#allocation7 + $0x2e0] sm:$0xff]
          %v3675 = vld [vmem:[#allocation7 + $0x2e8] sm:$0xff]
          %v3676 = vld [vmem:[#allocation7 + $0x2f0] sm:$0xff]
          %v3677 = vld [vmem:[#allocation7 + $0x2f8] sm:$0xff]
          %v3678 = vld [vmem:[#allocation7 + $0x300] sm:$0xff]
          %v3679 = vld [vmem:[#allocation7 + $0x308] sm:$0xff]
          %v3680 = vld [vmem:[#allocation7 + $0x310] sm:$0xff]
          %v3681 = vld [vmem:[#allocation7 + $0x318] sm:$0xff]
          %v3682 = vld [vmem:[#allocation7 + $0x320] sm:$0xff]
          %v3683 = vld [vmem:[#allocation7 + $0x328] sm:$0xff]
          %v3684 = vld [vmem:[#allocation7 + $0x330] sm:$0xff]
          %v3685 = vld [vmem:[#allocation7 + $0x338] sm:$0xff]
          %v3686 = vld [vmem:[#allocation7 + $0x340] sm:$0xff]
          %v3687 = vld [vmem:[#allocation7 + $0x348] sm:$0xff]
          %v3688 = vld [vmem:[#allocation7 + $0x350] sm:$0xff]
          %v3689 = vld [vmem:[#allocation7 + $0x358] sm:$0xff]
          %v3690 = vld [vmem:[#allocation7 + $0x360] sm:$0xff]
          %v3691 = vld [vmem:[#allocation7 + $0x368] sm:$0xff]
          %v3692 = vld [vmem:[#allocation7 + $0x370] sm:$0xff]
          %v3693 = vld [vmem:[#allocation7 + $0x378] sm:$0xff]
          %v3694 = vld [vmem:[#allocation7 + $0x380] sm:$0xff]
          %v3695 = vld [vmem:[#allocation7 + $0x388] sm:$0xff]
          %v3696 = vld [vmem:[#allocation7 + $0x390] sm:$0xff]
          %v3697 = vld [vmem:[#allocation7 + $0x398] sm:$0xff]
          %v3698 = vld [vmem:[#allocation7 + $0x3a0] sm:$0xff]
          %v3699 = vld [vmem:[#allocation7 + $0x3a8] sm:$0xff]
          %v3700 = vld [vmem:[#allocation7 + $0x3b0] sm:$0xff]
          %v3701 = vld [vmem:[#allocation7 + $0x3b8] sm:$0xff]
          %v3702 = vld [vmem:[#allocation7 + $0x3c0] sm:$0xff]
          %v3703 = vld [vmem:[#allocation7 + $0x3c8] sm:$0xff]
          %v3704 = vld [vmem:[#allocation7 + $0x3d0] sm:$0xff]
          %v3705 = vld [vmem:[#allocation7 + $0x3d8] sm:$0xff]
          %v3706 = vld [vmem:[#allocation7 + $0x3e0] sm:$0xff]
          %v3707 = vld [vmem:[#allocation7 + $0x3e8] sm:$0xff]
          %v3708 = vld [vmem:[#allocation7 + $0x3f0] sm:$0xff]
          %v3709 = vld [vmem:[#allocation7 + $0x3f8] sm:$0xff]
          %v3710 = vld [vmem:[#allocation8] sm:$0xf]
          %v3712 = vlaneseq
          %v3713 = vshrl.u32 %v3712, 7
          %v3714 = vsub.s32 0, %v3713
          %v3715 = vrot.slane %v3710, %v3714
          %v3716 = vlaneseq
          %v3717 = vshrl.u32 %v3716, 7
          %v3718 = vsub.s32 1, %v3717
          %v3719 = vrot.slane %v3710, %v3718
          %v3720 = vlaneseq
          %v3721 = vshrl.u32 %v3720, 7
          %v3722 = vsub.s32 2, %v3721
          %v3723 = vrot.slane %v3710, %v3722
          %v3724 = vlaneseq
          %v3725 = vshrl.u32 %v3724, 7
          %v3726 = vsub.s32 3, %v3725
          %v3727 = vrot.slane %v3710, %v3726
          %v3860 = vunpack.c.l.b16 %v3582
          %v3861 = vunpack.c.h.b16 %v3582
          %v3862 = vunpack.c.l.b16 %v3583
          %v3863 = vunpack.c.h.b16 %v3583
          %v3864 = vunpack.c.l.b16 %v3584
          %v3865 = vunpack.c.h.b16 %v3584
          %v3866 = vunpack.c.l.b16 %v3585
          %v3867 = vunpack.c.h.b16 %v3585
          %v3868 = vunpack.c.l.b16 %v3586
          %v3869 = vunpack.c.h.b16 %v3586
          %v3870 = vunpack.c.l.b16 %v3587
          %v3871 = vunpack.c.h.b16 %v3587
          %v3872 = vunpack.c.l.b16 %v3588
          %v3873 = vunpack.c.h.b16 %v3588
          %v3874 = vunpack.c.l.b16 %v3589
          %v3875 = vunpack.c.h.b16 %v3589
          %v3876 = vunpack.c.l.b16 %v3590
          %v3877 = vunpack.c.h.b16 %v3590
          %v3878 = vunpack.c.l.b16 %v3591
          %v3879 = vunpack.c.h.b16 %v3591
          %v3880 = vunpack.c.l.b16 %v3592
          %v3881 = vunpack.c.h.b16 %v3592
          %v3882 = vunpack.c.l.b16 %v3593
          %v3883 = vunpack.c.h.b16 %v3593
          %v3884 = vunpack.c.l.b16 %v3594
          %v3885 = vunpack.c.h.b16 %v3594
          %v3886 = vunpack.c.l.b16 %v3595
          %v3887 = vunpack.c.h.b16 %v3595
          %v3888 = vunpack.c.l.b16 %v3596
          %v3889 = vunpack.c.h.b16 %v3596
          %v3890 = vunpack.c.l.b16 %v3597
          %v3891 = vunpack.c.h.b16 %v3597
          %v3892 = vunpack.c.l.b16 %v3598
          %v3893 = vunpack.c.h.b16 %v3598
          %v3894 = vunpack.c.l.b16 %v3599
          %v3895 = vunpack.c.h.b16 %v3599
          %v3896 = vunpack.c.l.b16 %v3600
          %v3897 = vunpack.c.h.b16 %v3600
          %v3898 = vunpack.c.l.b16 %v3601
          %v3899 = vunpack.c.h.b16 %v3601
          %v3900 = vunpack.c.l.b16 %v3602
          %v3901 = vunpack.c.h.b16 %v3602
          %v3902 = vunpack.c.l.b16 %v3603
          %v3903 = vunpack.c.h.b16 %v3603
          %v3904 = vunpack.c.l.b16 %v3604
          %v3905 = vunpack.c.h.b16 %v3604
          %v3906 = vunpack.c.l.b16 %v3605
          %v3907 = vunpack.c.h.b16 %v3605
          %v3908 = vunpack.c.l.b16 %v3606
          %v3909 = vunpack.c.h.b16 %v3606
          %v3910 = vunpack.c.l.b16 %v3607
          %v3911 = vunpack.c.h.b16 %v3607
          %v3912 = vunpack.c.l.b16 %v3608
          %v3913 = vunpack.c.h.b16 %v3608
          %v3914 = vunpack.c.l.b16 %v3609
          %v3915 = vunpack.c.h.b16 %v3609
          %v3916 = vunpack.c.l.b16 %v3610
          %v3917 = vunpack.c.h.b16 %v3610
          %v3918 = vunpack.c.l.b16 %v3611
          %v3919 = vunpack.c.h.b16 %v3611
          %v3920 = vunpack.c.l.b16 %v3612
          %v3921 = vunpack.c.h.b16 %v3612
          %v3922 = vunpack.c.l.b16 %v3613
          %v3923 = vunpack.c.h.b16 %v3613
          %v3924 = vunpack.c.l.b16 %v3614
          %v3925 = vunpack.c.h.b16 %v3614
          %v3926 = vunpack.c.l.b16 %v3615
          %v3927 = vunpack.c.h.b16 %v3615
          %v3928 = vunpack.c.l.b16 %v3616
          %v3929 = vunpack.c.h.b16 %v3616
          %v3930 = vunpack.c.l.b16 %v3617
          %v3931 = vunpack.c.h.b16 %v3617
          %v3932 = vunpack.c.l.b16 %v3618
          %v3933 = vunpack.c.h.b16 %v3618
          %v3934 = vunpack.c.l.b16 %v3619
          %v3935 = vunpack.c.h.b16 %v3619
          %v3936 = vunpack.c.l.b16 %v3620
          %v3937 = vunpack.c.h.b16 %v3620
          %v3938 = vunpack.c.l.b16 %v3621
          %v3939 = vunpack.c.h.b16 %v3621
          %v3940 = vunpack.c.l.b16 %v3622
          %v3941 = vunpack.c.h.b16 %v3622
          %v3942 = vunpack.c.l.b16 %v3623
          %v3943 = vunpack.c.h.b16 %v3623
          %v3944 = vunpack.c.l.b16 %v3624
          %v3945 = vunpack.c.h.b16 %v3624
          %v3946 = vunpack.c.l.b16 %v3625
          %v3947 = vunpack.c.h.b16 %v3625
          %v3948 = vunpack.c.l.b16 %v3626
          %v3949 = vunpack.c.h.b16 %v3626
          %v3950 = vunpack.c.l.b16 %v3627
          %v3951 = vunpack.c.h.b16 %v3627
          %v3952 = vunpack.c.l.b16 %v3628
          %v3953 = vunpack.c.h.b16 %v3628
          %v3954 = vunpack.c.l.b16 %v3629
          %v3955 = vunpack.c.h.b16 %v3629
          %v3956 = vunpack.c.l.b16 %v3630
          %v3957 = vunpack.c.h.b16 %v3630
          %v3958 = vunpack.c.l.b16 %v3631
          %v3959 = vunpack.c.h.b16 %v3631
          %v3960 = vunpack.c.l.b16 %v3632
          %v3961 = vunpack.c.h.b16 %v3632
          %v3962 = vunpack.c.l.b16 %v3633
          %v3963 = vunpack.c.h.b16 %v3633
          %v3964 = vunpack.c.l.b16 %v3634
          %v3965 = vunpack.c.h.b16 %v3634
          %v3966 = vunpack.c.l.b16 %v3635
          %v3967 = vunpack.c.h.b16 %v3635
          %v3968 = vunpack.c.l.b16 %v3636
          %v3969 = vunpack.c.h.b16 %v3636
          %v3970 = vunpack.c.l.b16 %v3637
          %v3971 = vunpack.c.h.b16 %v3637
          %v3972 = vunpack.c.l.b16 %v3638
          %v3973 = vunpack.c.h.b16 %v3638
          %v3974 = vunpack.c.l.b16 %v3639
          %v3975 = vunpack.c.h.b16 %v3639
          %v3976 = vunpack.c.l.b16 %v3640
          %v3977 = vunpack.c.h.b16 %v3640
          %v3978 = vunpack.c.l.b16 %v3641
          %v3979 = vunpack.c.h.b16 %v3641
          %v3980 = vunpack.c.l.b16 %v3642
          %v3981 = vunpack.c.h.b16 %v3642
          %v3982 = vunpack.c.l.b16 %v3643
          %v3983 = vunpack.c.h.b16 %v3643
          %v3984 = vunpack.c.l.b16 %v3644
          %v3985 = vunpack.c.h.b16 %v3644
          %v3986 = vunpack.c.l.b16 %v3645
          %v3987 = vunpack.c.h.b16 %v3645
          %v3988 = vunpack.c.l.b16 %v3646
          %v3989 = vunpack.c.h.b16 %v3646
          %v3990 = vunpack.c.l.b16 %v3647
          %v3991 = vunpack.c.h.b16 %v3647
          %v3992 = vunpack.c.l.b16 %v3648
          %v3993 = vunpack.c.h.b16 %v3648
          %v3994 = vunpack.c.l.b16 %v3649
          %v3995 = vunpack.c.h.b16 %v3649
          %v3996 = vunpack.c.l.b16 %v3650
          %v3997 = vunpack.c.h.b16 %v3650
          %v3998 = vunpack.c.l.b16 %v3651
          %v3999 = vunpack.c.h.b16 %v3651
          %v4000 = vunpack.c.l.b16 %v3652
          %v4001 = vunpack.c.h.b16 %v3652
          %v4002 = vunpack.c.l.b16 %v3653
          %v4003 = vunpack.c.h.b16 %v3653
          %v4004 = vunpack.c.l.b16 %v3654
          %v4005 = vunpack.c.h.b16 %v3654
          %v4006 = vunpack.c.l.b16 %v3655
          %v4007 = vunpack.c.h.b16 %v3655
          %v4008 = vunpack.c.l.b16 %v3656
          %v4009 = vunpack.c.h.b16 %v3656
          %v4010 = vunpack.c.l.b16 %v3657
          %v4011 = vunpack.c.h.b16 %v3657
          %v4012 = vunpack.c.l.b16 %v3658
          %v4013 = vunpack.c.h.b16 %v3658
          %v4014 = vunpack.c.l.b16 %v3659
          %v4015 = vunpack.c.h.b16 %v3659
          %v4016 = vunpack.c.l.b16 %v3660
          %v4017 = vunpack.c.h.b16 %v3660
          %v4018 = vunpack.c.l.b16 %v3661
          %v4019 = vunpack.c.h.b16 %v3661
          %v4020 = vunpack.c.l.b16 %v3662
          %v4021 = vunpack.c.h.b16 %v3662
          %v4022 = vunpack.c.l.b16 %v3663
          %v4023 = vunpack.c.h.b16 %v3663
          %v4024 = vunpack.c.l.b16 %v3664
          %v4025 = vunpack.c.h.b16 %v3664
          %v4026 = vunpack.c.l.b16 %v3665
          %v4027 = vunpack.c.h.b16 %v3665
          %v4028 = vunpack.c.l.b16 %v3666
          %v4029 = vunpack.c.h.b16 %v3666
          %v4030 = vunpack.c.l.b16 %v3667
          %v4031 = vunpack.c.h.b16 %v3667
          %v4032 = vunpack.c.l.b16 %v3668
          %v4033 = vunpack.c.h.b16 %v3668
          %v4034 = vunpack.c.l.b16 %v3669
          %v4035 = vunpack.c.h.b16 %v3669
          %v4036 = vunpack.c.l.b16 %v3670
          %v4037 = vunpack.c.h.b16 %v3670
          %v4038 = vunpack.c.l.b16 %v3671
          %v4039 = vunpack.c.h.b16 %v3671
          %v4040 = vunpack.c.l.b16 %v3672
          %v4041 = vunpack.c.h.b16 %v3672
          %v4042 = vunpack.c.l.b16 %v3673
          %v4043 = vunpack.c.h.b16 %v3673
          %v4044 = vunpack.c.l.b16 %v3674
          %v4045 = vunpack.c.h.b16 %v3674
          %v4046 = vunpack.c.l.b16 %v3675
          %v4047 = vunpack.c.h.b16 %v3675
          %v4048 = vunpack.c.l.b16 %v3676
          %v4049 = vunpack.c.h.b16 %v3676
          %v4050 = vunpack.c.l.b16 %v3677
          %v4051 = vunpack.c.h.b16 %v3677
          %v4052 = vunpack.c.l.b16 %v3678
          %v4053 = vunpack.c.h.b16 %v3678
          %v4054 = vunpack.c.l.b16 %v3679
          %v4055 = vunpack.c.h.b16 %v3679
          %v4056 = vunpack.c.l.b16 %v3680
          %v4057 = vunpack.c.h.b16 %v3680
          %v4058 = vunpack.c.l.b16 %v3681
          %v4059 = vunpack.c.h.b16 %v3681
          %v4060 = vunpack.c.l.b16 %v3682
          %v4061 = vunpack.c.h.b16 %v3682
          %v4062 = vunpack.c.l.b16 %v3683
          %v4063 = vunpack.c.h.b16 %v3683
          %v4064 = vunpack.c.l.b16 %v3684
          %v4065 = vunpack.c.h.b16 %v3684
          %v4066 = vunpack.c.l.b16 %v3685
          %v4067 = vunpack.c.h.b16 %v3685
          %v4068 = vunpack.c.l.b16 %v3686
          %v4069 = vunpack.c.h.b16 %v3686
          %v4070 = vunpack.c.l.b16 %v3687
          %v4071 = vunpack.c.h.b16 %v3687
          %v4072 = vunpack.c.l.b16 %v3688
          %v4073 = vunpack.c.h.b16 %v3688
          %v4074 = vunpack.c.l.b16 %v3689
          %v4075 = vunpack.c.h.b16 %v3689
          %v4076 = vunpack.c.l.b16 %v3690
          %v4077 = vunpack.c.h.b16 %v3690
          %v4078 = vunpack.c.l.b16 %v3691
          %v4079 = vunpack.c.h.b16 %v3691
          %v4080 = vunpack.c.l.b16 %v3692
          %v4081 = vunpack.c.h.b16 %v3692
          %v4082 = vunpack.c.l.b16 %v3693
          %v4083 = vunpack.c.h.b16 %v3693
          %v4084 = vunpack.c.l.b16 %v3694
          %v4085 = vunpack.c.h.b16 %v3694
          %v4086 = vunpack.c.l.b16 %v3695
          %v4087 = vunpack.c.h.b16 %v3695
          %v4088 = vunpack.c.l.b16 %v3696
          %v4089 = vunpack.c.h.b16 %v3696
          %v4090 = vunpack.c.l.b16 %v3697
          %v4091 = vunpack.c.h.b16 %v3697
          %v4092 = vunpack.c.l.b16 %v3698
          %v4093 = vunpack.c.h.b16 %v3698
          %v4094 = vunpack.c.l.b16 %v3699
          %v4095 = vunpack.c.h.b16 %v3699
          %v4096 = vunpack.c.l.b16 %v3700
          %v4097 = vunpack.c.h.b16 %v3700
          %v4098 = vunpack.c.l.b16 %v3701
          %v4099 = vunpack.c.h.b16 %v3701
          %v4100 = vunpack.c.l.b16 %v3702
          %v4101 = vunpack.c.h.b16 %v3702
          %v4102 = vunpack.c.l.b16 %v3703
          %v4103 = vunpack.c.h.b16 %v3703
          %v4104 = vunpack.c.l.b16 %v3704
          %v4105 = vunpack.c.h.b16 %v3704
          %v4106 = vunpack.c.l.b16 %v3705
          %v4107 = vunpack.c.h.b16 %v3705
          %v4108 = vunpack.c.l.b16 %v3706
          %v4109 = vunpack.c.h.b16 %v3706
          %v4110 = vunpack.c.l.b16 %v3707
          %v4111 = vunpack.c.h.b16 %v3707
          %v4112 = vunpack.c.l.b16 %v3708
          %v4113 = vunpack.c.h.b16 %v3708
          %v4114 = vunpack.c.l.b16 %v3709
          %v4115 = vunpack.c.h.b16 %v3709
          %v4116 = vpack.c.b16 %v3864, %v3860
          %v4117 = vpack.c.b16 %v3865, %v3861
          %v4118 = vpack.c.b16 %v3866, %v3862
          %v4119 = vpack.c.b16 %v3867, %v3863
          %v4120 = vpack.c.b16 %v3872, %v3868
          %v4121 = vpack.c.b16 %v3873, %v3869
          %v4122 = vpack.c.b16 %v3874, %v3870
          %v4123 = vpack.c.b16 %v3875, %v3871
          %v4124 = vpack.c.b16 %v3880, %v3876
          %v4125 = vpack.c.b16 %v3881, %v3877
          %v4126 = vpack.c.b16 %v3882, %v3878
          %v4127 = vpack.c.b16 %v3883, %v3879
          %v4128 = vpack.c.b16 %v3888, %v3884
          %v4129 = vpack.c.b16 %v3889, %v3885
          %v4130 = vpack.c.b16 %v3890, %v3886
          %v4131 = vpack.c.b16 %v3891, %v3887
          %v4132 = vpack.c.b16 %v3896, %v3892
          %v4133 = vpack.c.b16 %v3897, %v3893
          %v4134 = vpack.c.b16 %v3898, %v3894
          %v4135 = vpack.c.b16 %v3899, %v3895
          %v4136 = vpack.c.b16 %v3904, %v3900
          %v4137 = vpack.c.b16 %v3905, %v3901
          %v4138 = vpack.c.b16 %v3906, %v3902
          %v4139 = vpack.c.b16 %v3907, %v3903
          %v4140 = vpack.c.b16 %v3912, %v3908
          %v4141 = vpack.c.b16 %v3913, %v3909
          %v4142 = vpack.c.b16 %v3914, %v3910
          %v4143 = vpack.c.b16 %v3915, %v3911
          %v4144 = vpack.c.b16 %v3920, %v3916
          %v4145 = vpack.c.b16 %v3921, %v3917
          %v4146 = vpack.c.b16 %v3922, %v3918
          %v4147 = vpack.c.b16 %v3923, %v3919
          %v4148 = vpack.c.b16 %v3928, %v3924
          %v4149 = vpack.c.b16 %v3929, %v3925
          %v4150 = vpack.c.b16 %v3930, %v3926
          %v4151 = vpack.c.b16 %v3931, %v3927
          %v4152 = vpack.c.b16 %v3936, %v3932
          %v4153 = vpack.c.b16 %v3937, %v3933
          %v4154 = vpack.c.b16 %v3938, %v3934
          %v4155 = vpack.c.b16 %v3939, %v3935
          %v4156 = vpack.c.b16 %v3944, %v3940
          %v4157 = vpack.c.b16 %v3945, %v3941
          %v4158 = vpack.c.b16 %v3946, %v3942
          %v4159 = vpack.c.b16 %v3947, %v3943
          %v4160 = vpack.c.b16 %v3952, %v3948
          %v4161 = vpack.c.b16 %v3953, %v3949
          %v4162 = vpack.c.b16 %v3954, %v3950
          %v4163 = vpack.c.b16 %v3955, %v3951
          %v4164 = vpack.c.b16 %v3960, %v3956
          %v4165 = vpack.c.b16 %v3961, %v3957
          %v4166 = vpack.c.b16 %v3962, %v3958
          %v4167 = vpack.c.b16 %v3963, %v3959
          %v4168 = vpack.c.b16 %v3968, %v3964
          %v4169 = vpack.c.b16 %v3969, %v3965
          %v4170 = vpack.c.b16 %v3970, %v3966
          %v4171 = vpack.c.b16 %v3971, %v3967
          %v4172 = vpack.c.b16 %v3976, %v3972
          %v4173 = vpack.c.b16 %v3977, %v3973
          %v4174 = vpack.c.b16 %v3978, %v3974
          %v4175 = vpack.c.b16 %v3979, %v3975
          %v4176 = vpack.c.b16 %v3984, %v3980
          %v4177 = vpack.c.b16 %v3985, %v3981
          %v4178 = vpack.c.b16 %v3986, %v3982
          %v4179 = vpack.c.b16 %v3987, %v3983
          %v4180 = vpack.c.b16 %v3992, %v3988
          %v4181 = vpack.c.b16 %v3993, %v3989
          %v4182 = vpack.c.b16 %v3994, %v3990
          %v4183 = vpack.c.b16 %v3995, %v3991
          %v4184 = vpack.c.b16 %v4000, %v3996
          %v4185 = vpack.c.b16 %v4001, %v3997
          %v4186 = vpack.c.b16 %v4002, %v3998
          %v4187 = vpack.c.b16 %v4003, %v3999
          %v4188 = vpack.c.b16 %v4008, %v4004
          %v4189 = vpack.c.b16 %v4009, %v4005
          %v4190 = vpack.c.b16 %v4010, %v4006
          %v4191 = vpack.c.b16 %v4011, %v4007
          %v4192 = vpack.c.b16 %v4016, %v4012
          %v4193 = vpack.c.b16 %v4017, %v4013
          %v4194 = vpack.c.b16 %v4018, %v4014
          %v4195 = vpack.c.b16 %v4019, %v4015
          %v4196 = vpack.c.b16 %v4024, %v4020
          %v4197 = vpack.c.b16 %v4025, %v4021
          %v4198 = vpack.c.b16 %v4026, %v4022
          %v4199 = vpack.c.b16 %v4027, %v4023
          %v4200 = vpack.c.b16 %v4032, %v4028
          %v4201 = vpack.c.b16 %v4033, %v4029
          %v4202 = vpack.c.b16 %v4034, %v4030
          %v4203 = vpack.c.b16 %v4035, %v4031
          %v4204 = vpack.c.b16 %v4040, %v4036
          %v4205 = vpack.c.b16 %v4041, %v4037
          %v4206 = vpack.c.b16 %v4042, %v4038
          %v4207 = vpack.c.b16 %v4043, %v4039
          %v4208 = vpack.c.b16 %v4048, %v4044
          %v4209 = vpack.c.b16 %v4049, %v4045
          %v4210 = vpack.c.b16 %v4050, %v4046
          %v4211 = vpack.c.b16 %v4051, %v4047
          %v4212 = vpack.c.b16 %v4056, %v4052
          %v4213 = vpack.c.b16 %v4057, %v4053
          %v4214 = vpack.c.b16 %v4058, %v4054
          %v4215 = vpack.c.b16 %v4059, %v4055
          %v4216 = vpack.c.b16 %v4064, %v4060
          %v4217 = vpack.c.b16 %v4065, %v4061
          %v4218 = vpack.c.b16 %v4066, %v4062
          %v4219 = vpack.c.b16 %v4067, %v4063
          %v4220 = vpack.c.b16 %v4072, %v4068
          %v4221 = vpack.c.b16 %v4073, %v4069
          %v4222 = vpack.c.b16 %v4074, %v4070
          %v4223 = vpack.c.b16 %v4075, %v4071
          %v4224 = vpack.c.b16 %v4080, %v4076
          %v4225 = vpack.c.b16 %v4081, %v4077
          %v4226 = vpack.c.b16 %v4082, %v4078
          %v4227 = vpack.c.b16 %v4083, %v4079
          %v4228 = vpack.c.b16 %v4088, %v4084
          %v4229 = vpack.c.b16 %v4089, %v4085
          %v4230 = vpack.c.b16 %v4090, %v4086
          %v4231 = vpack.c.b16 %v4091, %v4087
          %v4232 = vpack.c.b16 %v4096, %v4092
          %v4233 = vpack.c.b16 %v4097, %v4093
          %v4234 = vpack.c.b16 %v4098, %v4094
          %v4235 = vpack.c.b16 %v4099, %v4095
          %v4236 = vpack.c.b16 %v4104, %v4100
          %v4237 = vpack.c.b16 %v4105, %v4101
          %v4238 = vpack.c.b16 %v4106, %v4102
          %v4239 = vpack.c.b16 %v4107, %v4103
          %v4240 = vpack.c.b16 %v4112, %v4108
          %v4241 = vpack.c.b16 %v4113, %v4109
          %v4242 = vpack.c.b16 %v4114, %v4110
          %v4243 = vpack.c.b16 %v4115, %v4111
          %4372 = vmatprep.subr.bf16.mxu0 %v4117
          %4373 = vmatpush1.bf16.msra.mxu0 %v4116
          %4374 = vmatprep.subr.bf16.mxu0 %v4121
          %4375 = vmatpush1.bf16.msra.mxu0 %v4120
          %4376 = vmatprep.subr.bf16.mxu0 %v4125
          %4377 = vmatpush1.bf16.msra.mxu0 %v4124
          %4378 = vmatprep.subr.bf16.mxu0 %v4129
          %4379 = vmatpush1.bf16.msra.mxu0 %v4128
          %4380 = vmatprep.subr.bf16.mxu0 %v4133
          %4381 = vmatpush1.bf16.msra.mxu0 %v4132
          %4382 = vmatprep.subr.bf16.mxu0 %v4137
          %4383 = vmatpush1.bf16.msra.mxu0 %v4136
          %4384 = vmatprep.subr.bf16.mxu0 %v4141
          %4385 = vmatpush1.bf16.msra.mxu0 %v4140
          %4386 = vmatprep.subr.bf16.mxu0 %v4145
          %4387 = vmatpush1.bf16.msra.mxu0 %v4144
          %4388 = vmatprep.subr.bf16.mxu0 %v4149
          %4389 = vmatpush1.bf16.msra.mxu0 %v4148
          %4390 = vmatprep.subr.bf16.mxu0 %v4153
          %4391 = vmatpush1.bf16.msra.mxu0 %v4152
          %4392 = vmatprep.subr.bf16.mxu0 %v4157
          %4393 = vmatpush1.bf16.msra.mxu0 %v4156
          %4394 = vmatprep.subr.bf16.mxu0 %v4161
          %4395 = vmatpush1.bf16.msra.mxu0 %v4160
          %4396 = vmatprep.subr.bf16.mxu0 %v4165
          %4397 = vmatpush1.bf16.msra.mxu0 %v4164
          %4398 = vmatprep.subr.bf16.mxu0 %v4169
          %4399 = vmatpush1.bf16.msra.mxu0 %v4168
          %4400 = vmatprep.subr.bf16.mxu0 %v4173
          %4401 = vmatpush1.bf16.msra.mxu0 %v4172
          %4402 = vmatprep.subr.bf16.mxu0 %v4177
          %4403 = vmatpush1.bf16.msra.mxu0 %v4176
          %4404 = vmatprep.mubr.bf16.mxu0 %v3579
          %4405 = vmatmul.mubr.bf16.gmra.mrb[0].mxu0 %v3578
          %v4406 = vpop.f32.mrb[0].mxu0
          %v4407 = vadd.f32 %v3715, %v4406
          %v4408 = vpop.f32.mrb[0].mxu0
          %v4409 = vadd.f32 %v3719, %v4408
          %v4410 = vpop.f32.mrb[0].mxu0
          %v4411 = vpop.f32.mrb[0].mxu0
          %4412 = vdwg.mxu0
          %4413 = vmatprep.subr.bf16.mxu0 %v4181
          %4414 = vmatpush1.bf16.msra.mxu0 %v4180
          %4415 = vmatprep.subr.bf16.mxu0 %v4185
          %4416 = vmatpush1.bf16.msra.mxu0 %v4184
          %4417 = vmatprep.subr.bf16.mxu0 %v4189
          %4418 = vmatpush1.bf16.msra.mxu0 %v4188
          %4419 = vmatprep.subr.bf16.mxu0 %v4193
          %4420 = vmatpush1.bf16.msra.mxu0 %v4192
          %4421 = vmatprep.subr.bf16.mxu0 %v4197
          %4422 = vmatpush1.bf16.msra.mxu0 %v4196
          %4423 = vmatprep.subr.bf16.mxu0 %v4201
          %4424 = vmatpush1.bf16.msra.mxu0 %v4200
          %4425 = vmatprep.subr.bf16.mxu0 %v4205
          %4426 = vmatpush1.bf16.msra.mxu0 %v4204
          %4427 = vmatprep.subr.bf16.mxu0 %v4209
          %4428 = vmatpush1.bf16.msra.mxu0 %v4208
          %4429 = vmatprep.subr.bf16.mxu0 %v4213
          %4430 = vmatpush1.bf16.msra.mxu0 %v4212
          %4431 = vmatprep.subr.bf16.mxu0 %v4217
          %4432 = vmatpush1.bf16.msra.mxu0 %v4216
          %4433 = vmatprep.subr.bf16.mxu0 %v4221
          %4434 = vmatpush1.bf16.msra.mxu0 %v4220
          %4435 = vmatprep.subr.bf16.mxu0 %v4225
          %4436 = vmatpush1.bf16.msra.mxu0 %v4224
          %4437 = vmatprep.subr.bf16.mxu0 %v4229
          %4438 = vmatpush1.bf16.msra.mxu0 %v4228
          %4439 = vmatprep.subr.bf16.mxu0 %v4233
          %4440 = vmatpush1.bf16.msra.mxu0 %v4232
          %4441 = vmatprep.subr.bf16.mxu0 %v4237
          %4442 = vmatpush1.bf16.msra.mxu0 %v4236
          %4443 = vmatprep.subr.bf16.mxu0 %v4241
          %4444 = vmatpush1.bf16.msra.mxu0 %v4240
          %4445 = vmatprep.mubr.bf16.mxu0 %v3581
          %4446 = vmatmul.mubr.bf16.gmra.mrb[0].mxu0 %v3580
          %v4447 = vpop.f32.mrb[0].mxu0
          %v4448 = vadd.f32 %v4407, %v4447
          %v4449 = vpop.f32.mrb[0].mxu0
          %v4450 = vadd.f32 %v4409, %v4449
          %v4451 = vpop.f32.mrb[0].mxu0
          %v4452 = vpop.f32.mrb[0].mxu0
          %4453 = vdwg.mxu0
          %4454 = vmatprep.subr.bf16.mxu0 %v4119
          %4455 = vmatpush1.bf16.msra.mxu0 %v4118
          %4456 = vmatprep.subr.bf16.mxu0 %v4123
          %4457 = vmatpush1.bf16.msra.mxu0 %v4122
          %4458 = vmatprep.subr.bf16.mxu0 %v4127
          %4459 = vmatpush1.bf16.msra.mxu0 %v4126
          %4460 = vmatprep.subr.bf16.mxu0 %v4131
          %4461 = vmatpush1.bf16.msra.mxu0 %v4130
          %4462 = vmatprep.subr.bf16.mxu0 %v4135
          %4463 = vmatpush1.bf16.msra.mxu0 %v4134
          %4464 = vmatprep.subr.bf16.mxu0 %v4139
          %4465 = vmatpush1.bf16.msra.mxu0 %v4138
          %4466 = vmatprep.subr.bf16.mxu0 %v4143
          %4467 = vmatpush1.bf16.msra.mxu0 %v4142
          %4468 = vmatprep.subr.bf16.mxu0 %v4147
          %4469 = vmatpush1.bf16.msra.mxu0 %v4146
          %4470 = vmatprep.subr.bf16.mxu0 %v4151
          %4471 = vmatpush1.bf16.msra.mxu0 %v4150
          %4472 = vmatprep.subr.bf16.mxu0 %v4155
          %4473 = vmatpush1.bf16.msra.mxu0 %v4154
          %4474 = vmatprep.subr.bf16.mxu0 %v4159
          %4475 = vmatpush1.bf16.msra.mxu0 %v4158
          %4476 = vmatprep.subr.bf16.mxu0 %v4163
          %4477 = vmatpush1.bf16.msra.mxu0 %v4162
          %4478 = vmatprep.subr.bf16.mxu0 %v4167
          %4479 = vmatpush1.bf16.msra.mxu0 %v4166
          %4480 = vmatprep.subr.bf16.mxu0 %v4171
          %4481 = vmatpush1.bf16.msra.mxu0 %v4170
          %4482 = vmatprep.subr.bf16.mxu0 %v4175
          %4483 = vmatpush1.bf16.msra.mxu0 %v4174
          %4484 = vmatprep.subr.bf16.mxu0 %v4179
          %4485 = vmatpush1.bf16.msra.mxu0 %v4178
          %4486 = vmatprep.mubr.bf16.mxu0 %v3579
          %4487 = vmatmul.mubr.bf16.gmra.mrb[0].mxu0 %v3578
          %v4488 = vpop.f32.mrb[0].mxu0
          %v4489 = vadd.f32 %v3723, %v4488
          %v4490 = vpop.f32.mrb[0].mxu0
          %v4491 = vadd.f32 %v3727, %v4490
          %v4492 = vpop.f32.mrb[0].mxu0
          %v4493 = vpop.f32.mrb[0].mxu0
          %4494 = vdwg.mxu0
          %4495 = vmatprep.subr.bf16.mxu0 %v4183
          %4496 = vmatpush1.bf16.msra.mxu0 %v4182
          %4497 = vmatprep.subr.bf16.mxu0 %v4187
          %4498 = vmatpush1.bf16.msra.mxu0 %v4186
          %4499 = vmatprep.subr.bf16.mxu0 %v4191
          %4500 = vmatpush1.bf16.msra.mxu0 %v4190
          %4501 = vmatprep.subr.bf16.mxu0 %v4195
          %4502 = vmatpush1.bf16.msra.mxu0 %v4194
          %4503 = vmatprep.subr.bf16.mxu0 %v4199
          %4504 = vmatpush1.bf16.msra.mxu0 %v4198
          %4505 = vmatprep.subr.bf16.mxu0 %v4203
          %4506 = vmatpush1.bf16.msra.mxu0 %v4202
          %4507 = vmatprep.subr.bf16.mxu0 %v4207
          %4508 = vmatpush1.bf16.msra.mxu0 %v4206
          %4509 = vmatprep.subr.bf16.mxu0 %v4211
          %4510 = vmatpush1.bf16.msra.mxu0 %v4210
          %4511 = vmatprep.subr.bf16.mxu0 %v4215
          %4512 = vmatpush1.bf16.msra.mxu0 %v4214
          %4513 = vmatprep.subr.bf16.mxu0 %v4219
          %4514 = vmatpush1.bf16.msra.mxu0 %v4218
          %4515 = vmatprep.subr.bf16.mxu0 %v4223
          %4516 = vmatpush1.bf16.msra.mxu0 %v4222
          %4517 = vmatprep.subr.bf16.mxu0 %v4227
          %4518 = vmatpush1.bf16.msra.mxu0 %v4226
          %4519 = vmatprep.subr.bf16.mxu0 %v4231
          %4520 = vmatpush1.bf16.msra.mxu0 %v4230
          %4521 = vmatprep.subr.bf16.mxu0 %v4235
          %4522 = vmatpush1.bf16.msra.mxu0 %v4234
          %4523 = vmatprep.subr.bf16.mxu0 %v4239
          %4524 = vmatpush1.bf16.msra.mxu0 %v4238
          %4525 = vmatprep.subr.bf16.mxu0 %v4243
          %4526 = vmatpush1.bf16.msra.mxu0 %v4242
          %4527 = vmatprep.mubr.bf16.mxu0 %v3581
          %4528 = vmatmul.mubr.bf16.gmra.mrb[0].mxu0 %v3580
          %v4529 = vpop.f32.mrb[0].mxu0
          %v4530 = vadd.f32 %v4489, %v4529
          %v4531 = vpop.f32.mrb[0].mxu0
          %v4532 = vadd.f32 %v4491, %v4531
          %v4533 = vpop.f32.mrb[0].mxu0
          %v4534 = vpop.f32.mrb[0].mxu0
          %4535 = vdwg.mxu0
          %v4536 = vmax.f32 %v4448, 0.0
          %v4537 = vmax.f32 %v4450, 0.0
          %v4538 = vmax.f32 %v4530, 0.0
          %v4539 = vmax.f32 %v4532, 0.0
          %v4540 = vpack.c.bf16 %v4536, %v4536
          %v4541 = vpack.c.bf16 %v4537, %v4537
          %v4542 = vpack.c.bf16 %v4538, %v4538
          %v4543 = vpack.c.bf16 %v4539, %v4539
          %v4544 = vld [vmem:[#allocation10] sm:$0xf]
          %v4545 = vld [vmem:[#allocation10 + $0x4] sm:$0xf]
          %v4546 = vld [vmem:[#allocation10 + $0x8] sm:$0xf]
          %v4547 = vld [vmem:[#allocation10 + $0xc] sm:$0xf]
          %v4548 = vld [vmem:[#allocation10 + $0x10] sm:$0xf]
          %v4549 = vld [vmem:[#allocation10 + $0x14] sm:$0xf]
          %v4550 = vld [vmem:[#allocation10 + $0x18] sm:$0xf]
          %v4551 = vld [vmem:[#allocation10 + $0x1c] sm:$0xf]
          %v4552 = vld [vmem:[#allocation10 + $0x20] sm:$0xf]
          %v4553 = vld [vmem:[#allocation10 + $0x24] sm:$0xf]
          %v4554 = vld [vmem:[#allocation10 + $0x28] sm:$0xf]
          %v4555 = vld [vmem:[#allocation10 + $0x2c] sm:$0xf]
          %v4556 = vld [vmem:[#allocation10 + $0x30] sm:$0xf]
          %v4557 = vld [vmem:[#allocation10 + $0x34] sm:$0xf]
          %v4558 = vld [vmem:[#allocation10 + $0x38] sm:$0xf]
          %v4559 = vld [vmem:[#allocation10 + $0x3c] sm:$0xf]
          %v4560 = vld [vmem:[#allocation10 + $0x40] sm:$0xf]
          %v4561 = vld [vmem:[#allocation10 + $0x44] sm:$0xf]
          %v4562 = vld [vmem:[#allocation10 + $0x48] sm:$0xf]
          %v4563 = vld [vmem:[#allocation10 + $0x4c] sm:$0xf]
          %v4564 = vld [vmem:[#allocation10 + $0x50] sm:$0xf]
          %v4565 = vld [vmem:[#allocation10 + $0x54] sm:$0xf]
          %v4566 = vld [vmem:[#allocation10 + $0x58] sm:$0xf]
          %v4567 = vld [vmem:[#allocation10 + $0x5c] sm:$0xf]
          %v4568 = vld [vmem:[#allocation10 + $0x60] sm:$0xf]
          %v4569 = vld [vmem:[#allocation10 + $0x64] sm:$0xf]
          %v4570 = vld [vmem:[#allocation10 + $0x68] sm:$0xf]
          %v4571 = vld [vmem:[#allocation10 + $0x6c] sm:$0xf]
          %v4572 = vld [vmem:[#allocation10 + $0x70] sm:$0xf]
          %v4573 = vld [vmem:[#allocation10 + $0x74] sm:$0xf]
          %v4574 = vld [vmem:[#allocation10 + $0x78] sm:$0xf]
          %v4575 = vld [vmem:[#allocation10 + $0x7c] sm:$0xf]
          %v4576 = vld [vmem:[#allocation10 + $0x80] sm:$0xf]
          %v4577 = vld [vmem:[#allocation10 + $0x84] sm:$0xf]
          %v4578 = vld [vmem:[#allocation10 + $0x88] sm:$0xf]
          %v4579 = vld [vmem:[#allocation10 + $0x8c] sm:$0xf]
          %v4580 = vld [vmem:[#allocation10 + $0x90] sm:$0xf]
          %v4581 = vld [vmem:[#allocation10 + $0x94] sm:$0xf]
          %v4582 = vld [vmem:[#allocation10 + $0x98] sm:$0xf]
          %v4583 = vld [vmem:[#allocation10 + $0x9c] sm:$0xf]
          %v4584 = vld [vmem:[#allocation10 + $0xa0] sm:$0xf]
          %v4585 = vld [vmem:[#allocation10 + $0xa4] sm:$0xf]
          %v4586 = vld [vmem:[#allocation10 + $0xa8] sm:$0xf]
          %v4587 = vld [vmem:[#allocation10 + $0xac] sm:$0xf]
          %v4588 = vld [vmem:[#allocation10 + $0xb0] sm:$0xf]
          %v4589 = vld [vmem:[#allocation10 + $0xb4] sm:$0xf]
          %v4590 = vld [vmem:[#allocation10 + $0xb8] sm:$0xf]
          %v4591 = vld [vmem:[#allocation10 + $0xbc] sm:$0xf]
          %v4592 = vld [vmem:[#allocation10 + $0xc0] sm:$0xf]
          %v4593 = vld [vmem:[#allocation10 + $0xc4] sm:$0xf]
          %v4594 = vld [vmem:[#allocation10 + $0xc8] sm:$0xf]
          %v4595 = vld [vmem:[#allocation10 + $0xcc] sm:$0xf]
          %v4596 = vld [vmem:[#allocation10 + $0xd0] sm:$0xf]
          %v4597 = vld [vmem:[#allocation10 + $0xd4] sm:$0xf]
          %v4598 = vld [vmem:[#allocation10 + $0xd8] sm:$0xf]
          %v4599 = vld [vmem:[#allocation10 + $0xdc] sm:$0xf]
          %v4600 = vld [vmem:[#allocation10 + $0xe0] sm:$0xf]
          %v4601 = vld [vmem:[#allocation10 + $0xe4] sm:$0xf]
          %v4602 = vld [vmem:[#allocation10 + $0xe8] sm:$0xf]
          %v4603 = vld [vmem:[#allocation10 + $0xec] sm:$0xf]
          %v4604 = vld [vmem:[#allocation10 + $0xf0] sm:$0xf]
          %v4605 = vld [vmem:[#allocation10 + $0xf4] sm:$0xf]
          %v4606 = vld [vmem:[#allocation10 + $0xf8] sm:$0xf]
          %v4607 = vld [vmem:[#allocation10 + $0xfc] sm:$0xf]
          %v4608 = vld [vmem:[#allocation11] sm:$0x1]
          %v4610 = vlaneseq
          %v4611 = vshrl.u32 %v4610, 7
          %v4612 = vsub.s32 0, %v4611
          %v4613 = vrot.slane %v4608, %v4612
          %v4679 = vunpack.c.l.b16 %v4544
          %v4680 = vunpack.c.l.b16 %v4545
          %v4681 = vunpack.c.l.b16 %v4546
          %v4682 = vunpack.c.l.b16 %v4547
          %v4683 = vunpack.c.l.b16 %v4548
          %v4684 = vunpack.c.l.b16 %v4549
          %v4685 = vunpack.c.l.b16 %v4550
          %v4686 = vunpack.c.l.b16 %v4551
          %v4687 = vunpack.c.l.b16 %v4552
          %v4688 = vunpack.c.l.b16 %v4553
          %v4689 = vunpack.c.l.b16 %v4554
          %v4690 = vunpack.c.l.b16 %v4555
          %v4691 = vunpack.c.l.b16 %v4556
          %v4692 = vunpack.c.l.b16 %v4557
          %v4693 = vunpack.c.l.b16 %v4558
          %v4694 = vunpack.c.l.b16 %v4559
          %v4695 = vunpack.c.l.b16 %v4560
          %v4696 = vunpack.c.l.b16 %v4561
          %v4697 = vunpack.c.l.b16 %v4562
          %v4698 = vunpack.c.l.b16 %v4563
          %v4699 = vunpack.c.l.b16 %v4564
          %v4700 = vunpack.c.l.b16 %v4565
          %v4701 = vunpack.c.l.b16 %v4566
          %v4702 = vunpack.c.l.b16 %v4567
          %v4703 = vunpack.c.l.b16 %v4568
          %v4704 = vunpack.c.l.b16 %v4569
          %v4705 = vunpack.c.l.b16 %v4570
          %v4706 = vunpack.c.l.b16 %v4571
          %v4707 = vunpack.c.l.b16 %v4572
          %v4708 = vunpack.c.l.b16 %v4573
          %v4709 = vunpack.c.l.b16 %v4574
          %v4710 = vunpack.c.l.b16 %v4575
          %v4711 = vunpack.c.l.b16 %v4576
          %v4712 = vunpack.c.l.b16 %v4577
          %v4713 = vunpack.c.l.b16 %v4578
          %v4714 = vunpack.c.l.b16 %v4579
          %v4715 = vunpack.c.l.b16 %v4580
          %v4716 = vunpack.c.l.b16 %v4581
          %v4717 = vunpack.c.l.b16 %v4582
          %v4718 = vunpack.c.l.b16 %v4583
          %v4719 = vunpack.c.l.b16 %v4584
          %v4720 = vunpack.c.l.b16 %v4585
          %v4721 = vunpack.c.l.b16 %v4586
          %v4722 = vunpack.c.l.b16 %v4587
          %v4723 = vunpack.c.l.b16 %v4588
          %v4724 = vunpack.c.l.b16 %v4589
          %v4725 = vunpack.c.l.b16 %v4590
          %v4726 = vunpack.c.l.b16 %v4591
          %v4727 = vunpack.c.l.b16 %v4592
          %v4728 = vunpack.c.l.b16 %v4593
          %v4729 = vunpack.c.l.b16 %v4594
          %v4730 = vunpack.c.l.b16 %v4595
          %v4731 = vunpack.c.l.b16 %v4596
          %v4732 = vunpack.c.l.b16 %v4597
          %v4733 = vunpack.c.l.b16 %v4598
          %v4734 = vunpack.c.l.b16 %v4599
          %v4735 = vunpack.c.l.b16 %v4600
          %v4736 = vunpack.c.l.b16 %v4601
          %v4737 = vunpack.c.l.b16 %v4602
          %v4738 = vunpack.c.l.b16 %v4603
          %v4739 = vunpack.c.l.b16 %v4604
          %v4740 = vunpack.c.l.b16 %v4605
          %v4741 = vunpack.c.l.b16 %v4606
          %v4742 = vunpack.c.l.b16 %v4607
          %v4743 = vpack.c.b16 %v4680, %v4679
          %v4744 = vpack.c.b16 %v4682, %v4681
          %v4745 = vpack.c.b16 %v4684, %v4683
          %v4746 = vpack.c.b16 %v4686, %v4685
          %v4747 = vpack.c.b16 %v4688, %v4687
          %v4748 = vpack.c.b16 %v4690, %v4689
          %v4749 = vpack.c.b16 %v4692, %v4691
          %v4750 = vpack.c.b16 %v4694, %v4693
          %v4751 = vpack.c.b16 %v4696, %v4695
          %v4752 = vpack.c.b16 %v4698, %v4697
          %v4753 = vpack.c.b16 %v4700, %v4699
          %v4754 = vpack.c.b16 %v4702, %v4701
          %v4755 = vpack.c.b16 %v4704, %v4703
          %v4756 = vpack.c.b16 %v4706, %v4705
          %v4757 = vpack.c.b16 %v4708, %v4707
          %v4758 = vpack.c.b16 %v4710, %v4709
          %v4759 = vpack.c.b16 %v4712, %v4711
          %v4760 = vpack.c.b16 %v4714, %v4713
          %v4761 = vpack.c.b16 %v4716, %v4715
          %v4762 = vpack.c.b16 %v4718, %v4717
          %v4763 = vpack.c.b16 %v4720, %v4719
          %v4764 = vpack.c.b16 %v4722, %v4721
          %v4765 = vpack.c.b16 %v4724, %v4723
          %v4766 = vpack.c.b16 %v4726, %v4725
          %v4767 = vpack.c.b16 %v4728, %v4727
          %v4768 = vpack.c.b16 %v4730, %v4729
          %v4769 = vpack.c.b16 %v4732, %v4731
          %v4770 = vpack.c.b16 %v4734, %v4733
          %v4771 = vpack.c.b16 %v4736, %v4735
          %v4772 = vpack.c.b16 %v4738, %v4737
          %v4773 = vpack.c.b16 %v4740, %v4739
          %v4774 = vpack.c.b16 %v4742, %v4741
          %4807 = vmatprep.subr.bf16.mxu0 0
          %4808 = vmatpush1.bf16.msra.mxu0 %v4743
          %4809 = vmatprep.subr.bf16.mxu0 0
          %4810 = vmatpush1.bf16.msra.mxu0 %v4744
          %4811 = vmatprep.subr.bf16.mxu0 0
          %4812 = vmatpush1.bf16.msra.mxu0 %v4745
          %4813 = vmatprep.subr.bf16.mxu0 0
          %4814 = vmatpush1.bf16.msra.mxu0 %v4746
          %4815 = vmatprep.subr.bf16.mxu0 0
          %4816 = vmatpush1.bf16.msra.mxu0 %v4747
          %4817 = vmatprep.subr.bf16.mxu0 0
          %4818 = vmatpush1.bf16.msra.mxu0 %v4748
          %4819 = vmatprep.subr.bf16.mxu0 0
          %4820 = vmatpush1.bf16.msra.mxu0 %v4749
          %4821 = vmatprep.subr.bf16.mxu0 0
          %4822 = vmatpush1.bf16.msra.mxu0 %v4750
          %4823 = vmatprep.subr.bf16.mxu0 0
          %4824 = vmatpush1.bf16.msra.mxu0 %v4751
          %4825 = vmatprep.subr.bf16.mxu0 0
          %4826 = vmatpush1.bf16.msra.mxu0 %v4752
          %4827 = vmatprep.subr.bf16.mxu0 0
          %4828 = vmatpush1.bf16.msra.mxu0 %v4753
          %4829 = vmatprep.subr.bf16.mxu0 0
          %4830 = vmatpush1.bf16.msra.mxu0 %v4754
          %4831 = vmatprep.subr.bf16.mxu0 0
          %4832 = vmatpush1.bf16.msra.mxu0 %v4755
          %4833 = vmatprep.subr.bf16.mxu0 0
          %4834 = vmatpush1.bf16.msra.mxu0 %v4756
          %4835 = vmatprep.subr.bf16.mxu0 0
          %4836 = vmatpush1.bf16.msra.mxu0 %v4757
          %4837 = vmatprep.subr.bf16.mxu0 0
          %4838 = vmatpush1.bf16.msra.mxu0 %v4758
          %4839 = vmatprep.mubr.bf16.mxu0 %v4541
          %4840 = vmatmul.mubr.bf16.gmra.mrb[0].mxu0 %v4540
          %v4841 = vpop.f32.mrb[0].mxu0
          %v4842 = vadd.f32 %v4613, %v4841
          %v4843 = vpop.f32.mrb[0].mxu0
          %v4844 = vpop.f32.mrb[0].mxu0
          %v4845 = vpop.f32.mrb[0].mxu0
          %4846 = vdwg.mxu0
          %4847 = vmatprep.subr.bf16.mxu0 0
          %4848 = vmatpush1.bf16.msra.mxu0 %v4759
          %4849 = vmatprep.subr.bf16.mxu0 0
          %4850 = vmatpush1.bf16.msra.mxu0 %v4760
          %4851 = vmatprep.subr.bf16.mxu0 0
          %4852 = vmatpush1.bf16.msra.mxu0 %v4761
          %4853 = vmatprep.subr.bf16.mxu0 0
          %4854 = vmatpush1.bf16.msra.mxu0 %v4762
          %4855 = vmatprep.subr.bf16.mxu0 0
          %4856 = vmatpush1.bf16.msra.mxu0 %v4763
          %4857 = vmatprep.subr.bf16.mxu0 0
          %4858 = vmatpush1.bf16.msra.mxu0 %v4764
          %4859 = vmatprep.subr.bf16.mxu0 0
          %4860 = vmatpush1.bf16.msra.mxu0 %v4765
          %4861 = vmatprep.subr.bf16.mxu0 0
          %4862 = vmatpush1.bf16.msra.mxu0 %v4766
          %4863 = vmatprep.subr.bf16.mxu0 0
          %4864 = vmatpush1.bf16.msra.mxu0 %v4767
          %4865 = vmatprep.subr.bf16.mxu0 0
          %4866 = vmatpush1.bf16.msra.mxu0 %v4768
          %4867 = vmatprep.subr.bf16.mxu0 0
          %4868 = vmatpush1.bf16.msra.mxu0 %v4769
          %4869 = vmatprep.subr.bf16.mxu0 0
          %4870 = vmatpush1.bf16.msra.mxu0 %v4770
          %4871 = vmatprep.subr.bf16.mxu0 0
          %4872 = vmatpush1.bf16.msra.mxu0 %v4771
          %4873 = vmatprep.subr.bf16.mxu0 0
          %4874 = vmatpush1.bf16.msra.mxu0 %v4772
          %4875 = vmatprep.subr.bf16.mxu0 0
          %4876 = vmatpush1.bf16.msra.mxu0 %v4773
          %4877 = vmatprep.subr.bf16.mxu0 0
          %4878 = vmatpush1.bf16.msra.mxu0 %v4774
          %4879 = vmatprep.mubr.bf16.mxu0 %v4543
          %4880 = vmatmul.mubr.bf16.gmra.mrb[0].mxu0 %v4542
          %v4881 = vpop.f32.mrb[0].mxu0
          %v4882 = vadd.f32 %v4842, %v4881
          %v4883 = vpop.f32.mrb[0].mxu0
          %v4884 = vpop.f32.mrb[0].mxu0
          %v4885 = vpop.f32.mrb[0].mxu0
          %4886 = vdwg.mxu0
          %v4887 = vlaneseq
          %v4888 = vand.u32 %v4887, 127
          %vm4889 = vcmp.lt.s32.totalorder %v4888, 0
          %v4890 = vsub.s32 0, %v4888
          %v4891 = vsel %vm4889, %v4890, %v4888
          %v4892 = vmul.u32.u64.compose %v4891, 2863311531
          %v4893 = vextract.low.u32 %v4892
          %v4894 = vextract.high.u32 %v4892
          %v4895 = vshrl.u32 %v4894, 2
          %v4896 = vmul.u32 %v4895, 6
          %v4897 = vsub.s32 %v4891, %v4896
          %v4898 = vsub.s32 0, %v4897
          %v4899 = vsel %vm4889, %v4898, %v4897
          %vm4900 = vcmp.ne.s32.totalorder %v4899, 0
          %vm4901 = vcmp.lt.s32.totalorder %v4899, 0
          %vm4902 = vmand %vm4901, %vm4900
          %v4903 = vadd.s32 %v4899, 6
          %v4904 = vsel %vm4902, %v4903, %v4899
          %vm4905 = vcmp.lt.s32.totalorder %v4888, 96
          %vm4906 = vcmp.eq.s32.totalorder %v4904, 0
          %vm4907 = vcmp.eq.s32.totalorder %v4904, 4
          %vm4908 = vmor %vm4906, %vm4907
          %vm4909 = vmand %vm4905, %vm4908
          %v4910 = vsel %vm4909, 1.0, 0.0
          %v4911 = vadd.f32 %v4882, %v4910
          %v4912 = vpack.c.bf16 %v4911, %v4911
          %v4913 = vld [vmem:[#allocation13] sm:$0xff]
          %v4914 = vld [vmem:[#allocation13 + $0x8] sm:$0xff]
          %v4915 = vld [vmem:[#allocation13 + $0x10] sm:$0xff]
          %v4916 = vld [vmem:[#allocation13 + $0x18] sm:$0xff]
          %v4917 = vld [vmem:[#allocation13 + $0x20] sm:$0xff]
          %v4918 = vld [vmem:[#allocation13 + $0x28] sm:$0xff]
          %v4919 = vld [vmem:[#allocation13 + $0x30] sm:$0xff]
          %v4920 = vld [vmem:[#allocation13 + $0x38] sm:$0xff]
          %v4921 = vld [vmem:[#allocation13 + $0x40] sm:$0xff]
          %v4922 = vld [vmem:[#allocation13 + $0x48] sm:$0xff]
          %v4923 = vld [vmem:[#allocation13 + $0x50] sm:$0xff]
          %v4924 = vld [vmem:[#allocation13 + $0x58] sm:$0xff]
          %v4925 = vld [vmem:[#allocation13 + $0x60] sm:$0xff]
          %v4926 = vld [vmem:[#allocation13 + $0x68] sm:$0xff]
          %v4927 = vld [vmem:[#allocation13 + $0x70] sm:$0xff]
          %v4928 = vld [vmem:[#allocation13 + $0x78] sm:$0xff]
          %v4929 = vld [vmem:[#allocation13 + $0x80] sm:$0xff]
          %v4930 = vld [vmem:[#allocation13 + $0x88] sm:$0xff]
          %v4931 = vld [vmem:[#allocation13 + $0x90] sm:$0xff]
          %v4932 = vld [vmem:[#allocation13 + $0x98] sm:$0xff]
          %v4933 = vld [vmem:[#allocation13 + $0xa0] sm:$0xff]
          %v4934 = vld [vmem:[#allocation13 + $0xa8] sm:$0xff]
          %v4935 = vld [vmem:[#allocation13 + $0xb0] sm:$0xff]
          %v4936 = vld [vmem:[#allocation13 + $0xb8] sm:$0xff]
          %v4937 = vld [vmem:[#allocation13 + $0xc0] sm:$0xff]
          %v4938 = vld [vmem:[#allocation13 + $0xc8] sm:$0xff]
          %v4939 = vld [vmem:[#allocation13 + $0xd0] sm:$0xff]
          %v4940 = vld [vmem:[#allocation13 + $0xd8] sm:$0xff]
          %v4941 = vld [vmem:[#allocation13 + $0xe0] sm:$0xff]
          %v4942 = vld [vmem:[#allocation13 + $0xe8] sm:$0xff]
          %v4943 = vld [vmem:[#allocation13 + $0xf0] sm:$0xff]
          %v4944 = vld [vmem:[#allocation13 + $0xf8] sm:$0xff]
          %v4945 = vld [vmem:[#allocation13 + $0x100] sm:$0xff]
          %v4946 = vld [vmem:[#allocation13 + $0x108] sm:$0xff]
          %v4947 = vld [vmem:[#allocation13 + $0x110] sm:$0xff]
          %v4948 = vld [vmem:[#allocation13 + $0x118] sm:$0xff]
          %v4949 = vld [vmem:[#allocation13 + $0x120] sm:$0xff]
          %v4950 = vld [vmem:[#allocation13 + $0x128] sm:$0xff]
          %v4951 = vld [vmem:[#allocation13 + $0x130] sm:$0xff]
          %v4952 = vld [vmem:[#allocation13 + $0x138] sm:$0xff]
          %v4953 = vld [vmem:[#allocation13 + $0x140] sm:$0xff]
          %v4954 = vld [vmem:[#allocation13 + $0x148] sm:$0xff]
          %v4955 = vld [vmem:[#allocation13 + $0x150] sm:$0xff]
          %v4956 = vld [vmem:[#allocation13 + $0x158] sm:$0xff]
          %v4957 = vld [vmem:[#allocation13 + $0x160] sm:$0xff]
          %v4958 = vld [vmem:[#allocation13 + $0x168] sm:$0xff]
          %v4959 = vld [vmem:[#allocation13 + $0x170] sm:$0xff]
          %v4960 = vld [vmem:[#allocation13 + $0x178] sm:$0xff]
          %v4961 = vld [vmem:[#allocation13 + $0x180] sm:$0xff]
          %v4962 = vld [vmem:[#allocation13 + $0x188] sm:$0xff]
          %v4963 = vld [vmem:[#allocation13 + $0x190] sm:$0xff]
          %v4964 = vld [vmem:[#allocation13 + $0x198] sm:$0xff]
          %v4965 = vld [vmem:[#allocation13 + $0x1a0] sm:$0xff]
          %v4966 = vld [vmem:[#allocation13 + $0x1a8] sm:$0xff]
          %v4967 = vld [vmem:[#allocation13 + $0x1b0] sm:$0xff]
          %v4968 = vld [vmem:[#allocation13 + $0x1b8] sm:$0xff]
          %v4969 = vld [vmem:[#allocation13 + $0x1c0] sm:$0xff]
          %v4970 = vld [vmem:[#allocation13 + $0x1c8] sm:$0xff]
          %v4971 = vld [vmem:[#allocation13 + $0x1d0] sm:$0xff]
          %v4972 = vld [vmem:[#allocation13 + $0x1d8] sm:$0xff]
          %v4973 = vld [vmem:[#allocation13 + $0x1e0] sm:$0xff]
          %v4974 = vld [vmem:[#allocation13 + $0x1e8] sm:$0xff]
          %v4975 = vld [vmem:[#allocation13 + $0x1f0] sm:$0xff]
          %v4976 = vld [vmem:[#allocation13 + $0x1f8] sm:$0xff]
          %v5041 = vunpack.c.l.b16 %v4913
          %v5042 = vunpack.c.h.b16 %v4913
          %v5043 = vunpack.c.l.b16 %v4914
          %v5044 = vunpack.c.h.b16 %v4914
          %v5045 = vunpack.c.l.b16 %v4915
          %v5046 = vunpack.c.h.b16 %v4915
          %v5047 = vunpack.c.l.b16 %v4916
          %v5048 = vunpack.c.h.b16 %v4916
          %v5049 = vunpack.c.l.b16 %v4917
          %v5050 = vunpack.c.h.b16 %v4917
          %v5051 = vunpack.c.l.b16 %v4918
          %v5052 = vunpack.c.h.b16 %v4918
          %v5053 = vunpack.c.l.b16 %v4919
          %v5054 = vunpack.c.h.b16 %v4919
          %v5055 = vunpack.c.l.b16 %v4920
          %v5056 = vunpack.c.h.b16 %v4920
          %v5057 = vunpack.c.l.b16 %v4921
          %v5058 = vunpack.c.h.b16 %v4921
          %v5059 = vunpack.c.l.b16 %v4922
          %v5060 = vunpack.c.h.b16 %v4922
          %v5061 = vunpack.c.l.b16 %v4923
          %v5062 = vunpack.c.h.b16 %v4923
          %v5063 = vunpack.c.l.b16 %v4924
          %v5064 = vunpack.c.h.b16 %v4924
          %v5065 = vunpack.c.l.b16 %v4925
          %v5066 = vunpack.c.h.b16 %v4925
          %v5067 = vunpack.c.l.b16 %v4926
          %v5068 = vunpack.c.h.b16 %v4926
          %v5069 = vunpack.c.l.b16 %v4927
          %v5070 = vunpack.c.h.b16 %v4927
          %v5071 = vunpack.c.l.b16 %v4928
          %v5072 = vunpack.c.h.b16 %v4928
          %v5073 = vunpack.c.l.b16 %v4929
          %v5074 = vunpack.c.h.b16 %v4929
          %v5075 = vunpack.c.l.b16 %v4930
          %v5076 = vunpack.c.h.b16 %v4930
          %v5077 = vunpack.c.l.b16 %v4931
          %v5078 = vunpack.c.h.b16 %v4931
          %v5079 = vunpack.c.l.b16 %v4932
          %v5080 = vunpack.c.h.b16 %v4932
          %v5081 = vunpack.c.l.b16 %v4933
          %v5082 = vunpack.c.h.b16 %v4933
          %v5083 = vunpack.c.l.b16 %v4934
          %v5084 = vunpack.c.h.b16 %v4934
          %v5085 = vunpack.c.l.b16 %v4935
          %v5086 = vunpack.c.h.b16 %v4935
          %v5087 = vunpack.c.l.b16 %v4936
          %v5088 = vunpack.c.h.b16 %v4936
          %v5089 = vunpack.c.l.b16 %v4937
          %v5090 = vunpack.c.h.b16 %v4937
          %v5091 = vunpack.c.l.b16 %v4938
          %v5092 = vunpack.c.h.b16 %v4938
          %v5093 = vunpack.c.l.b16 %v4939
          %v5094 = vunpack.c.h.b16 %v4939
          %v5095 = vunpack.c.l.b16 %v4940
          %v5096 = vunpack.c.h.b16 %v4940
          %v5097 = vunpack.c.l.b16 %v4941
          %v5098 = vunpack.c.h.b16 %v4941
          %v5099 = vunpack.c.l.b16 %v4942
          %v5100 = vunpack.c.h.b16 %v4942
          %v5101 = vunpack.c.l.b16 %v4943
          %v5102 = vunpack.c.h.b16 %v4943
          %v5103 = vunpack.c.l.b16 %v4944
          %v5104 = vunpack.c.h.b16 %v4944
          %v5105 = vunpack.c.l.b16 %v4945
          %v5106 = vunpack.c.h.b16 %v4945
          %v5107 = vunpack.c.l.b16 %v4946
          %v5108 = vunpack.c.h.b16 %v4946
          %v5109 = vunpack.c.l.b16 %v4947
          %v5110 = vunpack.c.h.b16 %v4947
          %v5111 = vunpack.c.l.b16 %v4948
          %v5112 = vunpack.c.h.b16 %v4948
          %v5113 = vunpack.c.l.b16 %v4949
          %v5114 = vunpack.c.h.b16 %v4949
          %v5115 = vunpack.c.l.b16 %v4950
          %v5116 = vunpack.c.h.b16 %v4950
          %v5117 = vunpack.c.l.b16 %v4951
          %v5118 = vunpack.c.h.b16 %v4951
          %v5119 = vunpack.c.l.b16 %v4952
          %v5120 = vunpack.c.h.b16 %v4952
          %v5121 = vunpack.c.l.b16 %v4953
          %v5122 = vunpack.c.h.b16 %v4953
          %v5123 = vunpack.c.l.b16 %v4954
          %v5124 = vunpack.c.h.b16 %v4954
          %v5125 = vunpack.c.l.b16 %v4955
          %v5126 = vunpack.c.h.b16 %v4955
          %v5127 = vunpack.c.l.b16 %v4956
          %v5128 = vunpack.c.h.b16 %v4956
          %v5129 = vunpack.c.l.b16 %v4957
          %v5130 = vunpack.c.h.b16 %v4957
          %v5131 = vunpack.c.l.b16 %v4958
          %v5132 = vunpack.c.h.b16 %v4958
          %v5133 = vunpack.c.l.b16 %v4959
          %v5134 = vunpack.c.h.b16 %v4959
          %v5135 = vunpack.c.l.b16 %v4960
          %v5136 = vunpack.c.h.b16 %v4960
          %v5137 = vunpack.c.l.b16 %v4961
          %v5138 = vunpack.c.h.b16 %v4961
          %v5139 = vunpack.c.l.b16 %v4962
          %v5140 = vunpack.c.h.b16 %v4962
          %v5141 = vunpack.c.l.b16 %v4963
          %v5142 = vunpack.c.h.b16 %v4963
          %v5143 = vunpack.c.l.b16 %v4964
          %v5144 = vunpack.c.h.b16 %v4964
          %v5145 = vunpack.c.l.b16 %v4965
          %v5146 = vunpack.c.h.b16 %v4965
          %v5147 = vunpack.c.l.b16 %v4966
          %v5148 = vunpack.c.h.b16 %v4966
          %v5149 = vunpack.c.l.b16 %v4967
          %v5150 = vunpack.c.h.b16 %v4967
          %v5151 = vunpack.c.l.b16 %v4968
          %v5152 = vunpack.c.h.b16 %v4968
          %v5153 = vunpack.c.l.b16 %v4969
          %v5154 = vunpack.c.h.b16 %v4969
          %v5155 = vunpack.c.l.b16 %v4970
          %v5156 = vunpack.c.h.b16 %v4970
          %v5157 = vunpack.c.l.b16 %v4971
          %v5158 = vunpack.c.h.b16 %v4971
          %v5159 = vunpack.c.l.b16 %v4972
          %v5160 = vunpack.c.h.b16 %v4972
          %v5161 = vunpack.c.l.b16 %v4973
          %v5162 = vunpack.c.h.b16 %v4973
          %v5163 = vunpack.c.l.b16 %v4974
          %v5164 = vunpack.c.h.b16 %v4974
          %v5165 = vunpack.c.l.b16 %v4975
          %v5166 = vunpack.c.h.b16 %v4975
          %v5167 = vunpack.c.l.b16 %v4976
          %v5168 = vunpack.c.h.b16 %v4976
          %v5169 = vpack.c.b16 %v5049, %v5041
          %v5170 = vpack.c.b16 %v5050, %v5042
          %v5171 = vpack.c.b16 %v5051, %v5043
          %v5172 = vpack.c.b16 %v5052, %v5044
          %v5173 = vpack.c.b16 %v5053, %v5045
          %v5174 = vpack.c.b16 %v5054, %v5046
          %v5175 = vpack.c.b16 %v5055, %v5047
          %v5176 = vpack.c.b16 %v5056, %v5048
          %v5177 = vpack.c.b16 %v5065, %v5057
          %v5178 = vpack.c.b16 %v5066, %v5058
          %v5179 = vpack.c.b16 %v5067, %v5059
          %v5180 = vpack.c.b16 %v5068, %v5060
          %v5181 = vpack.c.b16 %v5069, %v5061
          %v5182 = vpack.c.b16 %v5070, %v5062
          %v5183 = vpack.c.b16 %v5071, %v5063
          %v5184 = vpack.c.b16 %v5072, %v5064
          %v5185 = vpack.c.b16 %v5081, %v5073
          %v5186 = vpack.c.b16 %v5082, %v5074
          %v5187 = vpack.c.b16 %v5083, %v5075
          %v5188 = vpack.c.b16 %v5084, %v5076
          %v5189 = vpack.c.b16 %v5085, %v5077
          %v5190 = vpack.c.b16 %v5086, %v5078
          %v5191 = vpack.c.b16 %v5087, %v5079
          %v5192 = vpack.c.b16 %v5088, %v5080
          %v5193 = vpack.c.b16 %v5097, %v5089
          %v5194 = vpack.c.b16 %v5098, %v5090
          %v5195 = vpack.c.b16 %v5099, %v5091
          %v5196 = vpack.c.b16 %v5100, %v5092
          %v5197 = vpack.c.b16 %v5101, %v5093
          %v5198 = vpack.c.b16 %v5102, %v5094
          %v5199 = vpack.c.b16 %v5103, %v5095
          %v5200 = vpack.c.b16 %v5104, %v5096
          %v5201 = vpack.c.b16 %v5113, %v5105
          %v5202 = vpack.c.b16 %v5114, %v5106
          %v5203 = vpack.c.b16 %v5115, %v5107
          %v5204 = vpack.c.b16 %v5116, %v5108
          %v5205 = vpack.c.b16 %v5117, %v5109
          %v5206 = vpack.c.b16 %v5118, %v5110
          %v5207 = vpack.c.b16 %v5119, %v5111
          %v5208 = vpack.c.b16 %v5120, %v5112
          %v5209 = vpack.c.b16 %v5129, %v5121
          %v5210 = vpack.c.b16 %v5130, %v5122
          %v5211 = vpack.c.b16 %v5131, %v5123
          %v5212 = vpack.c.b16 %v5132, %v5124
          %v5213 = vpack.c.b16 %v5133, %v5125
          %v5214 = vpack.c.b16 %v5134, %v5126
          %v5215 = vpack.c.b16 %v5135, %v5127
          %v5216 = vpack.c.b16 %v5136, %v5128
          %v5217 = vpack.c.b16 %v5145, %v5137
          %v5218 = vpack.c.b16 %v5146, %v5138
          %v5219 = vpack.c.b16 %v5147, %v5139
          %v5220 = vpack.c.b16 %v5148, %v5140
          %v5221 = vpack.c.b16 %v5149, %v5141
          %v5222 = vpack.c.b16 %v5150, %v5142
          %v5223 = vpack.c.b16 %v5151, %v5143
          %v5224 = vpack.c.b16 %v5152, %v5144
          %v5225 = vpack.c.b16 %v5161, %v5153
          %v5226 = vpack.c.b16 %v5162, %v5154
          %v5227 = vpack.c.b16 %v5163, %v5155
          %v5228 = vpack.c.b16 %v5164, %v5156
          %v5229 = vpack.c.b16 %v5165, %v5157
          %v5230 = vpack.c.b16 %v5166, %v5158
          %v5231 = vpack.c.b16 %v5167, %v5159
          %v5232 = vpack.c.b16 %v5168, %v5160
          %5297 = vmatprep.subr.bf16.mxu0 %v5170
          %5298 = vmatpush1.bf16.msra.mxu0 %v5169
          %5299 = vmatprep.subr.bf16.mxu0 %v5178
          %5300 = vmatpush1.bf16.msra.mxu0 %v5177
          %5301 = vmatprep.subr.bf16.mxu0 %v5186
          %5302 = vmatpush1.bf16.msra.mxu0 %v5185
          %5303 = vmatprep.subr.bf16.mxu0 %v5194
          %5304 = vmatpush1.bf16.msra.mxu0 %v5193
          %5305 = vmatprep.subr.bf16.mxu0 %v5202
          %5306 = vmatpush1.bf16.msra.mxu0 %v5201
          %5307 = vmatprep.subr.bf16.mxu0 %v5210
          %5308 = vmatpush1.bf16.msra.mxu0 %v5209
          %5309 = vmatprep.subr.bf16.mxu0 %v5218
          %5310 = vmatpush1.bf16.msra.mxu0 %v5217
          %5311 = vmatprep.subr.bf16.mxu0 %v5226
          %5312 = vmatpush1.bf16.msra.mxu0 %v5225
          %5313 = vmatprep.subr.bf16.mxu0 0
          %5314 = vmatpush1.bf16.msra.mxu0 0
          %5315 = vmatprep.subr.bf16.mxu0 0
          %5316 = vmatpush1.bf16.msra.mxu0 0
          %5317 = vmatprep.subr.bf16.mxu0 0
          %5318 = vmatpush1.bf16.msra.mxu0 0
          %5319 = vmatprep.subr.bf16.mxu0 0
          %5320 = vmatpush1.bf16.msra.mxu0 0
          %5321 = vmatprep.subr.bf16.mxu0 0
          %5322 = vmatpush1.bf16.msra.mxu0 0
          %5323 = vmatprep.subr.bf16.mxu0 0
          %5324 = vmatpush1.bf16.msra.mxu0 0
          %5325 = vmatprep.subr.bf16.mxu0 0
          %5326 = vmatpush1.bf16.msra.mxu0 0
          %5327 = vmatprep.subr.bf16.mxu0 0
          %5328 = vmatpush1.bf16.msra.mxu0 0
          %5329 = vmatprep.mubr.bf16.mxu0 0
          %5330 = vmatmul.mubr.bf16.gmra.mrb[0].mxu0 %v4912
          %v5331 = vpop.f32.mrb[0].mxu0
          %v5332 = vadd.f32 0.0, %v5331
          %v5333 = vpop.f32.mrb[0].mxu0
          %v5334 = vadd.f32 0.0, %v5333
          %v5335 = vpop.f32.mrb[0].mxu0
          %v5336 = vpop.f32.mrb[0].mxu0
          %5337 = vdwg.mxu0
          %5338 = vmatprep.subr.bf16.mxu0 %v5172
          %5339 = vmatpush1.bf16.msra.mxu0 %v5171
          %5340 = vmatprep.subr.bf16.mxu0 %v5180
          %5341 = vmatpush1.bf16.msra.mxu0 %v5179
          %5342 = vmatprep.subr.bf16.mxu0 %v5188
          %5343 = vmatpush1.bf16.msra.mxu0 %v5187
          %5344 = vmatprep.subr.bf16.mxu0 %v5196
          %5345 = vmatpush1.bf16.msra.mxu0 %v5195
          %5346 = vmatprep.subr.bf16.mxu0 %v5204
          %5347 = vmatpush1.bf16.msra.mxu0 %v5203
          %5348 = vmatprep.subr.bf16.mxu0 %v5212
          %5349 = vmatpush1.bf16.msra.mxu0 %v5211
          %5350 = vmatprep.subr.bf16.mxu0 %v5220
          %5351 = vmatpush1.bf16.msra.mxu0 %v5219
          %5352 = vmatprep.subr.bf16.mxu0 %v5228
          %5353 = vmatpush1.bf16.msra.mxu0 %v5227
          %5354 = vmatprep.subr.bf16.mxu0 0
          %5355 = vmatpush1.bf16.msra.mxu0 0
          %5356 = vmatprep.subr.bf16.mxu0 0
          %5357 = vmatpush1.bf16.msra.mxu0 0
          %5358 = vmatprep.subr.bf16.mxu0 0
          %5359 = vmatpush1.bf16.msra.mxu0 0
          %5360 = vmatprep.subr.bf16.mxu0 0
          %5361 = vmatpush1.bf16.msra.mxu0 0
          %5362 = vmatprep.subr.bf16.mxu0 0
          %5363 = vmatpush1.bf16.msra.mxu0 0
          %5364 = vmatprep.subr.bf16.mxu0 0
          %5365 = vmatpush1.bf16.msra.mxu0 0
          %5366 = vmatprep.subr.bf16.mxu0 0
          %5367 = vmatpush1.bf16.msra.mxu0 0
          %5368 = vmatprep.subr.bf16.mxu0 0
          %5369 = vmatpush1.bf16.msra.mxu0 0
          %5370 = vmatprep.mubr.bf16.mxu0 0
          %5371 = vmatmul.mubr.bf16.gmra.mrb[0].mxu0 %v4912
          %v5372 = vpop.f32.mrb[0].mxu0
          %v5373 = vadd.f32 0.0, %v5372
          %v5374 = vpop.f32.mrb[0].mxu0
          %v5375 = vadd.f32 0.0, %v5374
          %v5376 = vpop.f32.mrb[0].mxu0
          %v5377 = vpop.f32.mrb[0].mxu0
          %5378 = vdwg.mxu0
          %5379 = vmatprep.subr.bf16.mxu0 %v5174
          %5380 = vmatpush1.bf16.msra.mxu0 %v5173
          %5381 = vmatprep.subr.bf16.mxu0 %v5182
          %5382 = vmatpush1.bf16.msra.mxu0 %v5181
          %5383 = vmatprep.subr.bf16.mxu0 %v5190
          %5384 = vmatpush1.bf16.msra.mxu0 %v5189
          %5385 = vmatprep.subr.bf16.mxu0 %v5198
          %5386 = vmatpush1.bf16.msra.mxu0 %v5197
          %5387 = vmatprep.subr.bf16.mxu0 %v5206
          %5388 = vmatpush1.bf16.msra.mxu0 %v5205
          %5389 = vmatprep.subr.bf16.mxu0 %v5214
          %5390 = vmatpush1.bf16.msra.mxu0 %v5213
          %5391 = vmatprep.subr.bf16.mxu0 %v5222
          %5392 = vmatpush1.bf16.msra.mxu0 %v5221
          %5393 = vmatprep.subr.bf16.mxu0 %v5230
          %5394 = vmatpush1.bf16.msra.mxu0 %v5229
          %5395 = vmatprep.subr.bf16.mxu0 0
          %5396 = vmatpush1.bf16.msra.mxu0 0
          %5397 = vmatprep.subr.bf16.mxu0 0
          %5398 = vmatpush1.bf16.msra.mxu0 0
          %5399 = vmatprep.subr.bf16.mxu0 0
          %5400 = vmatpush1.bf16.msra.mxu0 0
          %5401 = vmatprep.subr.bf16.mxu0 0
          %5402 = vmatpush1.bf16.msra.mxu0 0
          %5403 = vmatprep.subr.bf16.mxu0 0
          %5404 = vmatpush1.bf16.msra.mxu0 0
          %5405 = vmatprep.subr.bf16.mxu0 0
          %5406 = vmatpush1.bf16.msra.mxu0 0
          %5407 = vmatprep.subr.bf16.mxu0 0
          %5408 = vmatpush1.bf16.msra.mxu0 0
          %5409 = vmatprep.subr.bf16.mxu0 0
          %5410 = vmatpush1.bf16.msra.mxu0 0
          %5411 = vmatprep.mubr.bf16.mxu0 0
          %5412 = vmatmul.mubr.bf16.gmra.mrb[0].mxu0 %v4912
          %v5413 = vpop.f32.mrb[0].mxu0
          %v5414 = vadd.f32 0.0, %v5413
          %v5415 = vpop.f32.mrb[0].mxu0
          %v5416 = vadd.f32 0.0, %v5415
          %v5417 = vpop.f32.mrb[0].mxu0
          %v5418 = vpop.f32.mrb[0].mxu0
          %5419 = vdwg.mxu0
          %5420 = vmatprep.subr.bf16.mxu0 %v5176
          %5421 = vmatpush1.bf16.msra.mxu0 %v5175
          %5422 = vmatprep.subr.bf16.mxu0 %v5184
          %5423 = vmatpush1.bf16.msra.mxu0 %v5183
          %5424 = vmatprep.subr.bf16.mxu0 %v5192
          %5425 = vmatpush1.bf16.msra.mxu0 %v5191
          %5426 = vmatprep.subr.bf16.mxu0 %v5200
          %5427 = vmatpush1.bf16.msra.mxu0 %v5199
          %5428 = vmatprep.subr.bf16.mxu0 %v5208
          %5429 = vmatpush1.bf16.msra.mxu0 %v5207
          %5430 = vmatprep.subr.bf16.mxu0 %v5216
          %5431 = vmatpush1.bf16.msra.mxu0 %v5215
          %5432 = vmatprep.subr.bf16.mxu0 %v5224
          %5433 = vmatpush1.bf16.msra.mxu0 %v5223
          %5434 = vmatprep.subr.bf16.mxu0 %v5232
          %5435 = vmatpush1.bf16.msra.mxu0 %v5231
          %5436 = vmatprep.subr.bf16.mxu0 0
          %5437 = vmatpush1.bf16.msra.mxu0 0
          %5438 = vmatprep.subr.bf16.mxu0 0
          %5439 = vmatpush1.bf16.msra.mxu0 0
          %5440 = vmatprep.subr.bf16.mxu0 0
          %5441 = vmatpush1.bf16.msra.mxu0 0
          %5442 = vmatprep.subr.bf16.mxu0 0
          %5443 = vmatpush1.bf16.msra.mxu0 0
          %5444 = vmatprep.subr.bf16.mxu0 0
          %5445 = vmatpush1.bf16.msra.mxu0 0
          %5446 = vmatprep.subr.bf16.mxu0 0
          %5447 = vmatpush1.bf16.msra.mxu0 0
          %5448 = vmatprep.subr.bf16.mxu0 0
          %5449 = vmatpush1.bf16.msra.mxu0 0
          %5450 = vmatprep.subr.bf16.mxu0 0
          %5451 = vmatpush1.bf16.msra.mxu0 0
          %5452 = vmatprep.mubr.bf16.mxu0 0
          %5453 = vmatmul.mubr.bf16.gmra.mrb[0].mxu0 %v4912
          %v5454 = vpop.f32.mrb[0].mxu0
          %v5455 = vadd.f32 0.0, %v5454
          %v5456 = vpop.f32.mrb[0].mxu0
          %v5457 = vadd.f32 0.0, %v5456
          %v5458 = vpop.f32.mrb[0].mxu0
          %v5459 = vpop.f32.mrb[0].mxu0
          %5460 = vdwg.mxu0
          %v5461 = vadd.f32 %v3566, %v5332
          %v5462 = vadd.f32 %v3567, %v5334
          %v5463 = vadd.f32 %v3568, %v5373
          %v5464 = vadd.f32 %v3569, %v5375
          %v5465 = vadd.f32 %v3570, %v5414
          %v5466 = vadd.f32 %v3571, %v5416
          %v5467 = vadd.f32 %v3572, %v5455
          %v5468 = vadd.f32 %v3573, %v5457
          %v5469 = vmax.f32 %v5461, 0.0
          %v5470 = vmax.f32 %v5462, 0.0
          %v5471 = vmax.f32 %v5463, 0.0
          %v5472 = vmax.f32 %v5464, 0.0
          %v5473 = vmax.f32 %v5465, 0.0
          %v5474 = vmax.f32 %v5466, 0.0
          %v5475 = vmax.f32 %v5467, 0.0
          %v5476 = vmax.f32 %v5468, 0.0
          %v5477 = vpack.c.bf16 %v5469, %v5469
          %v5478 = vpack.c.bf16 %v5470, %v5470
          %v5479 = vpack.c.bf16 %v5471, %v5471
          %v5480 = vpack.c.bf16 %v5472, %v5472
          %v5481 = vpack.c.bf16 %v5473, %v5473
          %v5482 = vpack.c.bf16 %v5474, %v5474
          %v5483 = vpack.c.bf16 %v5475, %v5475
          %v5484 = vpack.c.bf16 %v5476, %v5476
          %v5485 = vld [vmem:[#allocation14] sm:$0xff]
          %v5486 = vld [vmem:[#allocation14 + $0x8] sm:$0xff]
          %v5487 = vld [vmem:[#allocation14 + $0x10] sm:$0xff]
          %v5488 = vld [vmem:[#allocation14 + $0x18] sm:$0xff]
          %v5489 = vld [vmem:[#allocation14 + $0x20] sm:$0xff]
          %v5490 = vld [vmem:[#allocation14 + $0x28] sm:$0xff]
          %v5491 = vld [vmem:[#allocation14 + $0x30] sm:$0xff]
          %v5492 = vld [vmem:[#allocation14 + $0x38] sm:$0xff]
          %v5493 = vld [vmem:[#allocation14 + $0x40] sm:$0xff]
          %v5494 = vld [vmem:[#allocation14 + $0x48] sm:$0xff]
          %v5495 = vld [vmem:[#allocation14 + $0x50] sm:$0xff]
          %v5496 = vld [vmem:[#allocation14 + $0x58] sm:$0xff]
          %v5497 = vld [vmem:[#allocation14 + $0x60] sm:$0xff]
          %v5498 = vld [vmem:[#allocation14 + $0x68] sm:$0xff]
          %v5499 = vld [vmem:[#allocation14 + $0x70] sm:$0xff]
          %v5500 = vld [vmem:[#allocation14 + $0x78] sm:$0xff]
          %v5501 = vld [vmem:[#allocation14 + $0x80] sm:$0xff]
          %v5502 = vld [vmem:[#allocation14 + $0x88] sm:$0xff]
          %v5503 = vld [vmem:[#allocation14 + $0x90] sm:$0xff]
          %v5504 = vld [vmem:[#allocation14 + $0x98] sm:$0xff]
          %v5505 = vld [vmem:[#allocation14 + $0xa0] sm:$0xff]
          %v5506 = vld [vmem:[#allocation14 + $0xa8] sm:$0xff]
          %v5507 = vld [vmem:[#allocation14 + $0xb0] sm:$0xff]
          %v5508 = vld [vmem:[#allocation14 + $0xb8] sm:$0xff]
          %v5509 = vld [vmem:[#allocation14 + $0xc0] sm:$0xff]
          %v5510 = vld [vmem:[#allocation14 + $0xc8] sm:$0xff]
          %v5511 = vld [vmem:[#allocation14 + $0xd0] sm:$0xff]
          %v5512 = vld [vmem:[#allocation14 + $0xd8] sm:$0xff]
          %v5513 = vld [vmem:[#allocation14 + $0xe0] sm:$0xff]
          %v5514 = vld [vmem:[#allocation14 + $0xe8] sm:$0xff]
          %v5515 = vld [vmem:[#allocation14 + $0xf0] sm:$0xff]
          %v5516 = vld [vmem:[#allocation14 + $0xf8] sm:$0xff]
          %v5517 = vld [vmem:[#allocation14 + $0x100] sm:$0xff]
          %v5518 = vld [vmem:[#allocation14 + $0x108] sm:$0xff]
          %v5519 = vld [vmem:[#allocation14 + $0x110] sm:$0xff]
          %v5520 = vld [vmem:[#allocation14 + $0x118] sm:$0xff]
          %v5521 = vld [vmem:[#allocation14 + $0x120] sm:$0xff]
          %v5522 = vld [vmem:[#allocation14 + $0x128] sm:$0xff]
          %v5523 = vld [vmem:[#allocation14 + $0x130] sm:$0xff]
          %v5524 = vld [vmem:[#allocation14 + $0x138] sm:$0xff]
          %v5525 = vld [vmem:[#allocation14 + $0x140] sm:$0xff]
          %v5526 = vld [vmem:[#allocation14 + $0x148] sm:$0xff]
          %v5527 = vld [vmem:[#allocation14 + $0x150] sm:$0xff]
          %v5528 = vld [vmem:[#allocation14 + $0x158] sm:$0xff]
          %v5529 = vld [vmem:[#allocation14 + $0x160] sm:$0xff]
          %v5530 = vld [vmem:[#allocation14 + $0x168] sm:$0xff]
          %v5531 = vld [vmem:[#allocation14 + $0x170] sm:$0xff]
          %v5532 = vld [vmem:[#allocation14 + $0x178] sm:$0xff]
          %v5533 = vld [vmem:[#allocation14 + $0x180] sm:$0xff]
          %v5534 = vld [vmem:[#allocation14 + $0x188] sm:$0xff]
          %v5535 = vld [vmem:[#allocation14 + $0x190] sm:$0xff]
          %v5536 = vld [vmem:[#allocation14 + $0x198] sm:$0xff]
          %v5537 = vld [vmem:[#allocation14 + $0x1a0] sm:$0xff]
          %v5538 = vld [vmem:[#allocation14 + $0x1a8] sm:$0xff]
          %v5539 = vld [vmem:[#allocation14 + $0x1b0] sm:$0xff]
          %v5540 = vld [vmem:[#allocation14 + $0x1b8] sm:$0xff]
          %v5541 = vld [vmem:[#allocation14 + $0x1c0] sm:$0xff]
          %v5542 = vld [vmem:[#allocation14 + $0x1c8] sm:$0xff]
          %v5543 = vld [vmem:[#allocation14 + $0x1d0] sm:$0xff]
          %v5544 = vld [vmem:[#allocation14 + $0x1d8] sm:$0xff]
          %v5545 = vld [vmem:[#allocation14 + $0x1e0] sm:$0xff]
          %v5546 = vld [vmem:[#allocation14 + $0x1e8] sm:$0xff]
          %v5547 = vld [vmem:[#allocation14 + $0x1f0] sm:$0xff]
          %v5548 = vld [vmem:[#allocation14 + $0x1f8] sm:$0xff]
          %v5549 = vld [vmem:[#allocation14 + $0x200] sm:$0xff]
          %v5550 = vld [vmem:[#allocation14 + $0x208] sm:$0xff]
          %v5551 = vld [vmem:[#allocation14 + $0x210] sm:$0xff]
          %v5552 = vld [vmem:[#allocation14 + $0x218] sm:$0xff]
          %v5553 = vld [vmem:[#allocation14 + $0x220] sm:$0xff]
          %v5554 = vld [vmem:[#allocation14 + $0x228] sm:$0xff]
          %v5555 = vld [vmem:[#allocation14 + $0x230] sm:$0xff]
          %v5556 = vld [vmem:[#allocation14 + $0x238] sm:$0xff]
          %v5557 = vld [vmem:[#allocation14 + $0x240] sm:$0xff]
          %v5558 = vld [vmem:[#allocation14 + $0x248] sm:$0xff]
          %v5559 = vld [vmem:[#allocation14 + $0x250] sm:$0xff]
          %v5560 = vld [vmem:[#allocation14 + $0x258] sm:$0xff]
          %v5561 = vld [vmem:[#allocation14 + $0x260] sm:$0xff]
          %v5562 = vld [vmem:[#allocation14 + $0x268] sm:$0xff]
          %v5563 = vld [vmem:[#allocation14 + $0x270] sm:$0xff]
          %v5564 = vld [vmem:[#allocation14 + $0x278] sm:$0xff]
          %v5565 = vld [vmem:[#allocation14 + $0x280] sm:$0xff]
          %v5566 = vld [vmem:[#allocation14 + $0x288] sm:$0xff]
          %v5567 = vld [vmem:[#allocation14 + $0x290] sm:$0xff]
          %v5568 = vld [vmem:[#allocation14 + $0x298] sm:$0xff]
          %v5569 = vld [vmem:[#allocation14 + $0x2a0] sm:$0xff]
          %v5570 = vld [vmem:[#allocation14 + $0x2a8] sm:$0xff]
          %v5571 = vld [vmem:[#allocation14 + $0x2b0] sm:$0xff]
          %v5572 = vld [vmem:[#allocation14 + $0x2b8] sm:$0xff]
          %v5573 = vld [vmem:[#allocation14 + $0x2c0] sm:$0xff]
          %v5574 = vld [vmem:[#allocation14 + $0x2c8] sm:$0xff]
          %v5575 = vld [vmem:[#allocation14 + $0x2d0] sm:$0xff]
          %v5576 = vld [vmem:[#allocation14 + $0x2d8] sm:$0xff]
          %v5577 = vld [vmem:[#allocation14 + $0x2e0] sm:$0xff]
          %v5578 = vld [vmem:[#allocation14 + $0x2e8] sm:$0xff]
          %v5579 = vld [vmem:[#allocation14 + $0x2f0] sm:$0xff]
          %v5580 = vld [vmem:[#allocation14 + $0x2f8] sm:$0xff]
          %v5581 = vld [vmem:[#allocation14 + $0x300] sm:$0xff]
          %v5582 = vld [vmem:[#allocation14 + $0x308] sm:$0xff]
          %v5583 = vld [vmem:[#allocation14 + $0x310] sm:$0xff]
          %v5584 = vld [vmem:[#allocation14 + $0x318] sm:$0xff]
          %v5585 = vld [vmem:[#allocation14 + $0x320] sm:$0xff]
          %v5586 = vld [vmem:[#allocation14 + $0x328] sm:$0xff]
          %v5587 = vld [vmem:[#allocation14 + $0x330] sm:$0xff]
          %v5588 = vld [vmem:[#allocation14 + $0x338] sm:$0xff]
          %v5589 = vld [vmem:[#allocation14 + $0x340] sm:$0xff]
          %v5590 = vld [vmem:[#allocation14 + $0x348] sm:$0xff]
          %v5591 = vld [vmem:[#allocation14 + $0x350] sm:$0xff]
          %v5592 = vld [vmem:[#allocation14 + $0x358] sm:$0xff]
          %v5593 = vld [vmem:[#allocation14 + $0x360] sm:$0xff]
          %v5594 = vld [vmem:[#allocation14 + $0x368] sm:$0xff]
          %v5595 = vld [vmem:[#allocation14 + $0x370] sm:$0xff]
          %v5596 = vld [vmem:[#allocation14 + $0x378] sm:$0xff]
          %v5597 = vld [vmem:[#allocation14 + $0x380] sm:$0xff]
          %v5598 = vld [vmem:[#allocation14 + $0x388] sm:$0xff]
          %v5599 = vld [vmem:[#allocation14 + $0x390] sm:$0xff]
          %v5600 = vld [vmem:[#allocation14 + $0x398] sm:$0xff]
          %v5601 = vld [vmem:[#allocation14 + $0x3a0] sm:$0xff]
          %v5602 = vld [vmem:[#allocation14 + $0x3a8] sm:$0xff]
          %v5603 = vld [vmem:[#allocation14 + $0x3b0] sm:$0xff]
          %v5604 = vld [vmem:[#allocation14 + $0x3b8] sm:$0xff]
          %v5605 = vld [vmem:[#allocation14 + $0x3c0] sm:$0xff]
          %v5606 = vld [vmem:[#allocation14 + $0x3c8] sm:$0xff]
          %v5607 = vld [vmem:[#allocation14 + $0x3d0] sm:$0xff]
          %v5608 = vld [vmem:[#allocation14 + $0x3d8] sm:$0xff]
          %v5609 = vld [vmem:[#allocation14 + $0x3e0] sm:$0xff]
          %v5610 = vld [vmem:[#allocation14 + $0x3e8] sm:$0xff]
          %v5611 = vld [vmem:[#allocation14 + $0x3f0] sm:$0xff]
          %v5612 = vld [vmem:[#allocation14 + $0x3f8] sm:$0xff]
          %v5613 = vld [vmem:[#allocation14 + $0x400] sm:$0xff]
          %v5614 = vld [vmem:[#allocation14 + $0x408] sm:$0xff]
          %v5615 = vld [vmem:[#allocation14 + $0x410] sm:$0xff]
          %v5616 = vld [vmem:[#allocation14 + $0x418] sm:$0xff]
          %v5617 = vld [vmem:[#allocation14 + $0x420] sm:$0xff]
          %v5618 = vld [vmem:[#allocation14 + $0x428] sm:$0xff]
          %v5619 = vld [vmem:[#allocation14 + $0x430] sm:$0xff]
          %v5620 = vld [vmem:[#allocation14 + $0x438] sm:$0xff]
          %v5621 = vld [vmem:[#allocation14 + $0x440] sm:$0xff]
          %v5622 = vld [vmem:[#allocation14 + $0x448] sm:$0xff]
          %v5623 = vld [vmem:[#allocation14 + $0x450] sm:$0xff]
          %v5624 = vld [vmem:[#allocation14 + $0x458] sm:$0xff]
          %v5625 = vld [vmem:[#allocation14 + $0x460] sm:$0xff]
          %v5626 = vld [vmem:[#allocation14 + $0x468] sm:$0xff]
          %v5627 = vld [vmem:[#allocation14 + $0x470] sm:$0xff]
          %v5628 = vld [vmem:[#allocation14 + $0x478] sm:$0xff]
          %v5629 = vld [vmem:[#allocation14 + $0x480] sm:$0xff]
          %v5630 = vld [vmem:[#allocation14 + $0x488] sm:$0xff]
          %v5631 = vld [vmem:[#allocation14 + $0x490] sm:$0xff]
          %v5632 = vld [vmem:[#allocation14 + $0x498] sm:$0xff]
          %v5633 = vld [vmem:[#allocation14 + $0x4a0] sm:$0xff]
          %v5634 = vld [vmem:[#allocation14 + $0x4a8] sm:$0xff]
          %v5635 = vld [vmem:[#allocation14 + $0x4b0] sm:$0xff]
          %v5636 = vld [vmem:[#allocation14 + $0x4b8] sm:$0xff]
          %v5637 = vld [vmem:[#allocation14 + $0x4c0] sm:$0xff]
          %v5638 = vld [vmem:[#allocation14 + $0x4c8] sm:$0xff]
          %v5639 = vld [vmem:[#allocation14 + $0x4d0] sm:$0xff]
          %v5640 = vld [vmem:[#allocation14 + $0x4d8] sm:$0xff]
          %v5641 = vld [vmem:[#allocation14 + $0x4e0] sm:$0xff]
          %v5642 = vld [vmem:[#allocation14 + $0x4e8] sm:$0xff]
          %v5643 = vld [vmem:[#allocation14 + $0x4f0] sm:$0xff]
          %v5644 = vld [vmem:[#allocation14 + $0x4f8] sm:$0xff]
          %v5645 = vld [vmem:[#allocation14 + $0x500] sm:$0xff]
          %v5646 = vld [vmem:[#allocation14 + $0x508] sm:$0xff]
          %v5647 = vld [vmem:[#allocation14 + $0x510] sm:$0xff]
          %v5648 = vld [vmem:[#allocation14 + $0x518] sm:$0xff]
          %v5649 = vld [vmem:[#allocation14 + $0x520] sm:$0xff]
          %v5650 = vld [vmem:[#allocation14 + $0x528] sm:$0xff]
          %v5651 = vld [vmem:[#allocation14 + $0x530] sm:$0xff]
          %v5652 = vld [vmem:[#allocation14 + $0x538] sm:$0xff]
          %v5653 = vld [vmem:[#allocation14 + $0x540] sm:$0xff]
          %v5654 = vld [vmem:[#allocation14 + $0x548] sm:$0xff]
          %v5655 = vld [vmem:[#allocation14 + $0x550] sm:$0xff]
          %v5656 = vld [vmem:[#allocation14 + $0x558] sm:$0xff]
          %v5657 = vld [vmem:[#allocation14 + $0x560] sm:$0xff]
          %v5658 = vld [vmem:[#allocation14 + $0x568] sm:$0xff]
          %v5659 = vld [vmem:[#allocation14 + $0x570] sm:$0xff]
          %v5660 = vld [vmem:[#allocation14 + $0x578] sm:$0xff]
          %v5661 = vld [vmem:[#allocation14 + $0x580] sm:$0xff]
          %v5662 = vld [vmem:[#allocation14 + $0x588] sm:$0xff]
          %v5663 = vld [vmem:[#allocation14 + $0x590] sm:$0xff]
          %v5664 = vld [vmem:[#allocation14 + $0x598] sm:$0xff]
          %v5665 = vld [vmem:[#allocation14 + $0x5a0] sm:$0xff]
          %v5666 = vld [vmem:[#allocation14 + $0x5a8] sm:$0xff]
          %v5667 = vld [vmem:[#allocation14 + $0x5b0] sm:$0xff]
          %v5668 = vld [vmem:[#allocation14 + $0x5b8] sm:$0xff]
          %v5669 = vld [vmem:[#allocation14 + $0x5c0] sm:$0xff]
          %v5670 = vld [vmem:[#allocation14 + $0x5c8] sm:$0xff]
          %v5671 = vld [vmem:[#allocation14 + $0x5d0] sm:$0xff]
          %v5672 = vld [vmem:[#allocation14 + $0x5d8] sm:$0xff]
          %v5673 = vld [vmem:[#allocation14 + $0x5e0] sm:$0xff]
          %v5674 = vld [vmem:[#allocation14 + $0x5e8] sm:$0xff]
          %v5675 = vld [vmem:[#allocation14 + $0x5f0] sm:$0xff]
          %v5676 = vld [vmem:[#allocation14 + $0x5f8] sm:$0xff]
          %v5677 = vld [vmem:[#allocation14 + $0x600] sm:$0xff]
          %v5678 = vld [vmem:[#allocation14 + $0x608] sm:$0xff]
          %v5679 = vld [vmem:[#allocation14 + $0x610] sm:$0xff]
          %v5680 = vld [vmem:[#allocation14 + $0x618] sm:$0xff]
          %v5681 = vld [vmem:[#allocation14 + $0x620] sm:$0xff]
          %v5682 = vld [vmem:[#allocation14 + $0x628] sm:$0xff]
          %v5683 = vld [vmem:[#allocation14 + $0x630] sm:$0xff]
          %v5684 = vld [vmem:[#allocation14 + $0x638] sm:$0xff]
          %v5685 = vld [vmem:[#allocation14 + $0x640] sm:$0xff]
          %v5686 = vld [vmem:[#allocation14 + $0x648] sm:$0xff]
          %v5687 = vld [vmem:[#allocation14 + $0x650] sm:$0xff]
          %v5688 = vld [vmem:[#allocation14 + $0x658] sm:$0xff]
          %v5689 = vld [vmem:[#allocation14 + $0x660] sm:$0xff]
          %v5690 = vld [vmem:[#allocation14 + $0x668] sm:$0xff]
          %v5691 = vld [vmem:[#allocation14 + $0x670] sm:$0xff]
          %v5692 = vld [vmem:[#allocation14 + $0x678] sm:$0xff]
          %v5693 = vld [vmem:[#allocation14 + $0x680] sm:$0xff]
          %v5694 = vld [vmem:[#allocation14 + $0x688] sm:$0xff]
          %v5695 = vld [vmem:[#allocation14 + $0x690] sm:$0xff]
          %v5696 = vld [vmem:[#allocation14 + $0x698] sm:$0xff]
          %v5697 = vld [vmem:[#allocation14 + $0x6a0] sm:$0xff]
          %v5698 = vld [vmem:[#allocation14 + $0x6a8] sm:$0xff]
          %v5699 = vld [vmem:[#allocation14 + $0x6b0] sm:$0xff]
          %v5700 = vld [vmem:[#allocation14 + $0x6b8] sm:$0xff]
          %v5701 = vld [vmem:[#allocation14 + $0x6c0] sm:$0xff]
          %v5702 = vld [vmem:[#allocation14 + $0x6c8] sm:$0xff]
          %v5703 = vld [vmem:[#allocation14 + $0x6d0] sm:$0xff]
          %v5704 = vld [vmem:[#allocation14 + $0x6d8] sm:$0xff]
          %v5705 = vld [vmem:[#allocation14 + $0x6e0] sm:$0xff]
          %v5706 = vld [vmem:[#allocation14 + $0x6e8] sm:$0xff]
          %v5707 = vld [vmem:[#allocation14 + $0x6f0] sm:$0xff]
          %v5708 = vld [vmem:[#allocation14 + $0x6f8] sm:$0xff]
          %v5709 = vld [vmem:[#allocation14 + $0x700] sm:$0xff]
          %v5710 = vld [vmem:[#allocation14 + $0x708] sm:$0xff]
          %v5711 = vld [vmem:[#allocation14 + $0x710] sm:$0xff]
          %v5712 = vld [vmem:[#allocation14 + $0x718] sm:$0xff]
          %v5713 = vld [vmem:[#allocation14 + $0x720] sm:$0xff]
          %v5714 = vld [vmem:[#allocation14 + $0x728] sm:$0xff]
          %v5715 = vld [vmem:[#allocation14 + $0x730] sm:$0xff]
          %v5716 = vld [vmem:[#allocation14 + $0x738] sm:$0xff]
          %v5717 = vld [vmem:[#allocation14 + $0x740] sm:$0xff]
          %v5718 = vld [vmem:[#allocation14 + $0x748] sm:$0xff]
          %v5719 = vld [vmem:[#allocation14 + $0x750] sm:$0xff]
          %v5720 = vld [vmem:[#allocation14 + $0x758] sm:$0xff]
          %v5721 = vld [vmem:[#allocation14 + $0x760] sm:$0xff]
          %v5722 = vld [vmem:[#allocation14 + $0x768] sm:$0xff]
          %v5723 = vld [vmem:[#allocation14 + $0x770] sm:$0xff]
          %v5724 = vld [vmem:[#allocation14 + $0x778] sm:$0xff]
          %v5725 = vld [vmem:[#allocation14 + $0x780] sm:$0xff]
          %v5726 = vld [vmem:[#allocation14 + $0x788] sm:$0xff]
          %v5727 = vld [vmem:[#allocation14 + $0x790] sm:$0xff]
          %v5728 = vld [vmem:[#allocation14 + $0x798] sm:$0xff]
          %v5729 = vld [vmem:[#allocation14 + $0x7a0] sm:$0xff]
          %v5730 = vld [vmem:[#allocation14 + $0x7a8] sm:$0xff]
          %v5731 = vld [vmem:[#allocation14 + $0x7b0] sm:$0xff]
          %v5732 = vld [vmem:[#allocation14 + $0x7b8] sm:$0xff]
          %v5733 = vld [vmem:[#allocation14 + $0x7c0] sm:$0xff]
          %v5734 = vld [vmem:[#allocation14 + $0x7c8] sm:$0xff]
          %v5735 = vld [vmem:[#allocation14 + $0x7d0] sm:$0xff]
          %v5736 = vld [vmem:[#allocation14 + $0x7d8] sm:$0xff]
          %v5737 = vld [vmem:[#allocation14 + $0x7e0] sm:$0xff]
          %v5738 = vld [vmem:[#allocation14 + $0x7e8] sm:$0xff]
          %v5739 = vld [vmem:[#allocation14 + $0x7f0] sm:$0xff]
          %v5740 = vld [vmem:[#allocation14 + $0x7f8] sm:$0xff]
          %v5741 = vld [vmem:[#allocation14 + $0x800] sm:$0xff]
          %v5742 = vld [vmem:[#allocation14 + $0x808] sm:$0xff]
          %v5743 = vld [vmem:[#allocation14 + $0x810] sm:$0xff]
          %v5744 = vld [vmem:[#allocation14 + $0x818] sm:$0xff]
          %v5745 = vld [vmem:[#allocation14 + $0x820] sm:$0xff]
          %v5746 = vld [vmem:[#allocation14 + $0x828] sm:$0xff]
          %v5747 = vld [vmem:[#allocation14 + $0x830] sm:$0xff]
          %v5748 = vld [vmem:[#allocation14 + $0x838] sm:$0xff]
          %v5749 = vld [vmem:[#allocation14 + $0x840] sm:$0xff]
          %v5750 = vld [vmem:[#allocation14 + $0x848] sm:$0xff]
          %v5751 = vld [vmem:[#allocation14 + $0x850] sm:$0xff]
          %v5752 = vld [vmem:[#allocation14 + $0x858] sm:$0xff]
          %v5753 = vld [vmem:[#allocation14 + $0x860] sm:$0xff]
          %v5754 = vld [vmem:[#allocation14 + $0x868] sm:$0xff]
          %v5755 = vld [vmem:[#allocation14 + $0x870] sm:$0xff]
          %v5756 = vld [vmem:[#allocation14 + $0x878] sm:$0xff]
          %v5757 = vld [vmem:[#allocation14 + $0x880] sm:$0xff]
          %v5758 = vld [vmem:[#allocation14 + $0x888] sm:$0xff]
          %v5759 = vld [vmem:[#allocation14 + $0x890] sm:$0xff]
          %v5760 = vld [vmem:[#allocation14 + $0x898] sm:$0xff]
          %v5761 = vld [vmem:[#allocation14 + $0x8a0] sm:$0xff]
          %v5762 = vld [vmem:[#allocation14 + $0x8a8] sm:$0xff]
          %v5763 = vld [vmem:[#allocation14 + $0x8b0] sm:$0xff]
          %v5764 = vld [vmem:[#allocation14 + $0x8b8] sm:$0xff]
          %v5765 = vld [vmem:[#allocation14 + $0x8c0] sm:$0xff]
          %v5766 = vld [vmem:[#allocation14 + $0x8c8] sm:$0xff]
          %v5767 = vld [vmem:[#allocation14 + $0x8d0] sm:$0xff]
          %v5768 = vld [vmem:[#allocation14 + $0x8d8] sm:$0xff]
          %v5769 = vld [vmem:[#allocation14 + $0x8e0] sm:$0xff]
          %v5770 = vld [vmem:[#allocation14 + $0x8e8] sm:$0xff]
          %v5771 = vld [vmem:[#allocation14 + $0x8f0] sm:$0xff]
          %v5772 = vld [vmem:[#allocation14 + $0x8f8] sm:$0xff]
          %v5773 = vld [vmem:[#allocation14 + $0x900] sm:$0xff]
          %v5774 = vld [vmem:[#allocation14 + $0x908] sm:$0xff]
          %v5775 = vld [vmem:[#allocation14 + $0x910] sm:$0xff]
          %v5776 = vld [vmem:[#allocation14 + $0x918] sm:$0xff]
          %v5777 = vld [vmem:[#allocation14 + $0x920] sm:$0xff]
          %v5778 = vld [vmem:[#allocation14 + $0x928] sm:$0xff]
          %v5779 = vld [vmem:[#allocation14 + $0x930] sm:$0xff]
          %v5780 = vld [vmem:[#allocation14 + $0x938] sm:$0xff]
          %v5781 = vld [vmem:[#allocation14 + $0x940] sm:$0xff]
          %v5782 = vld [vmem:[#allocation14 + $0x948] sm:$0xff]
          %v5783 = vld [vmem:[#allocation14 + $0x950] sm:$0xff]
          %v5784 = vld [vmem:[#allocation14 + $0x958] sm:$0xff]
          %v5785 = vld [vmem:[#allocation14 + $0x960] sm:$0xff]
          %v5786 = vld [vmem:[#allocation14 + $0x968] sm:$0xff]
          %v5787 = vld [vmem:[#allocation14 + $0x970] sm:$0xff]
          %v5788 = vld [vmem:[#allocation14 + $0x978] sm:$0xff]
          %v5789 = vld [vmem:[#allocation14 + $0x980] sm:$0xff]
          %v5790 = vld [vmem:[#allocation14 + $0x988] sm:$0xff]
          %v5791 = vld [vmem:[#allocation14 + $0x990] sm:$0xff]
          %v5792 = vld [vmem:[#allocation14 + $0x998] sm:$0xff]
          %v5793 = vld [vmem:[#allocation14 + $0x9a0] sm:$0xff]
          %v5794 = vld [vmem:[#allocation14 + $0x9a8] sm:$0xff]
          %v5795 = vld [vmem:[#allocation14 + $0x9b0] sm:$0xff]
          %v5796 = vld [vmem:[#allocation14 + $0x9b8] sm:$0xff]
          %v5797 = vld [vmem:[#allocation14 + $0x9c0] sm:$0xff]
          %v5798 = vld [vmem:[#allocation14 + $0x9c8] sm:$0xff]
          %v5799 = vld [vmem:[#allocation14 + $0x9d0] sm:$0xff]
          %v5800 = vld [vmem:[#allocation14 + $0x9d8] sm:$0xff]
          %v5801 = vld [vmem:[#allocation14 + $0x9e0] sm:$0xff]
          %v5802 = vld [vmem:[#allocation14 + $0x9e8] sm:$0xff]
          %v5803 = vld [vmem:[#allocation14 + $0x9f0] sm:$0xff]
          %v5804 = vld [vmem:[#allocation14 + $0x9f8] sm:$0xff]
          %v5805 = vld [vmem:[#allocation14 + $0xa00] sm:$0xff]
          %v5806 = vld [vmem:[#allocation14 + $0xa08] sm:$0xff]
          %v5807 = vld [vmem:[#allocation14 + $0xa10] sm:$0xff]
          %v5808 = vld [vmem:[#allocation14 + $0xa18] sm:$0xff]
          %v5809 = vld [vmem:[#allocation14 + $0xa20] sm:$0xff]
          %v5810 = vld [vmem:[#allocation14 + $0xa28] sm:$0xff]
          %v5811 = vld [vmem:[#allocation14 + $0xa30] sm:$0xff]
          %v5812 = vld [vmem:[#allocation14 + $0xa38] sm:$0xff]
          %v5813 = vld [vmem:[#allocation14 + $0xa40] sm:$0xff]
          %v5814 = vld [vmem:[#allocation14 + $0xa48] sm:$0xff]
          %v5815 = vld [vmem:[#allocation14 + $0xa50] sm:$0xff]
          %v5816 = vld [vmem:[#allocation14 + $0xa58] sm:$0xff]
          %v5817 = vld [vmem:[#allocation14 + $0xa60] sm:$0xff]
          %v5818 = vld [vmem:[#allocation14 + $0xa68] sm:$0xff]
          %v5819 = vld [vmem:[#allocation14 + $0xa70] sm:$0xff]
          %v5820 = vld [vmem:[#allocation14 + $0xa78] sm:$0xff]
          %v5821 = vld [vmem:[#allocation14 + $0xa80] sm:$0xff]
          %v5822 = vld [vmem:[#allocation14 + $0xa88] sm:$0xff]
          %v5823 = vld [vmem:[#allocation14 + $0xa90] sm:$0xff]
          %v5824 = vld [vmem:[#allocation14 + $0xa98] sm:$0xff]
          %v5825 = vld [vmem:[#allocation14 + $0xaa0] sm:$0xff]
          %v5826 = vld [vmem:[#allocation14 + $0xaa8] sm:$0xff]
          %v5827 = vld [vmem:[#allocation14 + $0xab0] sm:$0xff]
          %v5828 = vld [vmem:[#allocation14 + $0xab8] sm:$0xff]
          %v5829 = vld [vmem:[#allocation14 + $0xac0] sm:$0xff]
          %v5830 = vld [vmem:[#allocation14 + $0xac8] sm:$0xff]
          %v5831 = vld [vmem:[#allocation14 + $0xad0] sm:$0xff]
          %v5832 = vld [vmem:[#allocation14 + $0xad8] sm:$0xff]
          %v5833 = vld [vmem:[#allocation14 + $0xae0] sm:$0xff]
          %v5834 = vld [vmem:[#allocation14 + $0xae8] sm:$0xff]
          %v5835 = vld [vmem:[#allocation14 + $0xaf0] sm:$0xff]
          %v5836 = vld [vmem:[#allocation14 + $0xaf8] sm:$0xff]
          %v5837 = vld [vmem:[#allocation14 + $0xb00] sm:$0xff]
          %v5838 = vld [vmem:[#allocation14 + $0xb08] sm:$0xff]
          %v5839 = vld [vmem:[#allocation14 + $0xb10] sm:$0xff]
          %v5840 = vld [vmem:[#allocation14 + $0xb18] sm:$0xff]
          %v5841 = vld [vmem:[#allocation14 + $0xb20] sm:$0xff]
          %v5842 = vld [vmem:[#allocation14 + $0xb28] sm:$0xff]
          %v5843 = vld [vmem:[#allocation14 + $0xb30] sm:$0xff]
          %v5844 = vld [vmem:[#allocation14 + $0xb38] sm:$0xff]
          %v5845 = vld [vmem:[#allocation14 + $0xb40] sm:$0xff]
          %v5846 = vld [vmem:[#allocation14 + $0xb48] sm:$0xff]
          %v5847 = vld [vmem:[#allocation14 + $0xb50] sm:$0xff]
          %v5848 = vld [vmem:[#allocation14 + $0xb58] sm:$0xff]
          %v5849 = vld [vmem:[#allocation14 + $0xb60] sm:$0xff]
          %v5850 = vld [vmem:[#allocation14 + $0xb68] sm:$0xff]
          %v5851 = vld [vmem:[#allocation14 + $0xb70] sm:$0xff]
          %v5852 = vld [vmem:[#allocation14 + $0xb78] sm:$0xff]
          %v5853 = vld [vmem:[#allocation14 + $0xb80] sm:$0xff]
          %v5854 = vld [vmem:[#allocation14 + $0xb88] sm:$0xff]
          %v5855 = vld [vmem:[#allocation14 + $0xb90] sm:$0xff]
          %v5856 = vld [vmem:[#allocation14 + $0xb98] sm:$0xff]
          %v5857 = vld [vmem:[#allocation14 + $0xba0] sm:$0xff]
          %v5858 = vld [vmem:[#allocation14 + $0xba8] sm:$0xff]
          %v5859 = vld [vmem:[#allocation14 + $0xbb0] sm:$0xff]
          %v5860 = vld [vmem:[#allocation14 + $0xbb8] sm:$0xff]
          %v5861 = vld [vmem:[#allocation14 + $0xbc0] sm:$0xff]
          %v5862 = vld [vmem:[#allocation14 + $0xbc8] sm:$0xff]
          %v5863 = vld [vmem:[#allocation14 + $0xbd0] sm:$0xff]
          %v5864 = vld [vmem:[#allocation14 + $0xbd8] sm:$0xff]
          %v5865 = vld [vmem:[#allocation14 + $0xbe0] sm:$0xff]
          %v5866 = vld [vmem:[#allocation14 + $0xbe8] sm:$0xff]
          %v5867 = vld [vmem:[#allocation14 + $0xbf0] sm:$0xff]
          %v5868 = vld [vmem:[#allocation14 + $0xbf8] sm:$0xff]
          %v5869 = vld [vmem:[#allocation14 + $0xc00] sm:$0xff]
          %v5870 = vld [vmem:[#allocation14 + $0xc08] sm:$0xff]
          %v5871 = vld [vmem:[#allocation14 + $0xc10] sm:$0xff]
          %v5872 = vld [vmem:[#allocation14 + $0xc18] sm:$0xff]
          %v5873 = vld [vmem:[#allocation14 + $0xc20] sm:$0xff]
          %v5874 = vld [vmem:[#allocation14 + $0xc28] sm:$0xff]
          %v5875 = vld [vmem:[#allocation14 + $0xc30] sm:$0xff]
          %v5876 = vld [vmem:[#allocation14 + $0xc38] sm:$0xff]
          %v5877 = vld [vmem:[#allocation14 + $0xc40] sm:$0xff]
          %v5878 = vld [vmem:[#allocation14 + $0xc48] sm:$0xff]
          %v5879 = vld [vmem:[#allocation14 + $0xc50] sm:$0xff]
          %v5880 = vld [vmem:[#allocation14 + $0xc58] sm:$0xff]
          %v5881 = vld [vmem:[#allocation14 + $0xc60] sm:$0xff]
          %v5882 = vld [vmem:[#allocation14 + $0xc68] sm:$0xff]
          %v5883 = vld [vmem:[#allocation14 + $0xc70] sm:$0xff]
          %v5884 = vld [vmem:[#allocation14 + $0xc78] sm:$0xff]
          %v5885 = vld [vmem:[#allocation14 + $0xc80] sm:$0xff]
          %v5886 = vld [vmem:[#allocation14 + $0xc88] sm:$0xff]
          %v5887 = vld [vmem:[#allocation14 + $0xc90] sm:$0xff]
          %v5888 = vld [vmem:[#allocation14 + $0xc98] sm:$0xff]
          %v5889 = vld [vmem:[#allocation14 + $0xca0] sm:$0xff]
          %v5890 = vld [vmem:[#allocation14 + $0xca8] sm:$0xff]
          %v5891 = vld [vmem:[#allocation14 + $0xcb0] sm:$0xff]
          %v5892 = vld [vmem:[#allocation14 + $0xcb8] sm:$0xff]
          %v5893 = vld [vmem:[#allocation14 + $0xcc0] sm:$0xff]
          %v5894 = vld [vmem:[#allocation14 + $0xcc8] sm:$0xff]
          %v5895 = vld [vmem:[#allocation14 + $0xcd0] sm:$0xff]
          %v5896 = vld [vmem:[#allocation14 + $0xcd8] sm:$0xff]
          %v5897 = vld [vmem:[#allocation14 + $0xce0] sm:$0xff]
          %v5898 = vld [vmem:[#allocation14 + $0xce8] sm:$0xff]
          %v5899 = vld [vmem:[#allocation14 + $0xcf0] sm:$0xff]
          %v5900 = vld [vmem:[#allocation14 + $0xcf8] sm:$0xff]
          %v5901 = vld [vmem:[#allocation14 + $0xd00] sm:$0xff]
          %v5902 = vld [vmem:[#allocation14 + $0xd08] sm:$0xff]
          %v5903 = vld [vmem:[#allocation14 + $0xd10] sm:$0xff]
          %v5904 = vld [vmem:[#allocation14 + $0xd18] sm:$0xff]
          %v5905 = vld [vmem:[#allocation14 + $0xd20] sm:$0xff]
          %v5906 = vld [vmem:[#allocation14 + $0xd28] sm:$0xff]
          %v5907 = vld [vmem:[#allocation14 + $0xd30] sm:$0xff]
          %v5908 = vld [vmem:[#allocation14 + $0xd38] sm:$0xff]
          %v5909 = vld [vmem:[#allocation14 + $0xd40] sm:$0xff]
          %v5910 = vld [vmem:[#allocation14 + $0xd48] sm:$0xff]
          %v5911 = vld [vmem:[#allocation14 + $0xd50] sm:$0xff]
          %v5912 = vld [vmem:[#allocation14 + $0xd58] sm:$0xff]
          %v5913 = vld [vmem:[#allocation14 + $0xd60] sm:$0xff]
          %v5914 = vld [vmem:[#allocation14 + $0xd68] sm:$0xff]
          %v5915 = vld [vmem:[#allocation14 + $0xd70] sm:$0xff]
          %v5916 = vld [vmem:[#allocation14 + $0xd78] sm:$0xff]
          %v5917 = vld [vmem:[#allocation14 + $0xd80] sm:$0xff]
          %v5918 = vld [vmem:[#allocation14 + $0xd88] sm:$0xff]
          %v5919 = vld [vmem:[#allocation14 + $0xd90] sm:$0xff]
          %v5920 = vld [vmem:[#allocation14 + $0xd98] sm:$0xff]
          %v5921 = vld [vmem:[#allocation14 + $0xda0] sm:$0xff]
          %v5922 = vld [vmem:[#allocation14 + $0xda8] sm:$0xff]
          %v5923 = vld [vmem:[#allocation14 + $0xdb0] sm:$0xff]
          %v5924 = vld [vmem:[#allocation14 + $0xdb8] sm:$0xff]
          %v5925 = vld [vmem:[#allocation14 + $0xdc0] sm:$0xff]
          %v5926 = vld [vmem:[#allocation14 + $0xdc8] sm:$0xff]
          %v5927 = vld [vmem:[#allocation14 + $0xdd0] sm:$0xff]
          %v5928 = vld [vmem:[#allocation14 + $0xdd8] sm:$0xff]
          %v5929 = vld [vmem:[#allocation14 + $0xde0] sm:$0xff]
          %v5930 = vld [vmem:[#allocation14 + $0xde8] sm:$0xff]
          %v5931 = vld [vmem:[#allocation14 + $0xdf0] sm:$0xff]
          %v5932 = vld [vmem:[#allocation14 + $0xdf8] sm:$0xff]
          %v5933 = vld [vmem:[#allocation14 + $0xe00] sm:$0xff]
          %v5934 = vld [vmem:[#allocation14 + $0xe08] sm:$0xff]
          %v5935 = vld [vmem:[#allocation14 + $0xe10] sm:$0xff]
          %v5936 = vld [vmem:[#allocation14 + $0xe18] sm:$0xff]
          %v5937 = vld [vmem:[#allocation14 + $0xe20] sm:$0xff]
          %v5938 = vld [vmem:[#allocation14 + $0xe28] sm:$0xff]
          %v5939 = vld [vmem:[#allocation14 + $0xe30] sm:$0xff]
          %v5940 = vld [vmem:[#allocation14 + $0xe38] sm:$0xff]
          %v5941 = vld [vmem:[#allocation14 + $0xe40] sm:$0xff]
          %v5942 = vld [vmem:[#allocation14 + $0xe48] sm:$0xff]
          %v5943 = vld [vmem:[#allocation14 + $0xe50] sm:$0xff]
          %v5944 = vld [vmem:[#allocation14 + $0xe58] sm:$0xff]
          %v5945 = vld [vmem:[#allocation14 + $0xe60] sm:$0xff]
          %v5946 = vld [vmem:[#allocation14 + $0xe68] sm:$0xff]
          %v5947 = vld [vmem:[#allocation14 + $0xe70] sm:$0xff]
          %v5948 = vld [vmem:[#allocation14 + $0xe78] sm:$0xff]
          %v5949 = vld [vmem:[#allocation14 + $0xe80] sm:$0xff]
          %v5950 = vld [vmem:[#allocation14 + $0xe88] sm:$0xff]
          %v5951 = vld [vmem:[#allocation14 + $0xe90] sm:$0xff]
          %v5952 = vld [vmem:[#allocation14 + $0xe98] sm:$0xff]
          %v5953 = vld [vmem:[#allocation14 + $0xea0] sm:$0xff]
          %v5954 = vld [vmem:[#allocation14 + $0xea8] sm:$0xff]
          %v5955 = vld [vmem:[#allocation14 + $0xeb0] sm:$0xff]
          %v5956 = vld [vmem:[#allocation14 + $0xeb8] sm:$0xff]
          %v5957 = vld [vmem:[#allocation14 + $0xec0] sm:$0xff]
          %v5958 = vld [vmem:[#allocation14 + $0xec8] sm:$0xff]
          %v5959 = vld [vmem:[#allocation14 + $0xed0] sm:$0xff]
          %v5960 = vld [vmem:[#allocation14 + $0xed8] sm:$0xff]
          %v5961 = vld [vmem:[#allocation14 + $0xee0] sm:$0xff]
          %v5962 = vld [vmem:[#allocation14 + $0xee8] sm:$0xff]
          %v5963 = vld [vmem:[#allocation14 + $0xef0] sm:$0xff]
          %v5964 = vld [vmem:[#allocation14 + $0xef8] sm:$0xff]
          %v5965 = vld [vmem:[#allocation14 + $0xf00] sm:$0xff]
          %v5966 = vld [vmem:[#allocation14 + $0xf08] sm:$0xff]
          %v5967 = vld [vmem:[#allocation14 + $0xf10] sm:$0xff]
          %v5968 = vld [vmem:[#allocation14 + $0xf18] sm:$0xff]
          %v5969 = vld [vmem:[#allocation14 + $0xf20] sm:$0xff]
          %v5970 = vld [vmem:[#allocation14 + $0xf28] sm:$0xff]
          %v5971 = vld [vmem:[#allocation14 + $0xf30] sm:$0xff]
          %v5972 = vld [vmem:[#allocation14 + $0xf38] sm:$0xff]
          %v5973 = vld [vmem:[#allocation14 + $0xf40] sm:$0xff]
          %v5974 = vld [vmem:[#allocation14 + $0xf48] sm:$0xff]
          %v5975 = vld [vmem:[#allocation14 + $0xf50] sm:$0xff]
          %v5976 = vld [vmem:[#allocation14 + $0xf58] sm:$0xff]
          %v5977 = vld [vmem:[#allocation14 + $0xf60] sm:$0xff]
          %v5978 = vld [vmem:[#allocation14 + $0xf68] sm:$0xff]
          %v5979 = vld [vmem:[#allocation14 + $0xf70] sm:$0xff]
          %v5980 = vld [vmem:[#allocation14 + $0xf78] sm:$0xff]
          %v5981 = vld [vmem:[#allocation14 + $0xf80] sm:$0xff]
          %v5982 = vld [vmem:[#allocation14 + $0xf88] sm:$0xff]
          %v5983 = vld [vmem:[#allocation14 + $0xf90] sm:$0xff]
          %v5984 = vld [vmem:[#allocation14 + $0xf98] sm:$0xff]
          %v5985 = vld [vmem:[#allocation14 + $0xfa0] sm:$0xff]
          %v5986 = vld [vmem:[#allocation14 + $0xfa8] sm:$0xff]
          %v5987 = vld [vmem:[#allocation14 + $0xfb0] sm:$0xff]
          %v5988 = vld [vmem:[#allocation14 + $0xfb8] sm:$0xff]
          %v5989 = vld [vmem:[#allocation14 + $0xfc0] sm:$0xff]
          %v5990 = vld [vmem:[#allocation14 + $0xfc8] sm:$0xff]
          %v5991 = vld [vmem:[#allocation14 + $0xfd0] sm:$0xff]
          %v5992 = vld [vmem:[#allocation14 + $0xfd8] sm:$0xff]
          %v5993 = vld [vmem:[#allocation14 + $0xfe0] sm:$0xff]
          %v5994 = vld [vmem:[#allocation14 + $0xfe8] sm:$0xff]
          %v5995 = vld [vmem:[#allocation14 + $0xff0] sm:$0xff]
          %v5996 = vld [vmem:[#allocation14 + $0xff8] sm:$0xff]
          %v5997 = vld [vmem:[#allocation16] sm:$0xff]
          %v5999 = vlaneseq
          %v6000 = vshrl.u32 %v5999, 7
          %v6001 = vsub.s32 0, %v6000
          %v6002 = vrot.slane %v5997, %v6001
          %v6003 = vlaneseq
          %v6004 = vshrl.u32 %v6003, 7
          %v6005 = vsub.s32 1, %v6004
          %v6006 = vrot.slane %v5997, %v6005
          %v6007 = vlaneseq
          %v6008 = vshrl.u32 %v6007, 7
          %v6009 = vsub.s32 2, %v6008
          %v6010 = vrot.slane %v5997, %v6009
          %v6011 = vlaneseq
          %v6012 = vshrl.u32 %v6011, 7
          %v6013 = vsub.s32 3, %v6012
          %v6014 = vrot.slane %v5997, %v6013
          %v6015 = vlaneseq
          %v6016 = vshrl.u32 %v6015, 7
          %v6017 = vsub.s32 4, %v6016
          %v6018 = vrot.slane %v5997, %v6017
          %v6019 = vlaneseq
          %v6020 = vshrl.u32 %v6019, 7
          %v6021 = vsub.s32 5, %v6020
          %v6022 = vrot.slane %v5997, %v6021
          %v6023 = vlaneseq
          %v6024 = vshrl.u32 %v6023, 7
          %v6025 = vsub.s32 6, %v6024
          %v6026 = vrot.slane %v5997, %v6025
          %v6027 = vlaneseq
          %v6028 = vshrl.u32 %v6027, 7
          %v6029 = vsub.s32 7, %v6028
          %v6030 = vrot.slane %v5997, %v6029
          %v6551 = vunpack.c.l.b16 %v5485
          %v6552 = vunpack.c.h.b16 %v5485
          %v6553 = vunpack.c.l.b16 %v5486
          %v6554 = vunpack.c.h.b16 %v5486
          %v6555 = vunpack.c.l.b16 %v5487
          %v6556 = vunpack.c.h.b16 %v5487
          %v6557 = vunpack.c.l.b16 %v5488
          %v6558 = vunpack.c.h.b16 %v5488
          %v6559 = vunpack.c.l.b16 %v5489
          %v6560 = vunpack.c.h.b16 %v5489
          %v6561 = vunpack.c.l.b16 %v5490
          %v6562 = vunpack.c.h.b16 %v5490
          %v6563 = vunpack.c.l.b16 %v5491
          %v6564 = vunpack.c.h.b16 %v5491
          %v6565 = vunpack.c.l.b16 %v5492
          %v6566 = vunpack.c.h.b16 %v5492
          %v6567 = vunpack.c.l.b16 %v5493
          %v6568 = vunpack.c.h.b16 %v5493
          %v6569 = vunpack.c.l.b16 %v5494
          %v6570 = vunpack.c.h.b16 %v5494
          %v6571 = vunpack.c.l.b16 %v5495
          %v6572 = vunpack.c.h.b16 %v5495
          %v6573 = vunpack.c.l.b16 %v5496
          %v6574 = vunpack.c.h.b16 %v5496
          %v6575 = vunpack.c.l.b16 %v5497
          %v6576 = vunpack.c.h.b16 %v5497
          %v6577 = vunpack.c.l.b16 %v5498
          %v6578 = vunpack.c.h.b16 %v5498
          %v6579 = vunpack.c.l.b16 %v5499
          %v6580 = vunpack.c.h.b16 %v5499
          %v6581 = vunpack.c.l.b16 %v5500
          %v6582 = vunpack.c.h.b16 %v5500
          %v6583 = vunpack.c.l.b16 %v5501
          %v6584 = vunpack.c.h.b16 %v5501
          %v6585 = vunpack.c.l.b16 %v5502
          %v6586 = vunpack.c.h.b16 %v5502
          %v6587 = vunpack.c.l.b16 %v5503
          %v6588 = vunpack.c.h.b16 %v5503
          %v6589 = vunpack.c.l.b16 %v5504
          %v6590 = vunpack.c.h.b16 %v5504
          %v6591 = vunpack.c.l.b16 %v5505
          %v6592 = vunpack.c.h.b16 %v5505
          %v6593 = vunpack.c.l.b16 %v5506
          %v6594 = vunpack.c.h.b16 %v5506
          %v6595 = vunpack.c.l.b16 %v5507
          %v6596 = vunpack.c.h.b16 %v5507
          %v6597 = vunpack.c.l.b16 %v5508
          %v6598 = vunpack.c.h.b16 %v5508
          %v6599 = vunpack.c.l.b16 %v5509
          %v6600 = vunpack.c.h.b16 %v5509
          %v6601 = vunpack.c.l.b16 %v5510
          %v6602 = vunpack.c.h.b16 %v5510
          %v6603 = vunpack.c.l.b16 %v5511
          %v6604 = vunpack.c.h.b16 %v5511
          %v6605 = vunpack.c.l.b16 %v5512
          %v6606 = vunpack.c.h.b16 %v5512
          %v6607 = vunpack.c.l.b16 %v5513
          %v6608 = vunpack.c.h.b16 %v5513
          %v6609 = vunpack.c.l.b16 %v5514
          %v6610 = vunpack.c.h.b16 %v5514
          %v6611 = vunpack.c.l.b16 %v5515
          %v6612 = vunpack.c.h.b16 %v5515
          %v6613 = vunpack.c.l.b16 %v5516
          %v6614 = vunpack.c.h.b16 %v5516
          %v6615 = vunpack.c.l.b16 %v5517
          %v6616 = vunpack.c.h.b16 %v5517
          %v6617 = vunpack.c.l.b16 %v5518
          %v6618 = vunpack.c.h.b16 %v5518
          %v6619 = vunpack.c.l.b16 %v5519
          %v6620 = vunpack.c.h.b16 %v5519
          %v6621 = vunpack.c.l.b16 %v5520
          %v6622 = vunpack.c.h.b16 %v5520
          %v6623 = vunpack.c.l.b16 %v5521
          %v6624 = vunpack.c.h.b16 %v5521
          %v6625 = vunpack.c.l.b16 %v5522
          %v6626 = vunpack.c.h.b16 %v5522
          %v6627 = vunpack.c.l.b16 %v5523
          %v6628 = vunpack.c.h.b16 %v5523
          %v6629 = vunpack.c.l.b16 %v5524
          %v6630 = vunpack.c.h.b16 %v5524
          %v6631 = vunpack.c.l.b16 %v5525
          %v6632 = vunpack.c.h.b16 %v5525
          %v6633 = vunpack.c.l.b16 %v5526
          %v6634 = vunpack.c.h.b16 %v5526
          %v6635 = vunpack.c.l.b16 %v5527
          %v6636 = vunpack.c.h.b16 %v5527
          %v6637 = vunpack.c.l.b16 %v5528
          %v6638 = vunpack.c.h.b16 %v5528
          %v6639 = vunpack.c.l.b16 %v5529
          %v6640 = vunpack.c.h.b16 %v5529
          %v6641 = vunpack.c.l.b16 %v5530
          %v6642 = vunpack.c.h.b16 %v5530
          %v6643 = vunpack.c.l.b16 %v5531
          %v6644 = vunpack.c.h.b16 %v5531
          %v6645 = vunpack.c.l.b16 %v5532
          %v6646 = vunpack.c.h.b16 %v5532
          %v6647 = vunpack.c.l.b16 %v5533
          %v6648 = vunpack.c.h.b16 %v5533
          %v6649 = vunpack.c.l.b16 %v5534
          %v6650 = vunpack.c.h.b16 %v5534
          %v6651 = vunpack.c.l.b16 %v5535
          %v6652 = vunpack.c.h.b16 %v5535
          %v6653 = vunpack.c.l.b16 %v5536
          %v6654 = vunpack.c.h.b16 %v5536
          %v6655 = vunpack.c.l.b16 %v5537
          %v6656 = vunpack.c.h.b16 %v5537
          %v6657 = vunpack.c.l.b16 %v5538
          %v6658 = vunpack.c.h.b16 %v5538
          %v6659 = vunpack.c.l.b16 %v5539
          %v6660 = vunpack.c.h.b16 %v5539
          %v6661 = vunpack.c.l.b16 %v5540
          %v6662 = vunpack.c.h.b16 %v5540
          %v6663 = vunpack.c.l.b16 %v5541
          %v6664 = vunpack.c.h.b16 %v5541
          %v6665 = vunpack.c.l.b16 %v5542
          %v6666 = vunpack.c.h.b16 %v5542
          %v6667 = vunpack.c.l.b16 %v5543
          %v6668 = vunpack.c.h.b16 %v5543
          %v6669 = vunpack.c.l.b16 %v5544
          %v6670 = vunpack.c.h.b16 %v5544
          %v6671 = vunpack.c.l.b16 %v5545
          %v6672 = vunpack.c.h.b16 %v5545
          %v6673 = vunpack.c.l.b16 %v5546
          %v6674 = vunpack.c.h.b16 %v5546
          %v6675 = vunpack.c.l.b16 %v5547
          %v6676 = vunpack.c.h.b16 %v5547
          %v6677 = vunpack.c.l.b16 %v5548
          %v6678 = vunpack.c.h.b16 %v5548
          %v6679 = vunpack.c.l.b16 %v5549
          %v6680 = vunpack.c.h.b16 %v5549
          %v6681 = vunpack.c.l.b16 %v5550
          %v6682 = vunpack.c.h.b16 %v5550
          %v6683 = vunpack.c.l.b16 %v5551
          %v6684 = vunpack.c.h.b16 %v5551
          %v6685 = vunpack.c.l.b16 %v5552
          %v6686 = vunpack.c.h.b16 %v5552
          %v6687 = vunpack.c.l.b16 %v5553
          %v6688 = vunpack.c.h.b16 %v5553
          %v6689 = vunpack.c.l.b16 %v5554
          %v6690 = vunpack.c.h.b16 %v5554
          %v6691 = vunpack.c.l.b16 %v5555
          %v6692 = vunpack.c.h.b16 %v5555
          %v6693 = vunpack.c.l.b16 %v5556
          %v6694 = vunpack.c.h.b16 %v5556
          %v6695 = vunpack.c.l.b16 %v5557
          %v6696 = vunpack.c.h.b16 %v5557
          %v6697 = vunpack.c.l.b16 %v5558
          %v6698 = vunpack.c.h.b16 %v5558
          %v6699 = vunpack.c.l.b16 %v5559
          %v6700 = vunpack.c.h.b16 %v5559
          %v6701 = vunpack.c.l.b16 %v5560
          %v6702 = vunpack.c.h.b16 %v5560
          %v6703 = vunpack.c.l.b16 %v5561
          %v6704 = vunpack.c.h.b16 %v5561
          %v6705 = vunpack.c.l.b16 %v5562
          %v6706 = vunpack.c.h.b16 %v5562
          %v6707 = vunpack.c.l.b16 %v5563
          %v6708 = vunpack.c.h.b16 %v5563
          %v6709 = vunpack.c.l.b16 %v5564
          %v6710 = vunpack.c.h.b16 %v5564
          %v6711 = vunpack.c.l.b16 %v5565
          %v6712 = vunpack.c.h.b16 %v5565
          %v6713 = vunpack.c.l.b16 %v5566
          %v6714 = vunpack.c.h.b16 %v5566
          %v6715 = vunpack.c.l.b16 %v5567
          %v6716 = vunpack.c.h.b16 %v5567
          %v6717 = vunpack.c.l.b16 %v5568
          %v6718 = vunpack.c.h.b16 %v5568
          %v6719 = vunpack.c.l.b16 %v5569
          %v6720 = vunpack.c.h.b16 %v5569
          %v6721 = vunpack.c.l.b16 %v5570
          %v6722 = vunpack.c.h.b16 %v5570
          %v6723 = vunpack.c.l.b16 %v5571
          %v6724 = vunpack.c.h.b16 %v5571
          %v6725 = vunpack.c.l.b16 %v5572
          %v6726 = vunpack.c.h.b16 %v5572
          %v6727 = vunpack.c.l.b16 %v5573
          %v6728 = vunpack.c.h.b16 %v5573
          %v6729 = vunpack.c.l.b16 %v5574
          %v6730 = vunpack.c.h.b16 %v5574
          %v6731 = vunpack.c.l.b16 %v5575
          %v6732 = vunpack.c.h.b16 %v5575
          %v6733 = vunpack.c.l.b16 %v5576
          %v6734 = vunpack.c.h.b16 %v5576
          %v6735 = vunpack.c.l.b16 %v5577
          %v6736 = vunpack.c.h.b16 %v5577
          %v6737 = vunpack.c.l.b16 %v5578
          %v6738 = vunpack.c.h.b16 %v5578
          %v6739 = vunpack.c.l.b16 %v5579
          %v6740 = vunpack.c.h.b16 %v5579
          %v6741 = vunpack.c.l.b16 %v5580
          %v6742 = vunpack.c.h.b16 %v5580
          %v6743 = vunpack.c.l.b16 %v5581
          %v6744 = vunpack.c.h.b16 %v5581
          %v6745 = vunpack.c.l.b16 %v5582
          %v6746 = vunpack.c.h.b16 %v5582
          %v6747 = vunpack.c.l.b16 %v5583
          %v6748 = vunpack.c.h.b16 %v5583
          %v6749 = vunpack.c.l.b16 %v5584
          %v6750 = vunpack.c.h.b16 %v5584
          %v6751 = vunpack.c.l.b16 %v5585
          %v6752 = vunpack.c.h.b16 %v5585
          %v6753 = vunpack.c.l.b16 %v5586
          %v6754 = vunpack.c.h.b16 %v5586
          %v6755 = vunpack.c.l.b16 %v5587
          %v6756 = vunpack.c.h.b16 %v5587
          %v6757 = vunpack.c.l.b16 %v5588
          %v6758 = vunpack.c.h.b16 %v5588
          %v6759 = vunpack.c.l.b16 %v5589
          %v6760 = vunpack.c.h.b16 %v5589
          %v6761 = vunpack.c.l.b16 %v5590
          %v6762 = vunpack.c.h.b16 %v5590
          %v6763 = vunpack.c.l.b16 %v5591
          %v6764 = vunpack.c.h.b16 %v5591
          %v6765 = vunpack.c.l.b16 %v5592
          %v6766 = vunpack.c.h.b16 %v5592
          %v6767 = vunpack.c.l.b16 %v5593
          %v6768 = vunpack.c.h.b16 %v5593
          %v6769 = vunpack.c.l.b16 %v5594
          %v6770 = vunpack.c.h.b16 %v5594
          %v6771 = vunpack.c.l.b16 %v5595
          %v6772 = vunpack.c.h.b16 %v5595
          %v6773 = vunpack.c.l.b16 %v5596
          %v6774 = vunpack.c.h.b16 %v5596
          %v6775 = vunpack.c.l.b16 %v5597
          %v6776 = vunpack.c.h.b16 %v5597
          %v6777 = vunpack.c.l.b16 %v5598
          %v6778 = vunpack.c.h.b16 %v5598
          %v6779 = vunpack.c.l.b16 %v5599
          %v6780 = vunpack.c.h.b16 %v5599
          %v6781 = vunpack.c.l.b16 %v5600
          %v6782 = vunpack.c.h.b16 %v5600
          %v6783 = vunpack.c.l.b16 %v5601
          %v6784 = vunpack.c.h.b16 %v5601
          %v6785 = vunpack.c.l.b16 %v5602
          %v6786 = vunpack.c.h.b16 %v5602
          %v6787 = vunpack.c.l.b16 %v5603
          %v6788 = vunpack.c.h.b16 %v5603
          %v6789 = vunpack.c.l.b16 %v5604
          %v6790 = vunpack.c.h.b16 %v5604
          %v6791 = vunpack.c.l.b16 %v5605
          %v6792 = vunpack.c.h.b16 %v5605
          %v6793 = vunpack.c.l.b16 %v5606
          %v6794 = vunpack.c.h.b16 %v5606
          %v6795 = vunpack.c.l.b16 %v5607
          %v6796 = vunpack.c.h.b16 %v5607
          %v6797 = vunpack.c.l.b16 %v5608
          %v6798 = vunpack.c.h.b16 %v5608
          %v6799 = vunpack.c.l.b16 %v5609
          %v6800 = vunpack.c.h.b16 %v5609
          %v6801 = vunpack.c.l.b16 %v5610
          %v6802 = vunpack.c.h.b16 %v5610
          %v6803 = vunpack.c.l.b16 %v5611
          %v6804 = vunpack.c.h.b16 %v5611
          %v6805 = vunpack.c.l.b16 %v5612
          %v6806 = vunpack.c.h.b16 %v5612
          %v6807 = vunpack.c.l.b16 %v5613
          %v6808 = vunpack.c.h.b16 %v5613
          %v6809 = vunpack.c.l.b16 %v5614
          %v6810 = vunpack.c.h.b16 %v5614
          %v6811 = vunpack.c.l.b16 %v5615
          %v6812 = vunpack.c.h.b16 %v5615
          %v6813 = vunpack.c.l.b16 %v5616
          %v6814 = vunpack.c.h.b16 %v5616
          %v6815 = vunpack.c.l.b16 %v5617
          %v6816 = vunpack.c.h.b16 %v5617
          %v6817 = vunpack.c.l.b16 %v5618
          %v6818 = vunpack.c.h.b16 %v5618
          %v6819 = vunpack.c.l.b16 %v5619
          %v6820 = vunpack.c.h.b16 %v5619
          %v6821 = vunpack.c.l.b16 %v5620
          %v6822 = vunpack.c.h.b16 %v5620
          %v6823 = vunpack.c.l.b16 %v5621
          %v6824 = vunpack.c.h.b16 %v5621
          %v6825 = vunpack.c.l.b16 %v5622
          %v6826 = vunpack.c.h.b16 %v5622
          %v6827 = vunpack.c.l.b16 %v5623
          %v6828 = vunpack.c.h.b16 %v5623
          %v6829 = vunpack.c.l.b16 %v5624
          %v6830 = vunpack.c.h.b16 %v5624
          %v6831 = vunpack.c.l.b16 %v5625
          %v6832 = vunpack.c.h.b16 %v5625
          %v6833 = vunpack.c.l.b16 %v5626
          %v6834 = vunpack.c.h.b16 %v5626
          %v6835 = vunpack.c.l.b16 %v5627
          %v6836 = vunpack.c.h.b16 %v5627
          %v6837 = vunpack.c.l.b16 %v5628
          %v6838 = vunpack.c.h.b16 %v5628
          %v6839 = vunpack.c.l.b16 %v5629
          %v6840 = vunpack.c.h.b16 %v5629
          %v6841 = vunpack.c.l.b16 %v5630
          %v6842 = vunpack.c.h.b16 %v5630
          %v6843 = vunpack.c.l.b16 %v5631
          %v6844 = vunpack.c.h.b16 %v5631
          %v6845 = vunpack.c.l.b16 %v5632
          %v6846 = vunpack.c.h.b16 %v5632
          %v6847 = vunpack.c.l.b16 %v5633
          %v6848 = vunpack.c.h.b16 %v5633
          %v6849 = vunpack.c.l.b16 %v5634
          %v6850 = vunpack.c.h.b16 %v5634
          %v6851 = vunpack.c.l.b16 %v5635
          %v6852 = vunpack.c.h.b16 %v5635
          %v6853 = vunpack.c.l.b16 %v5636
          %v6854 = vunpack.c.h.b16 %v5636
          %v6855 = vunpack.c.l.b16 %v5637
          %v6856 = vunpack.c.h.b16 %v5637
          %v6857 = vunpack.c.l.b16 %v5638
          %v6858 = vunpack.c.h.b16 %v5638
          %v6859 = vunpack.c.l.b16 %v5639
          %v6860 = vunpack.c.h.b16 %v5639
          %v6861 = vunpack.c.l.b16 %v5640
          %v6862 = vunpack.c.h.b16 %v5640
          %v6863 = vunpack.c.l.b16 %v5641
          %v6864 = vunpack.c.h.b16 %v5641
          %v6865 = vunpack.c.l.b16 %v5642
          %v6866 = vunpack.c.h.b16 %v5642
          %v6867 = vunpack.c.l.b16 %v5643
          %v6868 = vunpack.c.h.b16 %v5643
          %v6869 = vunpack.c.l.b16 %v5644
          %v6870 = vunpack.c.h.b16 %v5644
          %v6871 = vunpack.c.l.b16 %v5645
          %v6872 = vunpack.c.h.b16 %v5645
          %v6873 = vunpack.c.l.b16 %v5646
          %v6874 = vunpack.c.h.b16 %v5646
          %v6875 = vunpack.c.l.b16 %v5647
          %v6876 = vunpack.c.h.b16 %v5647
          %v6877 = vunpack.c.l.b16 %v5648
          %v6878 = vunpack.c.h.b16 %v5648
          %v6879 = vunpack.c.l.b16 %v5649
          %v6880 = vunpack.c.h.b16 %v5649
          %v6881 = vunpack.c.l.b16 %v5650
          %v6882 = vunpack.c.h.b16 %v5650
          %v6883 = vunpack.c.l.b16 %v5651
          %v6884 = vunpack.c.h.b16 %v5651
          %v6885 = vunpack.c.l.b16 %v5652
          %v6886 = vunpack.c.h.b16 %v5652
          %v6887 = vunpack.c.l.b16 %v5653
          %v6888 = vunpack.c.h.b16 %v5653
          %v6889 = vunpack.c.l.b16 %v5654
          %v6890 = vunpack.c.h.b16 %v5654
          %v6891 = vunpack.c.l.b16 %v5655
          %v6892 = vunpack.c.h.b16 %v5655
          %v6893 = vunpack.c.l.b16 %v5656
          %v6894 = vunpack.c.h.b16 %v5656
          %v6895 = vunpack.c.l.b16 %v5657
          %v6896 = vunpack.c.h.b16 %v5657
          %v6897 = vunpack.c.l.b16 %v5658
          %v6898 = vunpack.c.h.b16 %v5658
          %v6899 = vunpack.c.l.b16 %v5659
          %v6900 = vunpack.c.h.b16 %v5659
          %v6901 = vunpack.c.l.b16 %v5660
          %v6902 = vunpack.c.h.b16 %v5660
          %v6903 = vunpack.c.l.b16 %v5661
          %v6904 = vunpack.c.h.b16 %v5661
          %v6905 = vunpack.c.l.b16 %v5662
          %v6906 = vunpack.c.h.b16 %v5662
          %v6907 = vunpack.c.l.b16 %v5663
          %v6908 = vunpack.c.h.b16 %v5663
          %v6909 = vunpack.c.l.b16 %v5664
          %v6910 = vunpack.c.h.b16 %v5664
          %v6911 = vunpack.c.l.b16 %v5665
          %v6912 = vunpack.c.h.b16 %v5665
          %v6913 = vunpack.c.l.b16 %v5666
          %v6914 = vunpack.c.h.b16 %v5666
          %v6915 = vunpack.c.l.b16 %v5667
          %v6916 = vunpack.c.h.b16 %v5667
          %v6917 = vunpack.c.l.b16 %v5668
          %v6918 = vunpack.c.h.b16 %v5668
          %v6919 = vunpack.c.l.b16 %v5669
          %v6920 = vunpack.c.h.b16 %v5669
          %v6921 = vunpack.c.l.b16 %v5670
          %v6922 = vunpack.c.h.b16 %v5670
          %v6923 = vunpack.c.l.b16 %v5671
          %v6924 = vunpack.c.h.b16 %v5671
          %v6925 = vunpack.c.l.b16 %v5672
          %v6926 = vunpack.c.h.b16 %v5672
          %v6927 = vunpack.c.l.b16 %v5673
          %v6928 = vunpack.c.h.b16 %v5673
          %v6929 = vunpack.c.l.b16 %v5674
          %v6930 = vunpack.c.h.b16 %v5674
          %v6931 = vunpack.c.l.b16 %v5675
          %v6932 = vunpack.c.h.b16 %v5675
          %v6933 = vunpack.c.l.b16 %v5676
          %v6934 = vunpack.c.h.b16 %v5676
          %v6935 = vunpack.c.l.b16 %v5677
          %v6936 = vunpack.c.h.b16 %v5677
          %v6937 = vunpack.c.l.b16 %v5678
          %v6938 = vunpack.c.h.b16 %v5678
          %v6939 = vunpack.c.l.b16 %v5679
          %v6940 = vunpack.c.h.b16 %v5679
          %v6941 = vunpack.c.l.b16 %v5680
          %v6942 = vunpack.c.h.b16 %v5680
          %v6943 = vunpack.c.l.b16 %v5681
          %v6944 = vunpack.c.h.b16 %v5681
          %v6945 = vunpack.c.l.b16 %v5682
          %v6946 = vunpack.c.h.b16 %v5682
          %v6947 = vunpack.c.l.b16 %v5683
          %v6948 = vunpack.c.h.b16 %v5683
          %v6949 = vunpack.c.l.b16 %v5684
          %v6950 = vunpack.c.h.b16 %v5684
          %v6951 = vunpack.c.l.b16 %v5685
          %v6952 = vunpack.c.h.b16 %v5685
          %v6953 = vunpack.c.l.b16 %v5686
          %v6954 = vunpack.c.h.b16 %v5686
          %v6955 = vunpack.c.l.b16 %v5687
          %v6956 = vunpack.c.h.b16 %v5687
          %v6957 = vunpack.c.l.b16 %v5688
          %v6958 = vunpack.c.h.b16 %v5688
          %v6959 = vunpack.c.l.b16 %v5689
          %v6960 = vunpack.c.h.b16 %v5689
          %v6961 = vunpack.c.l.b16 %v5690
          %v6962 = vunpack.c.h.b16 %v5690
          %v6963 = vunpack.c.l.b16 %v5691
          %v6964 = vunpack.c.h.b16 %v5691
          %v6965 = vunpack.c.l.b16 %v5692
          %v6966 = vunpack.c.h.b16 %v5692
          %v6967 = vunpack.c.l.b16 %v5693
          %v6968 = vunpack.c.h.b16 %v5693
          %v6969 = vunpack.c.l.b16 %v5694
          %v6970 = vunpack.c.h.b16 %v5694
          %v6971 = vunpack.c.l.b16 %v5695
          %v6972 = vunpack.c.h.b16 %v5695
          %v6973 = vunpack.c.l.b16 %v5696
          %v6974 = vunpack.c.h.b16 %v5696
          %v6975 = vunpack.c.l.b16 %v5697
          %v6976 = vunpack.c.h.b16 %v5697
          %v6977 = vunpack.c.l.b16 %v5698
          %v6978 = vunpack.c.h.b16 %v5698
          %v6979 = vunpack.c.l.b16 %v5699
          %v6980 = vunpack.c.h.b16 %v5699
          %v6981 = vunpack.c.l.b16 %v5700
          %v6982 = vunpack.c.h.b16 %v5700
          %v6983 = vunpack.c.l.b16 %v5701
          %v6984 = vunpack.c.h.b16 %v5701
          %v6985 = vunpack.c.l.b16 %v5702
          %v6986 = vunpack.c.h.b16 %v5702
          %v6987 = vunpack.c.l.b16 %v5703
          %v6988 = vunpack.c.h.b16 %v5703
          %v6989 = vunpack.c.l.b16 %v5704
          %v6990 = vunpack.c.h.b16 %v5704
          %v6991 = vunpack.c.l.b16 %v5705
          %v6992 = vunpack.c.h.b16 %v5705
          %v6993 = vunpack.c.l.b16 %v5706
          %v6994 = vunpack.c.h.b16 %v5706
          %v6995 = vunpack.c.l.b16 %v5707
          %v6996 = vunpack.c.h.b16 %v5707
          %v6997 = vunpack.c.l.b16 %v5708
          %v6998 = vunpack.c.h.b16 %v5708
          %v6999 = vunpack.c.l.b16 %v5709
          %v7000 = vunpack.c.h.b16 %v5709
          %v7001 = vunpack.c.l.b16 %v5710
          %v7002 = vunpack.c.h.b16 %v5710
          %v7003 = vunpack.c.l.b16 %v5711
          %v7004 = vunpack.c.h.b16 %v5711
          %v7005 = vunpack.c.l.b16 %v5712
          %v7006 = vunpack.c.h.b16 %v5712
          %v7007 = vunpack.c.l.b16 %v5713
          %v7008 = vunpack.c.h.b16 %v5713
          %v7009 = vunpack.c.l.b16 %v5714
          %v7010 = vunpack.c.h.b16 %v5714
          %v7011 = vunpack.c.l.b16 %v5715
          %v7012 = vunpack.c.h.b16 %v5715
          %v7013 = vunpack.c.l.b16 %v5716
          %v7014 = vunpack.c.h.b16 %v5716
          %v7015 = vunpack.c.l.b16 %v5717
          %v7016 = vunpack.c.h.b16 %v5717
          %v7017 = vunpack.c.l.b16 %v5718
          %v7018 = vunpack.c.h.b16 %v5718
          %v7019 = vunpack.c.l.b16 %v5719
          %v7020 = vunpack.c.h.b16 %v5719
          %v7021 = vunpack.c.l.b16 %v5720
          %v7022 = vunpack.c.h.b16 %v5720
          %v7023 = vunpack.c.l.b16 %v5721
          %v7024 = vunpack.c.h.b16 %v5721
          %v7025 = vunpack.c.l.b16 %v5722
          %v7026 = vunpack.c.h.b16 %v5722
          %v7027 = vunpack.c.l.b16 %v5723
          %v7028 = vunpack.c.h.b16 %v5723
          %v7029 = vunpack.c.l.b16 %v5724
          %v7030 = vunpack.c.h.b16 %v5724
          %v7031 = vunpack.c.l.b16 %v5725
          %v7032 = vunpack.c.h.b16 %v5725
          %v7033 = vunpack.c.l.b16 %v5726
          %v7034 = vunpack.c.h.b16 %v5726
          %v7035 = vunpack.c.l.b16 %v5727
          %v7036 = vunpack.c.h.b16 %v5727
          %v7037 = vunpack.c.l.b16 %v5728
          %v7038 = vunpack.c.h.b16 %v5728
          %v7039 = vunpack.c.l.b16 %v5729
          %v7040 = vunpack.c.h.b16 %v5729
          %v7041 = vunpack.c.l.b16 %v5730
          %v7042 = vunpack.c.h.b16 %v5730
          %v7043 = vunpack.c.l.b16 %v5731
          %v7044 = vunpack.c.h.b16 %v5731
          %v7045 = vunpack.c.l.b16 %v5732
          %v7046 = vunpack.c.h.b16 %v5732
          %v7047 = vunpack.c.l.b16 %v5733
          %v7048 = vunpack.c.h.b16 %v5733
          %v7049 = vunpack.c.l.b16 %v5734
          %v7050 = vunpack.c.h.b16 %v5734
          %v7051 = vunpack.c.l.b16 %v5735
          %v7052 = vunpack.c.h.b16 %v5735
          %v7053 = vunpack.c.l.b16 %v5736
          %v7054 = vunpack.c.h.b16 %v5736
          %v7055 = vunpack.c.l.b16 %v5737
          %v7056 = vunpack.c.h.b16 %v5737
          %v7057 = vunpack.c.l.b16 %v5738
          %v7058 = vunpack.c.h.b16 %v5738
          %v7059 = vunpack.c.l.b16 %v5739
          %v7060 = vunpack.c.h.b16 %v5739
          %v7061 = vunpack.c.l.b16 %v5740
          %v7062 = vunpack.c.h.b16 %v5740
          %v7063 = vunpack.c.l.b16 %v5741
          %v7064 = vunpack.c.h.b16 %v5741
          %v7065 = vunpack.c.l.b16 %v5742
          %v7066 = vunpack.c.h.b16 %v5742
          %v7067 = vunpack.c.l.b16 %v5743
          %v7068 = vunpack.c.h.b16 %v5743
          %v7069 = vunpack.c.l.b16 %v5744
          %v7070 = vunpack.c.h.b16 %v5744
          %v7071 = vunpack.c.l.b16 %v5745
          %v7072 = vunpack.c.h.b16 %v5745
          %v7073 = vunpack.c.l.b16 %v5746
          %v7074 = vunpack.c.h.b16 %v5746
          %v7075 = vunpack.c.l.b16 %v5747
          %v7076 = vunpack.c.h.b16 %v5747
          %v7077 = vunpack.c.l.b16 %v5748
          %v7078 = vunpack.c.h.b16 %v5748
          %v7079 = vunpack.c.l.b16 %v5749
          %v7080 = vunpack.c.h.b16 %v5749
          %v7081 = vunpack.c.l.b16 %v5750
          %v7082 = vunpack.c.h.b16 %v5750
          %v7083 = vunpack.c.l.b16 %v5751
          %v7084 = vunpack.c.h.b16 %v5751
          %v7085 = vunpack.c.l.b16 %v5752
          %v7086 = vunpack.c.h.b16 %v5752
          %v7087 = vunpack.c.l.b16 %v5753
          %v7088 = vunpack.c.h.b16 %v5753
          %v7089 = vunpack.c.l.b16 %v5754
          %v7090 = vunpack.c.h.b16 %v5754
          %v7091 = vunpack.c.l.b16 %v5755
          %v7092 = vunpack.c.h.b16 %v5755
          %v7093 = vunpack.c.l.b16 %v5756
          %v7094 = vunpack.c.h.b16 %v5756
          %v7095 = vunpack.c.l.b16 %v5757
          %v7096 = vunpack.c.h.b16 %v5757
          %v7097 = vunpack.c.l.b16 %v5758
          %v7098 = vunpack.c.h.b16 %v5758
          %v7099 = vunpack.c.l.b16 %v5759
          %v7100 = vunpack.c.h.b16 %v5759
          %v7101 = vunpack.c.l.b16 %v5760
          %v7102 = vunpack.c.h.b16 %v5760
          %v7103 = vunpack.c.l.b16 %v5761
          %v7104 = vunpack.c.h.b16 %v5761
          %v7105 = vunpack.c.l.b16 %v5762
          %v7106 = vunpack.c.h.b16 %v5762
          %v7107 = vunpack.c.l.b16 %v5763
          %v7108 = vunpack.c.h.b16 %v5763
          %v7109 = vunpack.c.l.b16 %v5764
          %v7110 = vunpack.c.h.b16 %v5764
          %v7111 = vunpack.c.l.b16 %v5765
          %v7112 = vunpack.c.h.b16 %v5765
          %v7113 = vunpack.c.l.b16 %v5766
          %v7114 = vunpack.c.h.b16 %v5766
          %v7115 = vunpack.c.l.b16 %v5767
          %v7116 = vunpack.c.h.b16 %v5767
          %v7117 = vunpack.c.l.b16 %v5768
          %v7118 = vunpack.c.h.b16 %v5768
          %v7119 = vunpack.c.l.b16 %v5769
          %v7120 = vunpack.c.h.b16 %v5769
          %v7121 = vunpack.c.l.b16 %v5770
          %v7122 = vunpack.c.h.b16 %v5770
          %v7123 = vunpack.c.l.b16 %v5771
          %v7124 = vunpack.c.h.b16 %v5771
          %v7125 = vunpack.c.l.b16 %v5772
          %v7126 = vunpack.c.h.b16 %v5772
          %v7127 = vunpack.c.l.b16 %v5773
          %v7128 = vunpack.c.h.b16 %v5773
          %v7129 = vunpack.c.l.b16 %v5774
          %v7130 = vunpack.c.h.b16 %v5774
          %v7131 = vunpack.c.l.b16 %v5775
          %v7132 = vunpack.c.h.b16 %v5775
          %v7133 = vunpack.c.l.b16 %v5776
          %v7134 = vunpack.c.h.b16 %v5776
          %v7135 = vunpack.c.l.b16 %v5777
          %v7136 = vunpack.c.h.b16 %v5777
          %v7137 = vunpack.c.l.b16 %v5778
          %v7138 = vunpack.c.h.b16 %v5778
          %v7139 = vunpack.c.l.b16 %v5779
          %v7140 = vunpack.c.h.b16 %v5779
          %v7141 = vunpack.c.l.b16 %v5780
          %v7142 = vunpack.c.h.b16 %v5780
          %v7143 = vunpack.c.l.b16 %v5781
          %v7144 = vunpack.c.h.b16 %v5781
          %v7145 = vunpack.c.l.b16 %v5782
          %v7146 = vunpack.c.h.b16 %v5782
          %v7147 = vunpack.c.l.b16 %v5783
          %v7148 = vunpack.c.h.b16 %v5783
          %v7149 = vunpack.c.l.b16 %v5784
          %v7150 = vunpack.c.h.b16 %v5784
          %v7151 = vunpack.c.l.b16 %v5785
          %v7152 = vunpack.c.h.b16 %v5785
          %v7153 = vunpack.c.l.b16 %v5786
          %v7154 = vunpack.c.h.b16 %v5786
          %v7155 = vunpack.c.l.b16 %v5787
          %v7156 = vunpack.c.h.b16 %v5787
          %v7157 = vunpack.c.l.b16 %v5788
          %v7158 = vunpack.c.h.b16 %v5788
          %v7159 = vunpack.c.l.b16 %v5789
          %v7160 = vunpack.c.h.b16 %v5789
          %v7161 = vunpack.c.l.b16 %v5790
          %v7162 = vunpack.c.h.b16 %v5790
          %v7163 = vunpack.c.l.b16 %v5791
          %v7164 = vunpack.c.h.b16 %v5791
          %v7165 = vunpack.c.l.b16 %v5792
          %v7166 = vunpack.c.h.b16 %v5792
          %v7167 = vunpack.c.l.b16 %v5793
          %v7168 = vunpack.c.h.b16 %v5793
          %v7169 = vunpack.c.l.b16 %v5794
          %v7170 = vunpack.c.h.b16 %v5794
          %v7171 = vunpack.c.l.b16 %v5795
          %v7172 = vunpack.c.h.b16 %v5795
          %v7173 = vunpack.c.l.b16 %v5796
          %v7174 = vunpack.c.h.b16 %v5796
          %v7175 = vunpack.c.l.b16 %v5797
          %v7176 = vunpack.c.h.b16 %v5797
          %v7177 = vunpack.c.l.b16 %v5798
          %v7178 = vunpack.c.h.b16 %v5798
          %v7179 = vunpack.c.l.b16 %v5799
          %v7180 = vunpack.c.h.b16 %v5799
          %v7181 = vunpack.c.l.b16 %v5800
          %v7182 = vunpack.c.h.b16 %v5800
          %v7183 = vunpack.c.l.b16 %v5801
          %v7184 = vunpack.c.h.b16 %v5801
          %v7185 = vunpack.c.l.b16 %v5802
          %v7186 = vunpack.c.h.b16 %v5802
          %v7187 = vunpack.c.l.b16 %v5803
          %v7188 = vunpack.c.h.b16 %v5803
          %v7189 = vunpack.c.l.b16 %v5804
          %v7190 = vunpack.c.h.b16 %v5804
          %v7191 = vunpack.c.l.b16 %v5805
          %v7192 = vunpack.c.h.b16 %v5805
          %v7193 = vunpack.c.l.b16 %v5806
          %v7194 = vunpack.c.h.b16 %v5806
          %v7195 = vunpack.c.l.b16 %v5807
          %v7196 = vunpack.c.h.b16 %v5807
          %v7197 = vunpack.c.l.b16 %v5808
          %v7198 = vunpack.c.h.b16 %v5808
          %v7199 = vunpack.c.l.b16 %v5809
          %v7200 = vunpack.c.h.b16 %v5809
          %v7201 = vunpack.c.l.b16 %v5810
          %v7202 = vunpack.c.h.b16 %v5810
          %v7203 = vunpack.c.l.b16 %v5811
          %v7204 = vunpack.c.h.b16 %v5811
          %v7205 = vunpack.c.l.b16 %v5812
          %v7206 = vunpack.c.h.b16 %v5812
          %v7207 = vunpack.c.l.b16 %v5813
          %v7208 = vunpack.c.h.b16 %v5813
          %v7209 = vunpack.c.l.b16 %v5814
          %v7210 = vunpack.c.h.b16 %v5814
          %v7211 = vunpack.c.l.b16 %v5815
          %v7212 = vunpack.c.h.b16 %v5815
          %v7213 = vunpack.c.l.b16 %v5816
          %v7214 = vunpack.c.h.b16 %v5816
          %v7215 = vunpack.c.l.b16 %v5817
          %v7216 = vunpack.c.h.b16 %v5817
          %v7217 = vunpack.c.l.b16 %v5818
          %v7218 = vunpack.c.h.b16 %v5818
          %v7219 = vunpack.c.l.b16 %v5819
          %v7220 = vunpack.c.h.b16 %v5819
          %v7221 = vunpack.c.l.b16 %v5820
          %v7222 = vunpack.c.h.b16 %v5820
          %v7223 = vunpack.c.l.b16 %v5821
          %v7224 = vunpack.c.h.b16 %v5821
          %v7225 = vunpack.c.l.b16 %v5822
          %v7226 = vunpack.c.h.b16 %v5822
          %v7227 = vunpack.c.l.b16 %v5823
          %v7228 = vunpack.c.h.b16 %v5823
          %v7229 = vunpack.c.l.b16 %v5824
          %v7230 = vunpack.c.h.b16 %v5824
          %v7231 = vunpack.c.l.b16 %v5825
          %v7232 = vunpack.c.h.b16 %v5825
          %v7233 = vunpack.c.l.b16 %v5826
          %v7234 = vunpack.c.h.b16 %v5826
          %v7235 = vunpack.c.l.b16 %v5827
          %v7236 = vunpack.c.h.b16 %v5827
          %v7237 = vunpack.c.l.b16 %v5828
          %v7238 = vunpack.c.h.b16 %v5828
          %v7239 = vunpack.c.l.b16 %v5829
          %v7240 = vunpack.c.h.b16 %v5829
          %v7241 = vunpack.c.l.b16 %v5830
          %v7242 = vunpack.c.h.b16 %v5830
          %v7243 = vunpack.c.l.b16 %v5831
          %v7244 = vunpack.c.h.b16 %v5831
          %v7245 = vunpack.c.l.b16 %v5832
          %v7246 = vunpack.c.h.b16 %v5832
          %v7247 = vunpack.c.l.b16 %v5833
          %v7248 = vunpack.c.h.b16 %v5833
          %v7249 = vunpack.c.l.b16 %v5834
          %v7250 = vunpack.c.h.b16 %v5834
          %v7251 = vunpack.c.l.b16 %v5835
          %v7252 = vunpack.c.h.b16 %v5835
          %v7253 = vunpack.c.l.b16 %v5836
          %v7254 = vunpack.c.h.b16 %v5836
          %v7255 = vunpack.c.l.b16 %v5837
          %v7256 = vunpack.c.h.b16 %v5837
          %v7257 = vunpack.c.l.b16 %v5838
          %v7258 = vunpack.c.h.b16 %v5838
          %v7259 = vunpack.c.l.b16 %v5839
          %v7260 = vunpack.c.h.b16 %v5839
          %v7261 = vunpack.c.l.b16 %v5840
          %v7262 = vunpack.c.h.b16 %v5840
          %v7263 = vunpack.c.l.b16 %v5841
          %v7264 = vunpack.c.h.b16 %v5841
          %v7265 = vunpack.c.l.b16 %v5842
          %v7266 = vunpack.c.h.b16 %v5842
          %v7267 = vunpack.c.l.b16 %v5843
          %v7268 = vunpack.c.h.b16 %v5843
          %v7269 = vunpack.c.l.b16 %v5844
          %v7270 = vunpack.c.h.b16 %v5844
          %v7271 = vunpack.c.l.b16 %v5845
          %v7272 = vunpack.c.h.b16 %v5845
          %v7273 = vunpack.c.l.b16 %v5846
          %v7274 = vunpack.c.h.b16 %v5846
          %v7275 = vunpack.c.l.b16 %v5847
          %v7276 = vunpack.c.h.b16 %v5847
          %v7277 = vunpack.c.l.b16 %v5848
          %v7278 = vunpack.c.h.b16 %v5848
          %v7279 = vunpack.c.l.b16 %v5849
          %v7280 = vunpack.c.h.b16 %v5849
          %v7281 = vunpack.c.l.b16 %v5850
          %v7282 = vunpack.c.h.b16 %v5850
          %v7283 = vunpack.c.l.b16 %v5851
          %v7284 = vunpack.c.h.b16 %v5851
          %v7285 = vunpack.c.l.b16 %v5852
          %v7286 = vunpack.c.h.b16 %v5852
          %v7287 = vunpack.c.l.b16 %v5853
          %v7288 = vunpack.c.h.b16 %v5853
          %v7289 = vunpack.c.l.b16 %v5854
          %v7290 = vunpack.c.h.b16 %v5854
          %v7291 = vunpack.c.l.b16 %v5855
          %v7292 = vunpack.c.h.b16 %v5855
          %v7293 = vunpack.c.l.b16 %v5856
          %v7294 = vunpack.c.h.b16 %v5856
          %v7295 = vunpack.c.l.b16 %v5857
          %v7296 = vunpack.c.h.b16 %v5857
          %v7297 = vunpack.c.l.b16 %v5858
          %v7298 = vunpack.c.h.b16 %v5858
          %v7299 = vunpack.c.l.b16 %v5859
          %v7300 = vunpack.c.h.b16 %v5859
          %v7301 = vunpack.c.l.b16 %v5860
          %v7302 = vunpack.c.h.b16 %v5860
          %v7303 = vunpack.c.l.b16 %v5861
          %v7304 = vunpack.c.h.b16 %v5861
          %v7305 = vunpack.c.l.b16 %v5862
          %v7306 = vunpack.c.h.b16 %v5862
          %v7307 = vunpack.c.l.b16 %v5863
          %v7308 = vunpack.c.h.b16 %v5863
          %v7309 = vunpack.c.l.b16 %v5864
          %v7310 = vunpack.c.h.b16 %v5864
          %v7311 = vunpack.c.l.b16 %v5865
          %v7312 = vunpack.c.h.b16 %v5865
          %v7313 = vunpack.c.l.b16 %v5866
          %v7314 = vunpack.c.h.b16 %v5866
          %v7315 = vunpack.c.l.b16 %v5867
          %v7316 = vunpack.c.h.b16 %v5867
          %v7317 = vunpack.c.l.b16 %v5868
          %v7318 = vunpack.c.h.b16 %v5868
          %v7319 = vunpack.c.l.b16 %v5869
          %v7320 = vunpack.c.h.b16 %v5869
          %v7321 = vunpack.c.l.b16 %v5870
          %v7322 = vunpack.c.h.b16 %v5870
          %v7323 = vunpack.c.l.b16 %v5871
          %v7324 = vunpack.c.h.b16 %v5871
          %v7325 = vunpack.c.l.b16 %v5872
          %v7326 = vunpack.c.h.b16 %v5872
          %v7327 = vunpack.c.l.b16 %v5873
          %v7328 = vunpack.c.h.b16 %v5873
          %v7329 = vunpack.c.l.b16 %v5874
          %v7330 = vunpack.c.h.b16 %v5874
          %v7331 = vunpack.c.l.b16 %v5875
          %v7332 = vunpack.c.h.b16 %v5875
          %v7333 = vunpack.c.l.b16 %v5876
          %v7334 = vunpack.c.h.b16 %v5876
          %v7335 = vunpack.c.l.b16 %v5877
          %v7336 = vunpack.c.h.b16 %v5877
          %v7337 = vunpack.c.l.b16 %v5878
          %v7338 = vunpack.c.h.b16 %v5878
          %v7339 = vunpack.c.l.b16 %v5879
          %v7340 = vunpack.c.h.b16 %v5879
          %v7341 = vunpack.c.l.b16 %v5880
          %v7342 = vunpack.c.h.b16 %v5880
          %v7343 = vunpack.c.l.b16 %v5881
          %v7344 = vunpack.c.h.b16 %v5881
          %v7345 = vunpack.c.l.b16 %v5882
          %v7346 = vunpack.c.h.b16 %v5882
          %v7347 = vunpack.c.l.b16 %v5883
          %v7348 = vunpack.c.h.b16 %v5883
          %v7349 = vunpack.c.l.b16 %v5884
          %v7350 = vunpack.c.h.b16 %v5884
          %v7351 = vunpack.c.l.b16 %v5885
          %v7352 = vunpack.c.h.b16 %v5885
          %v7353 = vunpack.c.l.b16 %v5886
          %v7354 = vunpack.c.h.b16 %v5886
          %v7355 = vunpack.c.l.b16 %v5887
          %v7356 = vunpack.c.h.b16 %v5887
          %v7357 = vunpack.c.l.b16 %v5888
          %v7358 = vunpack.c.h.b16 %v5888
          %v7359 = vunpack.c.l.b16 %v5889
          %v7360 = vunpack.c.h.b16 %v5889
          %v7361 = vunpack.c.l.b16 %v5890
          %v7362 = vunpack.c.h.b16 %v5890
          %v7363 = vunpack.c.l.b16 %v5891
          %v7364 = vunpack.c.h.b16 %v5891
          %v7365 = vunpack.c.l.b16 %v5892
          %v7366 = vunpack.c.h.b16 %v5892
          %v7367 = vunpack.c.l.b16 %v5893
          %v7368 = vunpack.c.h.b16 %v5893
          %v7369 = vunpack.c.l.b16 %v5894
          %v7370 = vunpack.c.h.b16 %v5894
          %v7371 = vunpack.c.l.b16 %v5895
          %v7372 = vunpack.c.h.b16 %v5895
          %v7373 = vunpack.c.l.b16 %v5896
          %v7374 = vunpack.c.h.b16 %v5896
          %v7375 = vunpack.c.l.b16 %v5897
          %v7376 = vunpack.c.h.b16 %v5897
          %v7377 = vunpack.c.l.b16 %v5898
          %v7378 = vunpack.c.h.b16 %v5898
          %v7379 = vunpack.c.l.b16 %v5899
          %v7380 = vunpack.c.h.b16 %v5899
          %v7381 = vunpack.c.l.b16 %v5900
          %v7382 = vunpack.c.h.b16 %v5900
          %v7383 = vunpack.c.l.b16 %v5901
          %v7384 = vunpack.c.h.b16 %v5901
          %v7385 = vunpack.c.l.b16 %v5902
          %v7386 = vunpack.c.h.b16 %v5902
          %v7387 = vunpack.c.l.b16 %v5903
          %v7388 = vunpack.c.h.b16 %v5903
          %v7389 = vunpack.c.l.b16 %v5904
          %v7390 = vunpack.c.h.b16 %v5904
          %v7391 = vunpack.c.l.b16 %v5905
          %v7392 = vunpack.c.h.b16 %v5905
          %v7393 = vunpack.c.l.b16 %v5906
          %v7394 = vunpack.c.h.b16 %v5906
          %v7395 = vunpack.c.l.b16 %v5907
          %v7396 = vunpack.c.h.b16 %v5907
          %v7397 = vunpack.c.l.b16 %v5908
          %v7398 = vunpack.c.h.b16 %v5908
          %v7399 = vunpack.c.l.b16 %v5909
          %v7400 = vunpack.c.h.b16 %v5909
          %v7401 = vunpack.c.l.b16 %v5910
          %v7402 = vunpack.c.h.b16 %v5910
          %v7403 = vunpack.c.l.b16 %v5911
          %v7404 = vunpack.c.h.b16 %v5911
          %v7405 = vunpack.c.l.b16 %v5912
          %v7406 = vunpack.c.h.b16 %v5912
          %v7407 = vunpack.c.l.b16 %v5913
          %v7408 = vunpack.c.h.b16 %v5913
          %v7409 = vunpack.c.l.b16 %v5914
          %v7410 = vunpack.c.h.b16 %v5914
          %v7411 = vunpack.c.l.b16 %v5915
          %v7412 = vunpack.c.h.b16 %v5915
          %v7413 = vunpack.c.l.b16 %v5916
          %v7414 = vunpack.c.h.b16 %v5916
          %v7415 = vunpack.c.l.b16 %v5917
          %v7416 = vunpack.c.h.b16 %v5917
          %v7417 = vunpack.c.l.b16 %v5918
          %v7418 = vunpack.c.h.b16 %v5918
          %v7419 = vunpack.c.l.b16 %v5919
          %v7420 = vunpack.c.h.b16 %v5919
          %v7421 = vunpack.c.l.b16 %v5920
          %v7422 = vunpack.c.h.b16 %v5920
          %v7423 = vunpack.c.l.b16 %v5921
          %v7424 = vunpack.c.h.b16 %v5921
          %v7425 = vunpack.c.l.b16 %v5922
          %v7426 = vunpack.c.h.b16 %v5922
          %v7427 = vunpack.c.l.b16 %v5923
          %v7428 = vunpack.c.h.b16 %v5923
          %v7429 = vunpack.c.l.b16 %v5924
          %v7430 = vunpack.c.h.b16 %v5924
          %v7431 = vunpack.c.l.b16 %v5925
          %v7432 = vunpack.c.h.b16 %v5925
          %v7433 = vunpack.c.l.b16 %v5926
          %v7434 = vunpack.c.h.b16 %v5926
          %v7435 = vunpack.c.l.b16 %v5927
          %v7436 = vunpack.c.h.b16 %v5927
          %v7437 = vunpack.c.l.b16 %v5928
          %v7438 = vunpack.c.h.b16 %v5928
          %v7439 = vunpack.c.l.b16 %v5929
          %v7440 = vunpack.c.h.b16 %v5929
          %v7441 = vunpack.c.l.b16 %v5930
          %v7442 = vunpack.c.h.b16 %v5930
          %v7443 = vunpack.c.l.b16 %v5931
          %v7444 = vunpack.c.h.b16 %v5931
          %v7445 = vunpack.c.l.b16 %v5932
          %v7446 = vunpack.c.h.b16 %v5932
          %v7447 = vunpack.c.l.b16 %v5933
          %v7448 = vunpack.c.h.b16 %v5933
          %v7449 = vunpack.c.l.b16 %v5934
          %v7450 = vunpack.c.h.b16 %v5934
          %v7451 = vunpack.c.l.b16 %v5935
          %v7452 = vunpack.c.h.b16 %v5935
          %v7453 = vunpack.c.l.b16 %v5936
          %v7454 = vunpack.c.h.b16 %v5936
          %v7455 = vunpack.c.l.b16 %v5937
          %v7456 = vunpack.c.h.b16 %v5937
          %v7457 = vunpack.c.l.b16 %v5938
          %v7458 = vunpack.c.h.b16 %v5938
          %v7459 = vunpack.c.l.b16 %v5939
          %v7460 = vunpack.c.h.b16 %v5939
          %v7461 = vunpack.c.l.b16 %v5940
          %v7462 = vunpack.c.h.b16 %v5940
          %v7463 = vunpack.c.l.b16 %v5941
          %v7464 = vunpack.c.h.b16 %v5941
          %v7465 = vunpack.c.l.b16 %v5942
          %v7466 = vunpack.c.h.b16 %v5942
          %v7467 = vunpack.c.l.b16 %v5943
          %v7468 = vunpack.c.h.b16 %v5943
          %v7469 = vunpack.c.l.b16 %v5944
          %v7470 = vunpack.c.h.b16 %v5944
          %v7471 = vunpack.c.l.b16 %v5945
          %v7472 = vunpack.c.h.b16 %v5945
          %v7473 = vunpack.c.l.b16 %v5946
          %v7474 = vunpack.c.h.b16 %v5946
          %v7475 = vunpack.c.l.b16 %v5947
          %v7476 = vunpack.c.h.b16 %v5947
          %v7477 = vunpack.c.l.b16 %v5948
          %v7478 = vunpack.c.h.b16 %v5948
          %v7479 = vunpack.c.l.b16 %v5949
          %v7480 = vunpack.c.h.b16 %v5949
          %v7481 = vunpack.c.l.b16 %v5950
          %v7482 = vunpack.c.h.b16 %v5950
          %v7483 = vunpack.c.l.b16 %v5951
          %v7484 = vunpack.c.h.b16 %v5951
          %v7485 = vunpack.c.l.b16 %v5952
          %v7486 = vunpack.c.h.b16 %v5952
          %v7487 = vunpack.c.l.b16 %v5953
          %v7488 = vunpack.c.h.b16 %v5953
          %v7489 = vunpack.c.l.b16 %v5954
          %v7490 = vunpack.c.h.b16 %v5954
          %v7491 = vunpack.c.l.b16 %v5955
          %v7492 = vunpack.c.h.b16 %v5955
          %v7493 = vunpack.c.l.b16 %v5956
          %v7494 = vunpack.c.h.b16 %v5956
          %v7495 = vunpack.c.l.b16 %v5957
          %v7496 = vunpack.c.h.b16 %v5957
          %v7497 = vunpack.c.l.b16 %v5958
          %v7498 = vunpack.c.h.b16 %v5958
          %v7499 = vunpack.c.l.b16 %v5959
          %v7500 = vunpack.c.h.b16 %v5959
          %v7501 = vunpack.c.l.b16 %v5960
          %v7502 = vunpack.c.h.b16 %v5960
          %v7503 = vunpack.c.l.b16 %v5961
          %v7504 = vunpack.c.h.b16 %v5961
          %v7505 = vunpack.c.l.b16 %v5962
          %v7506 = vunpack.c.h.b16 %v5962
          %v7507 = vunpack.c.l.b16 %v5963
          %v7508 = vunpack.c.h.b16 %v5963
          %v7509 = vunpack.c.l.b16 %v5964
          %v7510 = vunpack.c.h.b16 %v5964
          %v7511 = vunpack.c.l.b16 %v5965
          %v7512 = vunpack.c.h.b16 %v5965
          %v7513 = vunpack.c.l.b16 %v5966
          %v7514 = vunpack.c.h.b16 %v5966
          %v7515 = vunpack.c.l.b16 %v5967
          %v7516 = vunpack.c.h.b16 %v5967
          %v7517 = vunpack.c.l.b16 %v5968
          %v7518 = vunpack.c.h.b16 %v5968
          %v7519 = vunpack.c.l.b16 %v5969
          %v7520 = vunpack.c.h.b16 %v5969
          %v7521 = vunpack.c.l.b16 %v5970
          %v7522 = vunpack.c.h.b16 %v5970
          %v7523 = vunpack.c.l.b16 %v5971
          %v7524 = vunpack.c.h.b16 %v5971
          %v7525 = vunpack.c.l.b16 %v5972
          %v7526 = vunpack.c.h.b16 %v5972
          %v7527 = vunpack.c.l.b16 %v5973
          %v7528 = vunpack.c.h.b16 %v5973
          %v7529 = vunpack.c.l.b16 %v5974
          %v7530 = vunpack.c.h.b16 %v5974
          %v7531 = vunpack.c.l.b16 %v5975
          %v7532 = vunpack.c.h.b16 %v5975
          %v7533 = vunpack.c.l.b16 %v5976
          %v7534 = vunpack.c.h.b16 %v5976
          %v7535 = vunpack.c.l.b16 %v5977
          %v7536 = vunpack.c.h.b16 %v5977
          %v7537 = vunpack.c.l.b16 %v5978
          %v7538 = vunpack.c.h.b16 %v5978
          %v7539 = vunpack.c.l.b16 %v5979
          %v7540 = vunpack.c.h.b16 %v5979
          %v7541 = vunpack.c.l.b16 %v5980
          %v7542 = vunpack.c.h.b16 %v5980
          %v7543 = vunpack.c.l.b16 %v5981
          %v7544 = vunpack.c.h.b16 %v5981
          %v7545 = vunpack.c.l.b16 %v5982
          %v7546 = vunpack.c.h.b16 %v5982
          %v7547 = vunpack.c.l.b16 %v5983
          %v7548 = vunpack.c.h.b16 %v5983
          %v7549 = vunpack.c.l.b16 %v5984
          %v7550 = vunpack.c.h.b16 %v5984
          %v7551 = vunpack.c.l.b16 %v5985
          %v7552 = vunpack.c.h.b16 %v5985
          %v7553 = vunpack.c.l.b16 %v5986
          %v7554 = vunpack.c.h.b16 %v5986
          %v7555 = vunpack.c.l.b16 %v5987
          %v7556 = vunpack.c.h.b16 %v5987
          %v7557 = vunpack.c.l.b16 %v5988
          %v7558 = vunpack.c.h.b16 %v5988
          %v7559 = vunpack.c.l.b16 %v5989
          %v7560 = vunpack.c.h.b16 %v5989
          %v7561 = vunpack.c.l.b16 %v5990
          %v7562 = vunpack.c.h.b16 %v5990
          %v7563 = vunpack.c.l.b16 %v5991
          %v7564 = vunpack.c.h.b16 %v5991
          %v7565 = vunpack.c.l.b16 %v5992
          %v7566 = vunpack.c.h.b16 %v5992
          %v7567 = vunpack.c.l.b16 %v5993
          %v7568 = vunpack.c.h.b16 %v5993
          %v7569 = vunpack.c.l.b16 %v5994
          %v7570 = vunpack.c.h.b16 %v5994
          %v7571 = vunpack.c.l.b16 %v5995
          %v7572 = vunpack.c.h.b16 %v5995
          %v7573 = vunpack.c.l.b16 %v5996
          %v7574 = vunpack.c.h.b16 %v5996
          %v7575 = vpack.c.b16 %v6559, %v6551
          %v7576 = vpack.c.b16 %v6560, %v6552
          %v7577 = vpack.c.b16 %v6561, %v6553
          %v7578 = vpack.c.b16 %v6562, %v6554
          %v7579 = vpack.c.b16 %v6563, %v6555
          %v7580 = vpack.c.b16 %v6564, %v6556
          %v7581 = vpack.c.b16 %v6565, %v6557
          %v7582 = vpack.c.b16 %v6566, %v6558
          %v7583 = vpack.c.b16 %v6575, %v6567
          %v7584 = vpack.c.b16 %v6576, %v6568
          %v7585 = vpack.c.b16 %v6577, %v6569
          %v7586 = vpack.c.b16 %v6578, %v6570
          %v7587 = vpack.c.b16 %v6579, %v6571
          %v7588 = vpack.c.b16 %v6580, %v6572
          %v7589 = vpack.c.b16 %v6581, %v6573
          %v7590 = vpack.c.b16 %v6582, %v6574
          %v7591 = vpack.c.b16 %v6591, %v6583
          %v7592 = vpack.c.b16 %v6592, %v6584
          %v7593 = vpack.c.b16 %v6593, %v6585
          %v7594 = vpack.c.b16 %v6594, %v6586
          %v7595 = vpack.c.b16 %v6595, %v6587
          %v7596 = vpack.c.b16 %v6596, %v6588
          %v7597 = vpack.c.b16 %v6597, %v6589
          %v7598 = vpack.c.b16 %v6598, %v6590
          %v7599 = vpack.c.b16 %v6607, %v6599
          %v7600 = vpack.c.b16 %v6608, %v6600
          %v7601 = vpack.c.b16 %v6609, %v6601
          %v7602 = vpack.c.b16 %v6610, %v6602
          %v7603 = vpack.c.b16 %v6611, %v6603
          %v7604 = vpack.c.b16 %v6612, %v6604
          %v7605 = vpack.c.b16 %v6613, %v6605
          %v7606 = vpack.c.b16 %v6614, %v6606
          %v7607 = vpack.c.b16 %v6623, %v6615
          %v7608 = vpack.c.b16 %v6624, %v6616
          %v7609 = vpack.c.b16 %v6625, %v6617
          %v7610 = vpack.c.b16 %v6626, %v6618
          %v7611 = vpack.c.b16 %v6627, %v6619
          %v7612 = vpack.c.b16 %v6628, %v6620
          %v7613 = vpack.c.b16 %v6629, %v6621
          %v7614 = vpack.c.b16 %v6630, %v6622
          %v7615 = vpack.c.b16 %v6639, %v6631
          %v7616 = vpack.c.b16 %v6640, %v6632
          %v7617 = vpack.c.b16 %v6641, %v6633
          %v7618 = vpack.c.b16 %v6642, %v6634
          %v7619 = vpack.c.b16 %v6643, %v6635
          %v7620 = vpack.c.b16 %v6644, %v6636
          %v7621 = vpack.c.b16 %v6645, %v6637
          %v7622 = vpack.c.b16 %v6646, %v6638
          %v7623 = vpack.c.b16 %v6655, %v6647
          %v7624 = vpack.c.b16 %v6656, %v6648
          %v7625 = vpack.c.b16 %v6657, %v6649
          %v7626 = vpack.c.b16 %v6658, %v6650
          %v7627 = vpack.c.b16 %v6659, %v6651
          %v7628 = vpack.c.b16 %v6660, %v6652
          %v7629 = vpack.c.b16 %v6661, %v6653
          %v7630 = vpack.c.b16 %v6662, %v6654
          %v7631 = vpack.c.b16 %v6671, %v6663
          %v7632 = vpack.c.b16 %v6672, %v6664
          %v7633 = vpack.c.b16 %v6673, %v6665
          %v7634 = vpack.c.b16 %v6674, %v6666
          %v7635 = vpack.c.b16 %v6675, %v6667
          %v7636 = vpack.c.b16 %v6676, %v6668
          %v7637 = vpack.c.b16 %v6677, %v6669
          %v7638 = vpack.c.b16 %v6678, %v6670
          %v7639 = vpack.c.b16 %v6687, %v6679
          %v7640 = vpack.c.b16 %v6688, %v6680
          %v7641 = vpack.c.b16 %v6689, %v6681
          %v7642 = vpack.c.b16 %v6690, %v6682
          %v7643 = vpack.c.b16 %v6691, %v6683
          %v7644 = vpack.c.b16 %v6692, %v6684
          %v7645 = vpack.c.b16 %v6693, %v6685
          %v7646 = vpack.c.b16 %v6694, %v6686
          %v7647 = vpack.c.b16 %v6703, %v6695
          %v7648 = vpack.c.b16 %v6704, %v6696
          %v7649 = vpack.c.b16 %v6705, %v6697
          %v7650 = vpack.c.b16 %v6706, %v6698
          %v7651 = vpack.c.b16 %v6707, %v6699
          %v7652 = vpack.c.b16 %v6708, %v6700
          %v7653 = vpack.c.b16 %v6709, %v6701
          %v7654 = vpack.c.b16 %v6710, %v6702
          %v7655 = vpack.c.b16 %v6719, %v6711
          %v7656 = vpack.c.b16 %v6720, %v6712
          %v7657 = vpack.c.b16 %v6721, %v6713
          %v7658 = vpack.c.b16 %v6722, %v6714
          %v7659 = vpack.c.b16 %v6723, %v6715
          %v7660 = vpack.c.b16 %v6724, %v6716
          %v7661 = vpack.c.b16 %v6725, %v6717
          %v7662 = vpack.c.b16 %v6726, %v6718
          %v7663 = vpack.c.b16 %v6735, %v6727
          %v7664 = vpack.c.b16 %v6736, %v6728
          %v7665 = vpack.c.b16 %v6737, %v6729
          %v7666 = vpack.c.b16 %v6738, %v6730
          %v7667 = vpack.c.b16 %v6739, %v6731
          %v7668 = vpack.c.b16 %v6740, %v6732
          %v7669 = vpack.c.b16 %v6741, %v6733
          %v7670 = vpack.c.b16 %v6742, %v6734
          %v7671 = vpack.c.b16 %v6751, %v6743
          %v7672 = vpack.c.b16 %v6752, %v6744
          %v7673 = vpack.c.b16 %v6753, %v6745
          %v7674 = vpack.c.b16 %v6754, %v6746
          %v7675 = vpack.c.b16 %v6755, %v6747
          %v7676 = vpack.c.b16 %v6756, %v6748
          %v7677 = vpack.c.b16 %v6757, %v6749
          %v7678 = vpack.c.b16 %v6758, %v6750
          %v7679 = vpack.c.b16 %v6767, %v6759
          %v7680 = vpack.c.b16 %v6768, %v6760
          %v7681 = vpack.c.b16 %v6769, %v6761
          %v7682 = vpack.c.b16 %v6770, %v6762
          %v7683 = vpack.c.b16 %v6771, %v6763
          %v7684 = vpack.c.b16 %v6772, %v6764
          %v7685 = vpack.c.b16 %v6773, %v6765
          %v7686 = vpack.c.b16 %v6774, %v6766
          %v7687 = vpack.c.b16 %v6783, %v6775
          %v7688 = vpack.c.b16 %v6784, %v6776
          %v7689 = vpack.c.b16 %v6785, %v6777
          %v7690 = vpack.c.b16 %v6786, %v6778
          %v7691 = vpack.c.b16 %v6787, %v6779
          %v7692 = vpack.c.b16 %v6788, %v6780
          %v7693 = vpack.c.b16 %v6789, %v6781
          %v7694 = vpack.c.b16 %v6790, %v6782
          %v7695 = vpack.c.b16 %v6799, %v6791
          %v7696 = vpack.c.b16 %v6800, %v6792
          %v7697 = vpack.c.b16 %v6801, %v6793
          %v7698 = vpack.c.b16 %v6802, %v6794
          %v7699 = vpack.c.b16 %v6803, %v6795
          %v7700 = vpack.c.b16 %v6804, %v6796
          %v7701 = vpack.c.b16 %v6805, %v6797
          %v7702 = vpack.c.b16 %v6806, %v6798
          %v7703 = vpack.c.b16 %v6815, %v6807
          %v7704 = vpack.c.b16 %v6816, %v6808
          %v7705 = vpack.c.b16 %v6817, %v6809
          %v7706 = vpack.c.b16 %v6818, %v6810
          %v7707 = vpack.c.b16 %v6819, %v6811
          %v7708 = vpack.c.b16 %v6820, %v6812
          %v7709 = vpack.c.b16 %v6821, %v6813
          %v7710 = vpack.c.b16 %v6822, %v6814
          %v7711 = vpack.c.b16 %v6831, %v6823
          %v7712 = vpack.c.b16 %v6832, %v6824
          %v7713 = vpack.c.b16 %v6833, %v6825
          %v7714 = vpack.c.b16 %v6834, %v6826
          %v7715 = vpack.c.b16 %v6835, %v6827
          %v7716 = vpack.c.b16 %v6836, %v6828
          %v7717 = vpack.c.b16 %v6837, %v6829
          %v7718 = vpack.c.b16 %v6838, %v6830
          %v7719 = vpack.c.b16 %v6847, %v6839
          %v7720 = vpack.c.b16 %v6848, %v6840
          %v7721 = vpack.c.b16 %v6849, %v6841
          %v7722 = vpack.c.b16 %v6850, %v6842
          %v7723 = vpack.c.b16 %v6851, %v6843
          %v7724 = vpack.c.b16 %v6852, %v6844
          %v7725 = vpack.c.b16 %v6853, %v6845
          %v7726 = vpack.c.b16 %v6854, %v6846
          %v7727 = vpack.c.b16 %v6863, %v6855
          %v7728 = vpack.c.b16 %v6864, %v6856
          %v7729 = vpack.c.b16 %v6865, %v6857
          %v7730 = vpack.c.b16 %v6866, %v6858
          %v7731 = vpack.c.b16 %v6867, %v6859
          %v7732 = vpack.c.b16 %v6868, %v6860
          %v7733 = vpack.c.b16 %v6869, %v6861
          %v7734 = vpack.c.b16 %v6870, %v6862
          %v7735 = vpack.c.b16 %v6879, %v6871
          %v7736 = vpack.c.b16 %v6880, %v6872
          %v7737 = vpack.c.b16 %v6881, %v6873
          %v7738 = vpack.c.b16 %v6882, %v6874
          %v7739 = vpack.c.b16 %v6883, %v6875
          %v7740 = vpack.c.b16 %v6884, %v6876
          %v7741 = vpack.c.b16 %v6885, %v6877
          %v7742 = vpack.c.b16 %v6886, %v6878
          %v7743 = vpack.c.b16 %v6895, %v6887
          %v7744 = vpack.c.b16 %v6896, %v6888
          %v7745 = vpack.c.b16 %v6897, %v6889
          %v7746 = vpack.c.b16 %v6898, %v6890
          %v7747 = vpack.c.b16 %v6899, %v6891
          %v7748 = vpack.c.b16 %v6900, %v6892
          %v7749 = vpack.c.b16 %v6901, %v6893
          %v7750 = vpack.c.b16 %v6902, %v6894
          %v7751 = vpack.c.b16 %v6911, %v6903
          %v7752 = vpack.c.b16 %v6912, %v6904
          %v7753 = vpack.c.b16 %v6913, %v6905
          %v7754 = vpack.c.b16 %v6914, %v6906
          %v7755 = vpack.c.b16 %v6915, %v6907
          %v7756 = vpack.c.b16 %v6916, %v6908
          %v7757 = vpack.c.b16 %v6917, %v6909
          %v7758 = vpack.c.b16 %v6918, %v6910
          %v7759 = vpack.c.b16 %v6927, %v6919
          %v7760 = vpack.c.b16 %v6928, %v6920
          %v7761 = vpack.c.b16 %v6929, %v6921
          %v7762 = vpack.c.b16 %v6930, %v6922
          %v7763 = vpack.c.b16 %v6931, %v6923
          %v7764 = vpack.c.b16 %v6932, %v6924
          %v7765 = vpack.c.b16 %v6933, %v6925
          %v7766 = vpack.c.b16 %v6934, %v6926
          %v7767 = vpack.c.b16 %v6943, %v6935
          %v7768 = vpack.c.b16 %v6944, %v6936
          %v7769 = vpack.c.b16 %v6945, %v6937
          %v7770 = vpack.c.b16 %v6946, %v6938
          %v7771 = vpack.c.b16 %v6947, %v6939
          %v7772 = vpack.c.b16 %v6948, %v6940
          %v7773 = vpack.c.b16 %v6949, %v6941
          %v7774 = vpack.c.b16 %v6950, %v6942
          %v7775 = vpack.c.b16 %v6959, %v6951
          %v7776 = vpack.c.b16 %v6960, %v6952
          %v7777 = vpack.c.b16 %v6961, %v6953
          %v7778 = vpack.c.b16 %v6962, %v6954
          %v7779 = vpack.c.b16 %v6963, %v6955
          %v7780 = vpack.c.b16 %v6964, %v6956
          %v7781 = vpack.c.b16 %v6965, %v6957
          %v7782 = vpack.c.b16 %v6966, %v6958
          %v7783 = vpack.c.b16 %v6975, %v6967
          %v7784 = vpack.c.b16 %v6976, %v6968
          %v7785 = vpack.c.b16 %v6977, %v6969
          %v7786 = vpack.c.b16 %v6978, %v6970
          %v7787 = vpack.c.b16 %v6979, %v6971
          %v7788 = vpack.c.b16 %v6980, %v6972
          %v7789 = vpack.c.b16 %v6981, %v6973
          %v7790 = vpack.c.b16 %v6982, %v6974
          %v7791 = vpack.c.b16 %v6991, %v6983
          %v7792 = vpack.c.b16 %v6992, %v6984
          %v7793 = vpack.c.b16 %v6993, %v6985
          %v7794 = vpack.c.b16 %v6994, %v6986
          %v7795 = vpack.c.b16 %v6995, %v6987
          %v7796 = vpack.c.b16 %v6996, %v6988
          %v7797 = vpack.c.b16 %v6997, %v6989
          %v7798 = vpack.c.b16 %v6998, %v6990
          %v7799 = vpack.c.b16 %v7007, %v6999
          %v7800 = vpack.c.b16 %v7008, %v7000
          %v7801 = vpack.c.b16 %v7009, %v7001
          %v7802 = vpack.c.b16 %v7010, %v7002
          %v7803 = vpack.c.b16 %v7011, %v7003
          %v7804 = vpack.c.b16 %v7012, %v7004
          %v7805 = vpack.c.b16 %v7013, %v7005
          %v7806 = vpack.c.b16 %v7014, %v7006
          %v7807 = vpack.c.b16 %v7023, %v7015
          %v7808 = vpack.c.b16 %v7024, %v7016
          %v7809 = vpack.c.b16 %v7025, %v7017
          %v7810 = vpack.c.b16 %v7026, %v7018
          %v7811 = vpack.c.b16 %v7027, %v7019
          %v7812 = vpack.c.b16 %v7028, %v7020
          %v7813 = vpack.c.b16 %v7029, %v7021
          %v7814 = vpack.c.b16 %v7030, %v7022
          %v7815 = vpack.c.b16 %v7039, %v7031
          %v7816 = vpack.c.b16 %v7040, %v7032
          %v7817 = vpack.c.b16 %v7041, %v7033
          %v7818 = vpack.c.b16 %v7042, %v7034
          %v7819 = vpack.c.b16 %v7043, %v7035
          %v7820 = vpack.c.b16 %v7044, %v7036
          %v7821 = vpack.c.b16 %v7045, %v7037
          %v7822 = vpack.c.b16 %v7046, %v7038
          %v7823 = vpack.c.b16 %v7055, %v7047
          %v7824 = vpack.c.b16 %v7056, %v7048
          %v7825 = vpack.c.b16 %v7057, %v7049
          %v7826 = vpack.c.b16 %v7058, %v7050
          %v7827 = vpack.c.b16 %v7059, %v7051
          %v7828 = vpack.c.b16 %v7060, %v7052
          %v7829 = vpack.c.b16 %v7061, %v7053
          %v7830 = vpack.c.b16 %v7062, %v7054
          %v7831 = vpack.c.b16 %v7071, %v7063
          %v7832 = vpack.c.b16 %v7072, %v7064
          %v7833 = vpack.c.b16 %v7073, %v7065
          %v7834 = vpack.c.b16 %v7074, %v7066
          %v7835 = vpack.c.b16 %v7075, %v7067
          %v7836 = vpack.c.b16 %v7076, %v7068
          %v7837 = vpack.c.b16 %v7077, %v7069
          %v7838 = vpack.c.b16 %v7078, %v7070
          %v7839 = vpack.c.b16 %v7087, %v7079
          %v7840 = vpack.c.b16 %v7088, %v7080
          %v7841 = vpack.c.b16 %v7089, %v7081
          %v7842 = vpack.c.b16 %v7090, %v7082
          %v7843 = vpack.c.b16 %v7091, %v7083
          %v7844 = vpack.c.b16 %v7092, %v7084
          %v7845 = vpack.c.b16 %v7093, %v7085
          %v7846 = vpack.c.b16 %v7094, %v7086
          %v7847 = vpack.c.b16 %v7103, %v7095
          %v7848 = vpack.c.b16 %v7104, %v7096
          %v7849 = vpack.c.b16 %v7105, %v7097
          %v7850 = vpack.c.b16 %v7106, %v7098
          %v7851 = vpack.c.b16 %v7107, %v7099
          %v7852 = vpack.c.b16 %v7108, %v7100
          %v7853 = vpack.c.b16 %v7109, %v7101
          %v7854 = vpack.c.b16 %v7110, %v7102
          %v7855 = vpack.c.b16 %v7119, %v7111
          %v7856 = vpack.c.b16 %v7120, %v7112
          %v7857 = vpack.c.b16 %v7121, %v7113
          %v7858 = vpack.c.b16 %v7122, %v7114
          %v7859 = vpack.c.b16 %v7123, %v7115
          %v7860 = vpack.c.b16 %v7124, %v7116
          %v7861 = vpack.c.b16 %v7125, %v7117
          %v7862 = vpack.c.b16 %v7126, %v7118
          %v7863 = vpack.c.b16 %v7135, %v7127
          %v7864 = vpack.c.b16 %v7136, %v7128
          %v7865 = vpack.c.b16 %v7137, %v7129
          %v7866 = vpack.c.b16 %v7138, %v7130
          %v7867 = vpack.c.b16 %v7139, %v7131
          %v7868 = vpack.c.b16 %v7140, %v7132
          %v7869 = vpack.c.b16 %v7141, %v7133
          %v7870 = vpack.c.b16 %v7142, %v7134
          %v7871 = vpack.c.b16 %v7151, %v7143
          %v7872 = vpack.c.b16 %v7152, %v7144
          %v7873 = vpack.c.b16 %v7153, %v7145
          %v7874 = vpack.c.b16 %v7154, %v7146
          %v7875 = vpack.c.b16 %v7155, %v7147
          %v7876 = vpack.c.b16 %v7156, %v7148
          %v7877 = vpack.c.b16 %v7157, %v7149
          %v7878 = vpack.c.b16 %v7158, %v7150
          %v7879 = vpack.c.b16 %v7167, %v7159
          %v7880 = vpack.c.b16 %v7168, %v7160
          %v7881 = vpack.c.b16 %v7169, %v7161
          %v7882 = vpack.c.b16 %v7170, %v7162
          %v7883 = vpack.c.b16 %v7171, %v7163
          %v7884 = vpack.c.b16 %v7172, %v7164
          %v7885 = vpack.c.b16 %v7173, %v7165
          %v7886 = vpack.c.b16 %v7174, %v7166
          %v7887 = vpack.c.b16 %v7183, %v7175
          %v7888 = vpack.c.b16 %v7184, %v7176
          %v7889 = vpack.c.b16 %v7185, %v7177
          %v7890 = vpack.c.b16 %v7186, %v7178
          %v7891 = vpack.c.b16 %v7187, %v7179
          %v7892 = vpack.c.b16 %v7188, %v7180
          %v7893 = vpack.c.b16 %v7189, %v7181
          %v7894 = vpack.c.b16 %v7190, %v7182
          %v7895 = vpack.c.b16 %v7199, %v7191
          %v7896 = vpack.c.b16 %v7200, %v7192
          %v7897 = vpack.c.b16 %v7201, %v7193
          %v7898 = vpack.c.b16 %v7202, %v7194
          %v7899 = vpack.c.b16 %v7203, %v7195
          %v7900 = vpack.c.b16 %v7204, %v7196
          %v7901 = vpack.c.b16 %v7205, %v7197
          %v7902 = vpack.c.b16 %v7206, %v7198
          %v7903 = vpack.c.b16 %v7215, %v7207
          %v7904 = vpack.c.b16 %v7216, %v7208
          %v7905 = vpack.c.b16 %v7217, %v7209
          %v7906 = vpack.c.b16 %v7218, %v7210
          %v7907 = vpack.c.b16 %v7219, %v7211
          %v7908 = vpack.c.b16 %v7220, %v7212
          %v7909 = vpack.c.b16 %v7221, %v7213
          %v7910 = vpack.c.b16 %v7222, %v7214
          %v7911 = vpack.c.b16 %v7231, %v7223
          %v7912 = vpack.c.b16 %v7232, %v7224
          %v7913 = vpack.c.b16 %v7233, %v7225
          %v7914 = vpack.c.b16 %v7234, %v7226
          %v7915 = vpack.c.b16 %v7235, %v7227
          %v7916 = vpack.c.b16 %v7236, %v7228
          %v7917 = vpack.c.b16 %v7237, %v7229
          %v7918 = vpack.c.b16 %v7238, %v7230
          %v7919 = vpack.c.b16 %v7247, %v7239
          %v7920 = vpack.c.b16 %v7248, %v7240
          %v7921 = vpack.c.b16 %v7249, %v7241
          %v7922 = vpack.c.b16 %v7250, %v7242
          %v7923 = vpack.c.b16 %v7251, %v7243
          %v7924 = vpack.c.b16 %v7252, %v7244
          %v7925 = vpack.c.b16 %v7253, %v7245
          %v7926 = vpack.c.b16 %v7254, %v7246
          %v7927 = vpack.c.b16 %v7263, %v7255
          %v7928 = vpack.c.b16 %v7264, %v7256
          %v7929 = vpack.c.b16 %v7265, %v7257
          %v7930 = vpack.c.b16 %v7266, %v7258
          %v7931 = vpack.c.b16 %v7267, %v7259
          %v7932 = vpack.c.b16 %v7268, %v7260
          %v7933 = vpack.c.b16 %v7269, %v7261
          %v7934 = vpack.c.b16 %v7270, %v7262
          %v7935 = vpack.c.b16 %v7279, %v7271
          %v7936 = vpack.c.b16 %v7280, %v7272
          %v7937 = vpack.c.b16 %v7281, %v7273
          %v7938 = vpack.c.b16 %v7282, %v7274
          %v7939 = vpack.c.b16 %v7283, %v7275
          %v7940 = vpack.c.b16 %v7284, %v7276
          %v7941 = vpack.c.b16 %v7285, %v7277
          %v7942 = vpack.c.b16 %v7286, %v7278
          %v7943 = vpack.c.b16 %v7295, %v7287
          %v7944 = vpack.c.b16 %v7296, %v7288
          %v7945 = vpack.c.b16 %v7297, %v7289
          %v7946 = vpack.c.b16 %v7298, %v7290
          %v7947 = vpack.c.b16 %v7299, %v7291
          %v7948 = vpack.c.b16 %v7300, %v7292
          %v7949 = vpack.c.b16 %v7301, %v7293
          %v7950 = vpack.c.b16 %v7302, %v7294
          %v7951 = vpack.c.b16 %v7311, %v7303
          %v7952 = vpack.c.b16 %v7312, %v7304
          %v7953 = vpack.c.b16 %v7313, %v7305
          %v7954 = vpack.c.b16 %v7314, %v7306
          %v7955 = vpack.c.b16 %v7315, %v7307
          %v7956 = vpack.c.b16 %v7316, %v7308
          %v7957 = vpack.c.b16 %v7317, %v7309
          %v7958 = vpack.c.b16 %v7318, %v7310
          %v7959 = vpack.c.b16 %v7327, %v7319
          %v7960 = vpack.c.b16 %v7328, %v7320
          %v7961 = vpack.c.b16 %v7329, %v7321
          %v7962 = vpack.c.b16 %v7330, %v7322
          %v7963 = vpack.c.b16 %v7331, %v7323
          %v7964 = vpack.c.b16 %v7332, %v7324
          %v7965 = vpack.c.b16 %v7333, %v7325
          %v7966 = vpack.c.b16 %v7334, %v7326
          %v7967 = vpack.c.b16 %v7343, %v7335
          %v7968 = vpack.c.b16 %v7344, %v7336
          %v7969 = vpack.c.b16 %v7345, %v7337
          %v7970 = vpack.c.b16 %v7346, %v7338
          %v7971 = vpack.c.b16 %v7347, %v7339
          %v7972 = vpack.c.b16 %v7348, %v7340
          %v7973 = vpack.c.b16 %v7349, %v7341
          %v7974 = vpack.c.b16 %v7350, %v7342
          %v7975 = vpack.c.b16 %v7359, %v7351
          %v7976 = vpack.c.b16 %v7360, %v7352
          %v7977 = vpack.c.b16 %v7361, %v7353
          %v7978 = vpack.c.b16 %v7362, %v7354
          %v7979 = vpack.c.b16 %v7363, %v7355
          %v7980 = vpack.c.b16 %v7364, %v7356
          %v7981 = vpack.c.b16 %v7365, %v7357
          %v7982 = vpack.c.b16 %v7366, %v7358
          %v7983 = vpack.c.b16 %v7375, %v7367
          %v7984 = vpack.c.b16 %v7376, %v7368
          %v7985 = vpack.c.b16 %v7377, %v7369
          %v7986 = vpack.c.b16 %v7378, %v7370
          %v7987 = vpack.c.b16 %v7379, %v7371
          %v7988 = vpack.c.b16 %v7380, %v7372
          %v7989 = vpack.c.b16 %v7381, %v7373
          %v7990 = vpack.c.b16 %v7382, %v7374
          %v7991 = vpack.c.b16 %v7391, %v7383
          %v7992 = vpack.c.b16 %v7392, %v7384
          %v7993 = vpack.c.b16 %v7393, %v7385
          %v7994 = vpack.c.b16 %v7394, %v7386
          %v7995 = vpack.c.b16 %v7395, %v7387
          %v7996 = vpack.c.b16 %v7396, %v7388
          %v7997 = vpack.c.b16 %v7397, %v7389
          %v7998 = vpack.c.b16 %v7398, %v7390
          %v7999 = vpack.c.b16 %v7407, %v7399
          %v8000 = vpack.c.b16 %v7408, %v7400
          %v8001 = vpack.c.b16 %v7409, %v7401
          %v8002 = vpack.c.b16 %v7410, %v7402
          %v8003 = vpack.c.b16 %v7411, %v7403
          %v8004 = vpack.c.b16 %v7412, %v7404
          %v8005 = vpack.c.b16 %v7413, %v7405
          %v8006 = vpack.c.b16 %v7414, %v7406
          %v8007 = vpack.c.b16 %v7423, %v7415
          %v8008 = vpack.c.b16 %v7424, %v7416
          %v8009 = vpack.c.b16 %v7425, %v7417
          %v8010 = vpack.c.b16 %v7426, %v7418
          %v8011 = vpack.c.b16 %v7427, %v7419
          %v8012 = vpack.c.b16 %v7428, %v7420
          %v8013 = vpack.c.b16 %v7429, %v7421
          %v8014 = vpack.c.b16 %v7430, %v7422
          %v8015 = vpack.c.b16 %v7439, %v7431
          %v8016 = vpack.c.b16 %v7440, %v7432
          %v8017 = vpack.c.b16 %v7441, %v7433
          %v8018 = vpack.c.b16 %v7442, %v7434
          %v8019 = vpack.c.b16 %v7443, %v7435
          %v8020 = vpack.c.b16 %v7444, %v7436
          %v8021 = vpack.c.b16 %v7445, %v7437
          %v8022 = vpack.c.b16 %v7446, %v7438
          %v8023 = vpack.c.b16 %v7455, %v7447
          %v8024 = vpack.c.b16 %v7456, %v7448
          %v8025 = vpack.c.b16 %v7457, %v7449
          %v8026 = vpack.c.b16 %v7458, %v7450
          %v8027 = vpack.c.b16 %v7459, %v7451
          %v8028 = vpack.c.b16 %v7460, %v7452
          %v8029 = vpack.c.b16 %v7461, %v7453
          %v8030 = vpack.c.b16 %v7462, %v7454
          %v8031 = vpack.c.b16 %v7471, %v7463
          %v8032 = vpack.c.b16 %v7472, %v7464
          %v8033 = vpack.c.b16 %v7473, %v7465
          %v8034 = vpack.c.b16 %v7474, %v7466
          %v8035 = vpack.c.b16 %v7475, %v7467
          %v8036 = vpack.c.b16 %v7476, %v7468
          %v8037 = vpack.c.b16 %v7477, %v7469
          %v8038 = vpack.c.b16 %v7478, %v7470
          %v8039 = vpack.c.b16 %v7487, %v7479
          %v8040 = vpack.c.b16 %v7488, %v7480
          %v8041 = vpack.c.b16 %v7489, %v7481
          %v8042 = vpack.c.b16 %v7490, %v7482
          %v8043 = vpack.c.b16 %v7491, %v7483
          %v8044 = vpack.c.b16 %v7492, %v7484
          %v8045 = vpack.c.b16 %v7493, %v7485
          %v8046 = vpack.c.b16 %v7494, %v7486
          %v8047 = vpack.c.b16 %v7503, %v7495
          %v8048 = vpack.c.b16 %v7504, %v7496
          %v8049 = vpack.c.b16 %v7505, %v7497
          %v8050 = vpack.c.b16 %v7506, %v7498
          %v8051 = vpack.c.b16 %v7507, %v7499
          %v8052 = vpack.c.b16 %v7508, %v7500
          %v8053 = vpack.c.b16 %v7509, %v7501
          %v8054 = vpack.c.b16 %v7510, %v7502
          %v8055 = vpack.c.b16 %v7519, %v7511
          %v8056 = vpack.c.b16 %v7520, %v7512
          %v8057 = vpack.c.b16 %v7521, %v7513
          %v8058 = vpack.c.b16 %v7522, %v7514
          %v8059 = vpack.c.b16 %v7523, %v7515
          %v8060 = vpack.c.b16 %v7524, %v7516
          %v8061 = vpack.c.b16 %v7525, %v7517
          %v8062 = vpack.c.b16 %v7526, %v7518
          %v8063 = vpack.c.b16 %v7535, %v7527
          %v8064 = vpack.c.b16 %v7536, %v7528
          %v8065 = vpack.c.b16 %v7537, %v7529
          %v8066 = vpack.c.b16 %v7538, %v7530
          %v8067 = vpack.c.b16 %v7539, %v7531
          %v8068 = vpack.c.b16 %v7540, %v7532
          %v8069 = vpack.c.b16 %v7541, %v7533
          %v8070 = vpack.c.b16 %v7542, %v7534
          %v8071 = vpack.c.b16 %v7551, %v7543
          %v8072 = vpack.c.b16 %v7552, %v7544
          %v8073 = vpack.c.b16 %v7553, %v7545
          %v8074 = vpack.c.b16 %v7554, %v7546
          %v8075 = vpack.c.b16 %v7555, %v7547
          %v8076 = vpack.c.b16 %v7556, %v7548
          %v8077 = vpack.c.b16 %v7557, %v7549
          %v8078 = vpack.c.b16 %v7558, %v7550
          %v8079 = vpack.c.b16 %v7567, %v7559
          %v8080 = vpack.c.b16 %v7568, %v7560
          %v8081 = vpack.c.b16 %v7569, %v7561
          %v8082 = vpack.c.b16 %v7570, %v7562
          %v8083 = vpack.c.b16 %v7571, %v7563
          %v8084 = vpack.c.b16 %v7572, %v7564
          %v8085 = vpack.c.b16 %v7573, %v7565
          %v8086 = vpack.c.b16 %v7574, %v7566
          %8599 = vmatprep.subr.bf16.mxu0 %v7576
          %8600 = vmatpush1.bf16.msra.mxu0 %v7575
          %8601 = vmatprep.subr.bf16.mxu0 %v7584
          %8602 = vmatpush1.bf16.msra.mxu0 %v7583
          %8603 = vmatprep.subr.bf16.mxu0 %v7592
          %8604 = vmatpush1.bf16.msra.mxu0 %v7591
          %8605 = vmatprep.subr.bf16.mxu0 %v7600
          %8606 = vmatpush1.bf16.msra.mxu0 %v7599
          %8607 = vmatprep.subr.bf16.mxu0 %v7608
          %8608 = vmatpush1.bf16.msra.mxu0 %v7607
          %8609 = vmatprep.subr.bf16.mxu0 %v7616
          %8610 = vmatpush1.bf16.msra.mxu0 %v7615
          %8611 = vmatprep.subr.bf16.mxu0 %v7624
          %8612 = vmatpush1.bf16.msra.mxu0 %v7623
          %8613 = vmatprep.subr.bf16.mxu0 %v7632
          %8614 = vmatpush1.bf16.msra.mxu0 %v7631
          %8615 = vmatprep.subr.bf16.mxu0 %v7640
          %8616 = vmatpush1.bf16.msra.mxu0 %v7639
          %8617 = vmatprep.subr.bf16.mxu0 %v7648
          %8618 = vmatpush1.bf16.msra.mxu0 %v7647
          %8619 = vmatprep.subr.bf16.mxu0 %v7656
          %8620 = vmatpush1.bf16.msra.mxu0 %v7655
          %8621 = vmatprep.subr.bf16.mxu0 %v7664
          %8622 = vmatpush1.bf16.msra.mxu0 %v7663
          %8623 = vmatprep.subr.bf16.mxu0 %v7672
          %8624 = vmatpush1.bf16.msra.mxu0 %v7671
          %8625 = vmatprep.subr.bf16.mxu0 %v7680
          %8626 = vmatpush1.bf16.msra.mxu0 %v7679
          %8627 = vmatprep.subr.bf16.mxu0 %v7688
          %8628 = vmatpush1.bf16.msra.mxu0 %v7687
          %8629 = vmatprep.subr.bf16.mxu0 %v7696
          %8630 = vmatpush1.bf16.msra.mxu0 %v7695
          %8631 = vmatprep.mubr.bf16.mxu0 %v5478
          %8632 = vmatmul.mubr.bf16.gmra.mrb[0].mxu0 %v5477
          %v8633 = vpop.f32.mrb[0].mxu0
          %v8634 = vadd.f32 %v6002, %v8633
          %v8635 = vpop.f32.mrb[0].mxu0
          %v8636 = vadd.f32 %v6006, %v8635
          %v8637 = vpop.f32.mrb[0].mxu0
          %v8638 = vpop.f32.mrb[0].mxu0
          %8639 = vdwg.mxu0
          %8640 = vmatprep.subr.bf16.mxu0 %v7704
          %8641 = vmatpush1.bf16.msra.mxu0 %v7703
          %8642 = vmatprep.subr.bf16.mxu0 %v7712
          %8643 = vmatpush1.bf16.msra.mxu0 %v7711
          %8644 = vmatprep.subr.bf16.mxu0 %v7720
          %8645 = vmatpush1.bf16.msra.mxu0 %v7719
          %8646 = vmatprep.subr.bf16.mxu0 %v7728
          %8647 = vmatpush1.bf16.msra.mxu0 %v7727
          %8648 = vmatprep.subr.bf16.mxu0 %v7736
          %8649 = vmatpush1.bf16.msra.mxu0 %v7735
          %8650 = vmatprep.subr.bf16.mxu0 %v7744
          %8651 = vmatpush1.bf16.msra.mxu0 %v7743
          %8652 = vmatprep.subr.bf16.mxu0 %v7752
          %8653 = vmatpush1.bf16.msra.mxu0 %v7751
          %8654 = vmatprep.subr.bf16.mxu0 %v7760
          %8655 = vmatpush1.bf16.msra.mxu0 %v7759
          %8656 = vmatprep.subr.bf16.mxu0 %v7768
          %8657 = vmatpush1.bf16.msra.mxu0 %v7767
          %8658 = vmatprep.subr.bf16.mxu0 %v7776
          %8659 = vmatpush1.bf16.msra.mxu0 %v7775
          %8660 = vmatprep.subr.bf16.mxu0 %v7784
          %8661 = vmatpush1.bf16.msra.mxu0 %v7783
          %8662 = vmatprep.subr.bf16.mxu0 %v7792
          %8663 = vmatpush1.bf16.msra.mxu0 %v7791
          %8664 = vmatprep.subr.bf16.mxu0 %v7800
          %8665 = vmatpush1.bf16.msra.mxu0 %v7799
          %8666 = vmatprep.subr.bf16.mxu0 %v7808
          %8667 = vmatpush1.bf16.msra.mxu0 %v7807
          %8668 = vmatprep.subr.bf16.mxu0 %v7816
          %8669 = vmatpush1.bf16.msra.mxu0 %v7815
          %8670 = vmatprep.subr.bf16.mxu0 %v7824
          %8671 = vmatpush1.bf16.msra.mxu0 %v7823
          %8672 = vmatprep.mubr.bf16.mxu0 %v5480
          %8673 = vmatmul.mubr.bf16.gmra.mrb[0].mxu0 %v5479
          %v8674 = vpop.f32.mrb[0].mxu0
          %v8675 = vadd.f32 %v8634, %v8674
          %v8676 = vpop.f32.mrb[0].mxu0
          %v8677 = vadd.f32 %v8636, %v8676
          %v8678 = vpop.f32.mrb[0].mxu0
          %v8679 = vpop.f32.mrb[0].mxu0
          %8680 = vdwg.mxu0
          %8681 = vmatprep.subr.bf16.mxu0 %v7832
          %8682 = vmatpush1.bf16.msra.mxu0 %v7831
          %8683 = vmatprep.subr.bf16.mxu0 %v7840
          %8684 = vmatpush1.bf16.msra.mxu0 %v7839
          %8685 = vmatprep.subr.bf16.mxu0 %v7848
          %8686 = vmatpush1.bf16.msra.mxu0 %v7847
          %8687 = vmatprep.subr.bf16.mxu0 %v7856
          %8688 = vmatpush1.bf16.msra.mxu0 %v7855
          %8689 = vmatprep.subr.bf16.mxu0 %v7864
          %8690 = vmatpush1.bf16.msra.mxu0 %v7863
          %8691 = vmatprep.subr.bf16.mxu0 %v7872
          %8692 = vmatpush1.bf16.msra.mxu0 %v7871
          %8693 = vmatprep.subr.bf16.mxu0 %v7880
          %8694 = vmatpush1.bf16.msra.mxu0 %v7879
          %8695 = vmatprep.subr.bf16.mxu0 %v7888
          %8696 = vmatpush1.bf16.msra.mxu0 %v7887
          %8697 = vmatprep.subr.bf16.mxu0 %v7896
          %8698 = vmatpush1.bf16.msra.mxu0 %v7895
          %8699 = vmatprep.subr.bf16.mxu0 %v7904
          %8700 = vmatpush1.bf16.msra.mxu0 %v7903
          %8701 = vmatprep.subr.bf16.mxu0 %v7912
          %8702 = vmatpush1.bf16.msra.mxu0 %v7911
          %8703 = vmatprep.subr.bf16.mxu0 %v7920
          %8704 = vmatpush1.bf16.msra.mxu0 %v7919
          %8705 = vmatprep.subr.bf16.mxu0 %v7928
          %8706 = vmatpush1.bf16.msra.mxu0 %v7927
          %8707 = vmatprep.subr.bf16.mxu0 %v7936
          %8708 = vmatpush1.bf16.msra.mxu0 %v7935
          %8709 = vmatprep.subr.bf16.mxu0 %v7944
          %8710 = vmatpush1.bf16.msra.mxu0 %v7943
          %8711 = vmatprep.subr.bf16.mxu0 %v7952
          %8712 = vmatpush1.bf16.msra.mxu0 %v7951
          %8713 = vmatprep.mubr.bf16.mxu0 %v5482
          %8714 = vmatmul.mubr.bf16.gmra.mrb[0].mxu0 %v5481
          %v8715 = vpop.f32.mrb[0].mxu0
          %v8716 = vadd.f32 %v8675, %v8715
          %v8717 = vpop.f32.mrb[0].mxu0
          %v8718 = vadd.f32 %v8677, %v8717
          %v8719 = vpop.f32.mrb[0].mxu0
          %v8720 = vpop.f32.mrb[0].mxu0
          %8721 = vdwg.mxu0
          %8722 = vmatprep.subr.bf16.mxu0 %v7960
          %8723 = vmatpush1.bf16.msra.mxu0 %v7959
          %8724 = vmatprep.subr.bf16.mxu0 %v7968
          %8725 = vmatpush1.bf16.msra.mxu0 %v7967
          %8726 = vmatprep.subr.bf16.mxu0 %v7976
          %8727 = vmatpush1.bf16.msra.mxu0 %v7975
          %8728 = vmatprep.subr.bf16.mxu0 %v7984
          %8729 = vmatpush1.bf16.msra.mxu0 %v7983
          %8730 = vmatprep.subr.bf16.mxu0 %v7992
          %8731 = vmatpush1.bf16.msra.mxu0 %v7991
          %8732 = vmatprep.subr.bf16.mxu0 %v8000
          %8733 = vmatpush1.bf16.msra.mxu0 %v7999
          %8734 = vmatprep.subr.bf16.mxu0 %v8008
          %8735 = vmatpush1.bf16.msra.mxu0 %v8007
          %8736 = vmatprep.subr.bf16.mxu0 %v8016
          %8737 = vmatpush1.bf16.msra.mxu0 %v8015
          %8738 = vmatprep.subr.bf16.mxu0 %v8024
          %8739 = vmatpush1.bf16.msra.mxu0 %v8023
          %8740 = vmatprep.subr.bf16.mxu0 %v8032
          %8741 = vmatpush1.bf16.msra.mxu0 %v8031
          %8742 = vmatprep.subr.bf16.mxu0 %v8040
          %8743 = vmatpush1.bf16.msra.mxu0 %v8039
          %8744 = vmatprep.subr.bf16.mxu0 %v8048
          %8745 = vmatpush1.bf16.msra.mxu0 %v8047
          %8746 = vmatprep.subr.bf16.mxu0 %v8056
          %8747 = vmatpush1.bf16.msra.mxu0 %v8055
          %8748 = vmatprep.subr.bf16.mxu0 %v8064
          %8749 = vmatpush1.bf16.msra.mxu0 %v8063
          %8750 = vmatprep.subr.bf16.mxu0 %v8072
          %8751 = vmatpush1.bf16.msra.mxu0 %v8071
          %8752 = vmatprep.subr.bf16.mxu0 %v8080
          %8753 = vmatpush1.bf16.msra.mxu0 %v8079
          %8754 = vmatprep.mubr.bf16.mxu0 %v5484
          %8755 = vmatmul.mubr.bf16.gmra.mrb[0].mxu0 %v5483
          %v8756 = vpop.f32.mrb[0].mxu0
          %v8757 = vadd.f32 %v8716, %v8756
          %v8758 = vpop.f32.mrb[0].mxu0
          %v8759 = vadd.f32 %v8718, %v8758
          %v8760 = vpop.f32.mrb[0].mxu0
          %v8761 = vpop.f32.mrb[0].mxu0
          %8762 = vdwg.mxu0
          %8763 = vmatprep.subr.bf16.mxu0 %v7578
          %8764 = vmatpush1.bf16.msra.mxu0 %v7577
          %8765 = vmatprep.subr.bf16.mxu0 %v7586
          %8766 = vmatpush1.bf16.msra.mxu0 %v7585
          %8767 = vmatprep.subr.bf16.mxu0 %v7594
          %8768 = vmatpush1.bf16.msra.mxu0 %v7593
          %8769 = vmatprep.subr.bf16.mxu0 %v7602
          %8770 = vmatpush1.bf16.msra.mxu0 %v7601
          %8771 = vmatprep.subr.bf16.mxu0 %v7610
          %8772 = vmatpush1.bf16.msra.mxu0 %v7609
          %8773 = vmatprep.subr.bf16.mxu0 %v7618
          %8774 = vmatpush1.bf16.msra.mxu0 %v7617
          %8775 = vmatprep.subr.bf16.mxu0 %v7626
          %8776 = vmatpush1.bf16.msra.mxu0 %v7625
          %8777 = vmatprep.subr.bf16.mxu0 %v7634
          %8778 = vmatpush1.bf16.msra.mxu0 %v7633
          %8779 = vmatprep.subr.bf16.mxu0 %v7642
          %8780 = vmatpush1.bf16.msra.mxu0 %v7641
          %8781 = vmatprep.subr.bf16.mxu0 %v7650
          %8782 = vmatpush1.bf16.msra.mxu0 %v7649
          %8783 = vmatprep.subr.bf16.mxu0 %v7658
          %8784 = vmatpush1.bf16.msra.mxu0 %v7657
          %8785 = vmatprep.subr.bf16.mxu0 %v7666
          %8786 = vmatpush1.bf16.msra.mxu0 %v7665
          %8787 = vmatprep.subr.bf16.mxu0 %v7674
          %8788 = vmatpush1.bf16.msra.mxu0 %v7673
          %8789 = vmatprep.subr.bf16.mxu0 %v7682
          %8790 = vmatpush1.bf16.msra.mxu0 %v7681
          %8791 = vmatprep.subr.bf16.mxu0 %v7690
          %8792 = vmatpush1.bf16.msra.mxu0 %v7689
          %8793 = vmatprep.subr.bf16.mxu0 %v7698
          %8794 = vmatpush1.bf16.msra.mxu0 %v7697
          %8795 = vmatprep.mubr.bf16.mxu0 %v5478
          %8796 = vmatmul.mubr.bf16.gmra.mrb[0].mxu0 %v5477
          %v8797 = vpop.f32.mrb[0].mxu0
          %v8798 = vadd.f32 %v6010, %v8797
          %v8799 = vpop.f32.mrb[0].mxu0
          %v8800 = vadd.f32 %v6014, %v8799
          %v8801 = vpop.f32.mrb[0].mxu0
          %v8802 = vpop.f32.mrb[0].mxu0
          %8803 = vdwg.mxu0
          %8804 = vmatprep.subr.bf16.mxu0 %v7706
          %8805 = vmatpush1.bf16.msra.mxu0 %v7705
          %8806 = vmatprep.subr.bf16.mxu0 %v7714
          %8807 = vmatpush1.bf16.msra.mxu0 %v7713
          %8808 = vmatprep.subr.bf16.mxu0 %v7722
          %8809 = vmatpush1.bf16.msra.mxu0 %v7721
          %8810 = vmatprep.subr.bf16.mxu0 %v7730
          %8811 = vmatpush1.bf16.msra.mxu0 %v7729
          %8812 = vmatprep.subr.bf16.mxu0 %v7738
          %8813 = vmatpush1.bf16.msra.mxu0 %v7737
          %8814 = vmatprep.subr.bf16.mxu0 %v7746
          %8815 = vmatpush1.bf16.msra.mxu0 %v7745
          %8816 = vmatprep.subr.bf16.mxu0 %v7754
          %8817 = vmatpush1.bf16.msra.mxu0 %v7753
          %8818 = vmatprep.subr.bf16.mxu0 %v7762
          %8819 = vmatpush1.bf16.msra.mxu0 %v7761
          %8820 = vmatprep.subr.bf16.mxu0 %v7770
          %8821 = vmatpush1.bf16.msra.mxu0 %v7769
          %8822 = vmatprep.subr.bf16.mxu0 %v7778
          %8823 = vmatpush1.bf16.msra.mxu0 %v7777
          %8824 = vmatprep.subr.bf16.mxu0 %v7786
          %8825 = vmatpush1.bf16.msra.mxu0 %v7785
          %8826 = vmatprep.subr.bf16.mxu0 %v7794
          %8827 = vmatpush1.bf16.msra.mxu0 %v7793
          %8828 = vmatprep.subr.bf16.mxu0 %v7802
          %8829 = vmatpush1.bf16.msra.mxu0 %v7801
          %8830 = vmatprep.subr.bf16.mxu0 %v7810
          %8831 = vmatpush1.bf16.msra.mxu0 %v7809
          %8832 = vmatprep.subr.bf16.mxu0 %v7818
          %8833 = vmatpush1.bf16.msra.mxu0 %v7817
          %8834 = vmatprep.subr.bf16.mxu0 %v7826
          %8835 = vmatpush1.bf16.msra.mxu0 %v7825
          %8836 = vmatprep.mubr.bf16.mxu0 %v5480
          %8837 = vmatmul.mubr.bf16.gmra.mrb[0].mxu0 %v5479
          %v8838 = vpop.f32.mrb[0].mxu0
          %v8839 = vadd.f32 %v8798, %v8838
          %v8840 = vpop.f32.mrb[0].mxu0
          %v8841 = vadd.f32 %v8800, %v8840
          %v8842 = vpop.f32.mrb[0].mxu0
          %v8843 = vpop.f32.mrb[0].mxu0
          %8844 = vdwg.mxu0
          %8845 = vmatprep.subr.bf16.mxu0 %v7834
          %8846 = vmatpush1.bf16.msra.mxu0 %v7833
          %8847 = vmatprep.subr.bf16.mxu0 %v7842
          %8848 = vmatpush1.bf16.msra.mxu0 %v7841
          %8849 = vmatprep.subr.bf16.mxu0 %v7850
          %8850 = vmatpush1.bf16.msra.mxu0 %v7849
          %8851 = vmatprep.subr.bf16.mxu0 %v7858
          %8852 = vmatpush1.bf16.msra.mxu0 %v7857
          %8853 = vmatprep.subr.bf16.mxu0 %v7866
          %8854 = vmatpush1.bf16.msra.mxu0 %v7865
          %8855 = vmatprep.subr.bf16.mxu0 %v7874
          %8856 = vmatpush1.bf16.msra.mxu0 %v7873
          %8857 = vmatprep.subr.bf16.mxu0 %v7882
          %8858 = vmatpush1.bf16.msra.mxu0 %v7881
          %8859 = vmatprep.subr.bf16.mxu0 %v7890
          %8860 = vmatpush1.bf16.msra.mxu0 %v7889
          %8861 = vmatprep.subr.bf16.mxu0 %v7898
          %8862 = vmatpush1.bf16.msra.mxu0 %v7897
          %8863 = vmatprep.subr.bf16.mxu0 %v7906
          %8864 = vmatpush1.bf16.msra.mxu0 %v7905
          %8865 = vmatprep.subr.bf16.mxu0 %v7914
          %8866 = vmatpush1.bf16.msra.mxu0 %v7913
          %8867 = vmatprep.subr.bf16.mxu0 %v7922
          %8868 = vmatpush1.bf16.msra.mxu0 %v7921
          %8869 = vmatprep.subr.bf16.mxu0 %v7930
          %8870 = vmatpush1.bf16.msra.mxu0 %v7929
          %8871 = vmatprep.subr.bf16.mxu0 %v7938
          %8872 = vmatpush1.bf16.msra.mxu0 %v7937
          %8873 = vmatprep.subr.bf16.mxu0 %v7946
          %8874 = vmatpush1.bf16.msra.mxu0 %v7945
          %8875 = vmatprep.subr.bf16.mxu0 %v7954
          %8876 = vmatpush1.bf16.msra.mxu0 %v7953
          %8877 = vmatprep.mubr.bf16.mxu0 %v5482
          %8878 = vmatmul.mubr.bf16.gmra.mrb[0].mxu0 %v5481
          %v8879 = vpop.f32.mrb[0].mxu0
          %v8880 = vadd.f32 %v8839, %v8879
          %v8881 = vpop.f32.mrb[0].mxu0
          %v8882 = vadd.f32 %v8841, %v8881
          %v8883 = vpop.f32.mrb[0].mxu0
          %v8884 = vpop.f32.mrb[0].mxu0
          %8885 = vdwg.mxu0
          %8886 = vmatprep.subr.bf16.mxu0 %v7962
          %8887 = vmatpush1.bf16.msra.mxu0 %v7961
          %8888 = vmatprep.subr.bf16.mxu0 %v7970
          %8889 = vmatpush1.bf16.msra.mxu0 %v7969
          %8890 = vmatprep.subr.bf16.mxu0 %v7978
          %8891 = vmatpush1.bf16.msra.mxu0 %v7977
          %8892 = vmatprep.subr.bf16.mxu0 %v7986
          %8893 = vmatpush1.bf16.msra.mxu0 %v7985
          %8894 = vmatprep.subr.bf16.mxu0 %v7994
          %8895 = vmatpush1.bf16.msra.mxu0 %v7993
          %8896 = vmatprep.subr.bf16.mxu0 %v8002
          %8897 = vmatpush1.bf16.msra.mxu0 %v8001
          %8898 = vmatprep.subr.bf16.mxu0 %v8010
          %8899 = vmatpush1.bf16.msra.mxu0 %v8009
          %8900 = vmatprep.subr.bf16.mxu0 %v8018
          %8901 = vmatpush1.bf16.msra.mxu0 %v8017
          %8902 = vmatprep.subr.bf16.mxu0 %v8026
          %8903 = vmatpush1.bf16.msra.mxu0 %v8025
          %8904 = vmatprep.subr.bf16.mxu0 %v8034
          %8905 = vmatpush1.bf16.msra.mxu0 %v8033
          %8906 = vmatprep.subr.bf16.mxu0 %v8042
          %8907 = vmatpush1.bf16.msra.mxu0 %v8041
          %8908 = vmatprep.subr.bf16.mxu0 %v8050
          %8909 = vmatpush1.bf16.msra.mxu0 %v8049
          %8910 = vmatprep.subr.bf16.mxu0 %v8058
          %8911 = vmatpush1.bf16.msra.mxu0 %v8057
          %8912 = vmatprep.subr.bf16.mxu0 %v8066
          %8913 = vmatpush1.bf16.msra.mxu0 %v8065
          %8914 = vmatprep.subr.bf16.mxu0 %v8074
          %8915 = vmatpush1.bf16.msra.mxu0 %v8073
          %8916 = vmatprep.subr.bf16.mxu0 %v8082
          %8917 = vmatpush1.bf16.msra.mxu0 %v8081
          %8918 = vmatprep.mubr.bf16.mxu0 %v5484
          %8919 = vmatmul.mubr.bf16.gmra.mrb[0].mxu0 %v5483
          %v8920 = vpop.f32.mrb[0].mxu0
          %v8921 = vadd.f32 %v8880, %v8920
          %v8922 = vpop.f32.mrb[0].mxu0
          %v8923 = vadd.f32 %v8882, %v8922
          %v8924 = vpop.f32.mrb[0].mxu0
          %v8925 = vpop.f32.mrb[0].mxu0
          %8926 = vdwg.mxu0
          %8927 = vmatprep.subr.bf16.mxu0 %v7580
          %8928 = vmatpush1.bf16.msra.mxu0 %v7579
          %8929 = vmatprep.subr.bf16.mxu0 %v7588
          %8930 = vmatpush1.bf16.msra.mxu0 %v7587
          %8931 = vmatprep.subr.bf16.mxu0 %v7596
          %8932 = vmatpush1.bf16.msra.mxu0 %v7595
          %8933 = vmatprep.subr.bf16.mxu0 %v7604
          %8934 = vmatpush1.bf16.msra.mxu0 %v7603
          %8935 = vmatprep.subr.bf16.mxu0 %v7612
          %8936 = vmatpush1.bf16.msra.mxu0 %v7611
          %8937 = vmatprep.subr.bf16.mxu0 %v7620
          %8938 = vmatpush1.bf16.msra.mxu0 %v7619
          %8939 = vmatprep.subr.bf16.mxu0 %v7628
          %8940 = vmatpush1.bf16.msra.mxu0 %v7627
          %8941 = vmatprep.subr.bf16.mxu0 %v7636
          %8942 = vmatpush1.bf16.msra.mxu0 %v7635
          %8943 = vmatprep.subr.bf16.mxu0 %v7644
          %8944 = vmatpush1.bf16.msra.mxu0 %v7643
          %8945 = vmatprep.subr.bf16.mxu0 %v7652
          %8946 = vmatpush1.bf16.msra.mxu0 %v7651
          %8947 = vmatprep.subr.bf16.mxu0 %v7660
          %8948 = vmatpush1.bf16.msra.mxu0 %v7659
          %8949 = vmatprep.subr.bf16.mxu0 %v7668
          %8950 = vmatpush1.bf16.msra.mxu0 %v7667
          %8951 = vmatprep.subr.bf16.mxu0 %v7676
          %8952 = vmatpush1.bf16.msra.mxu0 %v7675
          %8953 = vmatprep.subr.bf16.mxu0 %v7684
          %8954 = vmatpush1.bf16.msra.mxu0 %v7683
          %8955 = vmatprep.subr.bf16.mxu0 %v7692
          %8956 = vmatpush1.bf16.msra.mxu0 %v7691
          %8957 = vmatprep.subr.bf16.mxu0 %v7700
          %8958 = vmatpush1.bf16.msra.mxu0 %v7699
          %8959 = vmatprep.mubr.bf16.mxu0 %v5478
          %8960 = vmatmul.mubr.bf16.gmra.mrb[0].mxu0 %v5477
          %v8961 = vpop.f32.mrb[0].mxu0
          %v8962 = vadd.f32 %v6018, %v8961
          %v8963 = vpop.f32.mrb[0].mxu0
          %v8964 = vadd.f32 %v6022, %v8963
          %v8965 = vpop.f32.mrb[0].mxu0
          %v8966 = vpop.f32.mrb[0].mxu0
          %8967 = vdwg.mxu0
          %8968 = vmatprep.subr.bf16.mxu0 %v7708
          %8969 = vmatpush1.bf16.msra.mxu0 %v7707
          %8970 = vmatprep.subr.bf16.mxu0 %v7716
          %8971 = vmatpush1.bf16.msra.mxu0 %v7715
          %8972 = vmatprep.subr.bf16.mxu0 %v7724
          %8973 = vmatpush1.bf16.msra.mxu0 %v7723
          %8974 = vmatprep.subr.bf16.mxu0 %v7732
          %8975 = vmatpush1.bf16.msra.mxu0 %v7731
          %8976 = vmatprep.subr.bf16.mxu0 %v7740
          %8977 = vmatpush1.bf16.msra.mxu0 %v7739
          %8978 = vmatprep.subr.bf16.mxu0 %v7748
          %8979 = vmatpush1.bf16.msra.mxu0 %v7747
          %8980 = vmatprep.subr.bf16.mxu0 %v7756
          %8981 = vmatpush1.bf16.msra.mxu0 %v7755
          %8982 = vmatprep.subr.bf16.mxu0 %v7764
          %8983 = vmatpush1.bf16.msra.mxu0 %v7763
          %8984 = vmatprep.subr.bf16.mxu0 %v7772
          %8985 = vmatpush1.bf16.msra.mxu0 %v7771
          %8986 = vmatprep.subr.bf16.mxu0 %v7780
          %8987 = vmatpush1.bf16.msra.mxu0 %v7779
          %8988 = vmatprep.subr.bf16.mxu0 %v7788
          %8989 = vmatpush1.bf16.msra.mxu0 %v7787
          %8990 = vmatprep.subr.bf16.mxu0 %v7796
          %8991 = vmatpush1.bf16.msra.mxu0 %v7795
          %8992 = vmatprep.subr.bf16.mxu0 %v7804
          %8993 = vmatpush1.bf16.msra.mxu0 %v7803
          %8994 = vmatprep.subr.bf16.mxu0 %v7812
          %8995 = vmatpush1.bf16.msra.mxu0 %v7811
          %8996 = vmatprep.subr.bf16.mxu0 %v7820
          %8997 = vmatpush1.bf16.msra.mxu0 %v7819
          %8998 = vmatprep.subr.bf16.mxu0 %v7828
          %8999 = vmatpush1.bf16.msra.mxu0 %v7827
          %9000 = vmatprep.mubr.bf16.mxu0 %v5480
          %9001 = vmatmul.mubr.bf16.gmra.mrb[0].mxu0 %v5479
          %v9002 = vpop.f32.mrb[0].mxu0
          %v9003 = vadd.f32 %v8962, %v9002
          %v9004 = vpop.f32.mrb[0].mxu0
          %v9005 = vadd.f32 %v8964, %v9004
          %v9006 = vpop.f32.mrb[0].mxu0
          %v9007 = vpop.f32.mrb[0].mxu0
          %9008 = vdwg.mxu0
          %9009 = vmatprep.subr.bf16.mxu0 %v7836
          %9010 = vmatpush1.bf16.msra.mxu0 %v7835
          %9011 = vmatprep.subr.bf16.mxu0 %v7844
          %9012 = vmatpush1.bf16.msra.mxu0 %v7843
          %9013 = vmatprep.subr.bf16.mxu0 %v7852
          %9014 = vmatpush1.bf16.msra.mxu0 %v7851
          %9015 = vmatprep.subr.bf16.mxu0 %v7860
          %9016 = vmatpush1.bf16.msra.mxu0 %v7859
          %9017 = vmatprep.subr.bf16.mxu0 %v7868
          %9018 = vmatpush1.bf16.msra.mxu0 %v7867
          %9019 = vmatprep.subr.bf16.mxu0 %v7876
          %9020 = vmatpush1.bf16.msra.mxu0 %v7875
          %9021 = vmatprep.subr.bf16.mxu0 %v7884
          %9022 = vmatpush1.bf16.msra.mxu0 %v7883
          %9023 = vmatprep.subr.bf16.mxu0 %v7892
          %9024 = vmatpush1.bf16.msra.mxu0 %v7891
          %9025 = vmatprep.subr.bf16.mxu0 %v7900
          %9026 = vmatpush1.bf16.msra.mxu0 %v7899
          %9027 = vmatprep.subr.bf16.mxu0 %v7908
          %9028 = vmatpush1.bf16.msra.mxu0 %v7907
          %9029 = vmatprep.subr.bf16.mxu0 %v7916
          %9030 = vmatpush1.bf16.msra.mxu0 %v7915
          %9031 = vmatprep.subr.bf16.mxu0 %v7924
          %9032 = vmatpush1.bf16.msra.mxu0 %v7923
          %9033 = vmatprep.subr.bf16.mxu0 %v7932
          %9034 = vmatpush1.bf16.msra.mxu0 %v7931
          %9035 = vmatprep.subr.bf16.mxu0 %v7940
          %9036 = vmatpush1.bf16.msra.mxu0 %v7939
          %9037 = vmatprep.subr.bf16.mxu0 %v7948
          %9038 = vmatpush1.bf16.msra.mxu0 %v7947
          %9039 = vmatprep.subr.bf16.mxu0 %v7956
          %9040 = vmatpush1.bf16.msra.mxu0 %v7955
          %9041 = vmatprep.mubr.bf16.mxu0 %v5482
          %9042 = vmatmul.mubr.bf16.gmra.mrb[0].mxu0 %v5481
          %v9043 = vpop.f32.mrb[0].mxu0
          %v9044 = vadd.f32 %v9003, %v9043
          %v9045 = vpop.f32.mrb[0].mxu0
          %v9046 = vadd.f32 %v9005, %v9045
          %v9047 = vpop.f32.mrb[0].mxu0
          %v9048 = vpop.f32.mrb[0].mxu0
          %9049 = vdwg.mxu0
          %9050 = vmatprep.subr.bf16.mxu0 %v7964
          %9051 = vmatpush1.bf16.msra.mxu0 %v7963
          %9052 = vmatprep.subr.bf16.mxu0 %v7972
          %9053 = vmatpush1.bf16.msra.mxu0 %v7971
          %9054 = vmatprep.subr.bf16.mxu0 %v7980
          %9055 = vmatpush1.bf16.msra.mxu0 %v7979
          %9056 = vmatprep.subr.bf16.mxu0 %v7988
          %9057 = vmatpush1.bf16.msra.mxu0 %v7987
          %9058 = vmatprep.subr.bf16.mxu0 %v7996
          %9059 = vmatpush1.bf16.msra.mxu0 %v7995
          %9060 = vmatprep.subr.bf16.mxu0 %v8004
          %9061 = vmatpush1.bf16.msra.mxu0 %v8003
          %9062 = vmatprep.subr.bf16.mxu0 %v8012
          %9063 = vmatpush1.bf16.msra.mxu0 %v8011
          %9064 = vmatprep.subr.bf16.mxu0 %v8020
          %9065 = vmatpush1.bf16.msra.mxu0 %v8019
          %9066 = vmatprep.subr.bf16.mxu0 %v8028
          %9067 = vmatpush1.bf16.msra.mxu0 %v8027
          %9068 = vmatprep.subr.bf16.mxu0 %v8036
          %9069 = vmatpush1.bf16.msra.mxu0 %v8035
          %9070 = vmatprep.subr.bf16.mxu0 %v8044
          %9071 = vmatpush1.bf16.msra.mxu0 %v8043
          %9072 = vmatprep.subr.bf16.mxu0 %v8052
          %9073 = vmatpush1.bf16.msra.mxu0 %v8051
          %9074 = vmatprep.subr.bf16.mxu0 %v8060
          %9075 = vmatpush1.bf16.msra.mxu0 %v8059
          %9076 = vmatprep.subr.bf16.mxu0 %v8068
          %9077 = vmatpush1.bf16.msra.mxu0 %v8067
          %9078 = vmatprep.subr.bf16.mxu0 %v8076
          %9079 = vmatpush1.bf16.msra.mxu0 %v8075
          %9080 = vmatprep.subr.bf16.mxu0 %v8084
          %9081 = vmatpush1.bf16.msra.mxu0 %v8083
          %9082 = vmatprep.mubr.bf16.mxu0 %v5484
          %9083 = vmatmul.mubr.bf16.gmra.mrb[0].mxu0 %v5483
          %v9084 = vpop.f32.mrb[0].mxu0
          %v9085 = vadd.f32 %v9044, %v9084
          %v9086 = vpop.f32.mrb[0].mxu0
          %v9087 = vadd.f32 %v9046, %v9086
          %v9088 = vpop.f32.mrb[0].mxu0
          %v9089 = vpop.f32.mrb[0].mxu0
          %9090 = vdwg.mxu0
          %9091 = vmatprep.subr.bf16.mxu0 %v7582
          %9092 = vmatpush1.bf16.msra.mxu0 %v7581
          %9093 = vmatprep.subr.bf16.mxu0 %v7590
          %9094 = vmatpush1.bf16.msra.mxu0 %v7589
          %9095 = vmatprep.subr.bf16.mxu0 %v7598
          %9096 = vmatpush1.bf16.msra.mxu0 %v7597
          %9097 = vmatprep.subr.bf16.mxu0 %v7606
          %9098 = vmatpush1.bf16.msra.mxu0 %v7605
          %9099 = vmatprep.subr.bf16.mxu0 %v7614
          %9100 = vmatpush1.bf16.msra.mxu0 %v7613
          %9101 = vmatprep.subr.bf16.mxu0 %v7622
          %9102 = vmatpush1.bf16.msra.mxu0 %v7621
          %9103 = vmatprep.subr.bf16.mxu0 %v7630
          %9104 = vmatpush1.bf16.msra.mxu0 %v7629
          %9105 = vmatprep.subr.bf16.mxu0 %v7638
          %9106 = vmatpush1.bf16.msra.mxu0 %v7637
          %9107 = vmatprep.subr.bf16.mxu0 %v7646
          %9108 = vmatpush1.bf16.msra.mxu0 %v7645
          %9109 = vmatprep.subr.bf16.mxu0 %v7654
          %9110 = vmatpush1.bf16.msra.mxu0 %v7653
          %9111 = vmatprep.subr.bf16.mxu0 %v7662
          %9112 = vmatpush1.bf16.msra.mxu0 %v7661
          %9113 = vmatprep.subr.bf16.mxu0 %v7670
          %9114 = vmatpush1.bf16.msra.mxu0 %v7669
          %9115 = vmatprep.subr.bf16.mxu0 %v7678
          %9116 = vmatpush1.bf16.msra.mxu0 %v7677
          %9117 = vmatprep.subr.bf16.mxu0 %v7686
          %9118 = vmatpush1.bf16.msra.mxu0 %v7685
          %9119 = vmatprep.subr.bf16.mxu0 %v7694
          %9120 = vmatpush1.bf16.msra.mxu0 %v7693
          %9121 = vmatprep.subr.bf16.mxu0 %v7702
          %9122 = vmatpush1.bf16.msra.mxu0 %v7701
          %9123 = vmatprep.mubr.bf16.mxu0 %v5478
          %9124 = vmatmul.mubr.bf16.gmra.mrb[0].mxu0 %v5477
          %v9125 = vpop.f32.mrb[0].mxu0
          %v9126 = vadd.f32 %v6026, %v9125
          %v9127 = vpop.f32.mrb[0].mxu0
          %v9128 = vadd.f32 %v6030, %v9127
          %v9129 = vpop.f32.mrb[0].mxu0
          %v9130 = vpop.f32.mrb[0].mxu0
          %9131 = vdwg.mxu0
          %9132 = vmatprep.subr.bf16.mxu0 %v7710
          %9133 = vmatpush1.bf16.msra.mxu0 %v7709
          %9134 = vmatprep.subr.bf16.mxu0 %v7718
          %9135 = vmatpush1.bf16.msra.mxu0 %v7717
          %9136 = vmatprep.subr.bf16.mxu0 %v7726
          %9137 = vmatpush1.bf16.msra.mxu0 %v7725
          %9138 = vmatprep.subr.bf16.mxu0 %v7734
          %9139 = vmatpush1.bf16.msra.mxu0 %v7733
          %9140 = vmatprep.subr.bf16.mxu0 %v7742
          %9141 = vmatpush1.bf16.msra.mxu0 %v7741
          %9142 = vmatprep.subr.bf16.mxu0 %v7750
          %9143 = vmatpush1.bf16.msra.mxu0 %v7749
          %9144 = vmatprep.subr.bf16.mxu0 %v7758
          %9145 = vmatpush1.bf16.msra.mxu0 %v7757
          %9146 = vmatprep.subr.bf16.mxu0 %v7766
          %9147 = vmatpush1.bf16.msra.mxu0 %v7765
          %9148 = vmatprep.subr.bf16.mxu0 %v7774
          %9149 = vmatpush1.bf16.msra.mxu0 %v7773
          %9150 = vmatprep.subr.bf16.mxu0 %v7782
          %9151 = vmatpush1.bf16.msra.mxu0 %v7781
          %9152 = vmatprep.subr.bf16.mxu0 %v7790
          %9153 = vmatpush1.bf16.msra.mxu0 %v7789
          %9154 = vmatprep.subr.bf16.mxu0 %v7798
          %9155 = vmatpush1.bf16.msra.mxu0 %v7797
          %9156 = vmatprep.subr.bf16.mxu0 %v7806
          %9157 = vmatpush1.bf16.msra.mxu0 %v7805
          %9158 = vmatprep.subr.bf16.mxu0 %v7814
          %9159 = vmatpush1.bf16.msra.mxu0 %v7813
          %9160 = vmatprep.subr.bf16.mxu0 %v7822
          %9161 = vmatpush1.bf16.msra.mxu0 %v7821
          %9162 = vmatprep.subr.bf16.mxu0 %v7830
          %9163 = vmatpush1.bf16.msra.mxu0 %v7829
          %9164 = vmatprep.mubr.bf16.mxu0 %v5480
          %9165 = vmatmul.mubr.bf16.gmra.mrb[0].mxu0 %v5479
          %v9166 = vpop.f32.mrb[0].mxu0
          %v9167 = vadd.f32 %v9126, %v9166
          %v9168 = vpop.f32.mrb[0].mxu0
          %v9169 = vadd.f32 %v9128, %v9168
          %v9170 = vpop.f32.mrb[0].mxu0
          %v9171 = vpop.f32.mrb[0].mxu0
          %9172 = vdwg.mxu0
          %9173 = vmatprep.subr.bf16.mxu0 %v7838
          %9174 = vmatpush1.bf16.msra.mxu0 %v7837
          %9175 = vmatprep.subr.bf16.mxu0 %v7846
          %9176 = vmatpush1.bf16.msra.mxu0 %v7845
          %9177 = vmatprep.subr.bf16.mxu0 %v7854
          %9178 = vmatpush1.bf16.msra.mxu0 %v7853
          %9179 = vmatprep.subr.bf16.mxu0 %v7862
          %9180 = vmatpush1.bf16.msra.mxu0 %v7861
          %9181 = vmatprep.subr.bf16.mxu0 %v7870
          %9182 = vmatpush1.bf16.msra.mxu0 %v7869
          %9183 = vmatprep.subr.bf16.mxu0 %v7878
          %9184 = vmatpush1.bf16.msra.mxu0 %v7877
          %9185 = vmatprep.subr.bf16.mxu0 %v7886
          %9186 = vmatpush1.bf16.msra.mxu0 %v7885
          %9187 = vmatprep.subr.bf16.mxu0 %v7894
          %9188 = vmatpush1.bf16.msra.mxu0 %v7893
          %9189 = vmatprep.subr.bf16.mxu0 %v7902
          %9190 = vmatpush1.bf16.msra.mxu0 %v7901
          %9191 = vmatprep.subr.bf16.mxu0 %v7910
          %9192 = vmatpush1.bf16.msra.mxu0 %v7909
          %9193 = vmatprep.subr.bf16.mxu0 %v7918
          %9194 = vmatpush1.bf16.msra.mxu0 %v7917
          %9195 = vmatprep.subr.bf16.mxu0 %v7926
          %9196 = vmatpush1.bf16.msra.mxu0 %v7925
          %9197 = vmatprep.subr.bf16.mxu0 %v7934
          %9198 = vmatpush1.bf16.msra.mxu0 %v7933
          %9199 = vmatprep.subr.bf16.mxu0 %v7942
          %9200 = vmatpush1.bf16.msra.mxu0 %v7941
          %9201 = vmatprep.subr.bf16.mxu0 %v7950
          %9202 = vmatpush1.bf16.msra.mxu0 %v7949
          %9203 = vmatprep.subr.bf16.mxu0 %v7958
          %9204 = vmatpush1.bf16.msra.mxu0 %v7957
          %9205 = vmatprep.mubr.bf16.mxu0 %v5482
          %9206 = vmatmul.mubr.bf16.gmra.mrb[0].mxu0 %v5481
          %v9207 = vpop.f32.mrb[0].mxu0
          %v9208 = vadd.f32 %v9167, %v9207
          %v9209 = vpop.f32.mrb[0].mxu0
          %v9210 = vadd.f32 %v9169, %v9209
          %v9211 = vpop.f32.mrb[0].mxu0
          %v9212 = vpop.f32.mrb[0].mxu0
          %9213 = vdwg.mxu0
          %9214 = vmatprep.subr.bf16.mxu0 %v7966
          %9215 = vmatpush1.bf16.msra.mxu0 %v7965
          %9216 = vmatprep.subr.bf16.mxu0 %v7974
          %9217 = vmatpush1.bf16.msra.mxu0 %v7973
          %9218 = vmatprep.subr.bf16.mxu0 %v7982
          %9219 = vmatpush1.bf16.msra.mxu0 %v7981
          %9220 = vmatprep.subr.bf16.mxu0 %v7990
          %9221 = vmatpush1.bf16.msra.mxu0 %v7989
          %9222 = vmatprep.subr.bf16.mxu0 %v7998
          %9223 = vmatpush1.bf16.msra.mxu0 %v7997
          %9224 = vmatprep.subr.bf16.mxu0 %v8006
          %9225 = vmatpush1.bf16.msra.mxu0 %v8005
          %9226 = vmatprep.subr.bf16.mxu0 %v8014
          %9227 = vmatpush1.bf16.msra.mxu0 %v8013
          %9228 = vmatprep.subr.bf16.mxu0 %v8022
          %9229 = vmatpush1.bf16.msra.mxu0 %v8021
          %9230 = vmatprep.subr.bf16.mxu0 %v8030
          %9231 = vmatpush1.bf16.msra.mxu0 %v8029
          %9232 = vmatprep.subr.bf16.mxu0 %v8038
          %9233 = vmatpush1.bf16.msra.mxu0 %v8037
          %9234 = vmatprep.subr.bf16.mxu0 %v8046
          %9235 = vmatpush1.bf16.msra.mxu0 %v8045
          %9236 = vmatprep.subr.bf16.mxu0 %v8054
          %9237 = vmatpush1.bf16.msra.mxu0 %v8053
          %9238 = vmatprep.subr.bf16.mxu0 %v8062
          %9239 = vmatpush1.bf16.msra.mxu0 %v8061
          %9240 = vmatprep.subr.bf16.mxu0 %v8070
          %9241 = vmatpush1.bf16.msra.mxu0 %v8069
          %9242 = vmatprep.subr.bf16.mxu0 %v8078
          %9243 = vmatpush1.bf16.msra.mxu0 %v8077
          %9244 = vmatprep.subr.bf16.mxu0 %v8086
          %9245 = vmatpush1.bf16.msra.mxu0 %v8085
          %9246 = vmatprep.mubr.bf16.mxu0 %v5484
          %9247 = vmatmul.mubr.bf16.gmra.mrb[0].mxu0 %v5483
          %v9248 = vpop.f32.mrb[0].mxu0
          %v9249 = vadd.f32 %v9208, %v9248
          %v9250 = vpop.f32.mrb[0].mxu0
          %v9251 = vadd.f32 %v9210, %v9250
          %v9252 = vpop.f32.mrb[0].mxu0
          %v9253 = vpop.f32.mrb[0].mxu0
          %9254 = vdwg.mxu0
          %v9255 = vmax.f32 %v8757, 0.0
          %v9256 = vmax.f32 %v8759, 0.0
          %v9257 = vmax.f32 %v8921, 0.0
          %v9258 = vmax.f32 %v8923, 0.0
          %v9259 = vmax.f32 %v9085, 0.0
          %v9260 = vmax.f32 %v9087, 0.0
          %v9261 = vmax.f32 %v9249, 0.0
          %v9262 = vmax.f32 %v9251, 0.0
          %v9263 = vpack.c.bf16 %v9255, %v9255
          %v9264 = vpack.c.bf16 %v9256, %v9256
          %v9265 = vpack.c.bf16 %v9257, %v9257
          %v9266 = vpack.c.bf16 %v9258, %v9258
          %v9267 = vpack.c.bf16 %v9259, %v9259
          %v9268 = vpack.c.bf16 %v9260, %v9260
          %v9269 = vpack.c.bf16 %v9261, %v9261
          %v9270 = vpack.c.bf16 %v9262, %v9262
          %v9271 = vld [vmem:[#allocation17] sm:$0xf]
          %v9272 = vld [vmem:[#allocation17 + $0x4] sm:$0xf]
          %v9273 = vld [vmem:[#allocation17 + $0x8] sm:$0xf]
          %v9274 = vld [vmem:[#allocation17 + $0xc] sm:$0xf]
          %v9275 = vld [vmem:[#allocation17 + $0x10] sm:$0xf]
          %v9276 = vld [vmem:[#allocation17 + $0x14] sm:$0xf]
          %v9277 = vld [vmem:[#allocation17 + $0x18] sm:$0xf]
          %v9278 = vld [vmem:[#allocation17 + $0x1c] sm:$0xf]
          %v9279 = vld [vmem:[#allocation17 + $0x20] sm:$0xf]
          %v9280 = vld [vmem:[#allocation17 + $0x24] sm:$0xf]
          %v9281 = vld [vmem:[#allocation17 + $0x28] sm:$0xf]
          %v9282 = vld [vmem:[#allocation17 + $0x2c] sm:$0xf]
          %v9283 = vld [vmem:[#allocation17 + $0x30] sm:$0xf]
          %v9284 = vld [vmem:[#allocation17 + $0x34] sm:$0xf]
          %v9285 = vld [vmem:[#allocation17 + $0x38] sm:$0xf]
          %v9286 = vld [vmem:[#allocation17 + $0x3c] sm:$0xf]
          %v9287 = vld [vmem:[#allocation17 + $0x40] sm:$0xf]
          %v9288 = vld [vmem:[#allocation17 + $0x44] sm:$0xf]
          %v9289 = vld [vmem:[#allocation17 + $0x48] sm:$0xf]
          %v9290 = vld [vmem:[#allocation17 + $0x4c] sm:$0xf]
          %v9291 = vld [vmem:[#allocation17 + $0x50] sm:$0xf]
          %v9292 = vld [vmem:[#allocation17 + $0x54] sm:$0xf]
          %v9293 = vld [vmem:[#allocation17 + $0x58] sm:$0xf]
          %v9294 = vld [vmem:[#allocation17 + $0x5c] sm:$0xf]
          %v9295 = vld [vmem:[#allocation17 + $0x60] sm:$0xf]
          %v9296 = vld [vmem:[#allocation17 + $0x64] sm:$0xf]
          %v9297 = vld [vmem:[#allocation17 + $0x68] sm:$0xf]
          %v9298 = vld [vmem:[#allocation17 + $0x6c] sm:$0xf]
          %v9299 = vld [vmem:[#allocation17 + $0x70] sm:$0xf]
          %v9300 = vld [vmem:[#allocation17 + $0x74] sm:$0xf]
          %v9301 = vld [vmem:[#allocation17 + $0x78] sm:$0xf]
          %v9302 = vld [vmem:[#allocation17 + $0x7c] sm:$0xf]
          %v9303 = vld [vmem:[#allocation17 + $0x80] sm:$0xf]
          %v9304 = vld [vmem:[#allocation17 + $0x84] sm:$0xf]
          %v9305 = vld [vmem:[#allocation17 + $0x88] sm:$0xf]
          %v9306 = vld [vmem:[#allocation17 + $0x8c] sm:$0xf]
          %v9307 = vld [vmem:[#allocation17 + $0x90] sm:$0xf]
          %v9308 = vld [vmem:[#allocation17 + $0x94] sm:$0xf]
          %v9309 = vld [vmem:[#allocation17 + $0x98] sm:$0xf]
          %v9310 = vld [vmem:[#allocation17 + $0x9c] sm:$0xf]
          %v9311 = vld [vmem:[#allocation17 + $0xa0] sm:$0xf]
          %v9312 = vld [vmem:[#allocation17 + $0xa4] sm:$0xf]
          %v9313 = vld [vmem:[#allocation17 + $0xa8] sm:$0xf]
          %v9314 = vld [vmem:[#allocation17 + $0xac] sm:$0xf]
          %v9315 = vld [vmem:[#allocation17 + $0xb0] sm:$0xf]
          %v9316 = vld [vmem:[#allocation17 + $0xb4] sm:$0xf]
          %v9317 = vld [vmem:[#allocation17 + $0xb8] sm:$0xf]
          %v9318 = vld [vmem:[#allocation17 + $0xbc] sm:$0xf]
          %v9319 = vld [vmem:[#allocation17 + $0xc0] sm:$0xf]
          %v9320 = vld [vmem:[#allocation17 + $0xc4] sm:$0xf]
          %v9321 = vld [vmem:[#allocation17 + $0xc8] sm:$0xf]
          %v9322 = vld [vmem:[#allocation17 + $0xcc] sm:$0xf]
          %v9323 = vld [vmem:[#allocation17 + $0xd0] sm:$0xf]
          %v9324 = vld [vmem:[#allocation17 + $0xd4] sm:$0xf]
          %v9325 = vld [vmem:[#allocation17 + $0xd8] sm:$0xf]
          %v9326 = vld [vmem:[#allocation17 + $0xdc] sm:$0xf]
          %v9327 = vld [vmem:[#allocation17 + $0xe0] sm:$0xf]
          %v9328 = vld [vmem:[#allocation17 + $0xe4] sm:$0xf]
          %v9329 = vld [vmem:[#allocation17 + $0xe8] sm:$0xf]
          %v9330 = vld [vmem:[#allocation17 + $0xec] sm:$0xf]
          %v9331 = vld [vmem:[#allocation17 + $0xf0] sm:$0xf]
          %v9332 = vld [vmem:[#allocation17 + $0xf4] sm:$0xf]
          %v9333 = vld [vmem:[#allocation17 + $0xf8] sm:$0xf]
          %v9334 = vld [vmem:[#allocation17 + $0xfc] sm:$0xf]
          %v9335 = vld [vmem:[#allocation17 + $0x100] sm:$0xf]
          %v9336 = vld [vmem:[#allocation17 + $0x104] sm:$0xf]
          %v9337 = vld [vmem:[#allocation17 + $0x108] sm:$0xf]
          %v9338 = vld [vmem:[#allocation17 + $0x10c] sm:$0xf]
          %v9339 = vld [vmem:[#allocation17 + $0x110] sm:$0xf]
          %v9340 = vld [vmem:[#allocation17 + $0x114] sm:$0xf]
          %v9341 = vld [vmem:[#allocation17 + $0x118] sm:$0xf]
          %v9342 = vld [vmem:[#allocation17 + $0x11c] sm:$0xf]
          %v9343 = vld [vmem:[#allocation17 + $0x120] sm:$0xf]
          %v9344 = vld [vmem:[#allocation17 + $0x124] sm:$0xf]
          %v9345 = vld [vmem:[#allocation17 + $0x128] sm:$0xf]
          %v9346 = vld [vmem:[#allocation17 + $0x12c] sm:$0xf]
          %v9347 = vld [vmem:[#allocation17 + $0x130] sm:$0xf]
          %v9348 = vld [vmem:[#allocation17 + $0x134] sm:$0xf]
          %v9349 = vld [vmem:[#allocation17 + $0x138] sm:$0xf]
          %v9350 = vld [vmem:[#allocation17 + $0x13c] sm:$0xf]
          %v9351 = vld [vmem:[#allocation17 + $0x140] sm:$0xf]
          %v9352 = vld [vmem:[#allocation17 + $0x144] sm:$0xf]
          %v9353 = vld [vmem:[#allocation17 + $0x148] sm:$0xf]
          %v9354 = vld [vmem:[#allocation17 + $0x14c] sm:$0xf]
          %v9355 = vld [vmem:[#allocation17 + $0x150] sm:$0xf]
          %v9356 = vld [vmem:[#allocation17 + $0x154] sm:$0xf]
          %v9357 = vld [vmem:[#allocation17 + $0x158] sm:$0xf]
          %v9358 = vld [vmem:[#allocation17 + $0x15c] sm:$0xf]
          %v9359 = vld [vmem:[#allocation17 + $0x160] sm:$0xf]
          %v9360 = vld [vmem:[#allocation17 + $0x164] sm:$0xf]
          %v9361 = vld [vmem:[#allocation17 + $0x168] sm:$0xf]
          %v9362 = vld [vmem:[#allocation17 + $0x16c] sm:$0xf]
          %v9363 = vld [vmem:[#allocation17 + $0x170] sm:$0xf]
          %v9364 = vld [vmem:[#allocation17 + $0x174] sm:$0xf]
          %v9365 = vld [vmem:[#allocation17 + $0x178] sm:$0xf]
          %v9366 = vld [vmem:[#allocation17 + $0x17c] sm:$0xf]
          %v9367 = vld [vmem:[#allocation17 + $0x180] sm:$0xf]
          %v9368 = vld [vmem:[#allocation17 + $0x184] sm:$0xf]
          %v9369 = vld [vmem:[#allocation17 + $0x188] sm:$0xf]
          %v9370 = vld [vmem:[#allocation17 + $0x18c] sm:$0xf]
          %v9371 = vld [vmem:[#allocation17 + $0x190] sm:$0xf]
          %v9372 = vld [vmem:[#allocation17 + $0x194] sm:$0xf]
          %v9373 = vld [vmem:[#allocation17 + $0x198] sm:$0xf]
          %v9374 = vld [vmem:[#allocation17 + $0x19c] sm:$0xf]
          %v9375 = vld [vmem:[#allocation17 + $0x1a0] sm:$0xf]
          %v9376 = vld [vmem:[#allocation17 + $0x1a4] sm:$0xf]
          %v9377 = vld [vmem:[#allocation17 + $0x1a8] sm:$0xf]
          %v9378 = vld [vmem:[#allocation17 + $0x1ac] sm:$0xf]
          %v9379 = vld [vmem:[#allocation17 + $0x1b0] sm:$0xf]
          %v9380 = vld [vmem:[#allocation17 + $0x1b4] sm:$0xf]
          %v9381 = vld [vmem:[#allocation17 + $0x1b8] sm:$0xf]
          %v9382 = vld [vmem:[#allocation17 + $0x1bc] sm:$0xf]
          %v9383 = vld [vmem:[#allocation17 + $0x1c0] sm:$0xf]
          %v9384 = vld [vmem:[#allocation17 + $0x1c4] sm:$0xf]
          %v9385 = vld [vmem:[#allocation17 + $0x1c8] sm:$0xf]
          %v9386 = vld [vmem:[#allocation17 + $0x1cc] sm:$0xf]
          %v9387 = vld [vmem:[#allocation17 + $0x1d0] sm:$0xf]
          %v9388 = vld [vmem:[#allocation17 + $0x1d4] sm:$0xf]
          %v9389 = vld [vmem:[#allocation17 + $0x1d8] sm:$0xf]
          %v9390 = vld [vmem:[#allocation17 + $0x1dc] sm:$0xf]
          %v9391 = vld [vmem:[#allocation17 + $0x1e0] sm:$0xf]
          %v9392 = vld [vmem:[#allocation17 + $0x1e4] sm:$0xf]
          %v9393 = vld [vmem:[#allocation17 + $0x1e8] sm:$0xf]
          %v9394 = vld [vmem:[#allocation17 + $0x1ec] sm:$0xf]
          %v9395 = vld [vmem:[#allocation17 + $0x1f0] sm:$0xf]
          %v9396 = vld [vmem:[#allocation17 + $0x1f4] sm:$0xf]
          %v9397 = vld [vmem:[#allocation17 + $0x1f8] sm:$0xf]
          %v9398 = vld [vmem:[#allocation17 + $0x1fc] sm:$0xf]
          %v9527 = vunpack.c.l.b16 %v9271
          %v9528 = vunpack.c.l.b16 %v9272
          %v9529 = vunpack.c.l.b16 %v9273
          %v9530 = vunpack.c.l.b16 %v9274
          %v9531 = vunpack.c.l.b16 %v9275
          %v9532 = vunpack.c.l.b16 %v9276
          %v9533 = vunpack.c.l.b16 %v9277
          %v9534 = vunpack.c.l.b16 %v9278
          %v9535 = vunpack.c.l.b16 %v9279
          %v9536 = vunpack.c.l.b16 %v9280
          %v9537 = vunpack.c.l.b16 %v9281
          %v9538 = vunpack.c.l.b16 %v9282
          %v9539 = vunpack.c.l.b16 %v9283
          %v9540 = vunpack.c.l.b16 %v9284
          %v9541 = vunpack.c.l.b16 %v9285
          %v9542 = vunpack.c.l.b16 %v9286
          %v9543 = vunpack.c.l.b16 %v9287
          %v9544 = vunpack.c.l.b16 %v9288
          %v9545 = vunpack.c.l.b16 %v9289
          %v9546 = vunpack.c.l.b16 %v9290
          %v9547 = vunpack.c.l.b16 %v9291
          %v9548 = vunpack.c.l.b16 %v9292
          %v9549 = vunpack.c.l.b16 %v9293
          %v9550 = vunpack.c.l.b16 %v9294
          %v9551 = vunpack.c.l.b16 %v9295
          %v9552 = vunpack.c.l.b16 %v9296
          %v9553 = vunpack.c.l.b16 %v9297
          %v9554 = vunpack.c.l.b16 %v9298
          %v9555 = vunpack.c.l.b16 %v9299
          %v9556 = vunpack.c.l.b16 %v9300
          %v9557 = vunpack.c.l.b16 %v9301
          %v9558 = vunpack.c.l.b16 %v9302
          %v9559 = vunpack.c.l.b16 %v9303
          %v9560 = vunpack.c.l.b16 %v9304
          %v9561 = vunpack.c.l.b16 %v9305
          %v9562 = vunpack.c.l.b16 %v9306
          %v9563 = vunpack.c.l.b16 %v9307
          %v9564 = vunpack.c.l.b16 %v9308
          %v9565 = vunpack.c.l.b16 %v9309
          %v9566 = vunpack.c.l.b16 %v9310
          %v9567 = vunpack.c.l.b16 %v9311
          %v9568 = vunpack.c.l.b16 %v9312
          %v9569 = vunpack.c.l.b16 %v9313
          %v9570 = vunpack.c.l.b16 %v9314
          %v9571 = vunpack.c.l.b16 %v9315
          %v9572 = vunpack.c.l.b16 %v9316
          %v9573 = vunpack.c.l.b16 %v9317
          %v9574 = vunpack.c.l.b16 %v9318
          %v9575 = vunpack.c.l.b16 %v9319
          %v9576 = vunpack.c.l.b16 %v9320
          %v9577 = vunpack.c.l.b16 %v9321
          %v9578 = vunpack.c.l.b16 %v9322
          %v9579 = vunpack.c.l.b16 %v9323
          %v9580 = vunpack.c.l.b16 %v9324
          %v9581 = vunpack.c.l.b16 %v9325
          %v9582 = vunpack.c.l.b16 %v9326
          %v9583 = vunpack.c.l.b16 %v9327
          %v9584 = vunpack.c.l.b16 %v9328
          %v9585 = vunpack.c.l.b16 %v9329
          %v9586 = vunpack.c.l.b16 %v9330
          %v9587 = vunpack.c.l.b16 %v9331
          %v9588 = vunpack.c.l.b16 %v9332
          %v9589 = vunpack.c.l.b16 %v9333
          %v9590 = vunpack.c.l.b16 %v9334
          %v9591 = vunpack.c.l.b16 %v9335
          %v9592 = vunpack.c.l.b16 %v9336
          %v9593 = vunpack.c.l.b16 %v9337
          %v9594 = vunpack.c.l.b16 %v9338
          %v9595 = vunpack.c.l.b16 %v9339
          %v9596 = vunpack.c.l.b16 %v9340
          %v9597 = vunpack.c.l.b16 %v9341
          %v9598 = vunpack.c.l.b16 %v9342
          %v9599 = vunpack.c.l.b16 %v9343
          %v9600 = vunpack.c.l.b16 %v9344
          %v9601 = vunpack.c.l.b16 %v9345
          %v9602 = vunpack.c.l.b16 %v9346
          %v9603 = vunpack.c.l.b16 %v9347
          %v9604 = vunpack.c.l.b16 %v9348
          %v9605 = vunpack.c.l.b16 %v9349
          %v9606 = vunpack.c.l.b16 %v9350
          %v9607 = vunpack.c.l.b16 %v9351
          %v9608 = vunpack.c.l.b16 %v9352
          %v9609 = vunpack.c.l.b16 %v9353
          %v9610 = vunpack.c.l.b16 %v9354
          %v9611 = vunpack.c.l.b16 %v9355
          %v9612 = vunpack.c.l.b16 %v9356
          %v9613 = vunpack.c.l.b16 %v9357
          %v9614 = vunpack.c.l.b16 %v9358
          %v9615 = vunpack.c.l.b16 %v9359
          %v9616 = vunpack.c.l.b16 %v9360
          %v9617 = vunpack.c.l.b16 %v9361
          %v9618 = vunpack.c.l.b16 %v9362
          %v9619 = vunpack.c.l.b16 %v9363
          %v9620 = vunpack.c.l.b16 %v9364
          %v9621 = vunpack.c.l.b16 %v9365
          %v9622 = vunpack.c.l.b16 %v9366
          %v9623 = vunpack.c.l.b16 %v9367
          %v9624 = vunpack.c.l.b16 %v9368
          %v9625 = vunpack.c.l.b16 %v9369
          %v9626 = vunpack.c.l.b16 %v9370
          %v9627 = vunpack.c.l.b16 %v9371
          %v9628 = vunpack.c.l.b16 %v9372
          %v9629 = vunpack.c.l.b16 %v9373
          %v9630 = vunpack.c.l.b16 %v9374
          %v9631 = vunpack.c.l.b16 %v9375
          %v9632 = vunpack.c.l.b16 %v9376
          %v9633 = vunpack.c.l.b16 %v9377
          %v9634 = vunpack.c.l.b16 %v9378
          %v9635 = vunpack.c.l.b16 %v9379
          %v9636 = vunpack.c.l.b16 %v9380
          %v9637 = vunpack.c.l.b16 %v9381
          %v9638 = vunpack.c.l.b16 %v9382
          %v9639 = vunpack.c.l.b16 %v9383
          %v9640 = vunpack.c.l.b16 %v9384
          %v9641 = vunpack.c.l.b16 %v9385
          %v9642 = vunpack.c.l.b16 %v9386
          %v9643 = vunpack.c.l.b16 %v9387
          %v9644 = vunpack.c.l.b16 %v9388
          %v9645 = vunpack.c.l.b16 %v9389
          %v9646 = vunpack.c.l.b16 %v9390
          %v9647 = vunpack.c.l.b16 %v9391
          %v9648 = vunpack.c.l.b16 %v9392
          %v9649 = vunpack.c.l.b16 %v9393
          %v9650 = vunpack.c.l.b16 %v9394
          %v9651 = vunpack.c.l.b16 %v9395
          %v9652 = vunpack.c.l.b16 %v9396
          %v9653 = vunpack.c.l.b16 %v9397
          %v9654 = vunpack.c.l.b16 %v9398
          %v9655 = vpack.c.b16 %v9528, %v9527
          %v9656 = vpack.c.b16 %v9530, %v9529
          %v9657 = vpack.c.b16 %v9532, %v9531
          %v9658 = vpack.c.b16 %v9534, %v9533
          %v9659 = vpack.c.b16 %v9536, %v9535
          %v9660 = vpack.c.b16 %v9538, %v9537
          %v9661 = vpack.c.b16 %v9540, %v9539
          %v9662 = vpack.c.b16 %v9542, %v9541
          %v9663 = vpack.c.b16 %v9544, %v9543
          %v9664 = vpack.c.b16 %v9546, %v9545
          %v9665 = vpack.c.b16 %v9548, %v9547
          %v9666 = vpack.c.b16 %v9550, %v9549
          %v9667 = vpack.c.b16 %v9552, %v9551
          %v9668 = vpack.c.b16 %v9554, %v9553
          %v9669 = vpack.c.b16 %v9556, %v9555
          %v9670 = vpack.c.b16 %v9558, %v9557
          %v9671 = vpack.c.b16 %v9560, %v9559
          %v9672 = vpack.c.b16 %v9562, %v9561
          %v9673 = vpack.c.b16 %v9564, %v9563
          %v9674 = vpack.c.b16 %v9566, %v9565
          %v9675 = vpack.c.b16 %v9568, %v9567
          %v9676 = vpack.c.b16 %v9570, %v9569
          %v9677 = vpack.c.b16 %v9572, %v9571
          %v9678 = vpack.c.b16 %v9574, %v9573
          %v9679 = vpack.c.b16 %v9576, %v9575
          %v9680 = vpack.c.b16 %v9578, %v9577
          %v9681 = vpack.c.b16 %v9580, %v9579
          %v9682 = vpack.c.b16 %v9582, %v9581
          %v9683 = vpack.c.b16 %v9584, %v9583
          %v9684 = vpack.c.b16 %v9586, %v9585
          %v9685 = vpack.c.b16 %v9588, %v9587
          %v9686 = vpack.c.b16 %v9590, %v9589
          %v9687 = vpack.c.b16 %v9592, %v9591
          %v9688 = vpack.c.b16 %v9594, %v9593
          %v9689 = vpack.c.b16 %v9596, %v9595
          %v9690 = vpack.c.b16 %v9598, %v9597
          %v9691 = vpack.c.b16 %v9600, %v9599
          %v9692 = vpack.c.b16 %v9602, %v9601
          %v9693 = vpack.c.b16 %v9604, %v9603
          %v9694 = vpack.c.b16 %v9606, %v9605
          %v9695 = vpack.c.b16 %v9608, %v9607
          %v9696 = vpack.c.b16 %v9610, %v9609
          %v9697 = vpack.c.b16 %v9612, %v9611
          %v9698 = vpack.c.b16 %v9614, %v9613
          %v9699 = vpack.c.b16 %v9616, %v9615
          %v9700 = vpack.c.b16 %v9618, %v9617
          %v9701 = vpack.c.b16 %v9620, %v9619
          %v9702 = vpack.c.b16 %v9622, %v9621
          %v9703 = vpack.c.b16 %v9624, %v9623
          %v9704 = vpack.c.b16 %v9626, %v9625
          %v9705 = vpack.c.b16 %v9628, %v9627
          %v9706 = vpack.c.b16 %v9630, %v9629
          %v9707 = vpack.c.b16 %v9632, %v9631
          %v9708 = vpack.c.b16 %v9634, %v9633
          %v9709 = vpack.c.b16 %v9636, %v9635
          %v9710 = vpack.c.b16 %v9638, %v9637
          %v9711 = vpack.c.b16 %v9640, %v9639
          %v9712 = vpack.c.b16 %v9642, %v9641
          %v9713 = vpack.c.b16 %v9644, %v9643
          %v9714 = vpack.c.b16 %v9646, %v9645
          %v9715 = vpack.c.b16 %v9648, %v9647
          %v9716 = vpack.c.b16 %v9650, %v9649
          %v9717 = vpack.c.b16 %v9652, %v9651
          %v9718 = vpack.c.b16 %v9654, %v9653
          %9783 = vmatprep.subr.bf16.mxu0 0
          %9784 = vmatpush1.bf16.msra.mxu0 %v9655
          %9785 = vmatprep.subr.bf16.mxu0 0
          %9786 = vmatpush1.bf16.msra.mxu0 %v9656
          %9787 = vmatprep.subr.bf16.mxu0 0
          %9788 = vmatpush1.bf16.msra.mxu0 %v9657
          %9789 = vmatprep.subr.bf16.mxu0 0
          %9790 = vmatpush1.bf16.msra.mxu0 %v9658
          %9791 = vmatprep.subr.bf16.mxu0 0
          %9792 = vmatpush1.bf16.msra.mxu0 %v9659
          %9793 = vmatprep.subr.bf16.mxu0 0
          %9794 = vmatpush1.bf16.msra.mxu0 %v9660
          %9795 = vmatprep.subr.bf16.mxu0 0
          %9796 = vmatpush1.bf16.msra.mxu0 %v9661
          %9797 = vmatprep.subr.bf16.mxu0 0
          %9798 = vmatpush1.bf16.msra.mxu0 %v9662
          %9799 = vmatprep.subr.bf16.mxu0 0
          %9800 = vmatpush1.bf16.msra.mxu0 %v9663
          %9801 = vmatprep.subr.bf16.mxu0 0
          %9802 = vmatpush1.bf16.msra.mxu0 %v9664
          %9803 = vmatprep.subr.bf16.mxu0 0
          %9804 = vmatpush1.bf16.msra.mxu0 %v9665
          %9805 = vmatprep.subr.bf16.mxu0 0
          %9806 = vmatpush1.bf16.msra.mxu0 %v9666
          %9807 = vmatprep.subr.bf16.mxu0 0
          %9808 = vmatpush1.bf16.msra.mxu0 %v9667
          %9809 = vmatprep.subr.bf16.mxu0 0
          %9810 = vmatpush1.bf16.msra.mxu0 %v9668
          %9811 = vmatprep.subr.bf16.mxu0 0
          %9812 = vmatpush1.bf16.msra.mxu0 %v9669
          %9813 = vmatprep.subr.bf16.mxu0 0
          %9814 = vmatpush1.bf16.msra.mxu0 %v9670
          %9815 = vmatprep.mubr.bf16.mxu0 %v9264
          %9816 = vmatmul.mubr.bf16.gmra.mrb[0].mxu0 %v9263
          %v9817 = vpop.f32.mrb[0].mxu0
          %v9818 = vadd.f32 0.0, %v9817
          %v9819 = vpop.f32.mrb[0].mxu0
          %v9820 = vpop.f32.mrb[0].mxu0
          %v9821 = vpop.f32.mrb[0].mxu0
          %9822 = vdwg.mxu0
          %9823 = vmatprep.subr.bf16.mxu0 0
          %9824 = vmatpush1.bf16.msra.mxu0 %v9671
          %9825 = vmatprep.subr.bf16.mxu0 0
          %9826 = vmatpush1.bf16.msra.mxu0 %v9672
          %9827 = vmatprep.subr.bf16.mxu0 0
          %9828 = vmatpush1.bf16.msra.mxu0 %v9673
          %9829 = vmatprep.subr.bf16.mxu0 0
          %9830 = vmatpush1.bf16.msra.mxu0 %v9674
          %9831 = vmatprep.subr.bf16.mxu0 0
          %9832 = vmatpush1.bf16.msra.mxu0 %v9675
          %9833 = vmatprep.subr.bf16.mxu0 0
          %9834 = vmatpush1.bf16.msra.mxu0 %v9676
          %9835 = vmatprep.subr.bf16.mxu0 0
          %9836 = vmatpush1.bf16.msra.mxu0 %v9677
          %9837 = vmatprep.subr.bf16.mxu0 0
          %9838 = vmatpush1.bf16.msra.mxu0 %v9678
          %9839 = vmatprep.subr.bf16.mxu0 0
          %9840 = vmatpush1.bf16.msra.mxu0 %v9679
          %9841 = vmatprep.subr.bf16.mxu0 0
          %9842 = vmatpush1.bf16.msra.mxu0 %v9680
          %9843 = vmatprep.subr.bf16.mxu0 0
          %9844 = vmatpush1.bf16.msra.mxu0 %v9681
          %9845 = vmatprep.subr.bf16.mxu0 0
          %9846 = vmatpush1.bf16.msra.mxu0 %v9682
          %9847 = vmatprep.subr.bf16.mxu0 0
          %9848 = vmatpush1.bf16.msra.mxu0 %v9683
          %9849 = vmatprep.subr.bf16.mxu0 0
          %9850 = vmatpush1.bf16.msra.mxu0 %v9684
          %9851 = vmatprep.subr.bf16.mxu0 0
          %9852 = vmatpush1.bf16.msra.mxu0 %v9685
          %9853 = vmatprep.subr.bf16.mxu0 0
          %9854 = vmatpush1.bf16.msra.mxu0 %v9686
          %9855 = vmatprep.mubr.bf16.mxu0 %v9266
          %9856 = vmatmul.mubr.bf16.gmra.mrb[0].mxu0 %v9265
          %v9857 = vpop.f32.mrb[0].mxu0
          %v9858 = vadd.f32 %v9818, %v9857
          %v9859 = vpop.f32.mrb[0].mxu0
          %v9860 = vpop.f32.mrb[0].mxu0
          %v9861 = vpop.f32.mrb[0].mxu0
          %9862 = vdwg.mxu0
          %9863 = vmatprep.subr.bf16.mxu0 0
          %9864 = vmatpush1.bf16.msra.mxu0 %v9687
          %9865 = vmatprep.subr.bf16.mxu0 0
          %9866 = vmatpush1.bf16.msra.mxu0 %v9688
          %9867 = vmatprep.subr.bf16.mxu0 0
          %9868 = vmatpush1.bf16.msra.mxu0 %v9689
          %9869 = vmatprep.subr.bf16.mxu0 0
          %9870 = vmatpush1.bf16.msra.mxu0 %v9690
          %9871 = vmatprep.subr.bf16.mxu0 0
          %9872 = vmatpush1.bf16.msra.mxu0 %v9691
          %9873 = vmatprep.subr.bf16.mxu0 0
          %9874 = vmatpush1.bf16.msra.mxu0 %v9692
          %9875 = vmatprep.subr.bf16.mxu0 0
          %9876 = vmatpush1.bf16.msra.mxu0 %v9693
          %9877 = vmatprep.subr.bf16.mxu0 0
          %9878 = vmatpush1.bf16.msra.mxu0 %v9694
          %9879 = vmatprep.subr.bf16.mxu0 0
          %9880 = vmatpush1.bf16.msra.mxu0 %v9695
          %9881 = vmatprep.subr.bf16.mxu0 0
          %9882 = vmatpush1.bf16.msra.mxu0 %v9696
          %9883 = vmatprep.subr.bf16.mxu0 0
          %9884 = vmatpush1.bf16.msra.mxu0 %v9697
          %9885 = vmatprep.subr.bf16.mxu0 0
          %9886 = vmatpush1.bf16.msra.mxu0 %v9698
          %9887 = vmatprep.subr.bf16.mxu0 0
          %9888 = vmatpush1.bf16.msra.mxu0 %v9699
          %9889 = vmatprep.subr.bf16.mxu0 0
          %9890 = vmatpush1.bf16.msra.mxu0 %v9700
          %9891 = vmatprep.subr.bf16.mxu0 0
          %9892 = vmatpush1.bf16.msra.mxu0 %v9701
          %9893 = vmatprep.subr.bf16.mxu0 0
          %9894 = vmatpush1.bf16.msra.mxu0 %v9702
          %9895 = vmatprep.mubr.bf16.mxu0 %v9268
          %9896 = vmatmul.mubr.bf16.gmra.mrb[0].mxu0 %v9267
          %v9897 = vpop.f32.mrb[0].mxu0
          %v9898 = vadd.f32 %v9858, %v9897
          %v9899 = vpop.f32.mrb[0].mxu0
          %v9900 = vpop.f32.mrb[0].mxu0
          %v9901 = vpop.f32.mrb[0].mxu0
          %9902 = vdwg.mxu0
          %9903 = vmatprep.subr.bf16.mxu0 0
          %9904 = vmatpush1.bf16.msra.mxu0 %v9703
          %9905 = vmatprep.subr.bf16.mxu0 0
          %9906 = vmatpush1.bf16.msra.mxu0 %v9704
          %9907 = vmatprep.subr.bf16.mxu0 0
          %9908 = vmatpush1.bf16.msra.mxu0 %v9705
          %9909 = vmatprep.subr.bf16.mxu0 0
          %9910 = vmatpush1.bf16.msra.mxu0 %v9706
          %9911 = vmatprep.subr.bf16.mxu0 0
          %9912 = vmatpush1.bf16.msra.mxu0 %v9707
          %9913 = vmatprep.subr.bf16.mxu0 0
          %9914 = vmatpush1.bf16.msra.mxu0 %v9708
          %9915 = vmatprep.subr.bf16.mxu0 0
          %9916 = vmatpush1.bf16.msra.mxu0 %v9709
          %9917 = vmatprep.subr.bf16.mxu0 0
          %9918 = vmatpush1.bf16.msra.mxu0 %v9710
          %9919 = vmatprep.subr.bf16.mxu0 0
          %9920 = vmatpush1.bf16.msra.mxu0 %v9711
          %9921 = vmatprep.subr.bf16.mxu0 0
          %9922 = vmatpush1.bf16.msra.mxu0 %v9712
          %9923 = vmatprep.subr.bf16.mxu0 0
          %9924 = vmatpush1.bf16.msra.mxu0 %v9713
          %9925 = vmatprep.subr.bf16.mxu0 0
          %9926 = vmatpush1.bf16.msra.mxu0 %v9714
          %9927 = vmatprep.subr.bf16.mxu0 0
          %9928 = vmatpush1.bf16.msra.mxu0 %v9715
          %9929 = vmatprep.subr.bf16.mxu0 0
          %9930 = vmatpush1.bf16.msra.mxu0 %v9716
          %9931 = vmatprep.subr.bf16.mxu0 0
          %9932 = vmatpush1.bf16.msra.mxu0 %v9717
          %9933 = vmatprep.subr.bf16.mxu0 0
          %9934 = vmatpush1.bf16.msra.mxu0 %v9718
          %9935 = vmatprep.mubr.bf16.mxu0 %v9270
          %9936 = vmatmul.mubr.bf16.gmra.mrb[0].mxu0 %v9269
          %v9937 = vpop.f32.mrb[0].mxu0
          %v9938 = vadd.f32 %v9898, %v9937
          %v9939 = vpop.f32.mrb[0].mxu0
          %v9940 = vpop.f32.mrb[0].mxu0
          %v9941 = vpop.f32.mrb[0].mxu0
          %9942 = vdwg.mxu0
          %v9943 = vadd.f32 %v4911, %v9938
          %v9944 = vld [vmem:[#allocation19] sm:$0x1]
          %v9946 = vlaneseq
          %v9947 = vshrl.u32 %v9946, 7
          %v9948 = vsub.s32 0, %v9947
          %v9949 = vrot.slane %v9944, %v9948
          %v9951 = vadd.f32 %v9943, %v9949
          %v9952 = vpack.c.bf16 %v9951, %v9951
          %9953 = vmatprep.subr.bf16.mxu0 %v5170
          %9954 = vmatpush1.bf16.msra.mxu0 %v5169
          %9955 = vmatprep.subr.bf16.mxu0 %v5178
          %9956 = vmatpush1.bf16.msra.mxu0 %v5177
          %9957 = vmatprep.subr.bf16.mxu0 %v5186
          %9958 = vmatpush1.bf16.msra.mxu0 %v5185
          %9959 = vmatprep.subr.bf16.mxu0 %v5194
          %9960 = vmatpush1.bf16.msra.mxu0 %v5193
          %9961 = vmatprep.subr.bf16.mxu0 %v5202
          %9962 = vmatpush1.bf16.msra.mxu0 %v5201
          %9963 = vmatprep.subr.bf16.mxu0 %v5210
          %9964 = vmatpush1.bf16.msra.mxu0 %v5209
          %9965 = vmatprep.subr.bf16.mxu0 %v5218
          %9966 = vmatpush1.bf16.msra.mxu0 %v5217
          %9967 = vmatprep.subr.bf16.mxu0 %v5226
          %9968 = vmatpush1.bf16.msra.mxu0 %v5225
          %9969 = vmatprep.subr.bf16.mxu0 0
          %9970 = vmatpush1.bf16.msra.mxu0 0
          %9971 = vmatprep.subr.bf16.mxu0 0
          %9972 = vmatpush1.bf16.msra.mxu0 0
          %9973 = vmatprep.subr.bf16.mxu0 0
          %9974 = vmatpush1.bf16.msra.mxu0 0
          %9975 = vmatprep.subr.bf16.mxu0 0
          %9976 = vmatpush1.bf16.msra.mxu0 0
          %9977 = vmatprep.subr.bf16.mxu0 0
          %9978 = vmatpush1.bf16.msra.mxu0 0
          %9979 = vmatprep.subr.bf16.mxu0 0
          %9980 = vmatpush1.bf16.msra.mxu0 0
          %9981 = vmatprep.subr.bf16.mxu0 0
          %9982 = vmatpush1.bf16.msra.mxu0 0
          %9983 = vmatprep.subr.bf16.mxu0 0
          %9984 = vmatpush1.bf16.msra.mxu0 0
          %9985 = vmatprep.mubr.bf16.mxu0 0
          %9986 = vmatmul.mubr.bf16.gmra.mrb[0].mxu0 %v9952
          %v9987 = vpop.f32.mrb[0].mxu0
          %v9988 = vadd.f32 0.0, %v9987
          %v9989 = vpop.f32.mrb[0].mxu0
          %v9990 = vadd.f32 0.0, %v9989
          %v9991 = vpop.f32.mrb[0].mxu0
          %v9992 = vpop.f32.mrb[0].mxu0
          %9993 = vdwg.mxu0
          %9994 = vmatprep.subr.bf16.mxu0 %v5172
          %9995 = vmatpush1.bf16.msra.mxu0 %v5171
          %9996 = vmatprep.subr.bf16.mxu0 %v5180
          %9997 = vmatpush1.bf16.msra.mxu0 %v5179
          %9998 = vmatprep.subr.bf16.mxu0 %v5188
          %9999 = vmatpush1.bf16.msra.mxu0 %v5187
          %10000 = vmatprep.subr.bf16.mxu0 %v5196
          %10001 = vmatpush1.bf16.msra.mxu0 %v5195
          %10002 = vmatprep.subr.bf16.mxu0 %v5204
          %10003 = vmatpush1.bf16.msra.mxu0 %v5203
          %10004 = vmatprep.subr.bf16.mxu0 %v5212
          %10005 = vmatpush1.bf16.msra.mxu0 %v5211
          %10006 = vmatprep.subr.bf16.mxu0 %v5220
          %10007 = vmatpush1.bf16.msra.mxu0 %v5219
          %10008 = vmatprep.subr.bf16.mxu0 %v5228
          %10009 = vmatpush1.bf16.msra.mxu0 %v5227
          %10010 = vmatprep.subr.bf16.mxu0 0
          %10011 = vmatpush1.bf16.msra.mxu0 0
          %10012 = vmatprep.subr.bf16.mxu0 0
          %10013 = vmatpush1.bf16.msra.mxu0 0
          %10014 = vmatprep.subr.bf16.mxu0 0
          %10015 = vmatpush1.bf16.msra.mxu0 0
          %10016 = vmatprep.subr.bf16.mxu0 0
          %10017 = vmatpush1.bf16.msra.mxu0 0
          %10018 = vmatprep.subr.bf16.mxu0 0
          %10019 = vmatpush1.bf16.msra.mxu0 0
          %10020 = vmatprep.subr.bf16.mxu0 0
          %10021 = vmatpush1.bf16.msra.mxu0 0
          %10022 = vmatprep.subr.bf16.mxu0 0
          %10023 = vmatpush1.bf16.msra.mxu0 0
          %10024 = vmatprep.subr.bf16.mxu0 0
          %10025 = vmatpush1.bf16.msra.mxu0 0
          %10026 = vmatprep.mubr.bf16.mxu0 0
          %10027 = vmatmul.mubr.bf16.gmra.mrb[0].mxu0 %v9952
          %v10028 = vpop.f32.mrb[0].mxu0
          %v10029 = vadd.f32 0.0, %v10028
          %v10030 = vpop.f32.mrb[0].mxu0
          %v10031 = vadd.f32 0.0, %v10030
          %v10032 = vpop.f32.mrb[0].mxu0
          %v10033 = vpop.f32.mrb[0].mxu0
          %10034 = vdwg.mxu0
          %10035 = vmatprep.subr.bf16.mxu0 %v5174
          %10036 = vmatpush1.bf16.msra.mxu0 %v5173
          %10037 = vmatprep.subr.bf16.mxu0 %v5182
          %10038 = vmatpush1.bf16.msra.mxu0 %v5181
          %10039 = vmatprep.subr.bf16.mxu0 %v5190
          %10040 = vmatpush1.bf16.msra.mxu0 %v5189
          %10041 = vmatprep.subr.bf16.mxu0 %v5198
          %10042 = vmatpush1.bf16.msra.mxu0 %v5197
          %10043 = vmatprep.subr.bf16.mxu0 %v5206
          %10044 = vmatpush1.bf16.msra.mxu0 %v5205
          %10045 = vmatprep.subr.bf16.mxu0 %v5214
          %10046 = vmatpush1.bf16.msra.mxu0 %v5213
          %10047 = vmatprep.subr.bf16.mxu0 %v5222
          %10048 = vmatpush1.bf16.msra.mxu0 %v5221
          %10049 = vmatprep.subr.bf16.mxu0 %v5230
          %10050 = vmatpush1.bf16.msra.mxu0 %v5229
          %10051 = vmatprep.subr.bf16.mxu0 0
          %10052 = vmatpush1.bf16.msra.mxu0 0
          %10053 = vmatprep.subr.bf16.mxu0 0
          %10054 = vmatpush1.bf16.msra.mxu0 0
          %10055 = vmatprep.subr.bf16.mxu0 0
          %10056 = vmatpush1.bf16.msra.mxu0 0
          %10057 = vmatprep.subr.bf16.mxu0 0
          %10058 = vmatpush1.bf16.msra.mxu0 0
          %10059 = vmatprep.subr.bf16.mxu0 0
          %10060 = vmatpush1.bf16.msra.mxu0 0
          %10061 = vmatprep.subr.bf16.mxu0 0
          %10062 = vmatpush1.bf16.msra.mxu0 0
          %10063 = vmatprep.subr.bf16.mxu0 0
          %10064 = vmatpush1.bf16.msra.mxu0 0
          %10065 = vmatprep.subr.bf16.mxu0 0
          %10066 = vmatpush1.bf16.msra.mxu0 0
          %10067 = vmatprep.mubr.bf16.mxu0 0
          %10068 = vmatmul.mubr.bf16.gmra.mrb[0].mxu0 %v9952
          %v10069 = vpop.f32.mrb[0].mxu0
          %v10070 = vadd.f32 0.0, %v10069
          %v10071 = vpop.f32.mrb[0].mxu0
          %v10072 = vadd.f32 0.0, %v10071
          %v10073 = vpop.f32.mrb[0].mxu0
          %v10074 = vpop.f32.mrb[0].mxu0
          %10075 = vdwg.mxu0
          %10076 = vmatprep.subr.bf16.mxu0 %v5176
          %10077 = vmatpush1.bf16.msra.mxu0 %v5175
          %10078 = vmatprep.subr.bf16.mxu0 %v5184
          %10079 = vmatpush1.bf16.msra.mxu0 %v5183
          %10080 = vmatprep.subr.bf16.mxu0 %v5192
          %10081 = vmatpush1.bf16.msra.mxu0 %v5191
          %10082 = vmatprep.subr.bf16.mxu0 %v5200
          %10083 = vmatpush1.bf16.msra.mxu0 %v5199
          %10084 = vmatprep.subr.bf16.mxu0 %v5208
          %10085 = vmatpush1.bf16.msra.mxu0 %v5207
          %10086 = vmatprep.subr.bf16.mxu0 %v5216
          %10087 = vmatpush1.bf16.msra.mxu0 %v5215
          %10088 = vmatprep.subr.bf16.mxu0 %v5224
          %10089 = vmatpush1.bf16.msra.mxu0 %v5223
          %10090 = vmatprep.subr.bf16.mxu0 %v5232
          %10091 = vmatpush1.bf16.msra.mxu0 %v5231
          %10092 = vmatprep.subr.bf16.mxu0 0
          %10093 = vmatpush1.bf16.msra.mxu0 0
          %10094 = vmatprep.subr.bf16.mxu0 0
          %10095 = vmatpush1.bf16.msra.mxu0 0
          %10096 = vmatprep.subr.bf16.mxu0 0
          %10097 = vmatpush1.bf16.msra.mxu0 0
          %10098 = vmatprep.subr.bf16.mxu0 0
          %10099 = vmatpush1.bf16.msra.mxu0 0
          %10100 = vmatprep.subr.bf16.mxu0 0
          %10101 = vmatpush1.bf16.msra.mxu0 0
          %10102 = vmatprep.subr.bf16.mxu0 0
          %10103 = vmatpush1.bf16.msra.mxu0 0
          %10104 = vmatprep.subr.bf16.mxu0 0
          %10105 = vmatpush1.bf16.msra.mxu0 0
          %10106 = vmatprep.subr.bf16.mxu0 0
          %10107 = vmatpush1.bf16.msra.mxu0 0
          %10108 = vmatprep.mubr.bf16.mxu0 0
          %10109 = vmatmul.mubr.bf16.gmra.mrb[0].mxu0 %v9952
          %v10110 = vpop.f32.mrb[0].mxu0
          %v10111 = vadd.f32 0.0, %v10110
          %v10112 = vpop.f32.mrb[0].mxu0
          %v10113 = vadd.f32 0.0, %v10112
          %v10114 = vpop.f32.mrb[0].mxu0
          %v10115 = vpop.f32.mrb[0].mxu0
          %10116 = vdwg.mxu0
          %v10117 = vadd.f32 %v3566, %v9988
          %v10118 = vadd.f32 %v3567, %v9990
          %v10119 = vadd.f32 %v3568, %v10029
          %v10120 = vadd.f32 %v3569, %v10031
          %v10121 = vadd.f32 %v3570, %v10070
          %v10122 = vadd.f32 %v3571, %v10072
          %v10123 = vadd.f32 %v3572, %v10111
          %v10124 = vadd.f32 %v3573, %v10113
          %v10125 = vmax.f32 %v10117, 0.0
          %v10126 = vmax.f32 %v10118, 0.0
          %v10127 = vmax.f32 %v10119, 0.0
          %v10128 = vmax.f32 %v10120, 0.0
          %v10129 = vmax.f32 %v10121, 0.0
          %v10130 = vmax.f32 %v10122, 0.0
          %v10131 = vmax.f32 %v10123, 0.0
          %v10132 = vmax.f32 %v10124, 0.0
          %v10133 = vpack.c.bf16 %v10125, %v10125
          %v10134 = vpack.c.bf16 %v10126, %v10126
          %v10135 = vpack.c.bf16 %v10127, %v10127
          %v10136 = vpack.c.bf16 %v10128, %v10128
          %v10137 = vpack.c.bf16 %v10129, %v10129
          %v10138 = vpack.c.bf16 %v10130, %v10130
          %v10139 = vpack.c.bf16 %v10131, %v10131
          %v10140 = vpack.c.bf16 %v10132, %v10132
          %10141 = vmatprep.subr.bf16.mxu0 %v7576
          %10142 = vmatpush1.bf16.msra.mxu0 %v7575
          %10143 = vmatprep.subr.bf16.mxu0 %v7584
          %10144 = vmatpush1.bf16.msra.mxu0 %v7583
          %10145 = vmatprep.subr.bf16.mxu0 %v7592
          %10146 = vmatpush1.bf16.msra.mxu0 %v7591
          %10147 = vmatprep.subr.bf16.mxu0 %v7600
          %10148 = vmatpush1.bf16.msra.mxu0 %v7599
          %10149 = vmatprep.subr.bf16.mxu0 %v7608
          %10150 = vmatpush1.bf16.msra.mxu0 %v7607
          %10151 = vmatprep.subr.bf16.mxu0 %v7616
          %10152 = vmatpush1.bf16.msra.mxu0 %v7615
          %10153 = vmatprep.subr.bf16.mxu0 %v7624
          %10154 = vmatpush1.bf16.msra.mxu0 %v7623
          %10155 = vmatprep.subr.bf16.mxu0 %v7632
          %10156 = vmatpush1.bf16.msra.mxu0 %v7631
          %10157 = vmatprep.subr.bf16.mxu0 %v7640
          %10158 = vmatpush1.bf16.msra.mxu0 %v7639
          %10159 = vmatprep.subr.bf16.mxu0 %v7648
          %10160 = vmatpush1.bf16.msra.mxu0 %v7647
          %10161 = vmatprep.subr.bf16.mxu0 %v7656
          %10162 = vmatpush1.bf16.msra.mxu0 %v7655
          %10163 = vmatprep.subr.bf16.mxu0 %v7664
          %10164 = vmatpush1.bf16.msra.mxu0 %v7663
          %10165 = vmatprep.subr.bf16.mxu0 %v7672
          %10166 = vmatpush1.bf16.msra.mxu0 %v7671
          %10167 = vmatprep.subr.bf16.mxu0 %v7680
          %10168 = vmatpush1.bf16.msra.mxu0 %v7679
          %10169 = vmatprep.subr.bf16.mxu0 %v7688
          %10170 = vmatpush1.bf16.msra.mxu0 %v7687
          %10171 = vmatprep.subr.bf16.mxu0 %v7696
          %10172 = vmatpush1.bf16.msra.mxu0 %v7695
          %10173 = vmatprep.mubr.bf16.mxu0 %v10134
          %10174 = vmatmul.mubr.bf16.gmra.mrb[0].mxu0 %v10133
          %v10175 = vpop.f32.mrb[0].mxu0
          %v10176 = vadd.f32 %v6002, %v10175
          %v10177 = vpop.f32.mrb[0].mxu0
          %v10178 = vadd.f32 %v6006, %v10177
          %v10179 = vpop.f32.mrb[0].mxu0
          %v10180 = vpop.f32.mrb[0].mxu0
          %10181 = vdwg.mxu0
          %10182 = vmatprep.subr.bf16.mxu0 %v7704
          %10183 = vmatpush1.bf16.msra.mxu0 %v7703
          %10184 = vmatprep.subr.bf16.mxu0 %v7712
          %10185 = vmatpush1.bf16.msra.mxu0 %v7711
          %10186 = vmatprep.subr.bf16.mxu0 %v7720
          %10187 = vmatpush1.bf16.msra.mxu0 %v7719
          %10188 = vmatprep.subr.bf16.mxu0 %v7728
          %10189 = vmatpush1.bf16.msra.mxu0 %v7727
          %10190 = vmatprep.subr.bf16.mxu0 %v7736
          %10191 = vmatpush1.bf16.msra.mxu0 %v7735
          %10192 = vmatprep.subr.bf16.mxu0 %v7744
          %10193 = vmatpush1.bf16.msra.mxu0 %v7743
          %10194 = vmatprep.subr.bf16.mxu0 %v7752
          %10195 = vmatpush1.bf16.msra.mxu0 %v7751
          %10196 = vmatprep.subr.bf16.mxu0 %v7760
          %10197 = vmatpush1.bf16.msra.mxu0 %v7759
          %10198 = vmatprep.subr.bf16.mxu0 %v7768
          %10199 = vmatpush1.bf16.msra.mxu0 %v7767
          %10200 = vmatprep.subr.bf16.mxu0 %v7776
          %10201 = vmatpush1.bf16.msra.mxu0 %v7775
          %10202 = vmatprep.subr.bf16.mxu0 %v7784
          %10203 = vmatpush1.bf16.msra.mxu0 %v7783
          %10204 = vmatprep.subr.bf16.mxu0 %v7792
          %10205 = vmatpush1.bf16.msra.mxu0 %v7791
          %10206 = vmatprep.subr.bf16.mxu0 %v7800
          %10207 = vmatpush1.bf16.msra.mxu0 %v7799
          %10208 = vmatprep.subr.bf16.mxu0 %v7808
          %10209 = vmatpush1.bf16.msra.mxu0 %v7807
          %10210 = vmatprep.subr.bf16.mxu0 %v7816
          %10211 = vmatpush1.bf16.msra.mxu0 %v7815
          %10212 = vmatprep.subr.bf16.mxu0 %v7824
          %10213 = vmatpush1.bf16.msra.mxu0 %v7823
          %10214 = vmatprep.mubr.bf16.mxu0 %v10136
          %10215 = vmatmul.mubr.bf16.gmra.mrb[0].mxu0 %v10135
          %v10216 = vpop.f32.mrb[0].mxu0
          %v10217 = vadd.f32 %v10176, %v10216
          %v10218 = vpop.f32.mrb[0].mxu0
          %v10219 = vadd.f32 %v10178, %v10218
          %v10220 = vpop.f32.mrb[0].mxu0
          %v10221 = vpop.f32.mrb[0].mxu0
          %10222 = vdwg.mxu0
          %10223 = vmatprep.subr.bf16.mxu0 %v7832
          %10224 = vmatpush1.bf16.msra.mxu0 %v7831
          %10225 = vmatprep.subr.bf16.mxu0 %v7840
          %10226 = vmatpush1.bf16.msra.mxu0 %v7839
          %10227 = vmatprep.subr.bf16.mxu0 %v7848
          %10228 = vmatpush1.bf16.msra.mxu0 %v7847
          %10229 = vmatprep.subr.bf16.mxu0 %v7856
          %10230 = vmatpush1.bf16.msra.mxu0 %v7855
          %10231 = vmatprep.subr.bf16.mxu0 %v7864
          %10232 = vmatpush1.bf16.msra.mxu0 %v7863
          %10233 = vmatprep.subr.bf16.mxu0 %v7872
          %10234 = vmatpush1.bf16.msra.mxu0 %v7871
          %10235 = vmatprep.subr.bf16.mxu0 %v7880
          %10236 = vmatpush1.bf16.msra.mxu0 %v7879
          %10237 = vmatprep.subr.bf16.mxu0 %v7888
          %10238 = vmatpush1.bf16.msra.mxu0 %v7887
          %10239 = vmatprep.subr.bf16.mxu0 %v7896
          %10240 = vmatpush1.bf16.msra.mxu0 %v7895
          %10241 = vmatprep.subr.bf16.mxu0 %v7904
          %10242 = vmatpush1.bf16.msra.mxu0 %v7903
          %10243 = vmatprep.subr.bf16.mxu0 %v7912
          %10244 = vmatpush1.bf16.msra.mxu0 %v7911
          %10245 = vmatprep.subr.bf16.mxu0 %v7920
          %10246 = vmatpush1.bf16.msra.mxu0 %v7919
          %10247 = vmatprep.subr.bf16.mxu0 %v7928
          %10248 = vmatpush1.bf16.msra.mxu0 %v7927
          %10249 = vmatprep.subr.bf16.mxu0 %v7936
          %10250 = vmatpush1.bf16.msra.mxu0 %v7935
          %10251 = vmatprep.subr.bf16.mxu0 %v7944
          %10252 = vmatpush1.bf16.msra.mxu0 %v7943
          %10253 = vmatprep.subr.bf16.mxu0 %v7952
          %10254 = vmatpush1.bf16.msra.mxu0 %v7951
          %10255 = vmatprep.mubr.bf16.mxu0 %v10138
          %10256 = vmatmul.mubr.bf16.gmra.mrb[0].mxu0 %v10137
          %v10257 = vpop.f32.mrb[0].mxu0
          %v10258 = vadd.f32 %v10217, %v10257
          %v10259 = vpop.f32.mrb[0].mxu0
          %v10260 = vadd.f32 %v10219, %v10259
          %v10261 = vpop.f32.mrb[0].mxu0
          %v10262 = vpop.f32.mrb[0].mxu0
          %10263 = vdwg.mxu0
          %10264 = vmatprep.subr.bf16.mxu0 %v7960
          %10265 = vmatpush1.bf16.msra.mxu0 %v7959
          %10266 = vmatprep.subr.bf16.mxu0 %v7968
          %10267 = vmatpush1.bf16.msra.mxu0 %v7967
          %10268 = vmatprep.subr.bf16.mxu0 %v7976
          %10269 = vmatpush1.bf16.msra.mxu0 %v7975
          %10270 = vmatprep.subr.bf16.mxu0 %v7984
          %10271 = vmatpush1.bf16.msra.mxu0 %v7983
          %10272 = vmatprep.subr.bf16.mxu0 %v7992
          %10273 = vmatpush1.bf16.msra.mxu0 %v7991
          %10274 = vmatprep.subr.bf16.mxu0 %v8000
          %10275 = vmatpush1.bf16.msra.mxu0 %v7999
          %10276 = vmatprep.subr.bf16.mxu0 %v8008
          %10277 = vmatpush1.bf16.msra.mxu0 %v8007
          %10278 = vmatprep.subr.bf16.mxu0 %v8016
          %10279 = vmatpush1.bf16.msra.mxu0 %v8015
          %10280 = vmatprep.subr.bf16.mxu0 %v8024
          %10281 = vmatpush1.bf16.msra.mxu0 %v8023
          %10282 = vmatprep.subr.bf16.mxu0 %v8032
          %10283 = vmatpush1.bf16.msra.mxu0 %v8031
          %10284 = vmatprep.subr.bf16.mxu0 %v8040
          %10285 = vmatpush1.bf16.msra.mxu0 %v8039
          %10286 = vmatprep.subr.bf16.mxu0 %v8048
          %10287 = vmatpush1.bf16.msra.mxu0 %v8047
          %10288 = vmatprep.subr.bf16.mxu0 %v8056
          %10289 = vmatpush1.bf16.msra.mxu0 %v8055
          %10290 = vmatprep.subr.bf16.mxu0 %v8064
          %10291 = vmatpush1.bf16.msra.mxu0 %v8063
          %10292 = vmatprep.subr.bf16.mxu0 %v8072
          %10293 = vmatpush1.bf16.msra.mxu0 %v8071
          %10294 = vmatprep.subr.bf16.mxu0 %v8080
          %10295 = vmatpush1.bf16.msra.mxu0 %v8079
          %10296 = vmatprep.mubr.bf16.mxu0 %v10140
          %10297 = vmatmul.mubr.bf16.gmra.mrb[0].mxu0 %v10139
          %v10298 = vpop.f32.mrb[0].mxu0
          %v10299 = vadd.f32 %v10258, %v10298
          %v10300 = vpop.f32.mrb[0].mxu0
          %v10301 = vadd.f32 %v10260, %v10300
          %v10302 = vpop.f32.mrb[0].mxu0
          %v10303 = vpop.f32.mrb[0].mxu0
          %10304 = vdwg.mxu0
          %10305 = vmatprep.subr.bf16.mxu0 %v7578
          %10306 = vmatpush1.bf16.msra.mxu0 %v7577
          %10307 = vmatprep.subr.bf16.mxu0 %v7586
          %10308 = vmatpush1.bf16.msra.mxu0 %v7585
          %10309 = vmatprep.subr.bf16.mxu0 %v7594
          %10310 = vmatpush1.bf16.msra.mxu0 %v7593
          %10311 = vmatprep.subr.bf16.mxu0 %v7602
          %10312 = vmatpush1.bf16.msra.mxu0 %v7601
          %10313 = vmatprep.subr.bf16.mxu0 %v7610
          %10314 = vmatpush1.bf16.msra.mxu0 %v7609
          %10315 = vmatprep.subr.bf16.mxu0 %v7618
          %10316 = vmatpush1.bf16.msra.mxu0 %v7617
          %10317 = vmatprep.subr.bf16.mxu0 %v7626
          %10318 = vmatpush1.bf16.msra.mxu0 %v7625
          %10319 = vmatprep.subr.bf16.mxu0 %v7634
          %10320 = vmatpush1.bf16.msra.mxu0 %v7633
          %10321 = vmatprep.subr.bf16.mxu0 %v7642
          %10322 = vmatpush1.bf16.msra.mxu0 %v7641
          %10323 = vmatprep.subr.bf16.mxu0 %v7650
          %10324 = vmatpush1.bf16.msra.mxu0 %v7649
          %10325 = vmatprep.subr.bf16.mxu0 %v7658
          %10326 = vmatpush1.bf16.msra.mxu0 %v7657
          %10327 = vmatprep.subr.bf16.mxu0 %v7666
          %10328 = vmatpush1.bf16.msra.mxu0 %v7665
          %10329 = vmatprep.subr.bf16.mxu0 %v7674
          %10330 = vmatpush1.bf16.msra.mxu0 %v7673
          %10331 = vmatprep.subr.bf16.mxu0 %v7682
          %10332 = vmatpush1.bf16.msra.mxu0 %v7681
          %10333 = vmatprep.subr.bf16.mxu0 %v7690
          %10334 = vmatpush1.bf16.msra.mxu0 %v7689
          %10335 = vmatprep.subr.bf16.mxu0 %v7698
          %10336 = vmatpush1.bf16.msra.mxu0 %v7697
          %10337 = vmatprep.mubr.bf16.mxu0 %v10134
          %10338 = vmatmul.mubr.bf16.gmra.mrb[0].mxu0 %v10133
          %v10339 = vpop.f32.mrb[0].mxu0
          %v10340 = vadd.f32 %v6010, %v10339
          %v10341 = vpop.f32.mrb[0].mxu0
          %v10342 = vadd.f32 %v6014, %v10341
          %v10343 = vpop.f32.mrb[0].mxu0
          %v10344 = vpop.f32.mrb[0].mxu0
          %10345 = vdwg.mxu0
          %10346 = vmatprep.subr.bf16.mxu0 %v7706
          %10347 = vmatpush1.bf16.msra.mxu0 %v7705
          %10348 = vmatprep.subr.bf16.mxu0 %v7714
          %10349 = vmatpush1.bf16.msra.mxu0 %v7713
          %10350 = vmatprep.subr.bf16.mxu0 %v7722
          %10351 = vmatpush1.bf16.msra.mxu0 %v7721
          %10352 = vmatprep.subr.bf16.mxu0 %v7730
          %10353 = vmatpush1.bf16.msra.mxu0 %v7729
          %10354 = vmatprep.subr.bf16.mxu0 %v7738
          %10355 = vmatpush1.bf16.msra.mxu0 %v7737
          %10356 = vmatprep.subr.bf16.mxu0 %v7746
          %10357 = vmatpush1.bf16.msra.mxu0 %v7745
          %10358 = vmatprep.subr.bf16.mxu0 %v7754
          %10359 = vmatpush1.bf16.msra.mxu0 %v7753
          %10360 = vmatprep.subr.bf16.mxu0 %v7762
          %10361 = vmatpush1.bf16.msra.mxu0 %v7761
          %10362 = vmatprep.subr.bf16.mxu0 %v7770
          %10363 = vmatpush1.bf16.msra.mxu0 %v7769
          %10364 = vmatprep.subr.bf16.mxu0 %v7778
          %10365 = vmatpush1.bf16.msra.mxu0 %v7777
          %10366 = vmatprep.subr.bf16.mxu0 %v7786
          %10367 = vmatpush1.bf16.msra.mxu0 %v7785
          %10368 = vmatprep.subr.bf16.mxu0 %v7794
          %10369 = vmatpush1.bf16.msra.mxu0 %v7793
          %10370 = vmatprep.subr.bf16.mxu0 %v7802
          %10371 = vmatpush1.bf16.msra.mxu0 %v7801
          %10372 = vmatprep.subr.bf16.mxu0 %v7810
          %10373 = vmatpush1.bf16.msra.mxu0 %v7809
          %10374 = vmatprep.subr.bf16.mxu0 %v7818
          %10375 = vmatpush1.bf16.msra.mxu0 %v7817
          %10376 = vmatprep.subr.bf16.mxu0 %v7826
          %10377 = vmatpush1.bf16.msra.mxu0 %v7825
          %10378 = vmatprep.mubr.bf16.mxu0 %v10136
          %10379 = vmatmul.mubr.bf16.gmra.mrb[0].mxu0 %v10135
          %v10380 = vpop.f32.mrb[0].mxu0
          %v10381 = vadd.f32 %v10340, %v10380
          %v10382 = vpop.f32.mrb[0].mxu0
          %v10383 = vadd.f32 %v10342, %v10382
          %v10384 = vpop.f32.mrb[0].mxu0
          %v10385 = vpop.f32.mrb[0].mxu0
          %10386 = vdwg.mxu0
          %10387 = vmatprep.subr.bf16.mxu0 %v7834
          %10388 = vmatpush1.bf16.msra.mxu0 %v7833
          %10389 = vmatprep.subr.bf16.mxu0 %v7842
          %10390 = vmatpush1.bf16.msra.mxu0 %v7841
          %10391 = vmatprep.subr.bf16.mxu0 %v7850
          %10392 = vmatpush1.bf16.msra.mxu0 %v7849
          %10393 = vmatprep.subr.bf16.mxu0 %v7858
          %10394 = vmatpush1.bf16.msra.mxu0 %v7857
          %10395 = vmatprep.subr.bf16.mxu0 %v7866
          %10396 = vmatpush1.bf16.msra.mxu0 %v7865
          %10397 = vmatprep.subr.bf16.mxu0 %v7874
          %10398 = vmatpush1.bf16.msra.mxu0 %v7873
          %10399 = vmatprep.subr.bf16.mxu0 %v7882
          %10400 = vmatpush1.bf16.msra.mxu0 %v7881
          %10401 = vmatprep.subr.bf16.mxu0 %v7890
          %10402 = vmatpush1.bf16.msra.mxu0 %v7889
          %10403 = vmatprep.subr.bf16.mxu0 %v7898
          %10404 = vmatpush1.bf16.msra.mxu0 %v7897
          %10405 = vmatprep.subr.bf16.mxu0 %v7906
          %10406 = vmatpush1.bf16.msra.mxu0 %v7905
          %10407 = vmatprep.subr.bf16.mxu0 %v7914
          %10408 = vmatpush1.bf16.msra.mxu0 %v7913
          %10409 = vmatprep.subr.bf16.mxu0 %v7922
          %10410 = vmatpush1.bf16.msra.mxu0 %v7921
          %10411 = vmatprep.subr.bf16.mxu0 %v7930
          %10412 = vmatpush1.bf16.msra.mxu0 %v7929
          %10413 = vmatprep.subr.bf16.mxu0 %v7938
          %10414 = vmatpush1.bf16.msra.mxu0 %v7937
          %10415 = vmatprep.subr.bf16.mxu0 %v7946
          %10416 = vmatpush1.bf16.msra.mxu0 %v7945
          %10417 = vmatprep.subr.bf16.mxu0 %v7954
          %10418 = vmatpush1.bf16.msra.mxu0 %v7953
          %10419 = vmatprep.mubr.bf16.mxu0 %v10138
          %10420 = vmatmul.mubr.bf16.gmra.mrb[0].mxu0 %v10137
          %v10421 = vpop.f32.mrb[0].mxu0
          %v10422 = vadd.f32 %v10381, %v10421
          %v10423 = vpop.f32.mrb[0].mxu0
          %v10424 = vadd.f32 %v10383, %v10423
          %v10425 = vpop.f32.mrb[0].mxu0
          %v10426 = vpop.f32.mrb[0].mxu0
          %10427 = vdwg.mxu0
          %10428 = vmatprep.subr.bf16.mxu0 %v7962
          %10429 = vmatpush1.bf16.msra.mxu0 %v7961
          %10430 = vmatprep.subr.bf16.mxu0 %v7970
          %10431 = vmatpush1.bf16.msra.mxu0 %v7969
          %10432 = vmatprep.subr.bf16.mxu0 %v7978
          %10433 = vmatpush1.bf16.msra.mxu0 %v7977
          %10434 = vmatprep.subr.bf16.mxu0 %v7986
          %10435 = vmatpush1.bf16.msra.mxu0 %v7985
          %10436 = vmatprep.subr.bf16.mxu0 %v7994
          %10437 = vmatpush1.bf16.msra.mxu0 %v7993
          %10438 = vmatprep.subr.bf16.mxu0 %v8002
          %10439 = vmatpush1.bf16.msra.mxu0 %v8001
          %10440 = vmatprep.subr.bf16.mxu0 %v8010
          %10441 = vmatpush1.bf16.msra.mxu0 %v8009
          %10442 = vmatprep.subr.bf16.mxu0 %v8018
          %10443 = vmatpush1.bf16.msra.mxu0 %v8017
          %10444 = vmatprep.subr.bf16.mxu0 %v8026
          %10445 = vmatpush1.bf16.msra.mxu0 %v8025
          %10446 = vmatprep.subr.bf16.mxu0 %v8034
          %10447 = vmatpush1.bf16.msra.mxu0 %v8033
          %10448 = vmatprep.subr.bf16.mxu0 %v8042
          %10449 = vmatpush1.bf16.msra.mxu0 %v8041
          %10450 = vmatprep.subr.bf16.mxu0 %v8050
          %10451 = vmatpush1.bf16.msra.mxu0 %v8049
          %10452 = vmatprep.subr.bf16.mxu0 %v8058
          %10453 = vmatpush1.bf16.msra.mxu0 %v8057
          %10454 = vmatprep.subr.bf16.mxu0 %v8066
          %10455 = vmatpush1.bf16.msra.mxu0 %v8065
          %10456 = vmatprep.subr.bf16.mxu0 %v8074
          %10457 = vmatpush1.bf16.msra.mxu0 %v8073
          %10458 = vmatprep.subr.bf16.mxu0 %v8082
          %10459 = vmatpush1.bf16.msra.mxu0 %v8081
          %10460 = vmatprep.mubr.bf16.mxu0 %v10140
          %10461 = vmatmul.mubr.bf16.gmra.mrb[0].mxu0 %v10139
          %v10462 = vpop.f32.mrb[0].mxu0
          %v10463 = vadd.f32 %v10422, %v10462
          %v10464 = vpop.f32.mrb[0].mxu0
          %v10465 = vadd.f32 %v10424, %v10464
          %v10466 = vpop.f32.mrb[0].mxu0
          %v10467 = vpop.f32.mrb[0].mxu0
          %10468 = vdwg.mxu0
          %10469 = vmatprep.subr.bf16.mxu0 %v7580
          %10470 = vmatpush1.bf16.msra.mxu0 %v7579
          %10471 = vmatprep.subr.bf16.mxu0 %v7588
          %10472 = vmatpush1.bf16.msra.mxu0 %v7587
          %10473 = vmatprep.subr.bf16.mxu0 %v7596
          %10474 = vmatpush1.bf16.msra.mxu0 %v7595
          %10475 = vmatprep.subr.bf16.mxu0 %v7604
          %10476 = vmatpush1.bf16.msra.mxu0 %v7603
          %10477 = vmatprep.subr.bf16.mxu0 %v7612
          %10478 = vmatpush1.bf16.msra.mxu0 %v7611
          %10479 = vmatprep.subr.bf16.mxu0 %v7620
          %10480 = vmatpush1.bf16.msra.mxu0 %v7619
          %10481 = vmatprep.subr.bf16.mxu0 %v7628
          %10482 = vmatpush1.bf16.msra.mxu0 %v7627
          %10483 = vmatprep.subr.bf16.mxu0 %v7636
          %10484 = vmatpush1.bf16.msra.mxu0 %v7635
          %10485 = vmatprep.subr.bf16.mxu0 %v7644
          %10486 = vmatpush1.bf16.msra.mxu0 %v7643
          %10487 = vmatprep.subr.bf16.mxu0 %v7652
          %10488 = vmatpush1.bf16.msra.mxu0 %v7651
          %10489 = vmatprep.subr.bf16.mxu0 %v7660
          %10490 = vmatpush1.bf16.msra.mxu0 %v7659
          %10491 = vmatprep.subr.bf16.mxu0 %v7668
          %10492 = vmatpush1.bf16.msra.mxu0 %v7667
          %10493 = vmatprep.subr.bf16.mxu0 %v7676
          %10494 = vmatpush1.bf16.msra.mxu0 %v7675
          %10495 = vmatprep.subr.bf16.mxu0 %v7684
          %10496 = vmatpush1.bf16.msra.mxu0 %v7683
          %10497 = vmatprep.subr.bf16.mxu0 %v7692
          %10498 = vmatpush1.bf16.msra.mxu0 %v7691
          %10499 = vmatprep.subr.bf16.mxu0 %v7700
          %10500 = vmatpush1.bf16.msra.mxu0 %v7699
          %10501 = vmatprep.mubr.bf16.mxu0 %v10134
          %10502 = vmatmul.mubr.bf16.gmra.mrb[0].mxu0 %v10133
          %v10503 = vpop.f32.mrb[0].mxu0
          %v10504 = vadd.f32 %v6018, %v10503
          %v10505 = vpop.f32.mrb[0].mxu0
          %v10506 = vadd.f32 %v6022, %v10505
          %v10507 = vpop.f32.mrb[0].mxu0
          %v10508 = vpop.f32.mrb[0].mxu0
          %10509 = vdwg.mxu0
          %10510 = vmatprep.subr.bf16.mxu0 %v7708
          %10511 = vmatpush1.bf16.msra.mxu0 %v7707
          %10512 = vmatprep.subr.bf16.mxu0 %v7716
          %10513 = vmatpush1.bf16.msra.mxu0 %v7715
          %10514 = vmatprep.subr.bf16.mxu0 %v7724
          %10515 = vmatpush1.bf16.msra.mxu0 %v7723
          %10516 = vmatprep.subr.bf16.mxu0 %v7732
          %10517 = vmatpush1.bf16.msra.mxu0 %v7731
          %10518 = vmatprep.subr.bf16.mxu0 %v7740
          %10519 = vmatpush1.bf16.msra.mxu0 %v7739
          %10520 = vmatprep.subr.bf16.mxu0 %v7748
          %10521 = vmatpush1.bf16.msra.mxu0 %v7747
          %10522 = vmatprep.subr.bf16.mxu0 %v7756
          %10523 = vmatpush1.bf16.msra.mxu0 %v7755
          %10524 = vmatprep.subr.bf16.mxu0 %v7764
          %10525 = vmatpush1.bf16.msra.mxu0 %v7763
          %10526 = vmatprep.subr.bf16.mxu0 %v7772
          %10527 = vmatpush1.bf16.msra.mxu0 %v7771
          %10528 = vmatprep.subr.bf16.mxu0 %v7780
          %10529 = vmatpush1.bf16.msra.mxu0 %v7779
          %10530 = vmatprep.subr.bf16.mxu0 %v7788
          %10531 = vmatpush1.bf16.msra.mxu0 %v7787
          %10532 = vmatprep.subr.bf16.mxu0 %v7796
          %10533 = vmatpush1.bf16.msra.mxu0 %v7795
          %10534 = vmatprep.subr.bf16.mxu0 %v7804
          %10535 = vmatpush1.bf16.msra.mxu0 %v7803
          %10536 = vmatprep.subr.bf16.mxu0 %v7812
          %10537 = vmatpush1.bf16.msra.mxu0 %v7811
          %10538 = vmatprep.subr.bf16.mxu0 %v7820
          %10539 = vmatpush1.bf16.msra.mxu0 %v7819
          %10540 = vmatprep.subr.bf16.mxu0 %v7828
          %10541 = vmatpush1.bf16.msra.mxu0 %v7827
          %10542 = vmatprep.mubr.bf16.mxu0 %v10136
          %10543 = vmatmul.mubr.bf16.gmra.mrb[0].mxu0 %v10135
          %v10544 = vpop.f32.mrb[0].mxu0
          %v10545 = vadd.f32 %v10504, %v10544
          %v10546 = vpop.f32.mrb[0].mxu0
          %v10547 = vadd.f32 %v10506, %v10546
          %v10548 = vpop.f32.mrb[0].mxu0
          %v10549 = vpop.f32.mrb[0].mxu0
          %10550 = vdwg.mxu0
          %10551 = vmatprep.subr.bf16.mxu0 %v7836
          %10552 = vmatpush1.bf16.msra.mxu0 %v7835
          %10553 = vmatprep.subr.bf16.mxu0 %v7844
          %10554 = vmatpush1.bf16.msra.mxu0 %v7843
          %10555 = vmatprep.subr.bf16.mxu0 %v7852
          %10556 = vmatpush1.bf16.msra.mxu0 %v7851
          %10557 = vmatprep.subr.bf16.mxu0 %v7860
          %10558 = vmatpush1.bf16.msra.mxu0 %v7859
          %10559 = vmatprep.subr.bf16.mxu0 %v7868
          %10560 = vmatpush1.bf16.msra.mxu0 %v7867
          %10561 = vmatprep.subr.bf16.mxu0 %v7876
          %10562 = vmatpush1.bf16.msra.mxu0 %v7875
          %10563 = vmatprep.subr.bf16.mxu0 %v7884
          %10564 = vmatpush1.bf16.msra.mxu0 %v7883
          %10565 = vmatprep.subr.bf16.mxu0 %v7892
          %10566 = vmatpush1.bf16.msra.mxu0 %v7891
          %10567 = vmatprep.subr.bf16.mxu0 %v7900
          %10568 = vmatpush1.bf16.msra.mxu0 %v7899
          %10569 = vmatprep.subr.bf16.mxu0 %v7908
          %10570 = vmatpush1.bf16.msra.mxu0 %v7907
          %10571 = vmatprep.subr.bf16.mxu0 %v7916
          %10572 = vmatpush1.bf16.msra.mxu0 %v7915
          %10573 = vmatprep.subr.bf16.mxu0 %v7924
          %10574 = vmatpush1.bf16.msra.mxu0 %v7923
          %10575 = vmatprep.subr.bf16.mxu0 %v7932
          %10576 = vmatpush1.bf16.msra.mxu0 %v7931
          %10577 = vmatprep.subr.bf16.mxu0 %v7940
          %10578 = vmatpush1.bf16.msra.mxu0 %v7939
          %10579 = vmatprep.subr.bf16.mxu0 %v7948
          %10580 = vmatpush1.bf16.msra.mxu0 %v7947
          %10581 = vmatprep.subr.bf16.mxu0 %v7956
          %10582 = vmatpush1.bf16.msra.mxu0 %v7955
          %10583 = vmatprep.mubr.bf16.mxu0 %v10138
          %10584 = vmatmul.mubr.bf16.gmra.mrb[0].mxu0 %v10137
          %v10585 = vpop.f32.mrb[0].mxu0
          %v10586 = vadd.f32 %v10545, %v10585
          %v10587 = vpop.f32.mrb[0].mxu0
          %v10588 = vadd.f32 %v10547, %v10587
          %v10589 = vpop.f32.mrb[0].mxu0
          %v10590 = vpop.f32.mrb[0].mxu0
          %10591 = vdwg.mxu0
          %10592 = vmatprep.subr.bf16.mxu0 %v7964
          %10593 = vmatpush1.bf16.msra.mxu0 %v7963
          %10594 = vmatprep.subr.bf16.mxu0 %v7972
          %10595 = vmatpush1.bf16.msra.mxu0 %v7971
          %10596 = vmatprep.subr.bf16.mxu0 %v7980
          %10597 = vmatpush1.bf16.msra.mxu0 %v7979
          %10598 = vmatprep.subr.bf16.mxu0 %v7988
          %10599 = vmatpush1.bf16.msra.mxu0 %v7987
          %10600 = vmatprep.subr.bf16.mxu0 %v7996
          %10601 = vmatpush1.bf16.msra.mxu0 %v7995
          %10602 = vmatprep.subr.bf16.mxu0 %v8004
          %10603 = vmatpush1.bf16.msra.mxu0 %v8003
          %10604 = vmatprep.subr.bf16.mxu0 %v8012
          %10605 = vmatpush1.bf16.msra.mxu0 %v8011
          %10606 = vmatprep.subr.bf16.mxu0 %v8020
          %10607 = vmatpush1.bf16.msra.mxu0 %v8019
          %10608 = vmatprep.subr.bf16.mxu0 %v8028
          %10609 = vmatpush1.bf16.msra.mxu0 %v8027
          %10610 = vmatprep.subr.bf16.mxu0 %v8036
          %10611 = vmatpush1.bf16.msra.mxu0 %v8035
          %10612 = vmatprep.subr.bf16.mxu0 %v8044
          %10613 = vmatpush1.bf16.msra.mxu0 %v8043
          %10614 = vmatprep.subr.bf16.mxu0 %v8052
          %10615 = vmatpush1.bf16.msra.mxu0 %v8051
          %10616 = vmatprep.subr.bf16.mxu0 %v8060
          %10617 = vmatpush1.bf16.msra.mxu0 %v8059
          %10618 = vmatprep.subr.bf16.mxu0 %v8068
          %10619 = vmatpush1.bf16.msra.mxu0 %v8067
          %10620 = vmatprep.subr.bf16.mxu0 %v8076
          %10621 = vmatpush1.bf16.msra.mxu0 %v8075
          %10622 = vmatprep.subr.bf16.mxu0 %v8084
          %10623 = vmatpush1.bf16.msra.mxu0 %v8083
          %10624 = vmatprep.mubr.bf16.mxu0 %v10140
          %10625 = vmatmul.mubr.bf16.gmra.mrb[0].mxu0 %v10139
          %v10626 = vpop.f32.mrb[0].mxu0
          %v10627 = vadd.f32 %v10586, %v10626
          %v10628 = vpop.f32.mrb[0].mxu0
          %v10629 = vadd.f32 %v10588, %v10628
          %v10630 = vpop.f32.mrb[0].mxu0
          %v10631 = vpop.f32.mrb[0].mxu0
          %10632 = vdwg.mxu0
          %10633 = vmatprep.subr.bf16.mxu0 %v7582
          %10634 = vmatpush1.bf16.msra.mxu0 %v7581
          %10635 = vmatprep.subr.bf16.mxu0 %v7590
          %10636 = vmatpush1.bf16.msra.mxu0 %v7589
          %10637 = vmatprep.subr.bf16.mxu0 %v7598
          %10638 = vmatpush1.bf16.msra.mxu0 %v7597
          %10639 = vmatprep.subr.bf16.mxu0 %v7606
          %10640 = vmatpush1.bf16.msra.mxu0 %v7605
          %10641 = vmatprep.subr.bf16.mxu0 %v7614
          %10642 = vmatpush1.bf16.msra.mxu0 %v7613
          %10643 = vmatprep.subr.bf16.mxu0 %v7622
          %10644 = vmatpush1.bf16.msra.mxu0 %v7621
          %10645 = vmatprep.subr.bf16.mxu0 %v7630
          %10646 = vmatpush1.bf16.msra.mxu0 %v7629
          %10647 = vmatprep.subr.bf16.mxu0 %v7638
          %10648 = vmatpush1.bf16.msra.mxu0 %v7637
          %10649 = vmatprep.subr.bf16.mxu0 %v7646
          %10650 = vmatpush1.bf16.msra.mxu0 %v7645
          %10651 = vmatprep.subr.bf16.mxu0 %v7654
          %10652 = vmatpush1.bf16.msra.mxu0 %v7653
          %10653 = vmatprep.subr.bf16.mxu0 %v7662
          %10654 = vmatpush1.bf16.msra.mxu0 %v7661
          %10655 = vmatprep.subr.bf16.mxu0 %v7670
          %10656 = vmatpush1.bf16.msra.mxu0 %v7669
          %10657 = vmatprep.subr.bf16.mxu0 %v7678
          %10658 = vmatpush1.bf16.msra.mxu0 %v7677
          %10659 = vmatprep.subr.bf16.mxu0 %v7686
          %10660 = vmatpush1.bf16.msra.mxu0 %v7685
          %10661 = vmatprep.subr.bf16.mxu0 %v7694
          %10662 = vmatpush1.bf16.msra.mxu0 %v7693
          %10663 = vmatprep.subr.bf16.mxu0 %v7702
          %10664 = vmatpush1.bf16.msra.mxu0 %v7701
          %10665 = vmatprep.mubr.bf16.mxu0 %v10134
          %10666 = vmatmul.mubr.bf16.gmra.mrb[0].mxu0 %v10133
          %v10667 = vpop.f32.mrb[0].mxu0
          %v10668 = vadd.f32 %v6026, %v10667
          %v10669 = vpop.f32.mrb[0].mxu0
          %v10670 = vadd.f32 %v6030, %v10669
          %v10671 = vpop.f32.mrb[0].mxu0
          %v10672 = vpop.f32.mrb[0].mxu0
          %10673 = vdwg.mxu0
          %10674 = vmatprep.subr.bf16.mxu0 %v7710
          %10675 = vmatpush1.bf16.msra.mxu0 %v7709
          %10676 = vmatprep.subr.bf16.mxu0 %v7718
          %10677 = vmatpush1.bf16.msra.mxu0 %v7717
          %10678 = vmatprep.subr.bf16.mxu0 %v7726
          %10679 = vmatpush1.bf16.msra.mxu0 %v7725
          %10680 = vmatprep.subr.bf16.mxu0 %v7734
          %10681 = vmatpush1.bf16.msra.mxu0 %v7733
          %10682 = vmatprep.subr.bf16.mxu0 %v7742
          %10683 = vmatpush1.bf16.msra.mxu0 %v7741
          %10684 = vmatprep.subr.bf16.mxu0 %v7750
          %10685 = vmatpush1.bf16.msra.mxu0 %v7749
          %10686 = vmatprep.subr.bf16.mxu0 %v7758
          %10687 = vmatpush1.bf16.msra.mxu0 %v7757
          %10688 = vmatprep.subr.bf16.mxu0 %v7766
          %10689 = vmatpush1.bf16.msra.mxu0 %v7765
          %10690 = vmatprep.subr.bf16.mxu0 %v7774
          %10691 = vmatpush1.bf16.msra.mxu0 %v7773
          %10692 = vmatprep.subr.bf16.mxu0 %v7782
          %10693 = vmatpush1.bf16.msra.mxu0 %v7781
          %10694 = vmatprep.subr.bf16.mxu0 %v7790
          %10695 = vmatpush1.bf16.msra.mxu0 %v7789
          %10696 = vmatprep.subr.bf16.mxu0 %v7798
          %10697 = vmatpush1.bf16.msra.mxu0 %v7797
          %10698 = vmatprep.subr.bf16.mxu0 %v7806
          %10699 = vmatpush1.bf16.msra.mxu0 %v7805
          %10700 = vmatprep.subr.bf16.mxu0 %v7814
          %10701 = vmatpush1.bf16.msra.mxu0 %v7813
          %10702 = vmatprep.subr.bf16.mxu0 %v7822
          %10703 = vmatpush1.bf16.msra.mxu0 %v7821
          %10704 = vmatprep.subr.bf16.mxu0 %v7830
          %10705 = vmatpush1.bf16.msra.mxu0 %v7829
          %10706 = vmatprep.mubr.bf16.mxu0 %v10136
          %10707 = vmatmul.mubr.bf16.gmra.mrb[0].mxu0 %v10135
          %v10708 = vpop.f32.mrb[0].mxu0
          %v10709 = vadd.f32 %v10668, %v10708
          %v10710 = vpop.f32.mrb[0].mxu0
          %v10711 = vadd.f32 %v10670, %v10710
          %v10712 = vpop.f32.mrb[0].mxu0
          %v10713 = vpop.f32.mrb[0].mxu0
          %10714 = vdwg.mxu0
          %10715 = vmatprep.subr.bf16.mxu0 %v7838
          %10716 = vmatpush1.bf16.msra.mxu0 %v7837
          %10717 = vmatprep.subr.bf16.mxu0 %v7846
          %10718 = vmatpush1.bf16.msra.mxu0 %v7845
          %10719 = vmatprep.subr.bf16.mxu0 %v7854
          %10720 = vmatpush1.bf16.msra.mxu0 %v7853
          %10721 = vmatprep.subr.bf16.mxu0 %v7862
          %10722 = vmatpush1.bf16.msra.mxu0 %v7861
          %10723 = vmatprep.subr.bf16.mxu0 %v7870
          %10724 = vmatpush1.bf16.msra.mxu0 %v7869
          %10725 = vmatprep.subr.bf16.mxu0 %v7878
          %10726 = vmatpush1.bf16.msra.mxu0 %v7877
          %10727 = vmatprep.subr.bf16.mxu0 %v7886
          %10728 = vmatpush1.bf16.msra.mxu0 %v7885
          %10729 = vmatprep.subr.bf16.mxu0 %v7894
          %10730 = vmatpush1.bf16.msra.mxu0 %v7893
          %10731 = vmatprep.subr.bf16.mxu0 %v7902
          %10732 = vmatpush1.bf16.msra.mxu0 %v7901
          %10733 = vmatprep.subr.bf16.mxu0 %v7910
          %10734 = vmatpush1.bf16.msra.mxu0 %v7909
          %10735 = vmatprep.subr.bf16.mxu0 %v7918
          %10736 = vmatpush1.bf16.msra.mxu0 %v7917
          %10737 = vmatprep.subr.bf16.mxu0 %v7926
          %10738 = vmatpush1.bf16.msra.mxu0 %v7925
          %10739 = vmatprep.subr.bf16.mxu0 %v7934
          %10740 = vmatpush1.bf16.msra.mxu0 %v7933
          %10741 = vmatprep.subr.bf16.mxu0 %v7942
          %10742 = vmatpush1.bf16.msra.mxu0 %v7941
          %10743 = vmatprep.subr.bf16.mxu0 %v7950
          %10744 = vmatpush1.bf16.msra.mxu0 %v7949
          %10745 = vmatprep.subr.bf16.mxu0 %v7958
          %10746 = vmatpush1.bf16.msra.mxu0 %v7957
          %10747 = vmatprep.mubr.bf16.mxu0 %v10138
          %10748 = vmatmul.mubr.bf16.gmra.mrb[0].mxu0 %v10137
          %v10749 = vpop.f32.mrb[0].mxu0
          %v10750 = vadd.f32 %v10709, %v10749
          %v10751 = vpop.f32.mrb[0].mxu0
          %v10752 = vadd.f32 %v10711, %v10751
          %v10753 = vpop.f32.mrb[0].mxu0
          %v10754 = vpop.f32.mrb[0].mxu0
          %10755 = vdwg.mxu0
          %10756 = vmatprep.subr.bf16.mxu0 %v7966
          %10757 = vmatpush1.bf16.msra.mxu0 %v7965
          %10758 = vmatprep.subr.bf16.mxu0 %v7974
          %10759 = vmatpush1.bf16.msra.mxu0 %v7973
          %10760 = vmatprep.subr.bf16.mxu0 %v7982
          %10761 = vmatpush1.bf16.msra.mxu0 %v7981
          %10762 = vmatprep.subr.bf16.mxu0 %v7990
          %10763 = vmatpush1.bf16.msra.mxu0 %v7989
          %10764 = vmatprep.subr.bf16.mxu0 %v7998
          %10765 = vmatpush1.bf16.msra.mxu0 %v7997
          %10766 = vmatprep.subr.bf16.mxu0 %v8006
          %10767 = vmatpush1.bf16.msra.mxu0 %v8005
          %10768 = vmatprep.subr.bf16.mxu0 %v8014
          %10769 = vmatpush1.bf16.msra.mxu0 %v8013
          %10770 = vmatprep.subr.bf16.mxu0 %v8022
          %10771 = vmatpush1.bf16.msra.mxu0 %v8021
          %10772 = vmatprep.subr.bf16.mxu0 %v8030
          %10773 = vmatpush1.bf16.msra.mxu0 %v8029
          %10774 = vmatprep.subr.bf16.mxu0 %v8038
          %10775 = vmatpush1.bf16.msra.mxu0 %v8037
          %10776 = vmatprep.subr.bf16.mxu0 %v8046
          %10777 = vmatpush1.bf16.msra.mxu0 %v8045
          %10778 = vmatprep.subr.bf16.mxu0 %v8054
          %10779 = vmatpush1.bf16.msra.mxu0 %v8053
          %10780 = vmatprep.subr.bf16.mxu0 %v8062
          %10781 = vmatpush1.bf16.msra.mxu0 %v8061
          %10782 = vmatprep.subr.bf16.mxu0 %v8070
          %10783 = vmatpush1.bf16.msra.mxu0 %v8069
          %10784 = vmatprep.subr.bf16.mxu0 %v8078
          %10785 = vmatpush1.bf16.msra.mxu0 %v8077
          %10786 = vmatprep.subr.bf16.mxu0 %v8086
          %10787 = vmatpush1.bf16.msra.mxu0 %v8085
          %10788 = vmatprep.mubr.bf16.mxu0 %v10140
          %10789 = vmatmul.mubr.bf16.gmra.mrb[0].mxu0 %v10139
          %v10790 = vpop.f32.mrb[0].mxu0
          %v10791 = vadd.f32 %v10750, %v10790
          %v10792 = vpop.f32.mrb[0].mxu0
          %v10793 = vadd.f32 %v10752, %v10792
          %v10794 = vpop.f32.mrb[0].mxu0
          %v10795 = vpop.f32.mrb[0].mxu0
          %10796 = vdwg.mxu0
          %v10797 = vmax.f32 %v10299, 0.0
          %v10798 = vmax.f32 %v10301, 0.0
          %v10799 = vmax.f32 %v10463, 0.0
          %v10800 = vmax.f32 %v10465, 0.0
          %v10801 = vmax.f32 %v10627, 0.0
          %v10802 = vmax.f32 %v10629, 0.0
          %v10803 = vmax.f32 %v10791, 0.0
          %v10804 = vmax.f32 %v10793, 0.0
          %v10805 = vpack.c.bf16 %v10797, %v10797
          %v10806 = vpack.c.bf16 %v10798, %v10798
          %v10807 = vpack.c.bf16 %v10799, %v10799
          %v10808 = vpack.c.bf16 %v10800, %v10800
          %v10809 = vpack.c.bf16 %v10801, %v10801
          %v10810 = vpack.c.bf16 %v10802, %v10802
          %v10811 = vpack.c.bf16 %v10803, %v10803
          %v10812 = vpack.c.bf16 %v10804, %v10804
          %10813 = vmatprep.subr.bf16.mxu0 0
          %10814 = vmatpush1.bf16.msra.mxu0 %v9655
          %10815 = vmatprep.subr.bf16.mxu0 0
          %10816 = vmatpush1.bf16.msra.mxu0 %v9656
          %10817 = vmatprep.subr.bf16.mxu0 0
          %10818 = vmatpush1.bf16.msra.mxu0 %v9657
          %10819 = vmatprep.subr.bf16.mxu0 0
          %10820 = vmatpush1.bf16.msra.mxu0 %v9658
          %10821 = vmatprep.subr.bf16.mxu0 0
          %10822 = vmatpush1.bf16.msra.mxu0 %v9659
          %10823 = vmatprep.subr.bf16.mxu0 0
          %10824 = vmatpush1.bf16.msra.mxu0 %v9660
          %10825 = vmatprep.subr.bf16.mxu0 0
          %10826 = vmatpush1.bf16.msra.mxu0 %v9661
          %10827 = vmatprep.subr.bf16.mxu0 0
          %10828 = vmatpush1.bf16.msra.mxu0 %v9662
          %10829 = vmatprep.subr.bf16.mxu0 0
          %10830 = vmatpush1.bf16.msra.mxu0 %v9663
          %10831 = vmatprep.subr.bf16.mxu0 0
          %10832 = vmatpush1.bf16.msra.mxu0 %v9664
          %10833 = vmatprep.subr.bf16.mxu0 0
          %10834 = vmatpush1.bf16.msra.mxu0 %v9665
          %10835 = vmatprep.subr.bf16.mxu0 0
          %10836 = vmatpush1.bf16.msra.mxu0 %v9666
          %10837 = vmatprep.subr.bf16.mxu0 0
          %10838 = vmatpush1.bf16.msra.mxu0 %v9667
          %10839 = vmatprep.subr.bf16.mxu0 0
          %10840 = vmatpush1.bf16.msra.mxu0 %v9668
          %10841 = vmatprep.subr.bf16.mxu0 0
          %10842 = vmatpush1.bf16.msra.mxu0 %v9669
          %10843 = vmatprep.subr.bf16.mxu0 0
          %10844 = vmatpush1.bf16.msra.mxu0 %v9670
          %10845 = vmatprep.mubr.bf16.mxu0 %v10806
          %10846 = vmatmul.mubr.bf16.gmra.mrb[0].mxu0 %v10805
          %v10847 = vpop.f32.mrb[0].mxu0
          %v10848 = vadd.f32 0.0, %v10847
          %v10849 = vpop.f32.mrb[0].mxu0
          %v10850 = vpop.f32.mrb[0].mxu0
          %v10851 = vpop.f32.mrb[0].mxu0
          %10852 = vdwg.mxu0
          %10853 = vmatprep.subr.bf16.mxu0 0
          %10854 = vmatpush1.bf16.msra.mxu0 %v9671
          %10855 = vmatprep.subr.bf16.mxu0 0
          %10856 = vmatpush1.bf16.msra.mxu0 %v9672
          %10857 = vmatprep.subr.bf16.mxu0 0
          %10858 = vmatpush1.bf16.msra.mxu0 %v9673
          %10859 = vmatprep.subr.bf16.mxu0 0
          %10860 = vmatpush1.bf16.msra.mxu0 %v9674
          %10861 = vmatprep.subr.bf16.mxu0 0
          %10862 = vmatpush1.bf16.msra.mxu0 %v9675
          %10863 = vmatprep.subr.bf16.mxu0 0
          %10864 = vmatpush1.bf16.msra.mxu0 %v9676
          %10865 = vmatprep.subr.bf16.mxu0 0
          %10866 = vmatpush1.bf16.msra.mxu0 %v9677
          %10867 = vmatprep.subr.bf16.mxu0 0
          %10868 = vmatpush1.bf16.msra.mxu0 %v9678
          %10869 = vmatprep.subr.bf16.mxu0 0
          %10870 = vmatpush1.bf16.msra.mxu0 %v9679
          %10871 = vmatprep.subr.bf16.mxu0 0
          %10872 = vmatpush1.bf16.msra.mxu0 %v9680
          %10873 = vmatprep.subr.bf16.mxu0 0
          %10874 = vmatpush1.bf16.msra.mxu0 %v9681
          %10875 = vmatprep.subr.bf16.mxu0 0
          %10876 = vmatpush1.bf16.msra.mxu0 %v9682
          %10877 = vmatprep.subr.bf16.mxu0 0
          %10878 = vmatpush1.bf16.msra.mxu0 %v9683
          %10879 = vmatprep.subr.bf16.mxu0 0
          %10880 = vmatpush1.bf16.msra.mxu0 %v9684
          %10881 = vmatprep.subr.bf16.mxu0 0
          %10882 = vmatpush1.bf16.msra.mxu0 %v9685
          %10883 = vmatprep.subr.bf16.mxu0 0
          %10884 = vmatpush1.bf16.msra.mxu0 %v9686
          %10885 = vmatprep.mubr.bf16.mxu0 %v10808
          %10886 = vmatmul.mubr.bf16.gmra.mrb[0].mxu0 %v10807
          %v10887 = vpop.f32.mrb[0].mxu0
          %v10888 = vadd.f32 %v10848, %v10887
          %v10889 = vpop.f32.mrb[0].mxu0
          %v10890 = vpop.f32.mrb[0].mxu0
          %v10891 = vpop.f32.mrb[0].mxu0
          %10892 = vdwg.mxu0
          %10893 = vmatprep.subr.bf16.mxu0 0
          %10894 = vmatpush1.bf16.msra.mxu0 %v9687
          %10895 = vmatprep.subr.bf16.mxu0 0
          %10896 = vmatpush1.bf16.msra.mxu0 %v9688
          %10897 = vmatprep.subr.bf16.mxu0 0
          %10898 = vmatpush1.bf16.msra.mxu0 %v9689
          %10899 = vmatprep.subr.bf16.mxu0 0
          %10900 = vmatpush1.bf16.msra.mxu0 %v9690
          %10901 = vmatprep.subr.bf16.mxu0 0
          %10902 = vmatpush1.bf16.msra.mxu0 %v9691
          %10903 = vmatprep.subr.bf16.mxu0 0
          %10904 = vmatpush1.bf16.msra.mxu0 %v9692
          %10905 = vmatprep.subr.bf16.mxu0 0
          %10906 = vmatpush1.bf16.msra.mxu0 %v9693
          %10907 = vmatprep.subr.bf16.mxu0 0
          %10908 = vmatpush1.bf16.msra.mxu0 %v9694
          %10909 = vmatprep.subr.bf16.mxu0 0
          %10910 = vmatpush1.bf16.msra.mxu0 %v9695
          %10911 = vmatprep.subr.bf16.mxu0 0
          %10912 = vmatpush1.bf16.msra.mxu0 %v9696
          %10913 = vmatprep.subr.bf16.mxu0 0
          %10914 = vmatpush1.bf16.msra.mxu0 %v9697
          %10915 = vmatprep.subr.bf16.mxu0 0
          %10916 = vmatpush1.bf16.msra.mxu0 %v9698
          %10917 = vmatprep.subr.bf16.mxu0 0
          %10918 = vmatpush1.bf16.msra.mxu0 %v9699
          %10919 = vmatprep.subr.bf16.mxu0 0
          %10920 = vmatpush1.bf16.msra.mxu0 %v9700
          %10921 = vmatprep.subr.bf16.mxu0 0
          %10922 = vmatpush1.bf16.msra.mxu0 %v9701
          %10923 = vmatprep.subr.bf16.mxu0 0
          %10924 = vmatpush1.bf16.msra.mxu0 %v9702
          %10925 = vmatprep.mubr.bf16.mxu0 %v10810
          %10926 = vmatmul.mubr.bf16.gmra.mrb[0].mxu0 %v10809
          %v10927 = vpop.f32.mrb[0].mxu0
          %v10928 = vadd.f32 %v10888, %v10927
          %v10929 = vpop.f32.mrb[0].mxu0
          %v10930 = vpop.f32.mrb[0].mxu0
          %v10931 = vpop.f32.mrb[0].mxu0
          %10932 = vdwg.mxu0
          %10933 = vmatprep.subr.bf16.mxu0 0
          %10934 = vmatpush1.bf16.msra.mxu0 %v9703
          %10935 = vmatprep.subr.bf16.mxu0 0
          %10936 = vmatpush1.bf16.msra.mxu0 %v9704
          %10937 = vmatprep.subr.bf16.mxu0 0
          %10938 = vmatpush1.bf16.msra.mxu0 %v9705
          %10939 = vmatprep.subr.bf16.mxu0 0
          %10940 = vmatpush1.bf16.msra.mxu0 %v9706
          %10941 = vmatprep.subr.bf16.mxu0 0
          %10942 = vmatpush1.bf16.msra.mxu0 %v9707
          %10943 = vmatprep.subr.bf16.mxu0 0
          %10944 = vmatpush1.bf16.msra.mxu0 %v9708
          %10945 = vmatprep.subr.bf16.mxu0 0
          %10946 = vmatpush1.bf16.msra.mxu0 %v9709
          %10947 = vmatprep.subr.bf16.mxu0 0
          %10948 = vmatpush1.bf16.msra.mxu0 %v9710
          %10949 = vmatprep.subr.bf16.mxu0 0
          %10950 = vmatpush1.bf16.msra.mxu0 %v9711
          %10951 = vmatprep.subr.bf16.mxu0 0
          %10952 = vmatpush1.bf16.msra.mxu0 %v9712
          %10953 = vmatprep.subr.bf16.mxu0 0
          %10954 = vmatpush1.bf16.msra.mxu0 %v9713
          %10955 = vmatprep.subr.bf16.mxu0 0
          %10956 = vmatpush1.bf16.msra.mxu0 %v9714
          %10957 = vmatprep.subr.bf16.mxu0 0
          %10958 = vmatpush1.bf16.msra.mxu0 %v9715
          %10959 = vmatprep.subr.bf16.mxu0 0
          %10960 = vmatpush1.bf16.msra.mxu0 %v9716
          %10961 = vmatprep.subr.bf16.mxu0 0
          %10962 = vmatpush1.bf16.msra.mxu0 %v9717
          %10963 = vmatprep.subr.bf16.mxu0 0
          %10964 = vmatpush1.bf16.msra.mxu0 %v9718
          %10965 = vmatprep.mubr.bf16.mxu0 %v10812
          %10966 = vmatmul.mubr.bf16.gmra.mrb[0].mxu0 %v10811
          %v10967 = vpop.f32.mrb[0].mxu0
          %v10968 = vadd.f32 %v10928, %v10967
          %v10969 = vpop.f32.mrb[0].mxu0
          %v10970 = vpop.f32.mrb[0].mxu0
          %v10971 = vpop.f32.mrb[0].mxu0
          %10972 = vdwg.mxu0
          %v10973 = vadd.f32 %v9951, %v10968
          %v10974 = vadd.f32 %v10973, %v9949
          %v10975 = vpack.c.bf16 %v10974, %v10974
          %10976 = vmatprep.subr.bf16.mxu0 %v5170
          %10977 = vmatpush1.bf16.msra.mxu0 %v5169
          %10978 = vmatprep.subr.bf16.mxu0 %v5178
          %10979 = vmatpush1.bf16.msra.mxu0 %v5177
          %10980 = vmatprep.subr.bf16.mxu0 %v5186
          %10981 = vmatpush1.bf16.msra.mxu0 %v5185
          %10982 = vmatprep.subr.bf16.mxu0 %v5194
          %10983 = vmatpush1.bf16.msra.mxu0 %v5193
          %10984 = vmatprep.subr.bf16.mxu0 %v5202
          %10985 = vmatpush1.bf16.msra.mxu0 %v5201
          %10986 = vmatprep.subr.bf16.mxu0 %v5210
          %10987 = vmatpush1.bf16.msra.mxu0 %v5209
          %10988 = vmatprep.subr.bf16.mxu0 %v5218
          %10989 = vmatpush1.bf16.msra.mxu0 %v5217
          %10990 = vmatprep.subr.bf16.mxu0 %v5226
          %10991 = vmatpush1.bf16.msra.mxu0 %v5225
          %10992 = vmatprep.subr.bf16.mxu0 0
          %10993 = vmatpush1.bf16.msra.mxu0 0
          %10994 = vmatprep.subr.bf16.mxu0 0
          %10995 = vmatpush1.bf16.msra.mxu0 0
          %10996 = vmatprep.subr.bf16.mxu0 0
          %10997 = vmatpush1.bf16.msra.mxu0 0
          %10998 = vmatprep.subr.bf16.mxu0 0
          %10999 = vmatpush1.bf16.msra.mxu0 0
          %11000 = vmatprep.subr.bf16.mxu0 0
          %11001 = vmatpush1.bf16.msra.mxu0 0
          %11002 = vmatprep.subr.bf16.mxu0 0
          %11003 = vmatpush1.bf16.msra.mxu0 0
          %11004 = vmatprep.subr.bf16.mxu0 0
          %11005 = vmatpush1.bf16.msra.mxu0 0
          %11006 = vmatprep.subr.bf16.mxu0 0
          %11007 = vmatpush1.bf16.msra.mxu0 0
          %11008 = vmatprep.mubr.bf16.mxu0 0
          %11009 = vmatmul.mubr.bf16.gmra.mrb[0].mxu0 %v10975
          %v11010 = vpop.f32.mrb[0].mxu0
          %v11011 = vadd.f32 0.0, %v11010
          %v11012 = vpop.f32.mrb[0].mxu0
          %v11013 = vadd.f32 0.0, %v11012
          %v11014 = vpop.f32.mrb[0].mxu0
          %v11015 = vpop.f32.mrb[0].mxu0
          %11016 = vdwg.mxu0
          %11017 = vmatprep.subr.bf16.mxu0 %v5172
          %11018 = vmatpush1.bf16.msra.mxu0 %v5171
          %11019 = vmatprep.subr.bf16.mxu0 %v5180
          %11020 = vmatpush1.bf16.msra.mxu0 %v5179
          %11021 = vmatprep.subr.bf16.mxu0 %v5188
          %11022 = vmatpush1.bf16.msra.mxu0 %v5187
          %11023 = vmatprep.subr.bf16.mxu0 %v5196
          %11024 = vmatpush1.bf16.msra.mxu0 %v5195
          %11025 = vmatprep.subr.bf16.mxu0 %v5204
          %11026 = vmatpush1.bf16.msra.mxu0 %v5203
          %11027 = vmatprep.subr.bf16.mxu0 %v5212
          %11028 = vmatpush1.bf16.msra.mxu0 %v5211
          %11029 = vmatprep.subr.bf16.mxu0 %v5220
          %11030 = vmatpush1.bf16.msra.mxu0 %v5219
          %11031 = vmatprep.subr.bf16.mxu0 %v5228
          %11032 = vmatpush1.bf16.msra.mxu0 %v5227
          %11033 = vmatprep.subr.bf16.mxu0 0
          %11034 = vmatpush1.bf16.msra.mxu0 0
          %11035 = vmatprep.subr.bf16.mxu0 0
          %11036 = vmatpush1.bf16.msra.mxu0 0
          %11037 = vmatprep.subr.bf16.mxu0 0
          %11038 = vmatpush1.bf16.msra.mxu0 0
          %11039 = vmatprep.subr.bf16.mxu0 0
          %11040 = vmatpush1.bf16.msra.mxu0 0
          %11041 = vmatprep.subr.bf16.mxu0 0
          %11042 = vmatpush1.bf16.msra.mxu0 0
          %11043 = vmatprep.subr.bf16.mxu0 0
          %11044 = vmatpush1.bf16.msra.mxu0 0
          %11045 = vmatprep.subr.bf16.mxu0 0
          %11046 = vmatpush1.bf16.msra.mxu0 0
          %11047 = vmatprep.subr.bf16.mxu0 0
          %11048 = vmatpush1.bf16.msra.mxu0 0
          %11049 = vmatprep.mubr.bf16.mxu0 0
          %11050 = vmatmul.mubr.bf16.gmra.mrb[0].mxu0 %v10975
          %v11051 = vpop.f32.mrb[0].mxu0
          %v11052 = vadd.f32 0.0, %v11051
          %v11053 = vpop.f32.mrb[0].mxu0
          %v11054 = vadd.f32 0.0, %v11053
          %v11055 = vpop.f32.mrb[0].mxu0
          %v11056 = vpop.f32.mrb[0].mxu0
          %11057 = vdwg.mxu0
          %11058 = vmatprep.subr.bf16.mxu0 %v5174
          %11059 = vmatpush1.bf16.msra.mxu0 %v5173
          %11060 = vmatprep.subr.bf16.mxu0 %v5182
          %11061 = vmatpush1.bf16.msra.mxu0 %v5181
          %11062 = vmatprep.subr.bf16.mxu0 %v5190
          %11063 = vmatpush1.bf16.msra.mxu0 %v5189
          %11064 = vmatprep.subr.bf16.mxu0 %v5198
          %11065 = vmatpush1.bf16.msra.mxu0 %v5197
          %11066 = vmatprep.subr.bf16.mxu0 %v5206
          %11067 = vmatpush1.bf16.msra.mxu0 %v5205
          %11068 = vmatprep.subr.bf16.mxu0 %v5214
          %11069 = vmatpush1.bf16.msra.mxu0 %v5213
          %11070 = vmatprep.subr.bf16.mxu0 %v5222
          %11071 = vmatpush1.bf16.msra.mxu0 %v5221
          %11072 = vmatprep.subr.bf16.mxu0 %v5230
          %11073 = vmatpush1.bf16.msra.mxu0 %v5229
          %11074 = vmatprep.subr.bf16.mxu0 0
          %11075 = vmatpush1.bf16.msra.mxu0 0
          %11076 = vmatprep.subr.bf16.mxu0 0
          %11077 = vmatpush1.bf16.msra.mxu0 0
          %11078 = vmatprep.subr.bf16.mxu0 0
          %11079 = vmatpush1.bf16.msra.mxu0 0
          %11080 = vmatprep.subr.bf16.mxu0 0
          %11081 = vmatpush1.bf16.msra.mxu0 0
          %11082 = vmatprep.subr.bf16.mxu0 0
          %11083 = vmatpush1.bf16.msra.mxu0 0
          %11084 = vmatprep.subr.bf16.mxu0 0
          %11085 = vmatpush1.bf16.msra.mxu0 0
          %11086 = vmatprep.subr.bf16.mxu0 0
          %11087 = vmatpush1.bf16.msra.mxu0 0
          %11088 = vmatprep.subr.bf16.mxu0 0
          %11089 = vmatpush1.bf16.msra.mxu0 0
          %11090 = vmatprep.mubr.bf16.mxu0 0
          %11091 = vmatmul.mubr.bf16.gmra.mrb[0].mxu0 %v10975
          %v11092 = vpop.f32.mrb[0].mxu0
          %v11093 = vadd.f32 0.0, %v11092
          %v11094 = vpop.f32.mrb[0].mxu0
          %v11095 = vadd.f32 0.0, %v11094
          %v11096 = vpop.f32.mrb[0].mxu0
          %v11097 = vpop.f32.mrb[0].mxu0
          %11098 = vdwg.mxu0
          %11099 = vmatprep.subr.bf16.mxu0 %v5176
          %11100 = vmatpush1.bf16.msra.mxu0 %v5175
          %11101 = vmatprep.subr.bf16.mxu0 %v5184
          %11102 = vmatpush1.bf16.msra.mxu0 %v5183
          %11103 = vmatprep.subr.bf16.mxu0 %v5192
          %11104 = vmatpush1.bf16.msra.mxu0 %v5191
          %11105 = vmatprep.subr.bf16.mxu0 %v5200
          %11106 = vmatpush1.bf16.msra.mxu0 %v5199
          %11107 = vmatprep.subr.bf16.mxu0 %v5208
          %11108 = vmatpush1.bf16.msra.mxu0 %v5207
          %11109 = vmatprep.subr.bf16.mxu0 %v5216
          %11110 = vmatpush1.bf16.msra.mxu0 %v5215
          %11111 = vmatprep.subr.bf16.mxu0 %v5224
          %11112 = vmatpush1.bf16.msra.mxu0 %v5223
          %11113 = vmatprep.subr.bf16.mxu0 %v5232
          %11114 = vmatpush1.bf16.msra.mxu0 %v5231
          %11115 = vmatprep.subr.bf16.mxu0 0
          %11116 = vmatpush1.bf16.msra.mxu0 0
          %11117 = vmatprep.subr.bf16.mxu0 0
          %11118 = vmatpush1.bf16.msra.mxu0 0
          %11119 = vmatprep.subr.bf16.mxu0 0
          %11120 = vmatpush1.bf16.msra.mxu0 0
          %11121 = vmatprep.subr.bf16.mxu0 0
          %11122 = vmatpush1.bf16.msra.mxu0 0
          %11123 = vmatprep.subr.bf16.mxu0 0
          %11124 = vmatpush1.bf16.msra.mxu0 0
          %11125 = vmatprep.subr.bf16.mxu0 0
          %11126 = vmatpush1.bf16.msra.mxu0 0
          %11127 = vmatprep.subr.bf16.mxu0 0
          %11128 = vmatpush1.bf16.msra.mxu0 0
          %11129 = vmatprep.subr.bf16.mxu0 0
          %11130 = vmatpush1.bf16.msra.mxu0 0
          %11131 = vmatprep.mubr.bf16.mxu0 0
          %11132 = vmatmul.mubr.bf16.gmra.mrb[0].mxu0 %v10975
          %v11133 = vpop.f32.mrb[0].mxu0
          %v11134 = vadd.f32 0.0, %v11133
          %v11135 = vpop.f32.mrb[0].mxu0
          %v11136 = vadd.f32 0.0, %v11135
          %v11137 = vpop.f32.mrb[0].mxu0
          %v11138 = vpop.f32.mrb[0].mxu0
          %11139 = vdwg.mxu0
          %v11140 = vadd.f32 %v3566, %v11011
          %v11141 = vadd.f32 %v3567, %v11013
          %v11142 = vadd.f32 %v3568, %v11052
          %v11143 = vadd.f32 %v3569, %v11054
          %v11144 = vadd.f32 %v3570, %v11093
          %v11145 = vadd.f32 %v3571, %v11095
          %v11146 = vadd.f32 %v3572, %v11134
          %v11147 = vadd.f32 %v3573, %v11136
          %v11148 = vmax.f32 %v11140, 0.0
          %v11149 = vmax.f32 %v11141, 0.0
          %v11150 = vmax.f32 %v11142, 0.0
          %v11151 = vmax.f32 %v11143, 0.0
          %v11152 = vmax.f32 %v11144, 0.0
          %v11153 = vmax.f32 %v11145, 0.0
          %v11154 = vmax.f32 %v11146, 0.0
          %v11155 = vmax.f32 %v11147, 0.0
          %v11156 = vpack.c.bf16 %v11148, %v11148
          %v11157 = vpack.c.bf16 %v11149, %v11149
          %v11158 = vpack.c.bf16 %v11150, %v11150
          %v11159 = vpack.c.bf16 %v11151, %v11151
          %v11160 = vpack.c.bf16 %v11152, %v11152
          %v11161 = vpack.c.bf16 %v11153, %v11153
          %v11162 = vpack.c.bf16 %v11154, %v11154
          %v11163 = vpack.c.bf16 %v11155, %v11155
          %11164 = vmatprep.subr.bf16.mxu0 %v7576
          %11165 = vmatpush1.bf16.msra.mxu0 %v7575
          %11166 = vmatprep.subr.bf16.mxu0 %v7584
          %11167 = vmatpush1.bf16.msra.mxu0 %v7583
          %11168 = vmatprep.subr.bf16.mxu0 %v7592
          %11169 = vmatpush1.bf16.msra.mxu0 %v7591
          %11170 = vmatprep.subr.bf16.mxu0 %v7600
          %11171 = vmatpush1.bf16.msra.mxu0 %v7599
          %11172 = vmatprep.subr.bf16.mxu0 %v7608
          %11173 = vmatpush1.bf16.msra.mxu0 %v7607
          %11174 = vmatprep.subr.bf16.mxu0 %v7616
          %11175 = vmatpush1.bf16.msra.mxu0 %v7615
          %11176 = vmatprep.subr.bf16.mxu0 %v7624
          %11177 = vmatpush1.bf16.msra.mxu0 %v7623
          %11178 = vmatprep.subr.bf16.mxu0 %v7632
          %11179 = vmatpush1.bf16.msra.mxu0 %v7631
          %11180 = vmatprep.subr.bf16.mxu0 %v7640
          %11181 = vmatpush1.bf16.msra.mxu0 %v7639
          %11182 = vmatprep.subr.bf16.mxu0 %v7648
          %11183 = vmatpush1.bf16.msra.mxu0 %v7647
          %11184 = vmatprep.subr.bf16.mxu0 %v7656
          %11185 = vmatpush1.bf16.msra.mxu0 %v7655
          %11186 = vmatprep.subr.bf16.mxu0 %v7664
          %11187 = vmatpush1.bf16.msra.mxu0 %v7663
          %11188 = vmatprep.subr.bf16.mxu0 %v7672
          %11189 = vmatpush1.bf16.msra.mxu0 %v7671
          %11190 = vmatprep.subr.bf16.mxu0 %v7680
          %11191 = vmatpush1.bf16.msra.mxu0 %v7679
          %11192 = vmatprep.subr.bf16.mxu0 %v7688
          %11193 = vmatpush1.bf16.msra.mxu0 %v7687
          %11194 = vmatprep.subr.bf16.mxu0 %v7696
          %11195 = vmatpush1.bf16.msra.mxu0 %v7695
          %11196 = vmatprep.mubr.bf16.mxu0 %v11157
          %11197 = vmatmul.mubr.bf16.gmra.mrb[0].mxu0 %v11156
          %v11198 = vpop.f32.mrb[0].mxu0
          %v11199 = vadd.f32 %v6002, %v11198
          %v11200 = vpop.f32.mrb[0].mxu0
          %v11201 = vadd.f32 %v6006, %v11200
          %v11202 = vpop.f32.mrb[0].mxu0
          %v11203 = vpop.f32.mrb[0].mxu0
          %11204 = vdwg.mxu0
          %11205 = vmatprep.subr.bf16.mxu0 %v7704
          %11206 = vmatpush1.bf16.msra.mxu0 %v7703
          %11207 = vmatprep.subr.bf16.mxu0 %v7712
          %11208 = vmatpush1.bf16.msra.mxu0 %v7711
          %11209 = vmatprep.subr.bf16.mxu0 %v7720
          %11210 = vmatpush1.bf16.msra.mxu0 %v7719
          %11211 = vmatprep.subr.bf16.mxu0 %v7728
          %11212 = vmatpush1.bf16.msra.mxu0 %v7727
          %11213 = vmatprep.subr.bf16.mxu0 %v7736
          %11214 = vmatpush1.bf16.msra.mxu0 %v7735
          %11215 = vmatprep.subr.bf16.mxu0 %v7744
          %11216 = vmatpush1.bf16.msra.mxu0 %v7743
          %11217 = vmatprep.subr.bf16.mxu0 %v7752
          %11218 = vmatpush1.bf16.msra.mxu0 %v7751
          %11219 = vmatprep.subr.bf16.mxu0 %v7760
          %11220 = vmatpush1.bf16.msra.mxu0 %v7759
          %11221 = vmatprep.subr.bf16.mxu0 %v7768
          %11222 = vmatpush1.bf16.msra.mxu0 %v7767
          %11223 = vmatprep.subr.bf16.mxu0 %v7776
          %11224 = vmatpush1.bf16.msra.mxu0 %v7775
          %11225 = vmatprep.subr.bf16.mxu0 %v7784
          %11226 = vmatpush1.bf16.msra.mxu0 %v7783
          %11227 = vmatprep.subr.bf16.mxu0 %v7792
          %11228 = vmatpush1.bf16.msra.mxu0 %v7791
          %11229 = vmatprep.subr.bf16.mxu0 %v7800
          %11230 = vmatpush1.bf16.msra.mxu0 %v7799
          %11231 = vmatprep.subr.bf16.mxu0 %v7808
          %11232 = vmatpush1.bf16.msra.mxu0 %v7807
          %11233 = vmatprep.subr.bf16.mxu0 %v7816
          %11234 = vmatpush1.bf16.msra.mxu0 %v7815
          %11235 = vmatprep.subr.bf16.mxu0 %v7824
          %11236 = vmatpush1.bf16.msra.mxu0 %v7823
          %11237 = vmatprep.mubr.bf16.mxu0 %v11159
          %11238 = vmatmul.mubr.bf16.gmra.mrb[0].mxu0 %v11158
          %v11239 = vpop.f32.mrb[0].mxu0
          %v11240 = vadd.f32 %v11199, %v11239
          %v11241 = vpop.f32.mrb[0].mxu0
          %v11242 = vadd.f32 %v11201, %v11241
          %v11243 = vpop.f32.mrb[0].mxu0
          %v11244 = vpop.f32.mrb[0].mxu0
          %11245 = vdwg.mxu0
          %11246 = vmatprep.subr.bf16.mxu0 %v7832
          %11247 = vmatpush1.bf16.msra.mxu0 %v7831
          %11248 = vmatprep.subr.bf16.mxu0 %v7840
          %11249 = vmatpush1.bf16.msra.mxu0 %v7839
          %11250 = vmatprep.subr.bf16.mxu0 %v7848
          %11251 = vmatpush1.bf16.msra.mxu0 %v7847
          %11252 = vmatprep.subr.bf16.mxu0 %v7856
          %11253 = vmatpush1.bf16.msra.mxu0 %v7855
          %11254 = vmatprep.subr.bf16.mxu0 %v7864
          %11255 = vmatpush1.bf16.msra.mxu0 %v7863
          %11256 = vmatprep.subr.bf16.mxu0 %v7872
          %11257 = vmatpush1.bf16.msra.mxu0 %v7871
          %11258 = vmatprep.subr.bf16.mxu0 %v7880
          %11259 = vmatpush1.bf16.msra.mxu0 %v7879
          %11260 = vmatprep.subr.bf16.mxu0 %v7888
          %11261 = vmatpush1.bf16.msra.mxu0 %v7887
          %11262 = vmatprep.subr.bf16.mxu0 %v7896
          %11263 = vmatpush1.bf16.msra.mxu0 %v7895
          %11264 = vmatprep.subr.bf16.mxu0 %v7904
          %11265 = vmatpush1.bf16.msra.mxu0 %v7903
          %11266 = vmatprep.subr.bf16.mxu0 %v7912
          %11267 = vmatpush1.bf16.msra.mxu0 %v7911
          %11268 = vmatprep.subr.bf16.mxu0 %v7920
          %11269 = vmatpush1.bf16.msra.mxu0 %v7919
          %11270 = vmatprep.subr.bf16.mxu0 %v7928
          %11271 = vmatpush1.bf16.msra.mxu0 %v7927
          %11272 = vmatprep.subr.bf16.mxu0 %v7936
          %11273 = vmatpush1.bf16.msra.mxu0 %v7935
          %11274 = vmatprep.subr.bf16.mxu0 %v7944
          %11275 = vmatpush1.bf16.msra.mxu0 %v7943
          %11276 = vmatprep.subr.bf16.mxu0 %v7952
          %11277 = vmatpush1.bf16.msra.mxu0 %v7951
          %11278 = vmatprep.mubr.bf16.mxu0 %v11161
          %11279 = vmatmul.mubr.bf16.gmra.mrb[0].mxu0 %v11160
          %v11280 = vpop.f32.mrb[0].mxu0
          %v11281 = vadd.f32 %v11240, %v11280
          %v11282 = vpop.f32.mrb[0].mxu0
          %v11283 = vadd.f32 %v11242, %v11282
          %v11284 = vpop.f32.mrb[0].mxu0
          %v11285 = vpop.f32.mrb[0].mxu0
          %11286 = vdwg.mxu0
          %11287 = vmatprep.subr.bf16.mxu0 %v7960
          %11288 = vmatpush1.bf16.msra.mxu0 %v7959
          %11289 = vmatprep.subr.bf16.mxu0 %v7968
          %11290 = vmatpush1.bf16.msra.mxu0 %v7967
          %11291 = vmatprep.subr.bf16.mxu0 %v7976
          %11292 = vmatpush1.bf16.msra.mxu0 %v7975
          %11293 = vmatprep.subr.bf16.mxu0 %v7984
          %11294 = vmatpush1.bf16.msra.mxu0 %v7983
          %11295 = vmatprep.subr.bf16.mxu0 %v7992
          %11296 = vmatpush1.bf16.msra.mxu0 %v7991
          %11297 = vmatprep.subr.bf16.mxu0 %v8000
          %11298 = vmatpush1.bf16.msra.mxu0 %v7999
          %11299 = vmatprep.subr.bf16.mxu0 %v8008
          %11300 = vmatpush1.bf16.msra.mxu0 %v8007
          %11301 = vmatprep.subr.bf16.mxu0 %v8016
          %11302 = vmatpush1.bf16.msra.mxu0 %v8015
          %11303 = vmatprep.subr.bf16.mxu0 %v8024
          %11304 = vmatpush1.bf16.msra.mxu0 %v8023
          %11305 = vmatprep.subr.bf16.mxu0 %v8032
          %11306 = vmatpush1.bf16.msra.mxu0 %v8031
          %11307 = vmatprep.subr.bf16.mxu0 %v8040
          %11308 = vmatpush1.bf16.msra.mxu0 %v8039
          %11309 = vmatprep.subr.bf16.mxu0 %v8048
          %11310 = vmatpush1.bf16.msra.mxu0 %v8047
          %11311 = vmatprep.subr.bf16.mxu0 %v8056
          %11312 = vmatpush1.bf16.msra.mxu0 %v8055
          %11313 = vmatprep.subr.bf16.mxu0 %v8064
          %11314 = vmatpush1.bf16.msra.mxu0 %v8063
          %11315 = vmatprep.subr.bf16.mxu0 %v8072
          %11316 = vmatpush1.bf16.msra.mxu0 %v8071
          %11317 = vmatprep.subr.bf16.mxu0 %v8080
          %11318 = vmatpush1.bf16.msra.mxu0 %v8079
          %11319 = vmatprep.mubr.bf16.mxu0 %v11163
          %11320 = vmatmul.mubr.bf16.gmra.mrb[0].mxu0 %v11162
          %v11321 = vpop.f32.mrb[0].mxu0
          %v11322 = vadd.f32 %v11281, %v11321
          %v11323 = vpop.f32.mrb[0].mxu0
          %v11324 = vadd.f32 %v11283, %v11323
          %v11325 = vpop.f32.mrb[0].mxu0
          %v11326 = vpop.f32.mrb[0].mxu0
          %11327 = vdwg.mxu0
          %11328 = vmatprep.subr.bf16.mxu0 %v7578
          %11329 = vmatpush1.bf16.msra.mxu0 %v7577
          %11330 = vmatprep.subr.bf16.mxu0 %v7586
          %11331 = vmatpush1.bf16.msra.mxu0 %v7585
          %11332 = vmatprep.subr.bf16.mxu0 %v7594
          %11333 = vmatpush1.bf16.msra.mxu0 %v7593
          %11334 = vmatprep.subr.bf16.mxu0 %v7602
          %11335 = vmatpush1.bf16.msra.mxu0 %v7601
          %11336 = vmatprep.subr.bf16.mxu0 %v7610
          %11337 = vmatpush1.bf16.msra.mxu0 %v7609
          %11338 = vmatprep.subr.bf16.mxu0 %v7618
          %11339 = vmatpush1.bf16.msra.mxu0 %v7617
          %11340 = vmatprep.subr.bf16.mxu0 %v7626
          %11341 = vmatpush1.bf16.msra.mxu0 %v7625
          %11342 = vmatprep.subr.bf16.mxu0 %v7634
          %11343 = vmatpush1.bf16.msra.mxu0 %v7633
          %11344 = vmatprep.subr.bf16.mxu0 %v7642
          %11345 = vmatpush1.bf16.msra.mxu0 %v7641
          %11346 = vmatprep.subr.bf16.mxu0 %v7650
          %11347 = vmatpush1.bf16.msra.mxu0 %v7649
          %11348 = vmatprep.subr.bf16.mxu0 %v7658
          %11349 = vmatpush1.bf16.msra.mxu0 %v7657
          %11350 = vmatprep.subr.bf16.mxu0 %v7666
          %11351 = vmatpush1.bf16.msra.mxu0 %v7665
          %11352 = vmatprep.subr.bf16.mxu0 %v7674
          %11353 = vmatpush1.bf16.msra.mxu0 %v7673
          %11354 = vmatprep.subr.bf16.mxu0 %v7682
          %11355 = vmatpush1.bf16.msra.mxu0 %v7681
          %11356 = vmatprep.subr.bf16.mxu0 %v7690
          %11357 = vmatpush1.bf16.msra.mxu0 %v7689
          %11358 = vmatprep.subr.bf16.mxu0 %v7698
          %11359 = vmatpush1.bf16.msra.mxu0 %v7697
          %11360 = vmatprep.mubr.bf16.mxu0 %v11157
          %11361 = vmatmul.mubr.bf16.gmra.mrb[0].mxu0 %v11156
          %v11362 = vpop.f32.mrb[0].mxu0
          %v11363 = vadd.f32 %v6010, %v11362
          %v11364 = vpop.f32.mrb[0].mxu0
          %v11365 = vadd.f32 %v6014, %v11364
          %v11366 = vpop.f32.mrb[0].mxu0
          %v11367 = vpop.f32.mrb[0].mxu0
          %11368 = vdwg.mxu0
          %11369 = vmatprep.subr.bf16.mxu0 %v7706
          %11370 = vmatpush1.bf16.msra.mxu0 %v7705
          %11371 = vmatprep.subr.bf16.mxu0 %v7714
          %11372 = vmatpush1.bf16.msra.mxu0 %v7713
          %11373 = vmatprep.subr.bf16.mxu0 %v7722
          %11374 = vmatpush1.bf16.msra.mxu0 %v7721
          %11375 = vmatprep.subr.bf16.mxu0 %v7730
          %11376 = vmatpush1.bf16.msra.mxu0 %v7729
          %11377 = vmatprep.subr.bf16.mxu0 %v7738
          %11378 = vmatpush1.bf16.msra.mxu0 %v7737
          %11379 = vmatprep.subr.bf16.mxu0 %v7746
          %11380 = vmatpush1.bf16.msra.mxu0 %v7745
          %11381 = vmatprep.subr.bf16.mxu0 %v7754
          %11382 = vmatpush1.bf16.msra.mxu0 %v7753
          %11383 = vmatprep.subr.bf16.mxu0 %v7762
          %11384 = vmatpush1.bf16.msra.mxu0 %v7761
          %11385 = vmatprep.subr.bf16.mxu0 %v7770
          %11386 = vmatpush1.bf16.msra.mxu0 %v7769
          %11387 = vmatprep.subr.bf16.mxu0 %v7778
          %11388 = vmatpush1.bf16.msra.mxu0 %v7777
          %11389 = vmatprep.subr.bf16.mxu0 %v7786
          %11390 = vmatpush1.bf16.msra.mxu0 %v7785
          %11391 = vmatprep.subr.bf16.mxu0 %v7794
          %11392 = vmatpush1.bf16.msra.mxu0 %v7793
          %11393 = vmatprep.subr.bf16.mxu0 %v7802
          %11394 = vmatpush1.bf16.msra.mxu0 %v7801
          %11395 = vmatprep.subr.bf16.mxu0 %v7810
          %11396 = vmatpush1.bf16.msra.mxu0 %v7809
          %11397 = vmatprep.subr.bf16.mxu0 %v7818
          %11398 = vmatpush1.bf16.msra.mxu0 %v7817
          %11399 = vmatprep.subr.bf16.mxu0 %v7826
          %11400 = vmatpush1.bf16.msra.mxu0 %v7825
          %11401 = vmatprep.mubr.bf16.mxu0 %v11159
          %11402 = vmatmul.mubr.bf16.gmra.mrb[0].mxu0 %v11158
          %v11403 = vpop.f32.mrb[0].mxu0
          %v11404 = vadd.f32 %v11363, %v11403
          %v11405 = vpop.f32.mrb[0].mxu0
          %v11406 = vadd.f32 %v11365, %v11405
          %v11407 = vpop.f32.mrb[0].mxu0
          %v11408 = vpop.f32.mrb[0].mxu0
          %11409 = vdwg.mxu0
          %11410 = vmatprep.subr.bf16.mxu0 %v7834
          %11411 = vmatpush1.bf16.msra.mxu0 %v7833
          %11412 = vmatprep.subr.bf16.mxu0 %v7842
          %11413 = vmatpush1.bf16.msra.mxu0 %v7841
          %11414 = vmatprep.subr.bf16.mxu0 %v7850
          %11415 = vmatpush1.bf16.msra.mxu0 %v7849
          %11416 = vmatprep.subr.bf16.mxu0 %v7858
          %11417 = vmatpush1.bf16.msra.mxu0 %v7857
          %11418 = vmatprep.subr.bf16.mxu0 %v7866
          %11419 = vmatpush1.bf16.msra.mxu0 %v7865
          %11420 = vmatprep.subr.bf16.mxu0 %v7874
          %11421 = vmatpush1.bf16.msra.mxu0 %v7873
          %11422 = vmatprep.subr.bf16.mxu0 %v7882
          %11423 = vmatpush1.bf16.msra.mxu0 %v7881
          %11424 = vmatprep.subr.bf16.mxu0 %v7890
          %11425 = vmatpush1.bf16.msra.mxu0 %v7889
          %11426 = vmatprep.subr.bf16.mxu0 %v7898
          %11427 = vmatpush1.bf16.msra.mxu0 %v7897
          %11428 = vmatprep.subr.bf16.mxu0 %v7906
          %11429 = vmatpush1.bf16.msra.mxu0 %v7905
          %11430 = vmatprep.subr.bf16.mxu0 %v7914
          %11431 = vmatpush1.bf16.msra.mxu0 %v7913
          %11432 = vmatprep.subr.bf16.mxu0 %v7922
          %11433 = vmatpush1.bf16.msra.mxu0 %v7921
          %11434 = vmatprep.subr.bf16.mxu0 %v7930
          %11435 = vmatpush1.bf16.msra.mxu0 %v7929
          %11436 = vmatprep.subr.bf16.mxu0 %v7938
          %11437 = vmatpush1.bf16.msra.mxu0 %v7937
          %11438 = vmatprep.subr.bf16.mxu0 %v7946
          %11439 = vmatpush1.bf16.msra.mxu0 %v7945
          %11440 = vmatprep.subr.bf16.mxu0 %v7954
          %11441 = vmatpush1.bf16.msra.mxu0 %v7953
          %11442 = vmatprep.mubr.bf16.mxu0 %v11161
          %11443 = vmatmul.mubr.bf16.gmra.mrb[0].mxu0 %v11160
          %v11444 = vpop.f32.mrb[0].mxu0
          %v11445 = vadd.f32 %v11404, %v11444
          %v11446 = vpop.f32.mrb[0].mxu0
          %v11447 = vadd.f32 %v11406, %v11446
          %v11448 = vpop.f32.mrb[0].mxu0
          %v11449 = vpop.f32.mrb[0].mxu0
          %11450 = vdwg.mxu0
          %11451 = vmatprep.subr.bf16.mxu0 %v7962
          %11452 = vmatpush1.bf16.msra.mxu0 %v7961
          %11453 = vmatprep.subr.bf16.mxu0 %v7970
          %11454 = vmatpush1.bf16.msra.mxu0 %v7969
          %11455 = vmatprep.subr.bf16.mxu0 %v7978
          %11456 = vmatpush1.bf16.msra.mxu0 %v7977
          %11457 = vmatprep.subr.bf16.mxu0 %v7986
          %11458 = vmatpush1.bf16.msra.mxu0 %v7985
          %11459 = vmatprep.subr.bf16.mxu0 %v7994
          %11460 = vmatpush1.bf16.msra.mxu0 %v7993
          %11461 = vmatprep.subr.bf16.mxu0 %v8002
          %11462 = vmatpush1.bf16.msra.mxu0 %v8001
          %11463 = vmatprep.subr.bf16.mxu0 %v8010
          %11464 = vmatpush1.bf16.msra.mxu0 %v8009
          %11465 = vmatprep.subr.bf16.mxu0 %v8018
          %11466 = vmatpush1.bf16.msra.mxu0 %v8017
          %11467 = vmatprep.subr.bf16.mxu0 %v8026
          %11468 = vmatpush1.bf16.msra.mxu0 %v8025
          %11469 = vmatprep.subr.bf16.mxu0 %v8034
          %11470 = vmatpush1.bf16.msra.mxu0 %v8033
          %11471 = vmatprep.subr.bf16.mxu0 %v8042
          %11472 = vmatpush1.bf16.msra.mxu0 %v8041
          %11473 = vmatprep.subr.bf16.mxu0 %v8050
          %11474 = vmatpush1.bf16.msra.mxu0 %v8049
          %11475 = vmatprep.subr.bf16.mxu0 %v8058
          %11476 = vmatpush1.bf16.msra.mxu0 %v8057
          %11477 = vmatprep.subr.bf16.mxu0 %v8066
          %11478 = vmatpush1.bf16.msra.mxu0 %v8065
          %11479 = vmatprep.subr.bf16.mxu0 %v8074
          %11480 = vmatpush1.bf16.msra.mxu0 %v8073
          %11481 = vmatprep.subr.bf16.mxu0 %v8082
          %11482 = vmatpush1.bf16.msra.mxu0 %v8081
          %11483 = vmatprep.mubr.bf16.mxu0 %v11163
          %11484 = vmatmul.mubr.bf16.gmra.mrb[0].mxu0 %v11162
          %v11485 = vpop.f32.mrb[0].mxu0
          %v11486 = vadd.f32 %v11445, %v11485
          %v11487 = vpop.f32.mrb[0].mxu0
          %v11488 = vadd.f32 %v11447, %v11487
          %v11489 = vpop.f32.mrb[0].mxu0
          %v11490 = vpop.f32.mrb[0].mxu0
          %11491 = vdwg.mxu0
          %11492 = vmatprep.subr.bf16.mxu0 %v7580
          %11493 = vmatpush1.bf16.msra.mxu0 %v7579
          %11494 = vmatprep.subr.bf16.mxu0 %v7588
          %11495 = vmatpush1.bf16.msra.mxu0 %v7587
          %11496 = vmatprep.subr.bf16.mxu0 %v7596
          %11497 = vmatpush1.bf16.msra.mxu0 %v7595
          %11498 = vmatprep.subr.bf16.mxu0 %v7604
          %11499 = vmatpush1.bf16.msra.mxu0 %v7603
          %11500 = vmatprep.subr.bf16.mxu0 %v7612
          %11501 = vmatpush1.bf16.msra.mxu0 %v7611
          %11502 = vmatprep.subr.bf16.mxu0 %v7620
          %11503 = vmatpush1.bf16.msra.mxu0 %v7619
          %11504 = vmatprep.subr.bf16.mxu0 %v7628
          %11505 = vmatpush1.bf16.msra.mxu0 %v7627
          %11506 = vmatprep.subr.bf16.mxu0 %v7636
          %11507 = vmatpush1.bf16.msra.mxu0 %v7635
          %11508 = vmatprep.subr.bf16.mxu0 %v7644
          %11509 = vmatpush1.bf16.msra.mxu0 %v7643
          %11510 = vmatprep.subr.bf16.mxu0 %v7652
          %11511 = vmatpush1.bf16.msra.mxu0 %v7651
          %11512 = vmatprep.subr.bf16.mxu0 %v7660
          %11513 = vmatpush1.bf16.msra.mxu0 %v7659
          %11514 = vmatprep.subr.bf16.mxu0 %v7668
          %11515 = vmatpush1.bf16.msra.mxu0 %v7667
          %11516 = vmatprep.subr.bf16.mxu0 %v7676
          %11517 = vmatpush1.bf16.msra.mxu0 %v7675
          %11518 = vmatprep.subr.bf16.mxu0 %v7684
          %11519 = vmatpush1.bf16.msra.mxu0 %v7683
          %11520 = vmatprep.subr.bf16.mxu0 %v7692
          %11521 = vmatpush1.bf16.msra.mxu0 %v7691
          %11522 = vmatprep.subr.bf16.mxu0 %v7700
          %11523 = vmatpush1.bf16.msra.mxu0 %v7699
          %11524 = vmatprep.mubr.bf16.mxu0 %v11157
          %11525 = vmatmul.mubr.bf16.gmra.mrb[0].mxu0 %v11156
          %v11526 = vpop.f32.mrb[0].mxu0
          %v11527 = vadd.f32 %v6018, %v11526
          %v11528 = vpop.f32.mrb[0].mxu0
          %v11529 = vadd.f32 %v6022, %v11528
          %v11530 = vpop.f32.mrb[0].mxu0
          %v11531 = vpop.f32.mrb[0].mxu0
          %11532 = vdwg.mxu0
          %11533 = vmatprep.subr.bf16.mxu0 %v7708
          %11534 = vmatpush1.bf16.msra.mxu0 %v7707
          %11535 = vmatprep.subr.bf16.mxu0 %v7716
          %11536 = vmatpush1.bf16.msra.mxu0 %v7715
          %11537 = vmatprep.subr.bf16.mxu0 %v7724
          %11538 = vmatpush1.bf16.msra.mxu0 %v7723
          %11539 = vmatprep.subr.bf16.mxu0 %v7732
          %11540 = vmatpush1.bf16.msra.mxu0 %v7731
          %11541 = vmatprep.subr.bf16.mxu0 %v7740
          %11542 = vmatpush1.bf16.msra.mxu0 %v7739
          %11543 = vmatprep.subr.bf16.mxu0 %v7748
          %11544 = vmatpush1.bf16.msra.mxu0 %v7747
          %11545 = vmatprep.subr.bf16.mxu0 %v7756
          %11546 = vmatpush1.bf16.msra.mxu0 %v7755
          %11547 = vmatprep.subr.bf16.mxu0 %v7764
          %11548 = vmatpush1.bf16.msra.mxu0 %v7763
          %11549 = vmatprep.subr.bf16.mxu0 %v7772
          %11550 = vmatpush1.bf16.msra.mxu0 %v7771
          %11551 = vmatprep.subr.bf16.mxu0 %v7780
          %11552 = vmatpush1.bf16.msra.mxu0 %v7779
          %11553 = vmatprep.subr.bf16.mxu0 %v7788
          %11554 = vmatpush1.bf16.msra.mxu0 %v7787
          %11555 = vmatprep.subr.bf16.mxu0 %v7796
          %11556 = vmatpush1.bf16.msra.mxu0 %v7795
          %11557 = vmatprep.subr.bf16.mxu0 %v7804
          %11558 = vmatpush1.bf16.msra.mxu0 %v7803
          %11559 = vmatprep.subr.bf16.mxu0 %v7812
          %11560 = vmatpush1.bf16.msra.mxu0 %v7811
          %11561 = vmatprep.subr.bf16.mxu0 %v7820
          %11562 = vmatpush1.bf16.msra.mxu0 %v7819
          %11563 = vmatprep.subr.bf16.mxu0 %v7828
          %11564 = vmatpush1.bf16.msra.mxu0 %v7827
          %11565 = vmatprep.mubr.bf16.mxu0 %v11159
          %11566 = vmatmul.mubr.bf16.gmra.mrb[0].mxu0 %v11158
          %v11567 = vpop.f32.mrb[0].mxu0
          %v11568 = vadd.f32 %v11527, %v11567
          %v11569 = vpop.f32.mrb[0].mxu0
          %v11570 = vadd.f32 %v11529, %v11569
          %v11571 = vpop.f32.mrb[0].mxu0
          %v11572 = vpop.f32.mrb[0].mxu0
          %11573 = vdwg.mxu0
          %11574 = vmatprep.subr.bf16.mxu0 %v7836
          %11575 = vmatpush1.bf16.msra.mxu0 %v7835
          %11576 = vmatprep.subr.bf16.mxu0 %v7844
          %11577 = vmatpush1.bf16.msra.mxu0 %v7843
          %11578 = vmatprep.subr.bf16.mxu0 %v7852
          %11579 = vmatpush1.bf16.msra.mxu0 %v7851
          %11580 = vmatprep.subr.bf16.mxu0 %v7860
          %11581 = vmatpush1.bf16.msra.mxu0 %v7859
          %11582 = vmatprep.subr.bf16.mxu0 %v7868
          %11583 = vmatpush1.bf16.msra.mxu0 %v7867
          %11584 = vmatprep.subr.bf16.mxu0 %v7876
          %11585 = vmatpush1.bf16.msra.mxu0 %v7875
          %11586 = vmatprep.subr.bf16.mxu0 %v7884
          %11587 = vmatpush1.bf16.msra.mxu0 %v7883
          %11588 = vmatprep.subr.bf16.mxu0 %v7892
          %11589 = vmatpush1.bf16.msra.mxu0 %v7891
          %11590 = vmatprep.subr.bf16.mxu0 %v7900
          %11591 = vmatpush1.bf16.msra.mxu0 %v7899
          %11592 = vmatprep.subr.bf16.mxu0 %v7908
          %11593 = vmatpush1.bf16.msra.mxu0 %v7907
          %11594 = vmatprep.subr.bf16.mxu0 %v7916
          %11595 = vmatpush1.bf16.msra.mxu0 %v7915
          %11596 = vmatprep.subr.bf16.mxu0 %v7924
          %11597 = vmatpush1.bf16.msra.mxu0 %v7923
          %11598 = vmatprep.subr.bf16.mxu0 %v7932
          %11599 = vmatpush1.bf16.msra.mxu0 %v7931
          %11600 = vmatprep.subr.bf16.mxu0 %v7940
          %11601 = vmatpush1.bf16.msra.mxu0 %v7939
          %11602 = vmatprep.subr.bf16.mxu0 %v7948
          %11603 = vmatpush1.bf16.msra.mxu0 %v7947
          %11604 = vmatprep.subr.bf16.mxu0 %v7956
          %11605 = vmatpush1.bf16.msra.mxu0 %v7955
          %11606 = vmatprep.mubr.bf16.mxu0 %v11161
          %11607 = vmatmul.mubr.bf16.gmra.mrb[0].mxu0 %v11160
          %v11608 = vpop.f32.mrb[0].mxu0
          %v11609 = vadd.f32 %v11568, %v11608
          %v11610 = vpop.f32.mrb[0].mxu0
          %v11611 = vadd.f32 %v11570, %v11610
          %v11612 = vpop.f32.mrb[0].mxu0
          %v11613 = vpop.f32.mrb[0].mxu0
          %11614 = vdwg.mxu0
          %11615 = vmatprep.subr.bf16.mxu0 %v7964
          %11616 = vmatpush1.bf16.msra.mxu0 %v7963
          %11617 = vmatprep.subr.bf16.mxu0 %v7972
          %11618 = vmatpush1.bf16.msra.mxu0 %v7971
          %11619 = vmatprep.subr.bf16.mxu0 %v7980
          %11620 = vmatpush1.bf16.msra.mxu0 %v7979
          %11621 = vmatprep.subr.bf16.mxu0 %v7988
          %11622 = vmatpush1.bf16.msra.mxu0 %v7987
          %11623 = vmatprep.subr.bf16.mxu0 %v7996
          %11624 = vmatpush1.bf16.msra.mxu0 %v7995
          %11625 = vmatprep.subr.bf16.mxu0 %v8004
          %11626 = vmatpush1.bf16.msra.mxu0 %v8003
          %11627 = vmatprep.subr.bf16.mxu0 %v8012
          %11628 = vmatpush1.bf16.msra.mxu0 %v8011
          %11629 = vmatprep.subr.bf16.mxu0 %v8020
          %11630 = vmatpush1.bf16.msra.mxu0 %v8019
          %11631 = vmatprep.subr.bf16.mxu0 %v8028
          %11632 = vmatpush1.bf16.msra.mxu0 %v8027
          %11633 = vmatprep.subr.bf16.mxu0 %v8036
          %11634 = vmatpush1.bf16.msra.mxu0 %v8035
          %11635 = vmatprep.subr.bf16.mxu0 %v8044
          %11636 = vmatpush1.bf16.msra.mxu0 %v8043
          %11637 = vmatprep.subr.bf16.mxu0 %v8052
          %11638 = vmatpush1.bf16.msra.mxu0 %v8051
          %11639 = vmatprep.subr.bf16.mxu0 %v8060
          %11640 = vmatpush1.bf16.msra.mxu0 %v8059
          %11641 = vmatprep.subr.bf16.mxu0 %v8068
          %11642 = vmatpush1.bf16.msra.mxu0 %v8067
          %11643 = vmatprep.subr.bf16.mxu0 %v8076
          %11644 = vmatpush1.bf16.msra.mxu0 %v8075
          %11645 = vmatprep.subr.bf16.mxu0 %v8084
          %11646 = vmatpush1.bf16.msra.mxu0 %v8083
          %11647 = vmatprep.mubr.bf16.mxu0 %v11163
          %11648 = vmatmul.mubr.bf16.gmra.mrb[0].mxu0 %v11162
          %v11649 = vpop.f32.mrb[0].mxu0
          %v11650 = vadd.f32 %v11609, %v11649
          %v11651 = vpop.f32.mrb[0].mxu0
          %v11652 = vadd.f32 %v11611, %v11651
          %v11653 = vpop.f32.mrb[0].mxu0
          %v11654 = vpop.f32.mrb[0].mxu0
          %11655 = vdwg.mxu0
          %11656 = vmatprep.subr.bf16.mxu0 %v7582
          %11657 = vmatpush1.bf16.msra.mxu0 %v7581
          %11658 = vmatprep.subr.bf16.mxu0 %v7590
          %11659 = vmatpush1.bf16.msra.mxu0 %v7589
          %11660 = vmatprep.subr.bf16.mxu0 %v7598
          %11661 = vmatpush1.bf16.msra.mxu0 %v7597
          %11662 = vmatprep.subr.bf16.mxu0 %v7606
          %11663 = vmatpush1.bf16.msra.mxu0 %v7605
          %11664 = vmatprep.subr.bf16.mxu0 %v7614
          %11665 = vmatpush1.bf16.msra.mxu0 %v7613
          %11666 = vmatprep.subr.bf16.mxu0 %v7622
          %11667 = vmatpush1.bf16.msra.mxu0 %v7621
          %11668 = vmatprep.subr.bf16.mxu0 %v7630
          %11669 = vmatpush1.bf16.msra.mxu0 %v7629
          %11670 = vmatprep.subr.bf16.mxu0 %v7638
          %11671 = vmatpush1.bf16.msra.mxu0 %v7637
          %11672 = vmatprep.subr.bf16.mxu0 %v7646
          %11673 = vmatpush1.bf16.msra.mxu0 %v7645
          %11674 = vmatprep.subr.bf16.mxu0 %v7654
          %11675 = vmatpush1.bf16.msra.mxu0 %v7653
          %11676 = vmatprep.subr.bf16.mxu0 %v7662
          %11677 = vmatpush1.bf16.msra.mxu0 %v7661
          %11678 = vmatprep.subr.bf16.mxu0 %v7670
          %11679 = vmatpush1.bf16.msra.mxu0 %v7669
          %11680 = vmatprep.subr.bf16.mxu0 %v7678
          %11681 = vmatpush1.bf16.msra.mxu0 %v7677
          %11682 = vmatprep.subr.bf16.mxu0 %v7686
          %11683 = vmatpush1.bf16.msra.mxu0 %v7685
          %11684 = vmatprep.subr.bf16.mxu0 %v7694
          %11685 = vmatpush1.bf16.msra.mxu0 %v7693
          %11686 = vmatprep.subr.bf16.mxu0 %v7702
          %11687 = vmatpush1.bf16.msra.mxu0 %v7701
          %11688 = vmatprep.mubr.bf16.mxu0 %v11157
          %11689 = vmatmul.mubr.bf16.gmra.mrb[0].mxu0 %v11156
          %v11690 = vpop.f32.mrb[0].mxu0
          %v11691 = vadd.f32 %v6026, %v11690
          %v11692 = vpop.f32.mrb[0].mxu0
          %v11693 = vadd.f32 %v6030, %v11692
          %v11694 = vpop.f32.mrb[0].mxu0
          %v11695 = vpop.f32.mrb[0].mxu0
          %11696 = vdwg.mxu0
          %11697 = vmatprep.subr.bf16.mxu0 %v7710
          %11698 = vmatpush1.bf16.msra.mxu0 %v7709
          %11699 = vmatprep.subr.bf16.mxu0 %v7718
          %11700 = vmatpush1.bf16.msra.mxu0 %v7717
          %11701 = vmatprep.subr.bf16.mxu0 %v7726
          %11702 = vmatpush1.bf16.msra.mxu0 %v7725
          %11703 = vmatprep.subr.bf16.mxu0 %v7734
          %11704 = vmatpush1.bf16.msra.mxu0 %v7733
          %11705 = vmatprep.subr.bf16.mxu0 %v7742
          %11706 = vmatpush1.bf16.msra.mxu0 %v7741
          %11707 = vmatprep.subr.bf16.mxu0 %v7750
          %11708 = vmatpush1.bf16.msra.mxu0 %v7749
          %11709 = vmatprep.subr.bf16.mxu0 %v7758
          %11710 = vmatpush1.bf16.msra.mxu0 %v7757
          %11711 = vmatprep.subr.bf16.mxu0 %v7766
          %11712 = vmatpush1.bf16.msra.mxu0 %v7765
          %11713 = vmatprep.subr.bf16.mxu0 %v7774
          %11714 = vmatpush1.bf16.msra.mxu0 %v7773
          %11715 = vmatprep.subr.bf16.mxu0 %v7782
          %11716 = vmatpush1.bf16.msra.mxu0 %v7781
          %11717 = vmatprep.subr.bf16.mxu0 %v7790
          %11718 = vmatpush1.bf16.msra.mxu0 %v7789
          %11719 = vmatprep.subr.bf16.mxu0 %v7798
          %11720 = vmatpush1.bf16.msra.mxu0 %v7797
          %11721 = vmatprep.subr.bf16.mxu0 %v7806
          %11722 = vmatpush1.bf16.msra.mxu0 %v7805
          %11723 = vmatprep.subr.bf16.mxu0 %v7814
          %11724 = vmatpush1.bf16.msra.mxu0 %v7813
          %11725 = vmatprep.subr.bf16.mxu0 %v7822
          %11726 = vmatpush1.bf16.msra.mxu0 %v7821
          %11727 = vmatprep.subr.bf16.mxu0 %v7830
          %11728 = vmatpush1.bf16.msra.mxu0 %v7829
          %11729 = vmatprep.mubr.bf16.mxu0 %v11159
          %11730 = vmatmul.mubr.bf16.gmra.mrb[0].mxu0 %v11158
          %v11731 = vpop.f32.mrb[0].mxu0
          %v11732 = vadd.f32 %v11691, %v11731
          %v11733 = vpop.f32.mrb[0].mxu0
          %v11734 = vadd.f32 %v11693, %v11733
          %v11735 = vpop.f32.mrb[0].mxu0
          %v11736 = vpop.f32.mrb[0].mxu0
          %11737 = vdwg.mxu0
          %11738 = vmatprep.subr.bf16.mxu0 %v7838
          %11739 = vmatpush1.bf16.msra.mxu0 %v7837
          %11740 = vmatprep.subr.bf16.mxu0 %v7846
          %11741 = vmatpush1.bf16.msra.mxu0 %v7845
          %11742 = vmatprep.subr.bf16.mxu0 %v7854
          %11743 = vmatpush1.bf16.msra.mxu0 %v7853
          %11744 = vmatprep.subr.bf16.mxu0 %v7862
          %11745 = vmatpush1.bf16.msra.mxu0 %v7861
          %11746 = vmatprep.subr.bf16.mxu0 %v7870
          %11747 = vmatpush1.bf16.msra.mxu0 %v7869
          %11748 = vmatprep.subr.bf16.mxu0 %v7878
          %11749 = vmatpush1.bf16.msra.mxu0 %v7877
          %11750 = vmatprep.subr.bf16.mxu0 %v7886
          %11751 = vmatpush1.bf16.msra.mxu0 %v7885
          %11752 = vmatprep.subr.bf16.mxu0 %v7894
          %11753 = vmatpush1.bf16.msra.mxu0 %v7893
          %11754 = vmatprep.subr.bf16.mxu0 %v7902
          %11755 = vmatpush1.bf16.msra.mxu0 %v7901
          %11756 = vmatprep.subr.bf16.mxu0 %v7910
          %11757 = vmatpush1.bf16.msra.mxu0 %v7909
          %11758 = vmatprep.subr.bf16.mxu0 %v7918
          %11759 = vmatpush1.bf16.msra.mxu0 %v7917
          %11760 = vmatprep.subr.bf16.mxu0 %v7926
          %11761 = vmatpush1.bf16.msra.mxu0 %v7925
          %11762 = vmatprep.subr.bf16.mxu0 %v7934
          %11763 = vmatpush1.bf16.msra.mxu0 %v7933
          %11764 = vmatprep.subr.bf16.mxu0 %v7942
          %11765 = vmatpush1.bf16.msra.mxu0 %v7941
          %11766 = vmatprep.subr.bf16.mxu0 %v7950
          %11767 = vmatpush1.bf16.msra.mxu0 %v7949
          %11768 = vmatprep.subr.bf16.mxu0 %v7958
          %11769 = vmatpush1.bf16.msra.mxu0 %v7957
          %11770 = vmatprep.mubr.bf16.mxu0 %v11161
          %11771 = vmatmul.mubr.bf16.gmra.mrb[0].mxu0 %v11160
          %v11772 = vpop.f32.mrb[0].mxu0
          %v11773 = vadd.f32 %v11732, %v11772
          %v11774 = vpop.f32.mrb[0].mxu0
          %v11775 = vadd.f32 %v11734, %v11774
          %v11776 = vpop.f32.mrb[0].mxu0
          %v11777 = vpop.f32.mrb[0].mxu0
          %11778 = vdwg.mxu0
          %11779 = vmatprep.subr.bf16.mxu0 %v7966
          %11780 = vmatpush1.bf16.msra.mxu0 %v7965
          %11781 = vmatprep.subr.bf16.mxu0 %v7974
          %11782 = vmatpush1.bf16.msra.mxu0 %v7973
          %11783 = vmatprep.subr.bf16.mxu0 %v7982
          %11784 = vmatpush1.bf16.msra.mxu0 %v7981
          %11785 = vmatprep.subr.bf16.mxu0 %v7990
          %11786 = vmatpush1.bf16.msra.mxu0 %v7989
          %11787 = vmatprep.subr.bf16.mxu0 %v7998
          %11788 = vmatpush1.bf16.msra.mxu0 %v7997
          %11789 = vmatprep.subr.bf16.mxu0 %v8006
          %11790 = vmatpush1.bf16.msra.mxu0 %v8005
          %11791 = vmatprep.subr.bf16.mxu0 %v8014
          %11792 = vmatpush1.bf16.msra.mxu0 %v8013
          %11793 = vmatprep.subr.bf16.mxu0 %v8022
          %11794 = vmatpush1.bf16.msra.mxu0 %v8021
          %11795 = vmatprep.subr.bf16.mxu0 %v8030
          %11796 = vmatpush1.bf16.msra.mxu0 %v8029
          %11797 = vmatprep.subr.bf16.mxu0 %v8038
          %11798 = vmatpush1.bf16.msra.mxu0 %v8037
          %11799 = vmatprep.subr.bf16.mxu0 %v8046
          %11800 = vmatpush1.bf16.msra.mxu0 %v8045
          %11801 = vmatprep.subr.bf16.mxu0 %v8054
          %11802 = vmatpush1.bf16.msra.mxu0 %v8053
          %11803 = vmatprep.subr.bf16.mxu0 %v8062
          %11804 = vmatpush1.bf16.msra.mxu0 %v8061
          %11805 = vmatprep.subr.bf16.mxu0 %v8070
          %11806 = vmatpush1.bf16.msra.mxu0 %v8069
          %11807 = vmatprep.subr.bf16.mxu0 %v8078
          %11808 = vmatpush1.bf16.msra.mxu0 %v8077
          %11809 = vmatprep.subr.bf16.mxu0 %v8086
          %11810 = vmatpush1.bf16.msra.mxu0 %v8085
          %11811 = vmatprep.mubr.bf16.mxu0 %v11163
          %11812 = vmatmul.mubr.bf16.gmra.mrb[0].mxu0 %v11162
          %v11813 = vpop.f32.mrb[0].mxu0
          %v11814 = vadd.f32 %v11773, %v11813
          %v11815 = vpop.f32.mrb[0].mxu0
          %v11816 = vadd.f32 %v11775, %v11815
          %v11817 = vpop.f32.mrb[0].mxu0
          %v11818 = vpop.f32.mrb[0].mxu0
          %11819 = vdwg.mxu0
          %v11820 = vmax.f32 %v11322, 0.0
          %v11821 = vmax.f32 %v11324, 0.0
          %v11822 = vmax.f32 %v11486, 0.0
          %v11823 = vmax.f32 %v11488, 0.0
          %v11824 = vmax.f32 %v11650, 0.0
          %v11825 = vmax.f32 %v11652, 0.0
          %v11826 = vmax.f32 %v11814, 0.0
          %v11827 = vmax.f32 %v11816, 0.0
          %v11828 = vpack.c.bf16 %v11820, %v11820
          %v11829 = vpack.c.bf16 %v11821, %v11821
          %v11830 = vpack.c.bf16 %v11822, %v11822
          %v11831 = vpack.c.bf16 %v11823, %v11823
          %v11832 = vpack.c.bf16 %v11824, %v11824
          %v11833 = vpack.c.bf16 %v11825, %v11825
          %v11834 = vpack.c.bf16 %v11826, %v11826
          %v11835 = vpack.c.bf16 %v11827, %v11827
          %11836 = vmatprep.subr.bf16.mxu0 0
          %11837 = vmatpush1.bf16.msra.mxu0 %v9655
          %11838 = vmatprep.subr.bf16.mxu0 0
          %11839 = vmatpush1.bf16.msra.mxu0 %v9656
          %11840 = vmatprep.subr.bf16.mxu0 0
          %11841 = vmatpush1.bf16.msra.mxu0 %v9657
          %11842 = vmatprep.subr.bf16.mxu0 0
          %11843 = vmatpush1.bf16.msra.mxu0 %v9658
          %11844 = vmatprep.subr.bf16.mxu0 0
          %11845 = vmatpush1.bf16.msra.mxu0 %v9659
          %11846 = vmatprep.subr.bf16.mxu0 0
          %11847 = vmatpush1.bf16.msra.mxu0 %v9660
          %11848 = vmatprep.subr.bf16.mxu0 0
          %11849 = vmatpush1.bf16.msra.mxu0 %v9661
          %11850 = vmatprep.subr.bf16.mxu0 0
          %11851 = vmatpush1.bf16.msra.mxu0 %v9662
          %11852 = vmatprep.subr.bf16.mxu0 0
          %11853 = vmatpush1.bf16.msra.mxu0 %v9663
          %11854 = vmatprep.subr.bf16.mxu0 0
          %11855 = vmatpush1.bf16.msra.mxu0 %v9664
          %11856 = vmatprep.subr.bf16.mxu0 0
          %11857 = vmatpush1.bf16.msra.mxu0 %v9665
          %11858 = vmatprep.subr.bf16.mxu0 0
          %11859 = vmatpush1.bf16.msra.mxu0 %v9666
          %11860 = vmatprep.subr.bf16.mxu0 0
          %11861 = vmatpush1.bf16.msra.mxu0 %v9667
          %11862 = vmatprep.subr.bf16.mxu0 0
          %11863 = vmatpush1.bf16.msra.mxu0 %v9668
          %11864 = vmatprep.subr.bf16.mxu0 0
          %11865 = vmatpush1.bf16.msra.mxu0 %v9669
          %11866 = vmatprep.subr.bf16.mxu0 0
          %11867 = vmatpush1.bf16.msra.mxu0 %v9670
          %11868 = vmatprep.mubr.bf16.mxu0 %v11829
          %11869 = vmatmul.mubr.bf16.gmra.mrb[0].mxu0 %v11828
          %v11870 = vpop.f32.mrb[0].mxu0
          %v11871 = vadd.f32 0.0, %v11870
          %v11872 = vpop.f32.mrb[0].mxu0
          %v11873 = vpop.f32.mrb[0].mxu0
          %v11874 = vpop.f32.mrb[0].mxu0
          %11875 = vdwg.mxu0
          %11876 = vmatprep.subr.bf16.mxu0 0
          %11877 = vmatpush1.bf16.msra.mxu0 %v9671
          %11878 = vmatprep.subr.bf16.mxu0 0
          %11879 = vmatpush1.bf16.msra.mxu0 %v9672
          %11880 = vmatprep.subr.bf16.mxu0 0
          %11881 = vmatpush1.bf16.msra.mxu0 %v9673
          %11882 = vmatprep.subr.bf16.mxu0 0
          %11883 = vmatpush1.bf16.msra.mxu0 %v9674
          %11884 = vmatprep.subr.bf16.mxu0 0
          %11885 = vmatpush1.bf16.msra.mxu0 %v9675
          %11886 = vmatprep.subr.bf16.mxu0 0
          %11887 = vmatpush1.bf16.msra.mxu0 %v9676
          %11888 = vmatprep.subr.bf16.mxu0 0
          %11889 = vmatpush1.bf16.msra.mxu0 %v9677
          %11890 = vmatprep.subr.bf16.mxu0 0
          %11891 = vmatpush1.bf16.msra.mxu0 %v9678
          %11892 = vmatprep.subr.bf16.mxu0 0
          %11893 = vmatpush1.bf16.msra.mxu0 %v9679
          %11894 = vmatprep.subr.bf16.mxu0 0
          %11895 = vmatpush1.bf16.msra.mxu0 %v9680
          %11896 = vmatprep.subr.bf16.mxu0 0
          %11897 = vmatpush1.bf16.msra.mxu0 %v9681
          %11898 = vmatprep.subr.bf16.mxu0 0
          %11899 = vmatpush1.bf16.msra.mxu0 %v9682
          %11900 = vmatprep.subr.bf16.mxu0 0
          %11901 = vmatpush1.bf16.msra.mxu0 %v9683
          %11902 = vmatprep.subr.bf16.mxu0 0
          %11903 = vmatpush1.bf16.msra.mxu0 %v9684
          %11904 = vmatprep.subr.bf16.mxu0 0
          %11905 = vmatpush1.bf16.msra.mxu0 %v9685
          %11906 = vmatprep.subr.bf16.mxu0 0
          %11907 = vmatpush1.bf16.msra.mxu0 %v9686
          %11908 = vmatprep.mubr.bf16.mxu0 %v11831
          %11909 = vmatmul.mubr.bf16.gmra.mrb[0].mxu0 %v11830
          %v11910 = vpop.f32.mrb[0].mxu0
          %v11911 = vadd.f32 %v11871, %v11910
          %v11912 = vpop.f32.mrb[0].mxu0
          %v11913 = vpop.f32.mrb[0].mxu0
          %v11914 = vpop.f32.mrb[0].mxu0
          %11915 = vdwg.mxu0
          %11916 = vmatprep.subr.bf16.mxu0 0
          %11917 = vmatpush1.bf16.msra.mxu0 %v9687
          %11918 = vmatprep.subr.bf16.mxu0 0
          %11919 = vmatpush1.bf16.msra.mxu0 %v9688
          %11920 = vmatprep.subr.bf16.mxu0 0
          %11921 = vmatpush1.bf16.msra.mxu0 %v9689
          %11922 = vmatprep.subr.bf16.mxu0 0
          %11923 = vmatpush1.bf16.msra.mxu0 %v9690
          %11924 = vmatprep.subr.bf16.mxu0 0
          %11925 = vmatpush1.bf16.msra.mxu0 %v9691
          %11926 = vmatprep.subr.bf16.mxu0 0
          %11927 = vmatpush1.bf16.msra.mxu0 %v9692
          %11928 = vmatprep.subr.bf16.mxu0 0
          %11929 = vmatpush1.bf16.msra.mxu0 %v9693
          %11930 = vmatprep.subr.bf16.mxu0 0
          %11931 = vmatpush1.bf16.msra.mxu0 %v9694
          %11932 = vmatprep.subr.bf16.mxu0 0
          %11933 = vmatpush1.bf16.msra.mxu0 %v9695
          %11934 = vmatprep.subr.bf16.mxu0 0
          %11935 = vmatpush1.bf16.msra.mxu0 %v9696
          %11936 = vmatprep.subr.bf16.mxu0 0
          %11937 = vmatpush1.bf16.msra.mxu0 %v9697
          %11938 = vmatprep.subr.bf16.mxu0 0
          %11939 = vmatpush1.bf16.msra.mxu0 %v9698
          %11940 = vmatprep.subr.bf16.mxu0 0
          %11941 = vmatpush1.bf16.msra.mxu0 %v9699
          %11942 = vmatprep.subr.bf16.mxu0 0
          %11943 = vmatpush1.bf16.msra.mxu0 %v9700
          %11944 = vmatprep.subr.bf16.mxu0 0
          %11945 = vmatpush1.bf16.msra.mxu0 %v9701
          %11946 = vmatprep.subr.bf16.mxu0 0
          %11947 = vmatpush1.bf16.msra.mxu0 %v9702
          %11948 = vmatprep.mubr.bf16.mxu0 %v11833
          %11949 = vmatmul.mubr.bf16.gmra.mrb[0].mxu0 %v11832
          %v11950 = vpop.f32.mrb[0].mxu0
          %v11951 = vadd.f32 %v11911, %v11950
          %v11952 = vpop.f32.mrb[0].mxu0
          %v11953 = vpop.f32.mrb[0].mxu0
          %v11954 = vpop.f32.mrb[0].mxu0
          %11955 = vdwg.mxu0
          %11956 = vmatprep.subr.bf16.mxu0 0
          %11957 = vmatpush1.bf16.msra.mxu0 %v9703
          %11958 = vmatprep.subr.bf16.mxu0 0
          %11959 = vmatpush1.bf16.msra.mxu0 %v9704
          %11960 = vmatprep.subr.bf16.mxu0 0
          %11961 = vmatpush1.bf16.msra.mxu0 %v9705
          %11962 = vmatprep.subr.bf16.mxu0 0
          %11963 = vmatpush1.bf16.msra.mxu0 %v9706
          %11964 = vmatprep.subr.bf16.mxu0 0
          %11965 = vmatpush1.bf16.msra.mxu0 %v9707
          %11966 = vmatprep.subr.bf16.mxu0 0
          %11967 = vmatpush1.bf16.msra.mxu0 %v9708
          %11968 = vmatprep.subr.bf16.mxu0 0
          %11969 = vmatpush1.bf16.msra.mxu0 %v9709
          %11970 = vmatprep.subr.bf16.mxu0 0
          %11971 = vmatpush1.bf16.msra.mxu0 %v9710
          %11972 = vmatprep.subr.bf16.mxu0 0
          %11973 = vmatpush1.bf16.msra.mxu0 %v9711
          %11974 = vmatprep.subr.bf16.mxu0 0
          %11975 = vmatpush1.bf16.msra.mxu0 %v9712
          %11976 = vmatprep.subr.bf16.mxu0 0
          %11977 = vmatpush1.bf16.msra.mxu0 %v9713
          %11978 = vmatprep.subr.bf16.mxu0 0
          %11979 = vmatpush1.bf16.msra.mxu0 %v9714
          %11980 = vmatprep.subr.bf16.mxu0 0
          %11981 = vmatpush1.bf16.msra.mxu0 %v9715
          %11982 = vmatprep.subr.bf16.mxu0 0
          %11983 = vmatpush1.bf16.msra.mxu0 %v9716
          %11984 = vmatprep.subr.bf16.mxu0 0
          %11985 = vmatpush1.bf16.msra.mxu0 %v9717
          %11986 = vmatprep.subr.bf16.mxu0 0
          %11987 = vmatpush1.bf16.msra.mxu0 %v9718
          %11988 = vmatprep.mubr.bf16.mxu0 %v11835
          %11989 = vmatmul.mubr.bf16.gmra.mrb[0].mxu0 %v11834
          %v11990 = vpop.f32.mrb[0].mxu0
          %v11991 = vadd.f32 %v11951, %v11990
          %v11992 = vpop.f32.mrb[0].mxu0
          %v11993 = vpop.f32.mrb[0].mxu0
          %v11994 = vpop.f32.mrb[0].mxu0
          %11995 = vdwg.mxu0
          %v11996 = vadd.f32 %v10974, %v11991
          %v11997 = vadd.f32 %v11996, %v9949
          %11998 = vst [vmem:[%s616] sm:$0xff] %v11997
        $region120: #{hand_hmr_forward.1} parent=67 // pred_fallthru
          _
        %p11999 = scmp.lt.s32.totalorder %s35, 0
        %s12000 = scalar_select %p11999, %s35, 0
        %s12001 = smul.addr %s12000, 8
        %s12002 = scalar_lea.vmem %s12, %s12001
        // Predicated region
        $region121: #{hand_hmr_forward.1} parent=67 // pred_check
          %p12003 = pneg %p325
        $region122: #{hand_hmr_forward.1} parent=67 // pred_check_branch
          %12005 = sbr.rel (%p12003) target = $region124
        $region123: #{hand_hmr_forward.1} parent=67 // pred_region
          _
        $region124: #{hand_hmr_forward.1} parent=67 // pred_fallthru
          _
        // Predicated region
        $region125: #{hand_hmr_forward.1} parent=67 // pred_check
          %p12006 = pneg %p325
        $region126: #{hand_hmr_forward.1} parent=67 // pred_check_branch
          %12008 = sbr.rel (%p12006) target = $region128
        $region127: #{hand_hmr_forward.1} parent=67 // pred_region
          %p12009 = scmp.lt.s32.totalorder %s35, 0
          %s12010 = scalar_select %p12009, %s35, 0
          %s12011 = smul.addr %s12010, 8
          %s12012 = scalar_lea.vmem %s12, %s12011
        $region128: #{hand_hmr_forward.1} parent=67 // pred_fallthru
          _
      $region68: #{hand_hmr_forward.1} parent=5 // pred_fallthru
        _
      %p12013 = scmp.le.s32.totalorder 2, %s26
      // Predicated region
      $region129: #{hand_hmr_forward.1} parent=5 // pred_check
        %p12014 = pneg %p12013
      $region130: #{hand_hmr_forward.1} parent=5 // pred_check_branch
        %12016 = sbr.rel (%p12014) target = $region132
      $region131: #{hand_hmr_forward.1} parent=5 // pred_region
        %s12017 = ssub.s32 %s26, 2
      $region132: #{hand_hmr_forward.1} parent=5 // pred_fallthru
        _
    $region6: #{hand_hmr_forward.1} parent=1 // loop_footer
      %s30 = sadd.s32 1, %s26
    $region7: #{hand_hmr_forward.1} parent=1 // loop_footer_branch
      %25 = sbr.rel target = $region3
    $region8: #{hand_hmr_forward.1} parent=1 // loop_exit
      _
    %12018 = vsyncpa [#allocation4], 1
    %s12019 = scalar_lea.sflag [#allocation4], 1
    %12020 = vsyncpa %s12019, 1
    %12021 = vsyncpa [#allocation6], 1
    %12022 = vsyncpa [#allocation9], 1
    %12023 = vsyncpa [#allocation12], 1
    %12024 = vsyncpa [#allocation15], 1
    %12025 = vsyncpa [#allocation18], 1

</llo_original>
